<compile_context>
chip_gen: v5e
topology: v5e:2x2
jax: 0.10.0
libtpu: 0.0.40
codegen_flags: <defaults>
</compile_context>

<pallas_src>
import functools
import math

import jax
import jax.numpy as jnp
from jax import lax
from jax.experimental import pallas as pl
from jax.experimental.pallas import tpu as pltpu

_MARGIN = 16   # sublane margin around the shift scratch (>= max tap shift = w+1)
_CMAX = 128    # channel padding of the packed weight slabs


# --------------------------- in-kernel building blocks ----------------------

def _pw(x, idx, pww_ref, pwb_ref, *, cout, relu, residual=None):
    """1x1 conv + folded BN (+ residual) (+ ReLU) as one MXU matmul.
    x: (M, cin) f32 value; weights live in the packed (N, 128, 128) bf16 slab."""
    cin = x.shape[1]
    wm = pww_ref[idx, 0:cin, 0:cout]                       # (cin, cout) bf16
    acc = jnp.dot(x.astype(jnp.bfloat16), wm,
                  preferred_element_type=jnp.float32)
    acc = acc + pwb_ref[idx:idx + 1, 0:cout]
    if residual is not None:
        acc = acc + residual
    if relu:
        acc = jnp.maximum(acc, 0.0)
    return acc


def _downsample2(y, *, h, w):
    """Keep even rows / even cols of a row-major flattened (bs*h*w, c) slab via
    an exact one-hot selection matmul (avoids strided gathers / reshapes)."""
    hw = h * w
    bs = y.shape[0] // hw
    ho, wo = h // 2, w // 2
    howo = ho * wo
    mo, mi = bs * howo, bs * hw
    j = lax.broadcasted_iota(jnp.int32, (mo, mi), 0)
    i = lax.broadcasted_iota(jnp.int32, (mo, mi), 1)
    jb = j >> int(math.log2(howo))
    jr = j & (howo - 1)
    ro = jr >> int(math.log2(wo))
    co = jr & (wo - 1)
    tgt = jb * hw + (2 * w) * ro + 2 * co
    sel = (i == tgt).astype(jnp.float32)
    return jnp.dot(sel, y, preferred_element_type=jnp.float32)


def _dw3x3(x, idx, dww_ref, dwb_ref, scr_ref, *, h, w, stride):
    """3x3 depthwise conv (pad 1) + folded BN + ReLU, fully vectorized.

    x: (M, c) f32 value, M = bs*h*w row-major over (image, row, col).
    The activation is stored ONCE into the shift scratch; each of the 9 taps is
    read back as a shifted (M, c) slab and out-of-image taps are masked via
    iota-derived row/col validity.  stride==2 keeps even rows/cols with a
    one-hot selection matmul.  Columns beyond c in the scratch are never read.
    """
    m, c = x.shape
    hw = h * w
    g = _MARGIN
    scr_ref[g:g + m, 0:c] = x                              # one store
    w9 = dww_ref[idx, :, 0:c]                              # (9, c), loaded once
    bias = dwb_ref[idx:idx + 1, 0:c]                       # (1, c)

    pos = lax.broadcasted_iota(jnp.int32, (m, 1), 0)
    within = pos & (hw - 1)                                # position inside image
    row = within >> int(math.log2(w))
    col = within & (w - 1)

    acc = jnp.zeros((m, c), jnp.float32)
    for dy in (-1, 0, 1):
        rv = (row + dy >= 0) & (row + dy <= h - 1)
        for dx in (-1, 0, 1):
            valid = rv & ((col + dx >= 0) & (col + dx <= w - 1))
            s = dy * w + dx
            tap = scr_ref[g + s:g + s + m, 0:c]            # shifted slab (m, c)
            k = (dy + 1) * 3 + (dx + 1)
            acc = acc + jnp.where(valid, tap, 0.0) * w9[k:k + 1, :]
    y = jnp.maximum(acc + bias, 0.0)
    if stride == 2:
        y = _downsample2(y, h=h, w=w)
    return y


# ------------------------------ fused kernel body ---------------------------

def _fused_kernel(pat_ref, c1w_ref, c1b_ref, pww_ref, pwb_ref, dww_ref,
                  dwb_ref, out_ref, scr_ref, *, plan, bs, h0, w0):
    # Deterministic margins for the shift scratch (taps into them are masked).
    scr_ref[...] = jnp.zeros(scr_ref.shape, jnp.float32)

    # Stem: 3x3/s2 conv (im2col'd on the host) as a single matmul + BN + ReLU.
    kdim = pat_ref.shape[-1]
    pat = pat_ref[...].reshape(bs * h0 * w0, kdim)
    a = jnp.dot(pat, c1w_ref[...], preferred_element_type=jnp.float32)
    a = jnp.maximum(a + c1b_ref[...], 0.0)
    h, w = h0, w0

    # conv2: 3x3/s1 depthwise + BN + ReLU (dw slab index 0).
    a = _dw3x3(a, 0, dww_ref, dwb_ref, scr_ref, h=h, w=w, stride=1)

    # 13 inverted-residual blocks: expand(1x1) -> depthwise(3x3) -> project(1x1).
    for blk in plan:
        y = _pw(a, blk["pw1"], pww_ref, pwb_ref, cout=blk["hid"], relu=True)
        y = _dw3x3(y, blk["dw"], dww_ref, dwb_ref, scr_ref,
                   h=h, w=w, stride=blk["stride"])
        a = _pw(y, blk["pw2"], pww_ref, pwb_ref, cout=blk["cout"], relu=False,
                residual=a if blk["res"] else None)
        h //= blk["stride"]
        w //= blk["stride"]

    m = h * w
    for b in range(bs):                                    # one store per image
        out_ref[b] = a[b * m:(b + 1) * m, :]


# ------------------------------ host-side wrapper ---------------------------

def _pack(params):
    """Pack per-layer weights into a few stacked slabs + a static block plan."""
    pw_w, pw_b, dw_w, dw_b = [], [], [], []

    def add_pw(wt, bt):
        cin, cout = wt.shape
        assert cin <= _CMAX and cout <= _CMAX
        pw_w.append(jnp.zeros((_CMAX, _CMAX), jnp.bfloat16)
                    .at[:cin, :cout].set(wt.astype(jnp.bfloat16)))
        pw_b.append(jnp.zeros((_CMAX,), jnp.float32)
                    .at[:cout].set(bt[0].astype(jnp.float32)))
        return len(pw_w) - 1

    def add_dw(wt, bt):
        c = wt.shape[1]
        assert c <= _CMAX
        dw_w.append(jnp.zeros((9, _CMAX), jnp.float32)
                    .at[:, :c].set(wt.astype(jnp.float32)))
        dw_b.append(jnp.zeros((_CMAX,), jnp.float32)
                    .at[:c].set(bt[0].astype(jnp.float32)))
        return len(dw_w) - 1

    add_dw(params["conv2_w"], params["conv2_b"])           # dw slab index 0

    def _blocks():
        for i, blk in enumerate(params["layer1"]):
            yield blk, (2 if i == 0 else 1)
        yield params["block1"], 2
        for blk in params["layer2"]:
            yield blk, 1
        yield params["block2"], 1

    plan = []
    for blk, stride in _blocks():
        cin, hid = blk["w1"].shape
        cout = blk["w3"].shape[1]
        plan.append(dict(
            pw1=add_pw(blk["w1"], blk["b1"]),
            dw=add_dw(blk["w2"], blk["b2"]),
            pw2=add_pw(blk["w3"], blk["b3"]),
            hid=hid, cout=cout, stride=stride,
            res=(stride == 1 and cin == cout)))

    packed = dict(
        c1_w=params["conv1_w"], c1_b=params["conv1_b"],
        pw_w=jnp.stack(pw_w), pw_b=jnp.stack(pw_b),
        dw_w=jnp.stack(dw_w), dw_b=jnp.stack(dw_b))
    return packed, plan


def forward(params, x_nchw, *, images_per_step=1):
    n, cin, h_in, w_in = x_nchw.shape
    bs = images_per_step
    assert n % bs == 0 and h_in % 8 == 0 and w_in % 8 == 0

    x = jnp.transpose(x_nchw, (0, 2, 3, 1)).astype(jnp.float32)       # NHWC
    # Host-side im2col for the stride-2 stem; column order (dy*3+dx)*cin + ci
    # matches the packed (9*cin, cout) stem weight rows.
    xp = jnp.pad(x, ((0, 0), (1, 1), (1, 1), (0, 0)))
    pats = [xp[:, dy:dy + h_in:2, dx:dx + w_in:2, :]
            for dy in range(3) for dx in range(3)]
    h0, w0 = h_in // 2, w_in // 2
    pat = jnp.concatenate(pats, axis=-1).reshape(n, h0 * w0, 9 * cin)

    packed, plan = _pack(params)
    cout = plan[-1]["cout"]
    ho, wo = h_in // 8, w_in // 8               # /2 stem, /2 layer1[0], /2 block1

    kernel = functools.partial(_fused_kernel, plan=plan, bs=bs, h0=h0, w0=w0)

    def _const(ndim):
        return lambda b: (0,) * ndim

    in_specs = [
        pl.BlockSpec((bs, h0 * w0, 9 * cin), lambda b: (b, 0, 0)),
        pl.BlockSpec(packed["c1_w"].shape, _const(2)),
        pl.BlockSpec(packed["c1_b"].shape, _const(2)),
        pl.BlockSpec(packed["pw_w"].shape, _const(3)),
        pl.BlockSpec(packed["pw_b"].shape, _const(2)),
        pl.BlockSpec(packed["dw_w"].shape, _const(3)),
        pl.BlockSpec(packed["dw_b"].shape, _const(2)),
    ]

    out = pl.pallas_call(
        kernel,
        out_shape=jax.ShapeDtypeStruct((n, ho * wo, cout), jnp.float32),
        grid_spec=pltpu.PrefetchScalarGridSpec(
            num_scalar_prefetch=0,
            grid=(n // bs,),
            in_specs=in_specs,
            out_specs=pl.BlockSpec((bs, ho * wo, cout), lambda b: (b, 0, 0)),
            scratch_shapes=[
                pltpu.VMEM((bs * h0 * w0 + 2 * _MARGIN, _CMAX), jnp.float32),
            ]),
        compiler_params=pltpu.CompilerParams(
            dimension_semantics=("parallel",)),
    )(pat, packed["c1_w"], packed["c1_b"], packed["pw_w"], packed["pw_b"],
      packed["dw_w"], packed["dw_b"])

    out = out.reshape(n, ho, wo, cout)
    return jnp.transpose(out, (0, 3, 1, 2))                           # -> NCHW


# --------------------------- deterministic parameters -----------------------

def _fold_bn(key, c, eps=1e-5):
    k1, k2, k3, k4 = jax.random.split(key, 4)
    gamma = jax.random.uniform(k1, (c,), minval=0.5, maxval=1.5)
    beta = 0.1 * jax.random.normal(k2, (c,))
    mean = 0.1 * jax.random.normal(k3, (c,))
    var = jax.random.uniform(k4, (c,), minval=0.5, maxval=1.5)
    a = gamma * jax.lax.rsqrt(var + eps)
    b = beta - a * mean
    return a, b


def _make_pw(key, cin, cout):
    kw, kb = jax.random.split(key)
    wt = 0.1 * jax.random.normal(kw, (cout, cin))                # torch (cout,cin,1,1)
    a, b = _fold_bn(kb, cout)
    w = (wt.T * a[None, :]).astype(jnp.bfloat16)                 # bf16 MXU weights
    return w, b[None, :].astype(jnp.float32)


def _make_dw(key, c):
    kw, kb = jax.random.split(key)
    wt = 0.1 * jax.random.normal(kw, (c, 3, 3))                  # torch (c,1,3,3)
    a, b = _fold_bn(kb, c)
    w = jnp.transpose(wt, (1, 2, 0)).reshape(9, c) * a[None, :]  # row = dy*3+dx
    return w.astype(jnp.float32), b[None, :].astype(jnp.float32)


def _make_conv3x3(key, cin, cout):
    kw, kb = jax.random.split(key)
    wt = 0.1 * jax.random.normal(kw, (cout, cin, 3, 3))          # torch layout
    a, b = _fold_bn(kb, cout)
    w = jnp.transpose(wt, (2, 3, 1, 0)).reshape(9 * cin, cout) * a[None, :]
    return w.astype(jnp.float32), b[None, :].astype(jnp.float32)


def _make_ir(key, inp, oup, expand):
    hidden = inp * expand
    k1, k2, k3 = jax.random.split(key, 3)
    w1, b1 = _make_pw(k1, inp, hidden)
    w2, b2 = _make_dw(k2, hidden)
    w3, b3 = _make_pw(k3, hidden, oup)
    return dict(w1=w1, b1=b1, w2=w2, b2=b2, w3=w3, b3=b3)


def init_params(key, inchannel=3,
                layer1=(16, 16, 16, 16, 16),
                layer2=(32, 32, 32, 32, 32, 32),
                out_channel=16):
    keys = jax.random.split(key, 4 + len(layer1) + len(layer2))
    ki = iter(keys)
    params = {}
    inp = 32
    params["conv1_w"], params["conv1_b"] = _make_conv3x3(next(ki), inchannel, inp)
    params["conv2_w"], params["conv2_b"] = _make_dw(next(ki), inp)
    blocks = []
    for oup in layer1:
        blocks.append(_make_ir(next(ki), inp, oup, 2))
        inp = oup
    params["layer1"] = blocks
    params["block1"] = _make_ir(next(ki), inp, 32, 2)
    inp = 32
    blocks = []
    for oup in layer2:
        blocks.append(_make_ir(next(ki), inp, oup, 4))
        inp = oup
    params["layer2"] = blocks
    params["block2"] = _make_ir(next(ki), inp, out_channel, 2)
    return params


# ------------------------------------ main -----------------------------------

if __name__ == "__main__":
    key = jax.random.PRNGKey(0)
    kp, kx = jax.random.split(key)
    params = init_params(kp)
    x = jax.random.normal(kx, (2, 3, 16, 16), jnp.float32)       # NCHW, like PyTorch
    out = jax.jit(forward)(params, x)
    out = jax.block_until_ready(out)
    assert out.shape == (2, 16, 2, 2), out.shape
    assert bool(jnp.all(jnp.isfinite(out)))
    print("KERNEL_OK")
</pallas_src>

<mosaic_0001>
module attributes {stable_mosaic.version = 11 : i64} {
  func.func @_fused_kernel(%arg0: i32, %arg1: memref<1x64x27xf32, #tpu.memory_space<vmem>>, %arg2: memref<27x32xf32, #tpu.memory_space<vmem>>, %arg3: memref<1x32xf32, #tpu.memory_space<vmem>>, %arg4: memref<26x128x128xbf16, #tpu.memory_space<vmem>>, %arg5: memref<26x128xf32, #tpu.memory_space<vmem>>, %arg6: memref<14x9x128xf32, #tpu.memory_space<vmem>>, %arg7: memref<14x128xf32, #tpu.memory_space<vmem>>, %arg8: memref<1x4x16xf32, #tpu.memory_space<vmem>>, %arg9: memref<96x128xf32, #tpu.memory_space<vmem>>) attributes {dimension_semantics = [#tpu.dimension_semantics<parallel>], iteration_bounds = array<i64: 2>, scalar_prefetch = 0 : i64, scratch_operands = 1 : i64, tpu.core_type = #tpu.core_type<tc>, window_params = [{transform_indices = @transform_0, window_bounds = array<i64: 1, 64, 27>}, {pipeline_mode = #tpu.pipeline_mode<synchronous>, transform_indices = @transform_1, window_bounds = array<i64: 27, 32>}, {pipeline_mode = #tpu.pipeline_mode<synchronous>, transform_indices = @transform_2, window_bounds = array<i64: 1, 32>}, {pipeline_mode = #tpu.pipeline_mode<synchronous>, transform_indices = @transform_3, window_bounds = array<i64: 26, 128, 128>}, {pipeline_mode = #tpu.pipeline_mode<synchronous>, transform_indices = @transform_4, window_bounds = array<i64: 26, 128>}, {pipeline_mode = #tpu.pipeline_mode<synchronous>, transform_indices = @transform_5, window_bounds = array<i64: 14, 9, 128>}, {pipeline_mode = #tpu.pipeline_mode<synchronous>, transform_indices = @transform_6, window_bounds = array<i64: 14, 128>}, {transform_indices = @transform_7, window_bounds = array<i64: 1, 4, 16>}]} {
    %cst = arith.constant 0.000000e+00 : f32
    %0 = vector.broadcast %cst : f32 to vector<96x128xf32>
    %c0 = arith.constant 0 : index
    %c0_0 = arith.constant 0 : index
    %1 = vector.load %arg9[%c0, %c0_0] : memref<96x128xf32, #tpu.memory_space<vmem>>, vector<96x128xf32>
    tpu.vector_store %arg9[%c0, %c0_0], %0 {strides = array<i32>} : memref<96x128xf32, #tpu.memory_space<vmem>>, vector<96x128xf32>,
    %c0_1 = arith.constant 0 : index
    %c0_2 = arith.constant 0 : index
    %c0_3 = arith.constant 0 : index
    %2 = vector.load %arg1[%c0_1, %c0_2, %c0_3] : memref<1x64x27xf32, #tpu.memory_space<vmem>>, vector<1x64x27xf32>
    %3 = vector.shape_cast %2 : vector<1x64x27xf32> to vector<64x27xf32>
    %c0_4 = arith.constant 0 : index
    %c0_5 = arith.constant 0 : index
    %4 = vector.load %arg2[%c0_4, %c0_5] : memref<27x32xf32, #tpu.memory_space<vmem>>, vector<27x32xf32>
    %cst_6 = arith.constant dense<0.000000e+00> : vector<64x32xf32>
    %5 = tpu.matmul %3, %4, %cst_6 {dimension_numbers = #tpu.dot_dimension_numbers<[1], [0], [0], [1], [0, 0, 1, 1], [], []>} : vector<64x27xf32>, vector<27x32xf32>, vector<64x32xf32> -> vector<64x32xf32>
    %c0_7 = arith.constant 0 : index
    %c0_8 = arith.constant 0 : index
    %6 = vector.load %arg3[%c0_7, %c0_8] : memref<1x32xf32, #tpu.memory_space<vmem>>, vector<1x32xf32>
    %7 = vector.broadcast %6 : vector<1x32xf32> to vector<64x32xf32>
    %8 = arith.addf %5, %7 : vector<64x32xf32>
    %cst_9 = arith.constant 0.000000e+00 : f32
    %9 = vector.broadcast %cst_9 : f32 to vector<64x32xf32>
    %10 = arith.maximumf %8, %9 : vector<64x32xf32>
    %c16 = arith.constant 16 : index
    %c0_10 = arith.constant 0 : index
    %11 = vector.load %arg9[%c16, %c0_10] : memref<96x128xf32, #tpu.memory_space<vmem>>, vector<64x32xf32>
    tpu.vector_store %arg9[%c16, %c0_10], %10 {strides = array<i32>} : memref<96x128xf32, #tpu.memory_space<vmem>>, vector<64x32xf32>,
    %c0_11 = arith.constant 0 : index
    %c0_12 = arith.constant 0 : index
    %c0_13 = arith.constant 0 : index
    %12 = vector.load %arg6[%c0_11, %c0_12, %c0_13] : memref<14x9x128xf32, #tpu.memory_space<vmem>>, vector<1x9x32xf32>
    %13 = vector.shape_cast %12 : vector<1x9x32xf32> to vector<9x32xf32>
    %c0_14 = arith.constant 0 : index
    %c0_15 = arith.constant 0 : index
    %14 = vector.load %arg7[%c0_14, %c0_15] : memref<14x128xf32, #tpu.memory_space<vmem>>, vector<1x32xf32>
    %15 = tpu.iota {dimensions = array<i32: 0>} : vector<64x1xi32>
    %c63_i32 = arith.constant 63 : i32
    %16 = vector.broadcast %c63_i32 : i32 to vector<64x1xi32>
    %17 = arith.andi %15, %16 : vector<64x1xi32>
    %c3_i32 = arith.constant 3 : i32
    %18 = vector.broadcast %c3_i32 : i32 to vector<64x1xi32>
    %19 = arith.shrsi %17, %18 : vector<64x1xi32>
    %c7_i32 = arith.constant 7 : i32
    %20 = vector.broadcast %c7_i32 : i32 to vector<64x1xi32>
    %21 = arith.andi %17, %20 : vector<64x1xi32>
    %cst_16 = arith.constant 0.000000e+00 : f32
    %22 = vector.broadcast %cst_16 : f32 to vector<64x32xf32>
    %c-1_i32 = arith.constant -1 : i32
    %23 = vector.broadcast %c-1_i32 : i32 to vector<64x1xi32>
    %24 = arith.addi %19, %23 : vector<64x1xi32>
    %c0_i32 = arith.constant 0 : i32
    %25 = vector.broadcast %c0_i32 : i32 to vector<64x1xi32>
    %26 = arith.cmpi sge, %24, %25 : vector<64x1xi32>
    %c-1_i32_17 = arith.constant -1 : i32
    %27 = vector.broadcast %c-1_i32_17 : i32 to vector<64x1xi32>
    %28 = arith.addi %19, %27 : vector<64x1xi32>
    %c7_i32_18 = arith.constant 7 : i32
    %29 = vector.broadcast %c7_i32_18 : i32 to vector<64x1xi32>
    %30 = arith.cmpi sle, %28, %29 : vector<64x1xi32>
    %31 = arith.andi %26, %30 : vector<64x1xi1>
    %c-1_i32_19 = arith.constant -1 : i32
    %32 = vector.broadcast %c-1_i32_19 : i32 to vector<64x1xi32>
    %33 = arith.addi %21, %32 : vector<64x1xi32>
    %c0_i32_20 = arith.constant 0 : i32
    %34 = vector.broadcast %c0_i32_20 : i32 to vector<64x1xi32>
    %35 = arith.cmpi sge, %33, %34 : vector<64x1xi32>
    %c-1_i32_21 = arith.constant -1 : i32
    %36 = vector.broadcast %c-1_i32_21 : i32 to vector<64x1xi32>
    %37 = arith.addi %21, %36 : vector<64x1xi32>
    %c7_i32_22 = arith.constant 7 : i32
    %38 = vector.broadcast %c7_i32_22 : i32 to vector<64x1xi32>
    %39 = arith.cmpi sle, %37, %38 : vector<64x1xi32>
    %40 = arith.andi %35, %39 : vector<64x1xi1>
    %41 = arith.andi %31, %40 : vector<64x1xi1>
    %c7 = arith.constant 7 : index
    %c0_23 = arith.constant 0 : index
    %42 = vector.load %arg9[%c7, %c0_23] : memref<96x128xf32, #tpu.memory_space<vmem>>, vector<64x32xf32>
    %cst_24 = arith.constant 0.000000e+00 : f32
    %43 = vector.shape_cast %41 : vector<64x1xi1> to vector<64x1xi1>
    %44 = vector.broadcast %43 : vector<64x1xi1> to vector<64x32xi1>
    %45 = vector.broadcast %cst_24 : f32 to vector<64x32xf32>
    %46 = arith.select %44, %42, %45 : vector<64x32xi1>, vector<64x32xf32>
    %47 = vector.extract_strided_slice %13 {offsets = [0, 0], sizes = [1, 32], strides = [1, 1]} : vector<9x32xf32> to vector<1x32xf32>
    %48 = vector.broadcast %47 : vector<1x32xf32> to vector<64x32xf32>
    %49 = arith.mulf %46, %48 : vector<64x32xf32>
    %50 = arith.addf %22, %49 : vector<64x32xf32>
    %c0_i32_25 = arith.constant 0 : i32
    %51 = vector.broadcast %c0_i32_25 : i32 to vector<64x1xi32>
    %52 = arith.addi %21, %51 : vector<64x1xi32>
    %c0_i32_26 = arith.constant 0 : i32
    %53 = vector.broadcast %c0_i32_26 : i32 to vector<64x1xi32>
    %54 = arith.cmpi sge, %52, %53 : vector<64x1xi32>
    %c0_i32_27 = arith.constant 0 : i32
    %55 = vector.broadcast %c0_i32_27 : i32 to vector<64x1xi32>
    %56 = arith.addi %21, %55 : vector<64x1xi32>
    %c7_i32_28 = arith.constant 7 : i32
    %57 = vector.broadcast %c7_i32_28 : i32 to vector<64x1xi32>
    %58 = arith.cmpi sle, %56, %57 : vector<64x1xi32>
    %59 = arith.andi %54, %58 : vector<64x1xi1>
    %60 = arith.andi %31, %59 : vector<64x1xi1>
    %c8 = arith.constant 8 : index
    %c0_29 = arith.constant 0 : index
    %61 = vector.load %arg9[%c8, %c0_29] : memref<96x128xf32, #tpu.memory_space<vmem>>, vector<64x32xf32>
    %cst_30 = arith.constant 0.000000e+00 : f32
    %62 = vector.shape_cast %60 : vector<64x1xi1> to vector<64x1xi1>
    %63 = vector.broadcast %62 : vector<64x1xi1> to vector<64x32xi1>
    %64 = vector.broadcast %cst_30 : f32 to vector<64x32xf32>
    %65 = arith.select %63, %61, %64 : vector<64x32xi1>, vector<64x32xf32>
    %66 = vector.extract_strided_slice %13 {offsets = [1, 0], sizes = [1, 32], strides = [1, 1]} : vector<9x32xf32> to vector<1x32xf32>
    %67 = vector.broadcast %66 : vector<1x32xf32> to vector<64x32xf32>
    %68 = arith.mulf %65, %67 : vector<64x32xf32>
    %69 = arith.addf %50, %68 : vector<64x32xf32>
    %c1_i32 = arith.constant 1 : i32
    %70 = vector.broadcast %c1_i32 : i32 to vector<64x1xi32>
    %71 = arith.addi %21, %70 : vector<64x1xi32>
    %c0_i32_31 = arith.constant 0 : i32
    %72 = vector.broadcast %c0_i32_31 : i32 to vector<64x1xi32>
    %73 = arith.cmpi sge, %71, %72 : vector<64x1xi32>
    %c1_i32_32 = arith.constant 1 : i32
    %74 = vector.broadcast %c1_i32_32 : i32 to vector<64x1xi32>
    %75 = arith.addi %21, %74 : vector<64x1xi32>
    %c7_i32_33 = arith.constant 7 : i32
    %76 = vector.broadcast %c7_i32_33 : i32 to vector<64x1xi32>
    %77 = arith.cmpi sle, %75, %76 : vector<64x1xi32>
    %78 = arith.andi %73, %77 : vector<64x1xi1>
    %79 = arith.andi %31, %78 : vector<64x1xi1>
    %c9 = arith.constant 9 : index
    %c0_34 = arith.constant 0 : index
    %80 = vector.load %arg9[%c9, %c0_34] : memref<96x128xf32, #tpu.memory_space<vmem>>, vector<64x32xf32>
    %cst_35 = arith.constant 0.000000e+00 : f32
    %81 = vector.shape_cast %79 : vector<64x1xi1> to vector<64x1xi1>
    %82 = vector.broadcast %81 : vector<64x1xi1> to vector<64x32xi1>
    %83 = vector.broadcast %cst_35 : f32 to vector<64x32xf32>
    %84 = arith.select %82, %80, %83 : vector<64x32xi1>, vector<64x32xf32>
    %85 = vector.extract_strided_slice %13 {offsets = [2, 0], sizes = [1, 32], strides = [1, 1]} : vector<9x32xf32> to vector<1x32xf32>
    %86 = vector.broadcast %85 : vector<1x32xf32> to vector<64x32xf32>
    %87 = arith.mulf %84, %86 : vector<64x32xf32>
    %88 = arith.addf %69, %87 : vector<64x32xf32>
    %c0_i32_36 = arith.constant 0 : i32
    %89 = vector.broadcast %c0_i32_36 : i32 to vector<64x1xi32>
    %90 = arith.addi %19, %89 : vector<64x1xi32>
    %c0_i32_37 = arith.constant 0 : i32
    %91 = vector.broadcast %c0_i32_37 : i32 to vector<64x1xi32>
    %92 = arith.cmpi sge, %90, %91 : vector<64x1xi32>
    %c0_i32_38 = arith.constant 0 : i32
    %93 = vector.broadcast %c0_i32_38 : i32 to vector<64x1xi32>
    %94 = arith.addi %19, %93 : vector<64x1xi32>
    %c7_i32_39 = arith.constant 7 : i32
    %95 = vector.broadcast %c7_i32_39 : i32 to vector<64x1xi32>
    %96 = arith.cmpi sle, %94, %95 : vector<64x1xi32>
    %97 = arith.andi %92, %96 : vector<64x1xi1>
    %c-1_i32_40 = arith.constant -1 : i32
    %98 = vector.broadcast %c-1_i32_40 : i32 to vector<64x1xi32>
    %99 = arith.addi %21, %98 : vector<64x1xi32>
    %c0_i32_41 = arith.constant 0 : i32
    %100 = vector.broadcast %c0_i32_41 : i32 to vector<64x1xi32>
    %101 = arith.cmpi sge, %99, %100 : vector<64x1xi32>
    %c-1_i32_42 = arith.constant -1 : i32
    %102 = vector.broadcast %c-1_i32_42 : i32 to vector<64x1xi32>
    %103 = arith.addi %21, %102 : vector<64x1xi32>
    %c7_i32_43 = arith.constant 7 : i32
    %104 = vector.broadcast %c7_i32_43 : i32 to vector<64x1xi32>
    %105 = arith.cmpi sle, %103, %104 : vector<64x1xi32>
    %106 = arith.andi %101, %105 : vector<64x1xi1>
    %107 = arith.andi %97, %106 : vector<64x1xi1>
    %c15 = arith.constant 15 : index
    %c0_44 = arith.constant 0 : index
    %108 = vector.load %arg9[%c15, %c0_44] : memref<96x128xf32, #tpu.memory_space<vmem>>, vector<64x32xf32>
    %cst_45 = arith.constant 0.000000e+00 : f32
    %109 = vector.shape_cast %107 : vector<64x1xi1> to vector<64x1xi1>
    %110 = vector.broadcast %109 : vector<64x1xi1> to vector<64x32xi1>
    %111 = vector.broadcast %cst_45 : f32 to vector<64x32xf32>
    %112 = arith.select %110, %108, %111 : vector<64x32xi1>, vector<64x32xf32>
    %113 = vector.extract_strided_slice %13 {offsets = [3, 0], sizes = [1, 32], strides = [1, 1]} : vector<9x32xf32> to vector<1x32xf32>
    %114 = vector.broadcast %113 : vector<1x32xf32> to vector<64x32xf32>
    %115 = arith.mulf %112, %114 : vector<64x32xf32>
    %116 = arith.addf %88, %115 : vector<64x32xf32>
    %c0_i32_46 = arith.constant 0 : i32
    %117 = vector.broadcast %c0_i32_46 : i32 to vector<64x1xi32>
    %118 = arith.addi %21, %117 : vector<64x1xi32>
    %c0_i32_47 = arith.constant 0 : i32
    %119 = vector.broadcast %c0_i32_47 : i32 to vector<64x1xi32>
    %120 = arith.cmpi sge, %118, %119 : vector<64x1xi32>
    %c0_i32_48 = arith.constant 0 : i32
    %121 = vector.broadcast %c0_i32_48 : i32 to vector<64x1xi32>
    %122 = arith.addi %21, %121 : vector<64x1xi32>
    %c7_i32_49 = arith.constant 7 : i32
    %123 = vector.broadcast %c7_i32_49 : i32 to vector<64x1xi32>
    %124 = arith.cmpi sle, %122, %123 : vector<64x1xi32>
    %125 = arith.andi %120, %124 : vector<64x1xi1>
    %126 = arith.andi %97, %125 : vector<64x1xi1>
    %c16_50 = arith.constant 16 : index
    %c0_51 = arith.constant 0 : index
    %127 = vector.load %arg9[%c16_50, %c0_51] : memref<96x128xf32, #tpu.memory_space<vmem>>, vector<64x32xf32>
    %cst_52 = arith.constant 0.000000e+00 : f32
    %128 = vector.shape_cast %126 : vector<64x1xi1> to vector<64x1xi1>
    %129 = vector.broadcast %128 : vector<64x1xi1> to vector<64x32xi1>
    %130 = vector.broadcast %cst_52 : f32 to vector<64x32xf32>
    %131 = arith.select %129, %127, %130 : vector<64x32xi1>, vector<64x32xf32>
    %132 = vector.extract_strided_slice %13 {offsets = [4, 0], sizes = [1, 32], strides = [1, 1]} : vector<9x32xf32> to vector<1x32xf32>
    %133 = vector.broadcast %132 : vector<1x32xf32> to vector<64x32xf32>
    %134 = arith.mulf %131, %133 : vector<64x32xf32>
    %135 = arith.addf %116, %134 : vector<64x32xf32>
    %c1_i32_53 = arith.constant 1 : i32
    %136 = vector.broadcast %c1_i32_53 : i32 to vector<64x1xi32>
    %137 = arith.addi %21, %136 : vector<64x1xi32>
    %c0_i32_54 = arith.constant 0 : i32
    %138 = vector.broadcast %c0_i32_54 : i32 to vector<64x1xi32>
    %139 = arith.cmpi sge, %137, %138 : vector<64x1xi32>
    %c1_i32_55 = arith.constant 1 : i32
    %140 = vector.broadcast %c1_i32_55 : i32 to vector<64x1xi32>
    %141 = arith.addi %21, %140 : vector<64x1xi32>
    %c7_i32_56 = arith.constant 7 : i32
    %142 = vector.broadcast %c7_i32_56 : i32 to vector<64x1xi32>
    %143 = arith.cmpi sle, %141, %142 : vector<64x1xi32>
    %144 = arith.andi %139, %143 : vector<64x1xi1>
    %145 = arith.andi %97, %144 : vector<64x1xi1>
    %c17 = arith.constant 17 : index
    %c0_57 = arith.constant 0 : index
    %146 = vector.load %arg9[%c17, %c0_57] : memref<96x128xf32, #tpu.memory_space<vmem>>, vector<64x32xf32>
    %cst_58 = arith.constant 0.000000e+00 : f32
    %147 = vector.shape_cast %145 : vector<64x1xi1> to vector<64x1xi1>
    %148 = vector.broadcast %147 : vector<64x1xi1> to vector<64x32xi1>
    %149 = vector.broadcast %cst_58 : f32 to vector<64x32xf32>
    %150 = arith.select %148, %146, %149 : vector<64x32xi1>, vector<64x32xf32>
    %151 = vector.extract_strided_slice %13 {offsets = [5, 0], sizes = [1, 32], strides = [1, 1]} : vector<9x32xf32> to vector<1x32xf32>
    %152 = vector.broadcast %151 : vector<1x32xf32> to vector<64x32xf32>
    %153 = arith.mulf %150, %152 : vector<64x32xf32>
    %154 = arith.addf %135, %153 : vector<64x32xf32>
    %c1_i32_59 = arith.constant 1 : i32
    %155 = vector.broadcast %c1_i32_59 : i32 to vector<64x1xi32>
    %156 = arith.addi %19, %155 : vector<64x1xi32>
    %c0_i32_60 = arith.constant 0 : i32
    %157 = vector.broadcast %c0_i32_60 : i32 to vector<64x1xi32>
    %158 = arith.cmpi sge, %156, %157 : vector<64x1xi32>
    %c1_i32_61 = arith.constant 1 : i32
    %159 = vector.broadcast %c1_i32_61 : i32 to vector<64x1xi32>
    %160 = arith.addi %19, %159 : vector<64x1xi32>
    %c7_i32_62 = arith.constant 7 : i32
    %161 = vector.broadcast %c7_i32_62 : i32 to vector<64x1xi32>
    %162 = arith.cmpi sle, %160, %161 : vector<64x1xi32>
    %163 = arith.andi %158, %162 : vector<64x1xi1>
    %c-1_i32_63 = arith.constant -1 : i32
    %164 = vector.broadcast %c-1_i32_63 : i32 to vector<64x1xi32>
    %165 = arith.addi %21, %164 : vector<64x1xi32>
    %c0_i32_64 = arith.constant 0 : i32
    %166 = vector.broadcast %c0_i32_64 : i32 to vector<64x1xi32>
    %167 = arith.cmpi sge, %165, %166 : vector<64x1xi32>
    %c-1_i32_65 = arith.constant -1 : i32
    %168 = vector.broadcast %c-1_i32_65 : i32 to vector<64x1xi32>
    %169 = arith.addi %21, %168 : vector<64x1xi32>
    %c7_i32_66 = arith.constant 7 : i32
    %170 = vector.broadcast %c7_i32_66 : i32 to vector<64x1xi32>
    %171 = arith.cmpi sle, %169, %170 : vector<64x1xi32>
    %172 = arith.andi %167, %171 : vector<64x1xi1>
    %173 = arith.andi %163, %172 : vector<64x1xi1>
    %c23 = arith.constant 23 : index
    %c0_67 = arith.constant 0 : index
    %174 = vector.load %arg9[%c23, %c0_67] : memref<96x128xf32, #tpu.memory_space<vmem>>, vector<64x32xf32>
    %cst_68 = arith.constant 0.000000e+00 : f32
    %175 = vector.shape_cast %173 : vector<64x1xi1> to vector<64x1xi1>
    %176 = vector.broadcast %175 : vector<64x1xi1> to vector<64x32xi1>
    %177 = vector.broadcast %cst_68 : f32 to vector<64x32xf32>
    %178 = arith.select %176, %174, %177 : vector<64x32xi1>, vector<64x32xf32>
    %179 = vector.extract_strided_slice %13 {offsets = [6, 0], sizes = [1, 32], strides = [1, 1]} : vector<9x32xf32> to vector<1x32xf32>
    %180 = vector.broadcast %179 : vector<1x32xf32> to vector<64x32xf32>
    %181 = arith.mulf %178, %180 : vector<64x32xf32>
    %182 = arith.addf %154, %181 : vector<64x32xf32>
    %c0_i32_69 = arith.constant 0 : i32
    %183 = vector.broadcast %c0_i32_69 : i32 to vector<64x1xi32>
    %184 = arith.addi %21, %183 : vector<64x1xi32>
    %c0_i32_70 = arith.constant 0 : i32
    %185 = vector.broadcast %c0_i32_70 : i32 to vector<64x1xi32>
    %186 = arith.cmpi sge, %184, %185 : vector<64x1xi32>
    %c0_i32_71 = arith.constant 0 : i32
    %187 = vector.broadcast %c0_i32_71 : i32 to vector<64x1xi32>
    %188 = arith.addi %21, %187 : vector<64x1xi32>
    %c7_i32_72 = arith.constant 7 : i32
    %189 = vector.broadcast %c7_i32_72 : i32 to vector<64x1xi32>
    %190 = arith.cmpi sle, %188, %189 : vector<64x1xi32>
    %191 = arith.andi %186, %190 : vector<64x1xi1>
    %192 = arith.andi %163, %191 : vector<64x1xi1>
    %c24 = arith.constant 24 : index
    %c0_73 = arith.constant 0 : index
    %193 = vector.load %arg9[%c24, %c0_73] : memref<96x128xf32, #tpu.memory_space<vmem>>, vector<64x32xf32>
    %cst_74 = arith.constant 0.000000e+00 : f32
    %194 = vector.shape_cast %192 : vector<64x1xi1> to vector<64x1xi1>
    %195 = vector.broadcast %194 : vector<64x1xi1> to vector<64x32xi1>
    %196 = vector.broadcast %cst_74 : f32 to vector<64x32xf32>
    %197 = arith.select %195, %193, %196 : vector<64x32xi1>, vector<64x32xf32>
    %198 = vector.extract_strided_slice %13 {offsets = [7, 0], sizes = [1, 32], strides = [1, 1]} : vector<9x32xf32> to vector<1x32xf32>
    %199 = vector.broadcast %198 : vector<1x32xf32> to vector<64x32xf32>
    %200 = arith.mulf %197, %199 : vector<64x32xf32>
    %201 = arith.addf %182, %200 : vector<64x32xf32>
    %c1_i32_75 = arith.constant 1 : i32
    %202 = vector.broadcast %c1_i32_75 : i32 to vector<64x1xi32>
    %203 = arith.addi %21, %202 : vector<64x1xi32>
    %c0_i32_76 = arith.constant 0 : i32
    %204 = vector.broadcast %c0_i32_76 : i32 to vector<64x1xi32>
    %205 = arith.cmpi sge, %203, %204 : vector<64x1xi32>
    %c1_i32_77 = arith.constant 1 : i32
    %206 = vector.broadcast %c1_i32_77 : i32 to vector<64x1xi32>
    %207 = arith.addi %21, %206 : vector<64x1xi32>
    %c7_i32_78 = arith.constant 7 : i32
    %208 = vector.broadcast %c7_i32_78 : i32 to vector<64x1xi32>
    %209 = arith.cmpi sle, %207, %208 : vector<64x1xi32>
    %210 = arith.andi %205, %209 : vector<64x1xi1>
    %211 = arith.andi %163, %210 : vector<64x1xi1>
    %c25 = arith.constant 25 : index
    %c0_79 = arith.constant 0 : index
    %212 = vector.load %arg9[%c25, %c0_79] : memref<96x128xf32, #tpu.memory_space<vmem>>, vector<64x32xf32>
    %cst_80 = arith.constant 0.000000e+00 : f32
    %213 = vector.shape_cast %211 : vector<64x1xi1> to vector<64x1xi1>
    %214 = vector.broadcast %213 : vector<64x1xi1> to vector<64x32xi1>
    %215 = vector.broadcast %cst_80 : f32 to vector<64x32xf32>
    %216 = arith.select %214, %212, %215 : vector<64x32xi1>, vector<64x32xf32>
    %217 = vector.extract_strided_slice %13 {offsets = [8, 0], sizes = [1, 32], strides = [1, 1]} : vector<9x32xf32> to vector<1x32xf32>
    %218 = vector.broadcast %217 : vector<1x32xf32> to vector<64x32xf32>
    %219 = arith.mulf %216, %218 : vector<64x32xf32>
    %220 = arith.addf %201, %219 : vector<64x32xf32>
    %221 = vector.broadcast %14 : vector<1x32xf32> to vector<64x32xf32>
    %222 = arith.addf %220, %221 : vector<64x32xf32>
    %cst_81 = arith.constant 0.000000e+00 : f32
    %223 = vector.broadcast %cst_81 : f32 to vector<64x32xf32>
    %224 = arith.maximumf %222, %223 : vector<64x32xf32>
    %c0_82 = arith.constant 0 : index
    %c0_83 = arith.constant 0 : index
    %c0_84 = arith.constant 0 : index
    %225 = vector.load %arg4[%c0_82, %c0_83, %c0_84] : memref<26x128x128xbf16, #tpu.memory_space<vmem>>, vector<1x32x64xbf16>
    %226 = vector.shape_cast %225 : vector<1x32x64xbf16> to vector<32x64xbf16>
    %227 = arith.truncf %224 : vector<64x32xf32> to vector<64x32xbf16>
    %cst_85 = arith.constant dense<0.000000e+00> : vector<64x64xf32>
    %228 = tpu.matmul %227, %226, %cst_85 {dimension_numbers = #tpu.dot_dimension_numbers<[1], [0], [0], [1], [0, 0, 1, 1], [], []>} : vector<64x32xbf16>, vector<32x64xbf16>, vector<64x64xf32> -> vector<64x64xf32>
    %c0_86 = arith.constant 0 : index
    %c0_87 = arith.constant 0 : index
    %229 = vector.load %arg5[%c0_86, %c0_87] : memref<26x128xf32, #tpu.memory_space<vmem>>, vector<1x64xf32>
    %230 = vector.broadcast %229 : vector<1x64xf32> to vector<64x64xf32>
    %231 = arith.addf %228, %230 : vector<64x64xf32>
    %cst_88 = arith.constant 0.000000e+00 : f32
    %232 = vector.broadcast %cst_88 : f32 to vector<64x64xf32>
    %233 = arith.maximumf %231, %232 : vector<64x64xf32>
    %c16_89 = arith.constant 16 : index
    %c0_90 = arith.constant 0 : index
    %234 = vector.load %arg9[%c16_89, %c0_90] : memref<96x128xf32, #tpu.memory_space<vmem>>, vector<64x64xf32>
    tpu.vector_store %arg9[%c16_89, %c0_90], %233 {strides = array<i32>} : memref<96x128xf32, #tpu.memory_space<vmem>>, vector<64x64xf32>,
    %c1 = arith.constant 1 : index
    %c0_91 = arith.constant 0 : index
    %c0_92 = arith.constant 0 : index
    %235 = vector.load %arg6[%c1, %c0_91, %c0_92] : memref<14x9x128xf32, #tpu.memory_space<vmem>>, vector<1x9x64xf32>
    %236 = vector.shape_cast %235 : vector<1x9x64xf32> to vector<9x64xf32>
    %c1_93 = arith.constant 1 : index
    %c0_94 = arith.constant 0 : index
    %237 = vector.load %arg7[%c1_93, %c0_94] : memref<14x128xf32, #tpu.memory_space<vmem>>, vector<1x64xf32>
    %238 = tpu.iota {dimensions = array<i32: 0>} : vector<64x1xi32>
    %c63_i32_95 = arith.constant 63 : i32
    %239 = vector.broadcast %c63_i32_95 : i32 to vector<64x1xi32>
    %240 = arith.andi %238, %239 : vector<64x1xi32>
    %c3_i32_96 = arith.constant 3 : i32
    %241 = vector.broadcast %c3_i32_96 : i32 to vector<64x1xi32>
    %242 = arith.shrsi %240, %241 : vector<64x1xi32>
    %c7_i32_97 = arith.constant 7 : i32
    %243 = vector.broadcast %c7_i32_97 : i32 to vector<64x1xi32>
    %244 = arith.andi %240, %243 : vector<64x1xi32>
    %cst_98 = arith.constant 0.000000e+00 : f32
    %245 = vector.broadcast %cst_98 : f32 to vector<64x64xf32>
    %c-1_i32_99 = arith.constant -1 : i32
    %246 = vector.broadcast %c-1_i32_99 : i32 to vector<64x1xi32>
    %247 = arith.addi %242, %246 : vector<64x1xi32>
    %c0_i32_100 = arith.constant 0 : i32
    %248 = vector.broadcast %c0_i32_100 : i32 to vector<64x1xi32>
    %249 = arith.cmpi sge, %247, %248 : vector<64x1xi32>
    %c-1_i32_101 = arith.constant -1 : i32
    %250 = vector.broadcast %c-1_i32_101 : i32 to vector<64x1xi32>
    %251 = arith.addi %242, %250 : vector<64x1xi32>
    %c7_i32_102 = arith.constant 7 : i32
    %252 = vector.broadcast %c7_i32_102 : i32 to vector<64x1xi32>
    %253 = arith.cmpi sle, %251, %252 : vector<64x1xi32>
    %254 = arith.andi %249, %253 : vector<64x1xi1>
    %c-1_i32_103 = arith.constant -1 : i32
    %255 = vector.broadcast %c-1_i32_103 : i32 to vector<64x1xi32>
    %256 = arith.addi %244, %255 : vector<64x1xi32>
    %c0_i32_104 = arith.constant 0 : i32
    %257 = vector.broadcast %c0_i32_104 : i32 to vector<64x1xi32>
    %258 = arith.cmpi sge, %256, %257 : vector<64x1xi32>
    %c-1_i32_105 = arith.constant -1 : i32
    %259 = vector.broadcast %c-1_i32_105 : i32 to vector<64x1xi32>
    %260 = arith.addi %244, %259 : vector<64x1xi32>
    %c7_i32_106 = arith.constant 7 : i32
    %261 = vector.broadcast %c7_i32_106 : i32 to vector<64x1xi32>
    %262 = arith.cmpi sle, %260, %261 : vector<64x1xi32>
    %263 = arith.andi %258, %262 : vector<64x1xi1>
    %264 = arith.andi %254, %263 : vector<64x1xi1>
    %c7_107 = arith.constant 7 : index
    %c0_108 = arith.constant 0 : index
    %265 = vector.load %arg9[%c7_107, %c0_108] : memref<96x128xf32, #tpu.memory_space<vmem>>, vector<64x64xf32>
    %cst_109 = arith.constant 0.000000e+00 : f32
    %266 = vector.shape_cast %264 : vector<64x1xi1> to vector<64x1xi1>
    %267 = vector.broadcast %266 : vector<64x1xi1> to vector<64x64xi1>
    %268 = vector.broadcast %cst_109 : f32 to vector<64x64xf32>
    %269 = arith.select %267, %265, %268 : vector<64x64xi1>, vector<64x64xf32>
    %270 = vector.extract_strided_slice %236 {offsets = [0, 0], sizes = [1, 64], strides = [1, 1]} : vector<9x64xf32> to vector<1x64xf32>
    %271 = vector.broadcast %270 : vector<1x64xf32> to vector<64x64xf32>
    %272 = arith.mulf %269, %271 : vector<64x64xf32>
    %273 = arith.addf %245, %272 : vector<64x64xf32>
    %c0_i32_110 = arith.constant 0 : i32
    %274 = vector.broadcast %c0_i32_110 : i32 to vector<64x1xi32>
    %275 = arith.addi %244, %274 : vector<64x1xi32>
    %c0_i32_111 = arith.constant 0 : i32
    %276 = vector.broadcast %c0_i32_111 : i32 to vector<64x1xi32>
    %277 = arith.cmpi sge, %275, %276 : vector<64x1xi32>
    %c0_i32_112 = arith.constant 0 : i32
    %278 = vector.broadcast %c0_i32_112 : i32 to vector<64x1xi32>
    %279 = arith.addi %244, %278 : vector<64x1xi32>
    %c7_i32_113 = arith.constant 7 : i32
    %280 = vector.broadcast %c7_i32_113 : i32 to vector<64x1xi32>
    %281 = arith.cmpi sle, %279, %280 : vector<64x1xi32>
    %282 = arith.andi %277, %281 : vector<64x1xi1>
    %283 = arith.andi %254, %282 : vector<64x1xi1>
    %c8_114 = arith.constant 8 : index
    %c0_115 = arith.constant 0 : index
    %284 = vector.load %arg9[%c8_114, %c0_115] : memref<96x128xf32, #tpu.memory_space<vmem>>, vector<64x64xf32>
    %cst_116 = arith.constant 0.000000e+00 : f32
    %285 = vector.shape_cast %283 : vector<64x1xi1> to vector<64x1xi1>
    %286 = vector.broadcast %285 : vector<64x1xi1> to vector<64x64xi1>
    %287 = vector.broadcast %cst_116 : f32 to vector<64x64xf32>
    %288 = arith.select %286, %284, %287 : vector<64x64xi1>, vector<64x64xf32>
    %289 = vector.extract_strided_slice %236 {offsets = [1, 0], sizes = [1, 64], strides = [1, 1]} : vector<9x64xf32> to vector<1x64xf32>
    %290 = vector.broadcast %289 : vector<1x64xf32> to vector<64x64xf32>
    %291 = arith.mulf %288, %290 : vector<64x64xf32>
    %292 = arith.addf %273, %291 : vector<64x64xf32>
    %c1_i32_117 = arith.constant 1 : i32
    %293 = vector.broadcast %c1_i32_117 : i32 to vector<64x1xi32>
    %294 = arith.addi %244, %293 : vector<64x1xi32>
    %c0_i32_118 = arith.constant 0 : i32
    %295 = vector.broadcast %c0_i32_118 : i32 to vector<64x1xi32>
    %296 = arith.cmpi sge, %294, %295 : vector<64x1xi32>
    %c1_i32_119 = arith.constant 1 : i32
    %297 = vector.broadcast %c1_i32_119 : i32 to vector<64x1xi32>
    %298 = arith.addi %244, %297 : vector<64x1xi32>
    %c7_i32_120 = arith.constant 7 : i32
    %299 = vector.broadcast %c7_i32_120 : i32 to vector<64x1xi32>
    %300 = arith.cmpi sle, %298, %299 : vector<64x1xi32>
    %301 = arith.andi %296, %300 : vector<64x1xi1>
    %302 = arith.andi %254, %301 : vector<64x1xi1>
    %c9_121 = arith.constant 9 : index
    %c0_122 = arith.constant 0 : index
    %303 = vector.load %arg9[%c9_121, %c0_122] : memref<96x128xf32, #tpu.memory_space<vmem>>, vector<64x64xf32>
    %cst_123 = arith.constant 0.000000e+00 : f32
    %304 = vector.shape_cast %302 : vector<64x1xi1> to vector<64x1xi1>
    %305 = vector.broadcast %304 : vector<64x1xi1> to vector<64x64xi1>
    %306 = vector.broadcast %cst_123 : f32 to vector<64x64xf32>
    %307 = arith.select %305, %303, %306 : vector<64x64xi1>, vector<64x64xf32>
    %308 = vector.extract_strided_slice %236 {offsets = [2, 0], sizes = [1, 64], strides = [1, 1]} : vector<9x64xf32> to vector<1x64xf32>
    %309 = vector.broadcast %308 : vector<1x64xf32> to vector<64x64xf32>
    %310 = arith.mulf %307, %309 : vector<64x64xf32>
    %311 = arith.addf %292, %310 : vector<64x64xf32>
    %c0_i32_124 = arith.constant 0 : i32
    %312 = vector.broadcast %c0_i32_124 : i32 to vector<64x1xi32>
    %313 = arith.addi %242, %312 : vector<64x1xi32>
    %c0_i32_125 = arith.constant 0 : i32
    %314 = vector.broadcast %c0_i32_125 : i32 to vector<64x1xi32>
    %315 = arith.cmpi sge, %313, %314 : vector<64x1xi32>
    %c0_i32_126 = arith.constant 0 : i32
    %316 = vector.broadcast %c0_i32_126 : i32 to vector<64x1xi32>
    %317 = arith.addi %242, %316 : vector<64x1xi32>
    %c7_i32_127 = arith.constant 7 : i32
    %318 = vector.broadcast %c7_i32_127 : i32 to vector<64x1xi32>
    %319 = arith.cmpi sle, %317, %318 : vector<64x1xi32>
    %320 = arith.andi %315, %319 : vector<64x1xi1>
    %c-1_i32_128 = arith.constant -1 : i32
    %321 = vector.broadcast %c-1_i32_128 : i32 to vector<64x1xi32>
    %322 = arith.addi %244, %321 : vector<64x1xi32>
    %c0_i32_129 = arith.constant 0 : i32
    %323 = vector.broadcast %c0_i32_129 : i32 to vector<64x1xi32>
    %324 = arith.cmpi sge, %322, %323 : vector<64x1xi32>
    %c-1_i32_130 = arith.constant -1 : i32
    %325 = vector.broadcast %c-1_i32_130 : i32 to vector<64x1xi32>
    %326 = arith.addi %244, %325 : vector<64x1xi32>
    %c7_i32_131 = arith.constant 7 : i32
    %327 = vector.broadcast %c7_i32_131 : i32 to vector<64x1xi32>
    %328 = arith.cmpi sle, %326, %327 : vector<64x1xi32>
    %329 = arith.andi %324, %328 : vector<64x1xi1>
    %330 = arith.andi %320, %329 : vector<64x1xi1>
    %c15_132 = arith.constant 15 : index
    %c0_133 = arith.constant 0 : index
    %331 = vector.load %arg9[%c15_132, %c0_133] : memref<96x128xf32, #tpu.memory_space<vmem>>, vector<64x64xf32>
    %cst_134 = arith.constant 0.000000e+00 : f32
    %332 = vector.shape_cast %330 : vector<64x1xi1> to vector<64x1xi1>
    %333 = vector.broadcast %332 : vector<64x1xi1> to vector<64x64xi1>
    %334 = vector.broadcast %cst_134 : f32 to vector<64x64xf32>
    %335 = arith.select %333, %331, %334 : vector<64x64xi1>, vector<64x64xf32>
    %336 = vector.extract_strided_slice %236 {offsets = [3, 0], sizes = [1, 64], strides = [1, 1]} : vector<9x64xf32> to vector<1x64xf32>
    %337 = vector.broadcast %336 : vector<1x64xf32> to vector<64x64xf32>
    %338 = arith.mulf %335, %337 : vector<64x64xf32>
    %339 = arith.addf %311, %338 : vector<64x64xf32>
    %c0_i32_135 = arith.constant 0 : i32
    %340 = vector.broadcast %c0_i32_135 : i32 to vector<64x1xi32>
    %341 = arith.addi %244, %340 : vector<64x1xi32>
    %c0_i32_136 = arith.constant 0 : i32
    %342 = vector.broadcast %c0_i32_136 : i32 to vector<64x1xi32>
    %343 = arith.cmpi sge, %341, %342 : vector<64x1xi32>
    %c0_i32_137 = arith.constant 0 : i32
    %344 = vector.broadcast %c0_i32_137 : i32 to vector<64x1xi32>
    %345 = arith.addi %244, %344 : vector<64x1xi32>
    %c7_i32_138 = arith.constant 7 : i32
    %346 = vector.broadcast %c7_i32_138 : i32 to vector<64x1xi32>
    %347 = arith.cmpi sle, %345, %346 : vector<64x1xi32>
    %348 = arith.andi %343, %347 : vector<64x1xi1>
    %349 = arith.andi %320, %348 : vector<64x1xi1>
    %c16_139 = arith.constant 16 : index
    %c0_140 = arith.constant 0 : index
    %350 = vector.load %arg9[%c16_139, %c0_140] : memref<96x128xf32, #tpu.memory_space<vmem>>, vector<64x64xf32>
    %cst_141 = arith.constant 0.000000e+00 : f32
    %351 = vector.shape_cast %349 : vector<64x1xi1> to vector<64x1xi1>
    %352 = vector.broadcast %351 : vector<64x1xi1> to vector<64x64xi1>
    %353 = vector.broadcast %cst_141 : f32 to vector<64x64xf32>
    %354 = arith.select %352, %350, %353 : vector<64x64xi1>, vector<64x64xf32>
    %355 = vector.extract_strided_slice %236 {offsets = [4, 0], sizes = [1, 64], strides = [1, 1]} : vector<9x64xf32> to vector<1x64xf32>
    %356 = vector.broadcast %355 : vector<1x64xf32> to vector<64x64xf32>
    %357 = arith.mulf %354, %356 : vector<64x64xf32>
    %358 = arith.addf %339, %357 : vector<64x64xf32>
    %c1_i32_142 = arith.constant 1 : i32
    %359 = vector.broadcast %c1_i32_142 : i32 to vector<64x1xi32>
    %360 = arith.addi %244, %359 : vector<64x1xi32>
    %c0_i32_143 = arith.constant 0 : i32
    %361 = vector.broadcast %c0_i32_143 : i32 to vector<64x1xi32>
    %362 = arith.cmpi sge, %360, %361 : vector<64x1xi32>
    %c1_i32_144 = arith.constant 1 : i32
    %363 = vector.broadcast %c1_i32_144 : i32 to vector<64x1xi32>
    %364 = arith.addi %244, %363 : vector<64x1xi32>
    %c7_i32_145 = arith.constant 7 : i32
    %365 = vector.broadcast %c7_i32_145 : i32 to vector<64x1xi32>
    %366 = arith.cmpi sle, %364, %365 : vector<64x1xi32>
    %367 = arith.andi %362, %366 : vector<64x1xi1>
    %368 = arith.andi %320, %367 : vector<64x1xi1>
    %c17_146 = arith.constant 17 : index
    %c0_147 = arith.constant 0 : index
    %369 = vector.load %arg9[%c17_146, %c0_147] : memref<96x128xf32, #tpu.memory_space<vmem>>, vector<64x64xf32>
    %cst_148 = arith.constant 0.000000e+00 : f32
    %370 = vector.shape_cast %368 : vector<64x1xi1> to vector<64x1xi1>
    %371 = vector.broadcast %370 : vector<64x1xi1> to vector<64x64xi1>
    %372 = vector.broadcast %cst_148 : f32 to vector<64x64xf32>
    %373 = arith.select %371, %369, %372 : vector<64x64xi1>, vector<64x64xf32>
    %374 = vector.extract_strided_slice %236 {offsets = [5, 0], sizes = [1, 64], strides = [1, 1]} : vector<9x64xf32> to vector<1x64xf32>
    %375 = vector.broadcast %374 : vector<1x64xf32> to vector<64x64xf32>
    %376 = arith.mulf %373, %375 : vector<64x64xf32>
    %377 = arith.addf %358, %376 : vector<64x64xf32>
    %c1_i32_149 = arith.constant 1 : i32
    %378 = vector.broadcast %c1_i32_149 : i32 to vector<64x1xi32>
    %379 = arith.addi %242, %378 : vector<64x1xi32>
    %c0_i32_150 = arith.constant 0 : i32
    %380 = vector.broadcast %c0_i32_150 : i32 to vector<64x1xi32>
    %381 = arith.cmpi sge, %379, %380 : vector<64x1xi32>
    %c1_i32_151 = arith.constant 1 : i32
    %382 = vector.broadcast %c1_i32_151 : i32 to vector<64x1xi32>
    %383 = arith.addi %242, %382 : vector<64x1xi32>
    %c7_i32_152 = arith.constant 7 : i32
    %384 = vector.broadcast %c7_i32_152 : i32 to vector<64x1xi32>
    %385 = arith.cmpi sle, %383, %384 : vector<64x1xi32>
    %386 = arith.andi %381, %385 : vector<64x1xi1>
    %c-1_i32_153 = arith.constant -1 : i32
    %387 = vector.broadcast %c-1_i32_153 : i32 to vector<64x1xi32>
    %388 = arith.addi %244, %387 : vector<64x1xi32>
    %c0_i32_154 = arith.constant 0 : i32
    %389 = vector.broadcast %c0_i32_154 : i32 to vector<64x1xi32>
    %390 = arith.cmpi sge, %388, %389 : vector<64x1xi32>
    %c-1_i32_155 = arith.constant -1 : i32
    %391 = vector.broadcast %c-1_i32_155 : i32 to vector<64x1xi32>
    %392 = arith.addi %244, %391 : vector<64x1xi32>
    %c7_i32_156 = arith.constant 7 : i32
    %393 = vector.broadcast %c7_i32_156 : i32 to vector<64x1xi32>
    %394 = arith.cmpi sle, %392, %393 : vector<64x1xi32>
    %395 = arith.andi %390, %394 : vector<64x1xi1>
    %396 = arith.andi %386, %395 : vector<64x1xi1>
    %c23_157 = arith.constant 23 : index
    %c0_158 = arith.constant 0 : index
    %397 = vector.load %arg9[%c23_157, %c0_158] : memref<96x128xf32, #tpu.memory_space<vmem>>, vector<64x64xf32>
    %cst_159 = arith.constant 0.000000e+00 : f32
    %398 = vector.shape_cast %396 : vector<64x1xi1> to vector<64x1xi1>
    %399 = vector.broadcast %398 : vector<64x1xi1> to vector<64x64xi1>
    %400 = vector.broadcast %cst_159 : f32 to vector<64x64xf32>
    %401 = arith.select %399, %397, %400 : vector<64x64xi1>, vector<64x64xf32>
    %402 = vector.extract_strided_slice %236 {offsets = [6, 0], sizes = [1, 64], strides = [1, 1]} : vector<9x64xf32> to vector<1x64xf32>
    %403 = vector.broadcast %402 : vector<1x64xf32> to vector<64x64xf32>
    %404 = arith.mulf %401, %403 : vector<64x64xf32>
    %405 = arith.addf %377, %404 : vector<64x64xf32>
    %c0_i32_160 = arith.constant 0 : i32
    %406 = vector.broadcast %c0_i32_160 : i32 to vector<64x1xi32>
    %407 = arith.addi %244, %406 : vector<64x1xi32>
    %c0_i32_161 = arith.constant 0 : i32
    %408 = vector.broadcast %c0_i32_161 : i32 to vector<64x1xi32>
    %409 = arith.cmpi sge, %407, %408 : vector<64x1xi32>
    %c0_i32_162 = arith.constant 0 : i32
    %410 = vector.broadcast %c0_i32_162 : i32 to vector<64x1xi32>
    %411 = arith.addi %244, %410 : vector<64x1xi32>
    %c7_i32_163 = arith.constant 7 : i32
    %412 = vector.broadcast %c7_i32_163 : i32 to vector<64x1xi32>
    %413 = arith.cmpi sle, %411, %412 : vector<64x1xi32>
    %414 = arith.andi %409, %413 : vector<64x1xi1>
    %415 = arith.andi %386, %414 : vector<64x1xi1>
    %c24_164 = arith.constant 24 : index
    %c0_165 = arith.constant 0 : index
    %416 = vector.load %arg9[%c24_164, %c0_165] : memref<96x128xf32, #tpu.memory_space<vmem>>, vector<64x64xf32>
    %cst_166 = arith.constant 0.000000e+00 : f32
    %417 = vector.shape_cast %415 : vector<64x1xi1> to vector<64x1xi1>
    %418 = vector.broadcast %417 : vector<64x1xi1> to vector<64x64xi1>
    %419 = vector.broadcast %cst_166 : f32 to vector<64x64xf32>
    %420 = arith.select %418, %416, %419 : vector<64x64xi1>, vector<64x64xf32>
    %421 = vector.extract_strided_slice %236 {offsets = [7, 0], sizes = [1, 64], strides = [1, 1]} : vector<9x64xf32> to vector<1x64xf32>
    %422 = vector.broadcast %421 : vector<1x64xf32> to vector<64x64xf32>
    %423 = arith.mulf %420, %422 : vector<64x64xf32>
    %424 = arith.addf %405, %423 : vector<64x64xf32>
    %c1_i32_167 = arith.constant 1 : i32
    %425 = vector.broadcast %c1_i32_167 : i32 to vector<64x1xi32>
    %426 = arith.addi %244, %425 : vector<64x1xi32>
    %c0_i32_168 = arith.constant 0 : i32
    %427 = vector.broadcast %c0_i32_168 : i32 to vector<64x1xi32>
    %428 = arith.cmpi sge, %426, %427 : vector<64x1xi32>
    %c1_i32_169 = arith.constant 1 : i32
    %429 = vector.broadcast %c1_i32_169 : i32 to vector<64x1xi32>
    %430 = arith.addi %244, %429 : vector<64x1xi32>
    %c7_i32_170 = arith.constant 7 : i32
    %431 = vector.broadcast %c7_i32_170 : i32 to vector<64x1xi32>
    %432 = arith.cmpi sle, %430, %431 : vector<64x1xi32>
    %433 = arith.andi %428, %432 : vector<64x1xi1>
    %434 = arith.andi %386, %433 : vector<64x1xi1>
    %c25_171 = arith.constant 25 : index
    %c0_172 = arith.constant 0 : index
    %435 = vector.load %arg9[%c25_171, %c0_172] : memref<96x128xf32, #tpu.memory_space<vmem>>, vector<64x64xf32>
    %cst_173 = arith.constant 0.000000e+00 : f32
    %436 = vector.shape_cast %434 : vector<64x1xi1> to vector<64x1xi1>
    %437 = vector.broadcast %436 : vector<64x1xi1> to vector<64x64xi1>
    %438 = vector.broadcast %cst_173 : f32 to vector<64x64xf32>
    %439 = arith.select %437, %435, %438 : vector<64x64xi1>, vector<64x64xf32>
    %440 = vector.extract_strided_slice %236 {offsets = [8, 0], sizes = [1, 64], strides = [1, 1]} : vector<9x64xf32> to vector<1x64xf32>
    %441 = vector.broadcast %440 : vector<1x64xf32> to vector<64x64xf32>
    %442 = arith.mulf %439, %441 : vector<64x64xf32>
    %443 = arith.addf %424, %442 : vector<64x64xf32>
    %444 = vector.broadcast %237 : vector<1x64xf32> to vector<64x64xf32>
    %445 = arith.addf %443, %444 : vector<64x64xf32>
    %cst_174 = arith.constant 0.000000e+00 : f32
    %446 = vector.broadcast %cst_174 : f32 to vector<64x64xf32>
    %447 = arith.maximumf %445, %446 : vector<64x64xf32>
    %448 = tpu.iota {dimensions = array<i32: 0>} : vector<16x64xi32>
    %449 = tpu.iota {dimensions = array<i32: 1>} : vector<16x64xi32>
    %c4_i32 = arith.constant 4 : i32
    %450 = vector.broadcast %c4_i32 : i32 to vector<16x64xi32>
    %451 = arith.shrsi %448, %450 : vector<16x64xi32>
    %c15_i32 = arith.constant 15 : i32
    %452 = vector.broadcast %c15_i32 : i32 to vector<16x64xi32>
    %453 = arith.andi %448, %452 : vector<16x64xi32>
    %c2_i32 = arith.constant 2 : i32
    %454 = vector.broadcast %c2_i32 : i32 to vector<16x64xi32>
    %455 = arith.shrsi %453, %454 : vector<16x64xi32>
    %c3_i32_175 = arith.constant 3 : i32
    %456 = vector.broadcast %c3_i32_175 : i32 to vector<16x64xi32>
    %457 = arith.andi %453, %456 : vector<16x64xi32>
    %c64_i32 = arith.constant 64 : i32
    %458 = vector.broadcast %c64_i32 : i32 to vector<16x64xi32>
    %459 = arith.muli %451, %458 : vector<16x64xi32>
    %c16_i32 = arith.constant 16 : i32
    %460 = vector.broadcast %c16_i32 : i32 to vector<16x64xi32>
    %461 = arith.muli %460, %455 : vector<16x64xi32>
    %462 = arith.addi %459, %461 : vector<16x64xi32>
    %c2_i32_176 = arith.constant 2 : i32
    %463 = vector.broadcast %c2_i32_176 : i32 to vector<16x64xi32>
    %464 = arith.muli %463, %457 : vector<16x64xi32>
    %465 = arith.addi %462, %464 : vector<16x64xi32>
    %466 = arith.cmpi eq, %449, %465 : vector<16x64xi32>
    %467 = arith.extui %466 : vector<16x64xi1> to vector<16x64xi32>
    %468 = arith.sitofp %467 : vector<16x64xi32> to vector<16x64xf32>
    %cst_177 = arith.constant dense<0.000000e+00> : vector<16x64xf32>
    %469 = tpu.matmul %468, %447, %cst_177 {dimension_numbers = #tpu.dot_dimension_numbers<[1], [0], [0], [1], [0, 0, 1, 1], [], []>} : vector<16x64xf32>, vector<64x64xf32>, vector<16x64xf32> -> vector<16x64xf32>
    %c1_178 = arith.constant 1 : index
    %c0_179 = arith.constant 0 : index
    %c0_180 = arith.constant 0 : index
    %470 = vector.load %arg4[%c1_178, %c0_179, %c0_180] : memref<26x128x128xbf16, #tpu.memory_space<vmem>>, vector<1x64x16xbf16>
    %471 = vector.shape_cast %470 : vector<1x64x16xbf16> to vector<64x16xbf16>
    %472 = arith.truncf %469 : vector<16x64xf32> to vector<16x64xbf16>
    %cst_181 = arith.constant dense<0.000000e+00> : vector<16x16xf32>
    %473 = tpu.matmul %472, %471, %cst_181 {dimension_numbers = #tpu.dot_dimension_numbers<[1], [0], [0], [1], [0, 0, 1, 1], [], []>} : vector<16x64xbf16>, vector<64x16xbf16>, vector<16x16xf32> -> vector<16x16xf32>
    %c1_182 = arith.constant 1 : index
    %c0_183 = arith.constant 0 : index
    %474 = vector.load %arg5[%c1_182, %c0_183] : memref<26x128xf32, #tpu.memory_space<vmem>>, vector<1x16xf32>
    %475 = vector.broadcast %474 : vector<1x16xf32> to vector<16x16xf32>
    %476 = arith.addf %473, %475 : vector<16x16xf32>
    %c2 = arith.constant 2 : index
    %c0_184 = arith.constant 0 : index
    %c0_185 = arith.constant 0 : index
    %477 = vector.load %arg4[%c2, %c0_184, %c0_185] : memref<26x128x128xbf16, #tpu.memory_space<vmem>>, vector<1x16x32xbf16>
    %478 = vector.shape_cast %477 : vector<1x16x32xbf16> to vector<16x32xbf16>
    %479 = arith.truncf %476 : vector<16x16xf32> to vector<16x16xbf16>
    %cst_186 = arith.constant dense<0.000000e+00> : vector<16x32xf32>
    %480 = tpu.matmul %479, %478, %cst_186 {dimension_numbers = #tpu.dot_dimension_numbers<[1], [0], [0], [1], [0, 0, 1, 1], [], []>} : vector<16x16xbf16>, vector<16x32xbf16>, vector<16x32xf32> -> vector<16x32xf32>
    %c2_187 = arith.constant 2 : index
    %c0_188 = arith.constant 0 : index
    %481 = vector.load %arg5[%c2_187, %c0_188] : memref<26x128xf32, #tpu.memory_space<vmem>>, vector<1x32xf32>
    %482 = vector.broadcast %481 : vector<1x32xf32> to vector<16x32xf32>
    %483 = arith.addf %480, %482 : vector<16x32xf32>
    %cst_189 = arith.constant 0.000000e+00 : f32
    %484 = vector.broadcast %cst_189 : f32 to vector<16x32xf32>
    %485 = arith.maximumf %483, %484 : vector<16x32xf32>
    %c16_190 = arith.constant 16 : index
    %c0_191 = arith.constant 0 : index
    %486 = vector.load %arg9[%c16_190, %c0_191] : memref<96x128xf32, #tpu.memory_space<vmem>>, vector<16x32xf32>
    tpu.vector_store %arg9[%c16_190, %c0_191], %485 {strides = array<i32>} : memref<96x128xf32, #tpu.memory_space<vmem>>, vector<16x32xf32>,
    %c2_192 = arith.constant 2 : index
    %c0_193 = arith.constant 0 : index
    %c0_194 = arith.constant 0 : index
    %487 = vector.load %arg6[%c2_192, %c0_193, %c0_194] : memref<14x9x128xf32, #tpu.memory_space<vmem>>, vector<1x9x32xf32>
    %488 = vector.shape_cast %487 : vector<1x9x32xf32> to vector<9x32xf32>
    %c2_195 = arith.constant 2 : index
    %c0_196 = arith.constant 0 : index
    %489 = vector.load %arg7[%c2_195, %c0_196] : memref<14x128xf32, #tpu.memory_space<vmem>>, vector<1x32xf32>
    %490 = tpu.iota {dimensions = array<i32: 0>} : vector<16x1xi32>
    %c15_i32_197 = arith.constant 15 : i32
    %491 = vector.broadcast %c15_i32_197 : i32 to vector<16x1xi32>
    %492 = arith.andi %490, %491 : vector<16x1xi32>
    %c2_i32_198 = arith.constant 2 : i32
    %493 = vector.broadcast %c2_i32_198 : i32 to vector<16x1xi32>
    %494 = arith.shrsi %492, %493 : vector<16x1xi32>
    %c3_i32_199 = arith.constant 3 : i32
    %495 = vector.broadcast %c3_i32_199 : i32 to vector<16x1xi32>
    %496 = arith.andi %492, %495 : vector<16x1xi32>
    %cst_200 = arith.constant 0.000000e+00 : f32
    %497 = vector.broadcast %cst_200 : f32 to vector<16x32xf32>
    %c-1_i32_201 = arith.constant -1 : i32
    %498 = vector.broadcast %c-1_i32_201 : i32 to vector<16x1xi32>
    %499 = arith.addi %494, %498 : vector<16x1xi32>
    %c0_i32_202 = arith.constant 0 : i32
    %500 = vector.broadcast %c0_i32_202 : i32 to vector<16x1xi32>
    %501 = arith.cmpi sge, %499, %500 : vector<16x1xi32>
    %c-1_i32_203 = arith.constant -1 : i32
    %502 = vector.broadcast %c-1_i32_203 : i32 to vector<16x1xi32>
    %503 = arith.addi %494, %502 : vector<16x1xi32>
    %c3_i32_204 = arith.constant 3 : i32
    %504 = vector.broadcast %c3_i32_204 : i32 to vector<16x1xi32>
    %505 = arith.cmpi sle, %503, %504 : vector<16x1xi32>
    %506 = arith.andi %501, %505 : vector<16x1xi1>
    %c-1_i32_205 = arith.constant -1 : i32
    %507 = vector.broadcast %c-1_i32_205 : i32 to vector<16x1xi32>
    %508 = arith.addi %496, %507 : vector<16x1xi32>
    %c0_i32_206 = arith.constant 0 : i32
    %509 = vector.broadcast %c0_i32_206 : i32 to vector<16x1xi32>
    %510 = arith.cmpi sge, %508, %509 : vector<16x1xi32>
    %c-1_i32_207 = arith.constant -1 : i32
    %511 = vector.broadcast %c-1_i32_207 : i32 to vector<16x1xi32>
    %512 = arith.addi %496, %511 : vector<16x1xi32>
    %c3_i32_208 = arith.constant 3 : i32
    %513 = vector.broadcast %c3_i32_208 : i32 to vector<16x1xi32>
    %514 = arith.cmpi sle, %512, %513 : vector<16x1xi32>
    %515 = arith.andi %510, %514 : vector<16x1xi1>
    %516 = arith.andi %506, %515 : vector<16x1xi1>
    %c11 = arith.constant 11 : index
    %c0_209 = arith.constant 0 : index
    %517 = vector.load %arg9[%c11, %c0_209] : memref<96x128xf32, #tpu.memory_space<vmem>>, vector<16x32xf32>
    %cst_210 = arith.constant 0.000000e+00 : f32
    %518 = vector.shape_cast %516 : vector<16x1xi1> to vector<16x1xi1>
    %519 = vector.broadcast %518 : vector<16x1xi1> to vector<16x32xi1>
    %520 = vector.broadcast %cst_210 : f32 to vector<16x32xf32>
    %521 = arith.select %519, %517, %520 : vector<16x32xi1>, vector<16x32xf32>
    %522 = vector.extract_strided_slice %488 {offsets = [0, 0], sizes = [1, 32], strides = [1, 1]} : vector<9x32xf32> to vector<1x32xf32>
    %523 = vector.broadcast %522 : vector<1x32xf32> to vector<16x32xf32>
    %524 = arith.mulf %521, %523 : vector<16x32xf32>
    %525 = arith.addf %497, %524 : vector<16x32xf32>
    %c0_i32_211 = arith.constant 0 : i32
    %526 = vector.broadcast %c0_i32_211 : i32 to vector<16x1xi32>
    %527 = arith.addi %496, %526 : vector<16x1xi32>
    %c0_i32_212 = arith.constant 0 : i32
    %528 = vector.broadcast %c0_i32_212 : i32 to vector<16x1xi32>
    %529 = arith.cmpi sge, %527, %528 : vector<16x1xi32>
    %c0_i32_213 = arith.constant 0 : i32
    %530 = vector.broadcast %c0_i32_213 : i32 to vector<16x1xi32>
    %531 = arith.addi %496, %530 : vector<16x1xi32>
    %c3_i32_214 = arith.constant 3 : i32
    %532 = vector.broadcast %c3_i32_214 : i32 to vector<16x1xi32>
    %533 = arith.cmpi sle, %531, %532 : vector<16x1xi32>
    %534 = arith.andi %529, %533 : vector<16x1xi1>
    %535 = arith.andi %506, %534 : vector<16x1xi1>
    %c12 = arith.constant 12 : index
    %c0_215 = arith.constant 0 : index
    %536 = vector.load %arg9[%c12, %c0_215] : memref<96x128xf32, #tpu.memory_space<vmem>>, vector<16x32xf32>
    %cst_216 = arith.constant 0.000000e+00 : f32
    %537 = vector.shape_cast %535 : vector<16x1xi1> to vector<16x1xi1>
    %538 = vector.broadcast %537 : vector<16x1xi1> to vector<16x32xi1>
    %539 = vector.broadcast %cst_216 : f32 to vector<16x32xf32>
    %540 = arith.select %538, %536, %539 : vector<16x32xi1>, vector<16x32xf32>
    %541 = vector.extract_strided_slice %488 {offsets = [1, 0], sizes = [1, 32], strides = [1, 1]} : vector<9x32xf32> to vector<1x32xf32>
    %542 = vector.broadcast %541 : vector<1x32xf32> to vector<16x32xf32>
    %543 = arith.mulf %540, %542 : vector<16x32xf32>
    %544 = arith.addf %525, %543 : vector<16x32xf32>
    %c1_i32_217 = arith.constant 1 : i32
    %545 = vector.broadcast %c1_i32_217 : i32 to vector<16x1xi32>
    %546 = arith.addi %496, %545 : vector<16x1xi32>
    %c0_i32_218 = arith.constant 0 : i32
    %547 = vector.broadcast %c0_i32_218 : i32 to vector<16x1xi32>
    %548 = arith.cmpi sge, %546, %547 : vector<16x1xi32>
    %c1_i32_219 = arith.constant 1 : i32
    %549 = vector.broadcast %c1_i32_219 : i32 to vector<16x1xi32>
    %550 = arith.addi %496, %549 : vector<16x1xi32>
    %c3_i32_220 = arith.constant 3 : i32
    %551 = vector.broadcast %c3_i32_220 : i32 to vector<16x1xi32>
    %552 = arith.cmpi sle, %550, %551 : vector<16x1xi32>
    %553 = arith.andi %548, %552 : vector<16x1xi1>
    %554 = arith.andi %506, %553 : vector<16x1xi1>
    %c13 = arith.constant 13 : index
    %c0_221 = arith.constant 0 : index
    %555 = vector.load %arg9[%c13, %c0_221] : memref<96x128xf32, #tpu.memory_space<vmem>>, vector<16x32xf32>
    %cst_222 = arith.constant 0.000000e+00 : f32
    %556 = vector.shape_cast %554 : vector<16x1xi1> to vector<16x1xi1>
    %557 = vector.broadcast %556 : vector<16x1xi1> to vector<16x32xi1>
    %558 = vector.broadcast %cst_222 : f32 to vector<16x32xf32>
    %559 = arith.select %557, %555, %558 : vector<16x32xi1>, vector<16x32xf32>
    %560 = vector.extract_strided_slice %488 {offsets = [2, 0], sizes = [1, 32], strides = [1, 1]} : vector<9x32xf32> to vector<1x32xf32>
    %561 = vector.broadcast %560 : vector<1x32xf32> to vector<16x32xf32>
    %562 = arith.mulf %559, %561 : vector<16x32xf32>
    %563 = arith.addf %544, %562 : vector<16x32xf32>
    %c0_i32_223 = arith.constant 0 : i32
    %564 = vector.broadcast %c0_i32_223 : i32 to vector<16x1xi32>
    %565 = arith.addi %494, %564 : vector<16x1xi32>
    %c0_i32_224 = arith.constant 0 : i32
    %566 = vector.broadcast %c0_i32_224 : i32 to vector<16x1xi32>
    %567 = arith.cmpi sge, %565, %566 : vector<16x1xi32>
    %c0_i32_225 = arith.constant 0 : i32
    %568 = vector.broadcast %c0_i32_225 : i32 to vector<16x1xi32>
    %569 = arith.addi %494, %568 : vector<16x1xi32>
    %c3_i32_226 = arith.constant 3 : i32
    %570 = vector.broadcast %c3_i32_226 : i32 to vector<16x1xi32>
    %571 = arith.cmpi sle, %569, %570 : vector<16x1xi32>
    %572 = arith.andi %567, %571 : vector<16x1xi1>
    %c-1_i32_227 = arith.constant -1 : i32
    %573 = vector.broadcast %c-1_i32_227 : i32 to vector<16x1xi32>
    %574 = arith.addi %496, %573 : vector<16x1xi32>
    %c0_i32_228 = arith.constant 0 : i32
    %575 = vector.broadcast %c0_i32_228 : i32 to vector<16x1xi32>
    %576 = arith.cmpi sge, %574, %575 : vector<16x1xi32>
    %c-1_i32_229 = arith.constant -1 : i32
    %577 = vector.broadcast %c-1_i32_229 : i32 to vector<16x1xi32>
    %578 = arith.addi %496, %577 : vector<16x1xi32>
    %c3_i32_230 = arith.constant 3 : i32
    %579 = vector.broadcast %c3_i32_230 : i32 to vector<16x1xi32>
    %580 = arith.cmpi sle, %578, %579 : vector<16x1xi32>
    %581 = arith.andi %576, %580 : vector<16x1xi1>
    %582 = arith.andi %572, %581 : vector<16x1xi1>
    %c15_231 = arith.constant 15 : index
    %c0_232 = arith.constant 0 : index
    %583 = vector.load %arg9[%c15_231, %c0_232] : memref<96x128xf32, #tpu.memory_space<vmem>>, vector<16x32xf32>
    %cst_233 = arith.constant 0.000000e+00 : f32
    %584 = vector.shape_cast %582 : vector<16x1xi1> to vector<16x1xi1>
    %585 = vector.broadcast %584 : vector<16x1xi1> to vector<16x32xi1>
    %586 = vector.broadcast %cst_233 : f32 to vector<16x32xf32>
    %587 = arith.select %585, %583, %586 : vector<16x32xi1>, vector<16x32xf32>
    %588 = vector.extract_strided_slice %488 {offsets = [3, 0], sizes = [1, 32], strides = [1, 1]} : vector<9x32xf32> to vector<1x32xf32>
    %589 = vector.broadcast %588 : vector<1x32xf32> to vector<16x32xf32>
    %590 = arith.mulf %587, %589 : vector<16x32xf32>
    %591 = arith.addf %563, %590 : vector<16x32xf32>
    %c0_i32_234 = arith.constant 0 : i32
    %592 = vector.broadcast %c0_i32_234 : i32 to vector<16x1xi32>
    %593 = arith.addi %496, %592 : vector<16x1xi32>
    %c0_i32_235 = arith.constant 0 : i32
    %594 = vector.broadcast %c0_i32_235 : i32 to vector<16x1xi32>
    %595 = arith.cmpi sge, %593, %594 : vector<16x1xi32>
    %c0_i32_236 = arith.constant 0 : i32
    %596 = vector.broadcast %c0_i32_236 : i32 to vector<16x1xi32>
    %597 = arith.addi %496, %596 : vector<16x1xi32>
    %c3_i32_237 = arith.constant 3 : i32
    %598 = vector.broadcast %c3_i32_237 : i32 to vector<16x1xi32>
    %599 = arith.cmpi sle, %597, %598 : vector<16x1xi32>
    %600 = arith.andi %595, %599 : vector<16x1xi1>
    %601 = arith.andi %572, %600 : vector<16x1xi1>
    %c16_238 = arith.constant 16 : index
    %c0_239 = arith.constant 0 : index
    %602 = vector.load %arg9[%c16_238, %c0_239] : memref<96x128xf32, #tpu.memory_space<vmem>>, vector<16x32xf32>
    %cst_240 = arith.constant 0.000000e+00 : f32
    %603 = vector.shape_cast %601 : vector<16x1xi1> to vector<16x1xi1>
    %604 = vector.broadcast %603 : vector<16x1xi1> to vector<16x32xi1>
    %605 = vector.broadcast %cst_240 : f32 to vector<16x32xf32>
    %606 = arith.select %604, %602, %605 : vector<16x32xi1>, vector<16x32xf32>
    %607 = vector.extract_strided_slice %488 {offsets = [4, 0], sizes = [1, 32], strides = [1, 1]} : vector<9x32xf32> to vector<1x32xf32>
    %608 = vector.broadcast %607 : vector<1x32xf32> to vector<16x32xf32>
    %609 = arith.mulf %606, %608 : vector<16x32xf32>
    %610 = arith.addf %591, %609 : vector<16x32xf32>
    %c1_i32_241 = arith.constant 1 : i32
    %611 = vector.broadcast %c1_i32_241 : i32 to vector<16x1xi32>
    %612 = arith.addi %496, %611 : vector<16x1xi32>
    %c0_i32_242 = arith.constant 0 : i32
    %613 = vector.broadcast %c0_i32_242 : i32 to vector<16x1xi32>
    %614 = arith.cmpi sge, %612, %613 : vector<16x1xi32>
    %c1_i32_243 = arith.constant 1 : i32
    %615 = vector.broadcast %c1_i32_243 : i32 to vector<16x1xi32>
    %616 = arith.addi %496, %615 : vector<16x1xi32>
    %c3_i32_244 = arith.constant 3 : i32
    %617 = vector.broadcast %c3_i32_244 : i32 to vector<16x1xi32>
    %618 = arith.cmpi sle, %616, %617 : vector<16x1xi32>
    %619 = arith.andi %614, %618 : vector<16x1xi1>
    %620 = arith.andi %572, %619 : vector<16x1xi1>
    %c17_245 = arith.constant 17 : index
    %c0_246 = arith.constant 0 : index
    %621 = vector.load %arg9[%c17_245, %c0_246] : memref<96x128xf32, #tpu.memory_space<vmem>>, vector<16x32xf32>
    %cst_247 = arith.constant 0.000000e+00 : f32
    %622 = vector.shape_cast %620 : vector<16x1xi1> to vector<16x1xi1>
    %623 = vector.broadcast %622 : vector<16x1xi1> to vector<16x32xi1>
    %624 = vector.broadcast %cst_247 : f32 to vector<16x32xf32>
    %625 = arith.select %623, %621, %624 : vector<16x32xi1>, vector<16x32xf32>
    %626 = vector.extract_strided_slice %488 {offsets = [5, 0], sizes = [1, 32], strides = [1, 1]} : vector<9x32xf32> to vector<1x32xf32>
    %627 = vector.broadcast %626 : vector<1x32xf32> to vector<16x32xf32>
    %628 = arith.mulf %625, %627 : vector<16x32xf32>
    %629 = arith.addf %610, %628 : vector<16x32xf32>
    %c1_i32_248 = arith.constant 1 : i32
    %630 = vector.broadcast %c1_i32_248 : i32 to vector<16x1xi32>
    %631 = arith.addi %494, %630 : vector<16x1xi32>
    %c0_i32_249 = arith.constant 0 : i32
    %632 = vector.broadcast %c0_i32_249 : i32 to vector<16x1xi32>
    %633 = arith.cmpi sge, %631, %632 : vector<16x1xi32>
    %c1_i32_250 = arith.constant 1 : i32
    %634 = vector.broadcast %c1_i32_250 : i32 to vector<16x1xi32>
    %635 = arith.addi %494, %634 : vector<16x1xi32>
    %c3_i32_251 = arith.constant 3 : i32
    %636 = vector.broadcast %c3_i32_251 : i32 to vector<16x1xi32>
    %637 = arith.cmpi sle, %635, %636 : vector<16x1xi32>
    %638 = arith.andi %633, %637 : vector<16x1xi1>
    %c-1_i32_252 = arith.constant -1 : i32
    %639 = vector.broadcast %c-1_i32_252 : i32 to vector<16x1xi32>
    %640 = arith.addi %496, %639 : vector<16x1xi32>
    %c0_i32_253 = arith.constant 0 : i32
    %641 = vector.broadcast %c0_i32_253 : i32 to vector<16x1xi32>
    %642 = arith.cmpi sge, %640, %641 : vector<16x1xi32>
    %c-1_i32_254 = arith.constant -1 : i32
    %643 = vector.broadcast %c-1_i32_254 : i32 to vector<16x1xi32>
    %644 = arith.addi %496, %643 : vector<16x1xi32>
    %c3_i32_255 = arith.constant 3 : i32
    %645 = vector.broadcast %c3_i32_255 : i32 to vector<16x1xi32>
    %646 = arith.cmpi sle, %644, %645 : vector<16x1xi32>
    %647 = arith.andi %642, %646 : vector<16x1xi1>
    %648 = arith.andi %638, %647 : vector<16x1xi1>
    %c19 = arith.constant 19 : index
    %c0_256 = arith.constant 0 : index
    %649 = vector.load %arg9[%c19, %c0_256] : memref<96x128xf32, #tpu.memory_space<vmem>>, vector<16x32xf32>
    %cst_257 = arith.constant 0.000000e+00 : f32
    %650 = vector.shape_cast %648 : vector<16x1xi1> to vector<16x1xi1>
    %651 = vector.broadcast %650 : vector<16x1xi1> to vector<16x32xi1>
    %652 = vector.broadcast %cst_257 : f32 to vector<16x32xf32>
    %653 = arith.select %651, %649, %652 : vector<16x32xi1>, vector<16x32xf32>
    %654 = vector.extract_strided_slice %488 {offsets = [6, 0], sizes = [1, 32], strides = [1, 1]} : vector<9x32xf32> to vector<1x32xf32>
    %655 = vector.broadcast %654 : vector<1x32xf32> to vector<16x32xf32>
    %656 = arith.mulf %653, %655 : vector<16x32xf32>
    %657 = arith.addf %629, %656 : vector<16x32xf32>
    %c0_i32_258 = arith.constant 0 : i32
    %658 = vector.broadcast %c0_i32_258 : i32 to vector<16x1xi32>
    %659 = arith.addi %496, %658 : vector<16x1xi32>
    %c0_i32_259 = arith.constant 0 : i32
    %660 = vector.broadcast %c0_i32_259 : i32 to vector<16x1xi32>
    %661 = arith.cmpi sge, %659, %660 : vector<16x1xi32>
    %c0_i32_260 = arith.constant 0 : i32
    %662 = vector.broadcast %c0_i32_260 : i32 to vector<16x1xi32>
    %663 = arith.addi %496, %662 : vector<16x1xi32>
    %c3_i32_261 = arith.constant 3 : i32
    %664 = vector.broadcast %c3_i32_261 : i32 to vector<16x1xi32>
    %665 = arith.cmpi sle, %663, %664 : vector<16x1xi32>
    %666 = arith.andi %661, %665 : vector<16x1xi1>
    %667 = arith.andi %638, %666 : vector<16x1xi1>
    %c20 = arith.constant 20 : index
    %c0_262 = arith.constant 0 : index
    %668 = vector.load %arg9[%c20, %c0_262] : memref<96x128xf32, #tpu.memory_space<vmem>>, vector<16x32xf32>
    %cst_263 = arith.constant 0.000000e+00 : f32
    %669 = vector.shape_cast %667 : vector<16x1xi1> to vector<16x1xi1>
    %670 = vector.broadcast %669 : vector<16x1xi1> to vector<16x32xi1>
    %671 = vector.broadcast %cst_263 : f32 to vector<16x32xf32>
    %672 = arith.select %670, %668, %671 : vector<16x32xi1>, vector<16x32xf32>
    %673 = vector.extract_strided_slice %488 {offsets = [7, 0], sizes = [1, 32], strides = [1, 1]} : vector<9x32xf32> to vector<1x32xf32>
    %674 = vector.broadcast %673 : vector<1x32xf32> to vector<16x32xf32>
    %675 = arith.mulf %672, %674 : vector<16x32xf32>
    %676 = arith.addf %657, %675 : vector<16x32xf32>
    %c1_i32_264 = arith.constant 1 : i32
    %677 = vector.broadcast %c1_i32_264 : i32 to vector<16x1xi32>
    %678 = arith.addi %496, %677 : vector<16x1xi32>
    %c0_i32_265 = arith.constant 0 : i32
    %679 = vector.broadcast %c0_i32_265 : i32 to vector<16x1xi32>
    %680 = arith.cmpi sge, %678, %679 : vector<16x1xi32>
    %c1_i32_266 = arith.constant 1 : i32
    %681 = vector.broadcast %c1_i32_266 : i32 to vector<16x1xi32>
    %682 = arith.addi %496, %681 : vector<16x1xi32>
    %c3_i32_267 = arith.constant 3 : i32
    %683 = vector.broadcast %c3_i32_267 : i32 to vector<16x1xi32>
    %684 = arith.cmpi sle, %682, %683 : vector<16x1xi32>
    %685 = arith.andi %680, %684 : vector<16x1xi1>
    %686 = arith.andi %638, %685 : vector<16x1xi1>
    %c21 = arith.constant 21 : index
    %c0_268 = arith.constant 0 : index
    %687 = vector.load %arg9[%c21, %c0_268] : memref<96x128xf32, #tpu.memory_space<vmem>>, vector<16x32xf32>
    %cst_269 = arith.constant 0.000000e+00 : f32
    %688 = vector.shape_cast %686 : vector<16x1xi1> to vector<16x1xi1>
    %689 = vector.broadcast %688 : vector<16x1xi1> to vector<16x32xi1>
    %690 = vector.broadcast %cst_269 : f32 to vector<16x32xf32>
    %691 = arith.select %689, %687, %690 : vector<16x32xi1>, vector<16x32xf32>
    %692 = vector.extract_strided_slice %488 {offsets = [8, 0], sizes = [1, 32], strides = [1, 1]} : vector<9x32xf32> to vector<1x32xf32>
    %693 = vector.broadcast %692 : vector<1x32xf32> to vector<16x32xf32>
    %694 = arith.mulf %691, %693 : vector<16x32xf32>
    %695 = arith.addf %676, %694 : vector<16x32xf32>
    %696 = vector.broadcast %489 : vector<1x32xf32> to vector<16x32xf32>
    %697 = arith.addf %695, %696 : vector<16x32xf32>
    %cst_270 = arith.constant 0.000000e+00 : f32
    %698 = vector.broadcast %cst_270 : f32 to vector<16x32xf32>
    %699 = arith.maximumf %697, %698 : vector<16x32xf32>
    %c3 = arith.constant 3 : index
    %c0_271 = arith.constant 0 : index
    %c0_272 = arith.constant 0 : index
    %700 = vector.load %arg4[%c3, %c0_271, %c0_272] : memref<26x128x128xbf16, #tpu.memory_space<vmem>>, vector<1x32x16xbf16>
    %701 = vector.shape_cast %700 : vector<1x32x16xbf16> to vector<32x16xbf16>
    %702 = arith.truncf %699 : vector<16x32xf32> to vector<16x32xbf16>
    %cst_273 = arith.constant dense<0.000000e+00> : vector<16x16xf32>
    %703 = tpu.matmul %702, %701, %cst_273 {dimension_numbers = #tpu.dot_dimension_numbers<[1], [0], [0], [1], [0, 0, 1, 1], [], []>} : vector<16x32xbf16>, vector<32x16xbf16>, vector<16x16xf32> -> vector<16x16xf32>
    %c3_274 = arith.constant 3 : index
    %c0_275 = arith.constant 0 : index
    %704 = vector.load %arg5[%c3_274, %c0_275] : memref<26x128xf32, #tpu.memory_space<vmem>>, vector<1x16xf32>
    %705 = vector.broadcast %704 : vector<1x16xf32> to vector<16x16xf32>
    %706 = arith.addf %703, %705 : vector<16x16xf32>
    %707 = arith.addf %706, %476 : vector<16x16xf32>
    %c4 = arith.constant 4 : index
    %c0_276 = arith.constant 0 : index
    %c0_277 = arith.constant 0 : index
    %708 = vector.load %arg4[%c4, %c0_276, %c0_277] : memref<26x128x128xbf16, #tpu.memory_space<vmem>>, vector<1x16x32xbf16>
    %709 = vector.shape_cast %708 : vector<1x16x32xbf16> to vector<16x32xbf16>
    %710 = arith.truncf %707 : vector<16x16xf32> to vector<16x16xbf16>
    %cst_278 = arith.constant dense<0.000000e+00> : vector<16x32xf32>
    %711 = tpu.matmul %710, %709, %cst_278 {dimension_numbers = #tpu.dot_dimension_numbers<[1], [0], [0], [1], [0, 0, 1, 1], [], []>} : vector<16x16xbf16>, vector<16x32xbf16>, vector<16x32xf32> -> vector<16x32xf32>
    %c4_279 = arith.constant 4 : index
    %c0_280 = arith.constant 0 : index
    %712 = vector.load %arg5[%c4_279, %c0_280] : memref<26x128xf32, #tpu.memory_space<vmem>>, vector<1x32xf32>
    %713 = vector.broadcast %712 : vector<1x32xf32> to vector<16x32xf32>
    %714 = arith.addf %711, %713 : vector<16x32xf32>
    %cst_281 = arith.constant 0.000000e+00 : f32
    %715 = vector.broadcast %cst_281 : f32 to vector<16x32xf32>
    %716 = arith.maximumf %714, %715 : vector<16x32xf32>
    %c16_282 = arith.constant 16 : index
    %c0_283 = arith.constant 0 : index
    %717 = vector.load %arg9[%c16_282, %c0_283] : memref<96x128xf32, #tpu.memory_space<vmem>>, vector<16x32xf32>
    tpu.vector_store %arg9[%c16_282, %c0_283], %716 {strides = array<i32>} : memref<96x128xf32, #tpu.memory_space<vmem>>, vector<16x32xf32>,
    %c3_284 = arith.constant 3 : index
    %c0_285 = arith.constant 0 : index
    %c0_286 = arith.constant 0 : index
    %718 = vector.load %arg6[%c3_284, %c0_285, %c0_286] : memref<14x9x128xf32, #tpu.memory_space<vmem>>, vector<1x9x32xf32>
    %719 = vector.shape_cast %718 : vector<1x9x32xf32> to vector<9x32xf32>
    %c3_287 = arith.constant 3 : index
    %c0_288 = arith.constant 0 : index
    %720 = vector.load %arg7[%c3_287, %c0_288] : memref<14x128xf32, #tpu.memory_space<vmem>>, vector<1x32xf32>
    %721 = tpu.iota {dimensions = array<i32: 0>} : vector<16x1xi32>
    %c15_i32_289 = arith.constant 15 : i32
    %722 = vector.broadcast %c15_i32_289 : i32 to vector<16x1xi32>
    %723 = arith.andi %721, %722 : vector<16x1xi32>
    %c2_i32_290 = arith.constant 2 : i32
    %724 = vector.broadcast %c2_i32_290 : i32 to vector<16x1xi32>
    %725 = arith.shrsi %723, %724 : vector<16x1xi32>
    %c3_i32_291 = arith.constant 3 : i32
    %726 = vector.broadcast %c3_i32_291 : i32 to vector<16x1xi32>
    %727 = arith.andi %723, %726 : vector<16x1xi32>
    %cst_292 = arith.constant 0.000000e+00 : f32
    %728 = vector.broadcast %cst_292 : f32 to vector<16x32xf32>
    %c-1_i32_293 = arith.constant -1 : i32
    %729 = vector.broadcast %c-1_i32_293 : i32 to vector<16x1xi32>
    %730 = arith.addi %725, %729 : vector<16x1xi32>
    %c0_i32_294 = arith.constant 0 : i32
    %731 = vector.broadcast %c0_i32_294 : i32 to vector<16x1xi32>
    %732 = arith.cmpi sge, %730, %731 : vector<16x1xi32>
    %c-1_i32_295 = arith.constant -1 : i32
    %733 = vector.broadcast %c-1_i32_295 : i32 to vector<16x1xi32>
    %734 = arith.addi %725, %733 : vector<16x1xi32>
    %c3_i32_296 = arith.constant 3 : i32
    %735 = vector.broadcast %c3_i32_296 : i32 to vector<16x1xi32>
    %736 = arith.cmpi sle, %734, %735 : vector<16x1xi32>
    %737 = arith.andi %732, %736 : vector<16x1xi1>
    %c-1_i32_297 = arith.constant -1 : i32
    %738 = vector.broadcast %c-1_i32_297 : i32 to vector<16x1xi32>
    %739 = arith.addi %727, %738 : vector<16x1xi32>
    %c0_i32_298 = arith.constant 0 : i32
    %740 = vector.broadcast %c0_i32_298 : i32 to vector<16x1xi32>
    %741 = arith.cmpi sge, %739, %740 : vector<16x1xi32>
    %c-1_i32_299 = arith.constant -1 : i32
    %742 = vector.broadcast %c-1_i32_299 : i32 to vector<16x1xi32>
    %743 = arith.addi %727, %742 : vector<16x1xi32>
    %c3_i32_300 = arith.constant 3 : i32
    %744 = vector.broadcast %c3_i32_300 : i32 to vector<16x1xi32>
    %745 = arith.cmpi sle, %743, %744 : vector<16x1xi32>
    %746 = arith.andi %741, %745 : vector<16x1xi1>
    %747 = arith.andi %737, %746 : vector<16x1xi1>
    %c11_301 = arith.constant 11 : index
    %c0_302 = arith.constant 0 : index
    %748 = vector.load %arg9[%c11_301, %c0_302] : memref<96x128xf32, #tpu.memory_space<vmem>>, vector<16x32xf32>
    %cst_303 = arith.constant 0.000000e+00 : f32
    %749 = vector.shape_cast %747 : vector<16x1xi1> to vector<16x1xi1>
    %750 = vector.broadcast %749 : vector<16x1xi1> to vector<16x32xi1>
    %751 = vector.broadcast %cst_303 : f32 to vector<16x32xf32>
    %752 = arith.select %750, %748, %751 : vector<16x32xi1>, vector<16x32xf32>
    %753 = vector.extract_strided_slice %719 {offsets = [0, 0], sizes = [1, 32], strides = [1, 1]} : vector<9x32xf32> to vector<1x32xf32>
    %754 = vector.broadcast %753 : vector<1x32xf32> to vector<16x32xf32>
    %755 = arith.mulf %752, %754 : vector<16x32xf32>
    %756 = arith.addf %728, %755 : vector<16x32xf32>
    %c0_i32_304 = arith.constant 0 : i32
    %757 = vector.broadcast %c0_i32_304 : i32 to vector<16x1xi32>
    %758 = arith.addi %727, %757 : vector<16x1xi32>
    %c0_i32_305 = arith.constant 0 : i32
    %759 = vector.broadcast %c0_i32_305 : i32 to vector<16x1xi32>
    %760 = arith.cmpi sge, %758, %759 : vector<16x1xi32>
    %c0_i32_306 = arith.constant 0 : i32
    %761 = vector.broadcast %c0_i32_306 : i32 to vector<16x1xi32>
    %762 = arith.addi %727, %761 : vector<16x1xi32>
    %c3_i32_307 = arith.constant 3 : i32
    %763 = vector.broadcast %c3_i32_307 : i32 to vector<16x1xi32>
    %764 = arith.cmpi sle, %762, %763 : vector<16x1xi32>
    %765 = arith.andi %760, %764 : vector<16x1xi1>
    %766 = arith.andi %737, %765 : vector<16x1xi1>
    %c12_308 = arith.constant 12 : index
    %c0_309 = arith.constant 0 : index
    %767 = vector.load %arg9[%c12_308, %c0_309] : memref<96x128xf32, #tpu.memory_space<vmem>>, vector<16x32xf32>
    %cst_310 = arith.constant 0.000000e+00 : f32
    %768 = vector.shape_cast %766 : vector<16x1xi1> to vector<16x1xi1>
    %769 = vector.broadcast %768 : vector<16x1xi1> to vector<16x32xi1>
    %770 = vector.broadcast %cst_310 : f32 to vector<16x32xf32>
    %771 = arith.select %769, %767, %770 : vector<16x32xi1>, vector<16x32xf32>
    %772 = vector.extract_strided_slice %719 {offsets = [1, 0], sizes = [1, 32], strides = [1, 1]} : vector<9x32xf32> to vector<1x32xf32>
    %773 = vector.broadcast %772 : vector<1x32xf32> to vector<16x32xf32>
    %774 = arith.mulf %771, %773 : vector<16x32xf32>
    %775 = arith.addf %756, %774 : vector<16x32xf32>
    %c1_i32_311 = arith.constant 1 : i32
    %776 = vector.broadcast %c1_i32_311 : i32 to vector<16x1xi32>
    %777 = arith.addi %727, %776 : vector<16x1xi32>
    %c0_i32_312 = arith.constant 0 : i32
    %778 = vector.broadcast %c0_i32_312 : i32 to vector<16x1xi32>
    %779 = arith.cmpi sge, %777, %778 : vector<16x1xi32>
    %c1_i32_313 = arith.constant 1 : i32
    %780 = vector.broadcast %c1_i32_313 : i32 to vector<16x1xi32>
    %781 = arith.addi %727, %780 : vector<16x1xi32>
    %c3_i32_314 = arith.constant 3 : i32
    %782 = vector.broadcast %c3_i32_314 : i32 to vector<16x1xi32>
    %783 = arith.cmpi sle, %781, %782 : vector<16x1xi32>
    %784 = arith.andi %779, %783 : vector<16x1xi1>
    %785 = arith.andi %737, %784 : vector<16x1xi1>
    %c13_315 = arith.constant 13 : index
    %c0_316 = arith.constant 0 : index
    %786 = vector.load %arg9[%c13_315, %c0_316] : memref<96x128xf32, #tpu.memory_space<vmem>>, vector<16x32xf32>
    %cst_317 = arith.constant 0.000000e+00 : f32
    %787 = vector.shape_cast %785 : vector<16x1xi1> to vector<16x1xi1>
    %788 = vector.broadcast %787 : vector<16x1xi1> to vector<16x32xi1>
    %789 = vector.broadcast %cst_317 : f32 to vector<16x32xf32>
    %790 = arith.select %788, %786, %789 : vector<16x32xi1>, vector<16x32xf32>
    %791 = vector.extract_strided_slice %719 {offsets = [2, 0], sizes = [1, 32], strides = [1, 1]} : vector<9x32xf32> to vector<1x32xf32>
    %792 = vector.broadcast %791 : vector<1x32xf32> to vector<16x32xf32>
    %793 = arith.mulf %790, %792 : vector<16x32xf32>
    %794 = arith.addf %775, %793 : vector<16x32xf32>
    %c0_i32_318 = arith.constant 0 : i32
    %795 = vector.broadcast %c0_i32_318 : i32 to vector<16x1xi32>
    %796 = arith.addi %725, %795 : vector<16x1xi32>
    %c0_i32_319 = arith.constant 0 : i32
    %797 = vector.broadcast %c0_i32_319 : i32 to vector<16x1xi32>
    %798 = arith.cmpi sge, %796, %797 : vector<16x1xi32>
    %c0_i32_320 = arith.constant 0 : i32
    %799 = vector.broadcast %c0_i32_320 : i32 to vector<16x1xi32>
    %800 = arith.addi %725, %799 : vector<16x1xi32>
    %c3_i32_321 = arith.constant 3 : i32
    %801 = vector.broadcast %c3_i32_321 : i32 to vector<16x1xi32>
    %802 = arith.cmpi sle, %800, %801 : vector<16x1xi32>
    %803 = arith.andi %798, %802 : vector<16x1xi1>
    %c-1_i32_322 = arith.constant -1 : i32
    %804 = vector.broadcast %c-1_i32_322 : i32 to vector<16x1xi32>
    %805 = arith.addi %727, %804 : vector<16x1xi32>
    %c0_i32_323 = arith.constant 0 : i32
    %806 = vector.broadcast %c0_i32_323 : i32 to vector<16x1xi32>
    %807 = arith.cmpi sge, %805, %806 : vector<16x1xi32>
    %c-1_i32_324 = arith.constant -1 : i32
    %808 = vector.broadcast %c-1_i32_324 : i32 to vector<16x1xi32>
    %809 = arith.addi %727, %808 : vector<16x1xi32>
    %c3_i32_325 = arith.constant 3 : i32
    %810 = vector.broadcast %c3_i32_325 : i32 to vector<16x1xi32>
    %811 = arith.cmpi sle, %809, %810 : vector<16x1xi32>
    %812 = arith.andi %807, %811 : vector<16x1xi1>
    %813 = arith.andi %803, %812 : vector<16x1xi1>
    %c15_326 = arith.constant 15 : index
    %c0_327 = arith.constant 0 : index
    %814 = vector.load %arg9[%c15_326, %c0_327] : memref<96x128xf32, #tpu.memory_space<vmem>>, vector<16x32xf32>
    %cst_328 = arith.constant 0.000000e+00 : f32
    %815 = vector.shape_cast %813 : vector<16x1xi1> to vector<16x1xi1>
    %816 = vector.broadcast %815 : vector<16x1xi1> to vector<16x32xi1>
    %817 = vector.broadcast %cst_328 : f32 to vector<16x32xf32>
    %818 = arith.select %816, %814, %817 : vector<16x32xi1>, vector<16x32xf32>
    %819 = vector.extract_strided_slice %719 {offsets = [3, 0], sizes = [1, 32], strides = [1, 1]} : vector<9x32xf32> to vector<1x32xf32>
    %820 = vector.broadcast %819 : vector<1x32xf32> to vector<16x32xf32>
    %821 = arith.mulf %818, %820 : vector<16x32xf32>
    %822 = arith.addf %794, %821 : vector<16x32xf32>
    %c0_i32_329 = arith.constant 0 : i32
    %823 = vector.broadcast %c0_i32_329 : i32 to vector<16x1xi32>
    %824 = arith.addi %727, %823 : vector<16x1xi32>
    %c0_i32_330 = arith.constant 0 : i32
    %825 = vector.broadcast %c0_i32_330 : i32 to vector<16x1xi32>
    %826 = arith.cmpi sge, %824, %825 : vector<16x1xi32>
    %c0_i32_331 = arith.constant 0 : i32
    %827 = vector.broadcast %c0_i32_331 : i32 to vector<16x1xi32>
    %828 = arith.addi %727, %827 : vector<16x1xi32>
    %c3_i32_332 = arith.constant 3 : i32
    %829 = vector.broadcast %c3_i32_332 : i32 to vector<16x1xi32>
    %830 = arith.cmpi sle, %828, %829 : vector<16x1xi32>
    %831 = arith.andi %826, %830 : vector<16x1xi1>
    %832 = arith.andi %803, %831 : vector<16x1xi1>
    %c16_333 = arith.constant 16 : index
    %c0_334 = arith.constant 0 : index
    %833 = vector.load %arg9[%c16_333, %c0_334] : memref<96x128xf32, #tpu.memory_space<vmem>>, vector<16x32xf32>
    %cst_335 = arith.constant 0.000000e+00 : f32
    %834 = vector.shape_cast %832 : vector<16x1xi1> to vector<16x1xi1>
    %835 = vector.broadcast %834 : vector<16x1xi1> to vector<16x32xi1>
    %836 = vector.broadcast %cst_335 : f32 to vector<16x32xf32>
    %837 = arith.select %835, %833, %836 : vector<16x32xi1>, vector<16x32xf32>
    %838 = vector.extract_strided_slice %719 {offsets = [4, 0], sizes = [1, 32], strides = [1, 1]} : vector<9x32xf32> to vector<1x32xf32>
    %839 = vector.broadcast %838 : vector<1x32xf32> to vector<16x32xf32>
    %840 = arith.mulf %837, %839 : vector<16x32xf32>
    %841 = arith.addf %822, %840 : vector<16x32xf32>
    %c1_i32_336 = arith.constant 1 : i32
    %842 = vector.broadcast %c1_i32_336 : i32 to vector<16x1xi32>
    %843 = arith.addi %727, %842 : vector<16x1xi32>
    %c0_i32_337 = arith.constant 0 : i32
    %844 = vector.broadcast %c0_i32_337 : i32 to vector<16x1xi32>
    %845 = arith.cmpi sge, %843, %844 : vector<16x1xi32>
    %c1_i32_338 = arith.constant 1 : i32
    %846 = vector.broadcast %c1_i32_338 : i32 to vector<16x1xi32>
    %847 = arith.addi %727, %846 : vector<16x1xi32>
    %c3_i32_339 = arith.constant 3 : i32
    %848 = vector.broadcast %c3_i32_339 : i32 to vector<16x1xi32>
    %849 = arith.cmpi sle, %847, %848 : vector<16x1xi32>
    %850 = arith.andi %845, %849 : vector<16x1xi1>
    %851 = arith.andi %803, %850 : vector<16x1xi1>
    %c17_340 = arith.constant 17 : index
    %c0_341 = arith.constant 0 : index
    %852 = vector.load %arg9[%c17_340, %c0_341] : memref<96x128xf32, #tpu.memory_space<vmem>>, vector<16x32xf32>
    %cst_342 = arith.constant 0.000000e+00 : f32
    %853 = vector.shape_cast %851 : vector<16x1xi1> to vector<16x1xi1>
    %854 = vector.broadcast %853 : vector<16x1xi1> to vector<16x32xi1>
    %855 = vector.broadcast %cst_342 : f32 to vector<16x32xf32>
    %856 = arith.select %854, %852, %855 : vector<16x32xi1>, vector<16x32xf32>
    %857 = vector.extract_strided_slice %719 {offsets = [5, 0], sizes = [1, 32], strides = [1, 1]} : vector<9x32xf32> to vector<1x32xf32>
    %858 = vector.broadcast %857 : vector<1x32xf32> to vector<16x32xf32>
    %859 = arith.mulf %856, %858 : vector<16x32xf32>
    %860 = arith.addf %841, %859 : vector<16x32xf32>
    %c1_i32_343 = arith.constant 1 : i32
    %861 = vector.broadcast %c1_i32_343 : i32 to vector<16x1xi32>
    %862 = arith.addi %725, %861 : vector<16x1xi32>
    %c0_i32_344 = arith.constant 0 : i32
    %863 = vector.broadcast %c0_i32_344 : i32 to vector<16x1xi32>
    %864 = arith.cmpi sge, %862, %863 : vector<16x1xi32>
    %c1_i32_345 = arith.constant 1 : i32
    %865 = vector.broadcast %c1_i32_345 : i32 to vector<16x1xi32>
    %866 = arith.addi %725, %865 : vector<16x1xi32>
    %c3_i32_346 = arith.constant 3 : i32
    %867 = vector.broadcast %c3_i32_346 : i32 to vector<16x1xi32>
    %868 = arith.cmpi sle, %866, %867 : vector<16x1xi32>
    %869 = arith.andi %864, %868 : vector<16x1xi1>
    %c-1_i32_347 = arith.constant -1 : i32
    %870 = vector.broadcast %c-1_i32_347 : i32 to vector<16x1xi32>
    %871 = arith.addi %727, %870 : vector<16x1xi32>
    %c0_i32_348 = arith.constant 0 : i32
    %872 = vector.broadcast %c0_i32_348 : i32 to vector<16x1xi32>
    %873 = arith.cmpi sge, %871, %872 : vector<16x1xi32>
    %c-1_i32_349 = arith.constant -1 : i32
    %874 = vector.broadcast %c-1_i32_349 : i32 to vector<16x1xi32>
    %875 = arith.addi %727, %874 : vector<16x1xi32>
    %c3_i32_350 = arith.constant 3 : i32
    %876 = vector.broadcast %c3_i32_350 : i32 to vector<16x1xi32>
    %877 = arith.cmpi sle, %875, %876 : vector<16x1xi32>
    %878 = arith.andi %873, %877 : vector<16x1xi1>
    %879 = arith.andi %869, %878 : vector<16x1xi1>
    %c19_351 = arith.constant 19 : index
    %c0_352 = arith.constant 0 : index
    %880 = vector.load %arg9[%c19_351, %c0_352] : memref<96x128xf32, #tpu.memory_space<vmem>>, vector<16x32xf32>
    %cst_353 = arith.constant 0.000000e+00 : f32
    %881 = vector.shape_cast %879 : vector<16x1xi1> to vector<16x1xi1>
    %882 = vector.broadcast %881 : vector<16x1xi1> to vector<16x32xi1>
    %883 = vector.broadcast %cst_353 : f32 to vector<16x32xf32>
    %884 = arith.select %882, %880, %883 : vector<16x32xi1>, vector<16x32xf32>
    %885 = vector.extract_strided_slice %719 {offsets = [6, 0], sizes = [1, 32], strides = [1, 1]} : vector<9x32xf32> to vector<1x32xf32>
    %886 = vector.broadcast %885 : vector<1x32xf32> to vector<16x32xf32>
    %887 = arith.mulf %884, %886 : vector<16x32xf32>
    %888 = arith.addf %860, %887 : vector<16x32xf32>
    %c0_i32_354 = arith.constant 0 : i32
    %889 = vector.broadcast %c0_i32_354 : i32 to vector<16x1xi32>
    %890 = arith.addi %727, %889 : vector<16x1xi32>
    %c0_i32_355 = arith.constant 0 : i32
    %891 = vector.broadcast %c0_i32_355 : i32 to vector<16x1xi32>
    %892 = arith.cmpi sge, %890, %891 : vector<16x1xi32>
    %c0_i32_356 = arith.constant 0 : i32
    %893 = vector.broadcast %c0_i32_356 : i32 to vector<16x1xi32>
    %894 = arith.addi %727, %893 : vector<16x1xi32>
    %c3_i32_357 = arith.constant 3 : i32
    %895 = vector.broadcast %c3_i32_357 : i32 to vector<16x1xi32>
    %896 = arith.cmpi sle, %894, %895 : vector<16x1xi32>
    %897 = arith.andi %892, %896 : vector<16x1xi1>
    %898 = arith.andi %869, %897 : vector<16x1xi1>
    %c20_358 = arith.constant 20 : index
    %c0_359 = arith.constant 0 : index
    %899 = vector.load %arg9[%c20_358, %c0_359] : memref<96x128xf32, #tpu.memory_space<vmem>>, vector<16x32xf32>
    %cst_360 = arith.constant 0.000000e+00 : f32
    %900 = vector.shape_cast %898 : vector<16x1xi1> to vector<16x1xi1>
    %901 = vector.broadcast %900 : vector<16x1xi1> to vector<16x32xi1>
    %902 = vector.broadcast %cst_360 : f32 to vector<16x32xf32>
    %903 = arith.select %901, %899, %902 : vector<16x32xi1>, vector<16x32xf32>
    %904 = vector.extract_strided_slice %719 {offsets = [7, 0], sizes = [1, 32], strides = [1, 1]} : vector<9x32xf32> to vector<1x32xf32>
    %905 = vector.broadcast %904 : vector<1x32xf32> to vector<16x32xf32>
    %906 = arith.mulf %903, %905 : vector<16x32xf32>
    %907 = arith.addf %888, %906 : vector<16x32xf32>
    %c1_i32_361 = arith.constant 1 : i32
    %908 = vector.broadcast %c1_i32_361 : i32 to vector<16x1xi32>
    %909 = arith.addi %727, %908 : vector<16x1xi32>
    %c0_i32_362 = arith.constant 0 : i32
    %910 = vector.broadcast %c0_i32_362 : i32 to vector<16x1xi32>
    %911 = arith.cmpi sge, %909, %910 : vector<16x1xi32>
    %c1_i32_363 = arith.constant 1 : i32
    %912 = vector.broadcast %c1_i32_363 : i32 to vector<16x1xi32>
    %913 = arith.addi %727, %912 : vector<16x1xi32>
    %c3_i32_364 = arith.constant 3 : i32
    %914 = vector.broadcast %c3_i32_364 : i32 to vector<16x1xi32>
    %915 = arith.cmpi sle, %913, %914 : vector<16x1xi32>
    %916 = arith.andi %911, %915 : vector<16x1xi1>
    %917 = arith.andi %869, %916 : vector<16x1xi1>
    %c21_365 = arith.constant 21 : index
    %c0_366 = arith.constant 0 : index
    %918 = vector.load %arg9[%c21_365, %c0_366] : memref<96x128xf32, #tpu.memory_space<vmem>>, vector<16x32xf32>
    %cst_367 = arith.constant 0.000000e+00 : f32
    %919 = vector.shape_cast %917 : vector<16x1xi1> to vector<16x1xi1>
    %920 = vector.broadcast %919 : vector<16x1xi1> to vector<16x32xi1>
    %921 = vector.broadcast %cst_367 : f32 to vector<16x32xf32>
    %922 = arith.select %920, %918, %921 : vector<16x32xi1>, vector<16x32xf32>
    %923 = vector.extract_strided_slice %719 {offsets = [8, 0], sizes = [1, 32], strides = [1, 1]} : vector<9x32xf32> to vector<1x32xf32>
    %924 = vector.broadcast %923 : vector<1x32xf32> to vector<16x32xf32>
    %925 = arith.mulf %922, %924 : vector<16x32xf32>
    %926 = arith.addf %907, %925 : vector<16x32xf32>
    %927 = vector.broadcast %720 : vector<1x32xf32> to vector<16x32xf32>
    %928 = arith.addf %926, %927 : vector<16x32xf32>
    %cst_368 = arith.constant 0.000000e+00 : f32
    %929 = vector.broadcast %cst_368 : f32 to vector<16x32xf32>
    %930 = arith.maximumf %928, %929 : vector<16x32xf32>
    %c5 = arith.constant 5 : index
    %c0_369 = arith.constant 0 : index
    %c0_370 = arith.constant 0 : index
    %931 = vector.load %arg4[%c5, %c0_369, %c0_370] : memref<26x128x128xbf16, #tpu.memory_space<vmem>>, vector<1x32x16xbf16>
    %932 = vector.shape_cast %931 : vector<1x32x16xbf16> to vector<32x16xbf16>
    %933 = arith.truncf %930 : vector<16x32xf32> to vector<16x32xbf16>
    %cst_371 = arith.constant dense<0.000000e+00> : vector<16x16xf32>
    %934 = tpu.matmul %933, %932, %cst_371 {dimension_numbers = #tpu.dot_dimension_numbers<[1], [0], [0], [1], [0, 0, 1, 1], [], []>} : vector<16x32xbf16>, vector<32x16xbf16>, vector<16x16xf32> -> vector<16x16xf32>
    %c5_372 = arith.constant 5 : index
    %c0_373 = arith.constant 0 : index
    %935 = vector.load %arg5[%c5_372, %c0_373] : memref<26x128xf32, #tpu.memory_space<vmem>>, vector<1x16xf32>
    %936 = vector.broadcast %935 : vector<1x16xf32> to vector<16x16xf32>
    %937 = arith.addf %934, %936 : vector<16x16xf32>
    %938 = arith.addf %937, %707 : vector<16x16xf32>
    %c6 = arith.constant 6 : index
    %c0_374 = arith.constant 0 : index
    %c0_375 = arith.constant 0 : index
    %939 = vector.load %arg4[%c6, %c0_374, %c0_375] : memref<26x128x128xbf16, #tpu.memory_space<vmem>>, vector<1x16x32xbf16>
    %940 = vector.shape_cast %939 : vector<1x16x32xbf16> to vector<16x32xbf16>
    %941 = arith.truncf %938 : vector<16x16xf32> to vector<16x16xbf16>
    %cst_376 = arith.constant dense<0.000000e+00> : vector<16x32xf32>
    %942 = tpu.matmul %941, %940, %cst_376 {dimension_numbers = #tpu.dot_dimension_numbers<[1], [0], [0], [1], [0, 0, 1, 1], [], []>} : vector<16x16xbf16>, vector<16x32xbf16>, vector<16x32xf32> -> vector<16x32xf32>
    %c6_377 = arith.constant 6 : index
    %c0_378 = arith.constant 0 : index
    %943 = vector.load %arg5[%c6_377, %c0_378] : memref<26x128xf32, #tpu.memory_space<vmem>>, vector<1x32xf32>
    %944 = vector.broadcast %943 : vector<1x32xf32> to vector<16x32xf32>
    %945 = arith.addf %942, %944 : vector<16x32xf32>
    %cst_379 = arith.constant 0.000000e+00 : f32
    %946 = vector.broadcast %cst_379 : f32 to vector<16x32xf32>
    %947 = arith.maximumf %945, %946 : vector<16x32xf32>
    %c16_380 = arith.constant 16 : index
    %c0_381 = arith.constant 0 : index
    %948 = vector.load %arg9[%c16_380, %c0_381] : memref<96x128xf32, #tpu.memory_space<vmem>>, vector<16x32xf32>
    tpu.vector_store %arg9[%c16_380, %c0_381], %947 {strides = array<i32>} : memref<96x128xf32, #tpu.memory_space<vmem>>, vector<16x32xf32>,
    %c4_382 = arith.constant 4 : index
    %c0_383 = arith.constant 0 : index
    %c0_384 = arith.constant 0 : index
    %949 = vector.load %arg6[%c4_382, %c0_383, %c0_384] : memref<14x9x128xf32, #tpu.memory_space<vmem>>, vector<1x9x32xf32>
    %950 = vector.shape_cast %949 : vector<1x9x32xf32> to vector<9x32xf32>
    %c4_385 = arith.constant 4 : index
    %c0_386 = arith.constant 0 : index
    %951 = vector.load %arg7[%c4_385, %c0_386] : memref<14x128xf32, #tpu.memory_space<vmem>>, vector<1x32xf32>
    %952 = tpu.iota {dimensions = array<i32: 0>} : vector<16x1xi32>
    %c15_i32_387 = arith.constant 15 : i32
    %953 = vector.broadcast %c15_i32_387 : i32 to vector<16x1xi32>
    %954 = arith.andi %952, %953 : vector<16x1xi32>
    %c2_i32_388 = arith.constant 2 : i32
    %955 = vector.broadcast %c2_i32_388 : i32 to vector<16x1xi32>
    %956 = arith.shrsi %954, %955 : vector<16x1xi32>
    %c3_i32_389 = arith.constant 3 : i32
    %957 = vector.broadcast %c3_i32_389 : i32 to vector<16x1xi32>
    %958 = arith.andi %954, %957 : vector<16x1xi32>
    %cst_390 = arith.constant 0.000000e+00 : f32
    %959 = vector.broadcast %cst_390 : f32 to vector<16x32xf32>
    %c-1_i32_391 = arith.constant -1 : i32
    %960 = vector.broadcast %c-1_i32_391 : i32 to vector<16x1xi32>
    %961 = arith.addi %956, %960 : vector<16x1xi32>
    %c0_i32_392 = arith.constant 0 : i32
    %962 = vector.broadcast %c0_i32_392 : i32 to vector<16x1xi32>
    %963 = arith.cmpi sge, %961, %962 : vector<16x1xi32>
    %c-1_i32_393 = arith.constant -1 : i32
    %964 = vector.broadcast %c-1_i32_393 : i32 to vector<16x1xi32>
    %965 = arith.addi %956, %964 : vector<16x1xi32>
    %c3_i32_394 = arith.constant 3 : i32
    %966 = vector.broadcast %c3_i32_394 : i32 to vector<16x1xi32>
    %967 = arith.cmpi sle, %965, %966 : vector<16x1xi32>
    %968 = arith.andi %963, %967 : vector<16x1xi1>
    %c-1_i32_395 = arith.constant -1 : i32
    %969 = vector.broadcast %c-1_i32_395 : i32 to vector<16x1xi32>
    %970 = arith.addi %958, %969 : vector<16x1xi32>
    %c0_i32_396 = arith.constant 0 : i32
    %971 = vector.broadcast %c0_i32_396 : i32 to vector<16x1xi32>
    %972 = arith.cmpi sge, %970, %971 : vector<16x1xi32>
    %c-1_i32_397 = arith.constant -1 : i32
    %973 = vector.broadcast %c-1_i32_397 : i32 to vector<16x1xi32>
    %974 = arith.addi %958, %973 : vector<16x1xi32>
    %c3_i32_398 = arith.constant 3 : i32
    %975 = vector.broadcast %c3_i32_398 : i32 to vector<16x1xi32>
    %976 = arith.cmpi sle, %974, %975 : vector<16x1xi32>
    %977 = arith.andi %972, %976 : vector<16x1xi1>
    %978 = arith.andi %968, %977 : vector<16x1xi1>
    %c11_399 = arith.constant 11 : index
    %c0_400 = arith.constant 0 : index
    %979 = vector.load %arg9[%c11_399, %c0_400] : memref<96x128xf32, #tpu.memory_space<vmem>>, vector<16x32xf32>
    %cst_401 = arith.constant 0.000000e+00 : f32
    %980 = vector.shape_cast %978 : vector<16x1xi1> to vector<16x1xi1>
    %981 = vector.broadcast %980 : vector<16x1xi1> to vector<16x32xi1>
    %982 = vector.broadcast %cst_401 : f32 to vector<16x32xf32>
    %983 = arith.select %981, %979, %982 : vector<16x32xi1>, vector<16x32xf32>
    %984 = vector.extract_strided_slice %950 {offsets = [0, 0], sizes = [1, 32], strides = [1, 1]} : vector<9x32xf32> to vector<1x32xf32>
    %985 = vector.broadcast %984 : vector<1x32xf32> to vector<16x32xf32>
    %986 = arith.mulf %983, %985 : vector<16x32xf32>
    %987 = arith.addf %959, %986 : vector<16x32xf32>
    %c0_i32_402 = arith.constant 0 : i32
    %988 = vector.broadcast %c0_i32_402 : i32 to vector<16x1xi32>
    %989 = arith.addi %958, %988 : vector<16x1xi32>
    %c0_i32_403 = arith.constant 0 : i32
    %990 = vector.broadcast %c0_i32_403 : i32 to vector<16x1xi32>
    %991 = arith.cmpi sge, %989, %990 : vector<16x1xi32>
    %c0_i32_404 = arith.constant 0 : i32
    %992 = vector.broadcast %c0_i32_404 : i32 to vector<16x1xi32>
    %993 = arith.addi %958, %992 : vector<16x1xi32>
    %c3_i32_405 = arith.constant 3 : i32
    %994 = vector.broadcast %c3_i32_405 : i32 to vector<16x1xi32>
    %995 = arith.cmpi sle, %993, %994 : vector<16x1xi32>
    %996 = arith.andi %991, %995 : vector<16x1xi1>
    %997 = arith.andi %968, %996 : vector<16x1xi1>
    %c12_406 = arith.constant 12 : index
    %c0_407 = arith.constant 0 : index
    %998 = vector.load %arg9[%c12_406, %c0_407] : memref<96x128xf32, #tpu.memory_space<vmem>>, vector<16x32xf32>
    %cst_408 = arith.constant 0.000000e+00 : f32
    %999 = vector.shape_cast %997 : vector<16x1xi1> to vector<16x1xi1>
    %1000 = vector.broadcast %999 : vector<16x1xi1> to vector<16x32xi1>
    %1001 = vector.broadcast %cst_408 : f32 to vector<16x32xf32>
    %1002 = arith.select %1000, %998, %1001 : vector<16x32xi1>, vector<16x32xf32>
    %1003 = vector.extract_strided_slice %950 {offsets = [1, 0], sizes = [1, 32], strides = [1, 1]} : vector<9x32xf32> to vector<1x32xf32>
    %1004 = vector.broadcast %1003 : vector<1x32xf32> to vector<16x32xf32>
    %1005 = arith.mulf %1002, %1004 : vector<16x32xf32>
    %1006 = arith.addf %987, %1005 : vector<16x32xf32>
    %c1_i32_409 = arith.constant 1 : i32
    %1007 = vector.broadcast %c1_i32_409 : i32 to vector<16x1xi32>
    %1008 = arith.addi %958, %1007 : vector<16x1xi32>
    %c0_i32_410 = arith.constant 0 : i32
    %1009 = vector.broadcast %c0_i32_410 : i32 to vector<16x1xi32>
    %1010 = arith.cmpi sge, %1008, %1009 : vector<16x1xi32>
    %c1_i32_411 = arith.constant 1 : i32
    %1011 = vector.broadcast %c1_i32_411 : i32 to vector<16x1xi32>
    %1012 = arith.addi %958, %1011 : vector<16x1xi32>
    %c3_i32_412 = arith.constant 3 : i32
    %1013 = vector.broadcast %c3_i32_412 : i32 to vector<16x1xi32>
    %1014 = arith.cmpi sle, %1012, %1013 : vector<16x1xi32>
    %1015 = arith.andi %1010, %1014 : vector<16x1xi1>
    %1016 = arith.andi %968, %1015 : vector<16x1xi1>
    %c13_413 = arith.constant 13 : index
    %c0_414 = arith.constant 0 : index
    %1017 = vector.load %arg9[%c13_413, %c0_414] : memref<96x128xf32, #tpu.memory_space<vmem>>, vector<16x32xf32>
    %cst_415 = arith.constant 0.000000e+00 : f32
    %1018 = vector.shape_cast %1016 : vector<16x1xi1> to vector<16x1xi1>
    %1019 = vector.broadcast %1018 : vector<16x1xi1> to vector<16x32xi1>
    %1020 = vector.broadcast %cst_415 : f32 to vector<16x32xf32>
    %1021 = arith.select %1019, %1017, %1020 : vector<16x32xi1>, vector<16x32xf32>
    %1022 = vector.extract_strided_slice %950 {offsets = [2, 0], sizes = [1, 32], strides = [1, 1]} : vector<9x32xf32> to vector<1x32xf32>
    %1023 = vector.broadcast %1022 : vector<1x32xf32> to vector<16x32xf32>
    %1024 = arith.mulf %1021, %1023 : vector<16x32xf32>
    %1025 = arith.addf %1006, %1024 : vector<16x32xf32>
    %c0_i32_416 = arith.constant 0 : i32
    %1026 = vector.broadcast %c0_i32_416 : i32 to vector<16x1xi32>
    %1027 = arith.addi %956, %1026 : vector<16x1xi32>
    %c0_i32_417 = arith.constant 0 : i32
    %1028 = vector.broadcast %c0_i32_417 : i32 to vector<16x1xi32>
    %1029 = arith.cmpi sge, %1027, %1028 : vector<16x1xi32>
    %c0_i32_418 = arith.constant 0 : i32
    %1030 = vector.broadcast %c0_i32_418 : i32 to vector<16x1xi32>
    %1031 = arith.addi %956, %1030 : vector<16x1xi32>
    %c3_i32_419 = arith.constant 3 : i32
    %1032 = vector.broadcast %c3_i32_419 : i32 to vector<16x1xi32>
    %1033 = arith.cmpi sle, %1031, %1032 : vector<16x1xi32>
    %1034 = arith.andi %1029, %1033 : vector<16x1xi1>
    %c-1_i32_420 = arith.constant -1 : i32
    %1035 = vector.broadcast %c-1_i32_420 : i32 to vector<16x1xi32>
    %1036 = arith.addi %958, %1035 : vector<16x1xi32>
    %c0_i32_421 = arith.constant 0 : i32
    %1037 = vector.broadcast %c0_i32_421 : i32 to vector<16x1xi32>
    %1038 = arith.cmpi sge, %1036, %1037 : vector<16x1xi32>
    %c-1_i32_422 = arith.constant -1 : i32
    %1039 = vector.broadcast %c-1_i32_422 : i32 to vector<16x1xi32>
    %1040 = arith.addi %958, %1039 : vector<16x1xi32>
    %c3_i32_423 = arith.constant 3 : i32
    %1041 = vector.broadcast %c3_i32_423 : i32 to vector<16x1xi32>
    %1042 = arith.cmpi sle, %1040, %1041 : vector<16x1xi32>
    %1043 = arith.andi %1038, %1042 : vector<16x1xi1>
    %1044 = arith.andi %1034, %1043 : vector<16x1xi1>
    %c15_424 = arith.constant 15 : index
    %c0_425 = arith.constant 0 : index
    %1045 = vector.load %arg9[%c15_424, %c0_425] : memref<96x128xf32, #tpu.memory_space<vmem>>, vector<16x32xf32>
    %cst_426 = arith.constant 0.000000e+00 : f32
    %1046 = vector.shape_cast %1044 : vector<16x1xi1> to vector<16x1xi1>
    %1047 = vector.broadcast %1046 : vector<16x1xi1> to vector<16x32xi1>
    %1048 = vector.broadcast %cst_426 : f32 to vector<16x32xf32>
    %1049 = arith.select %1047, %1045, %1048 : vector<16x32xi1>, vector<16x32xf32>
    %1050 = vector.extract_strided_slice %950 {offsets = [3, 0], sizes = [1, 32], strides = [1, 1]} : vector<9x32xf32> to vector<1x32xf32>
    %1051 = vector.broadcast %1050 : vector<1x32xf32> to vector<16x32xf32>
    %1052 = arith.mulf %1049, %1051 : vector<16x32xf32>
    %1053 = arith.addf %1025, %1052 : vector<16x32xf32>
    %c0_i32_427 = arith.constant 0 : i32
    %1054 = vector.broadcast %c0_i32_427 : i32 to vector<16x1xi32>
    %1055 = arith.addi %958, %1054 : vector<16x1xi32>
    %c0_i32_428 = arith.constant 0 : i32
    %1056 = vector.broadcast %c0_i32_428 : i32 to vector<16x1xi32>
    %1057 = arith.cmpi sge, %1055, %1056 : vector<16x1xi32>
    %c0_i32_429 = arith.constant 0 : i32
    %1058 = vector.broadcast %c0_i32_429 : i32 to vector<16x1xi32>
    %1059 = arith.addi %958, %1058 : vector<16x1xi32>
    %c3_i32_430 = arith.constant 3 : i32
    %1060 = vector.broadcast %c3_i32_430 : i32 to vector<16x1xi32>
    %1061 = arith.cmpi sle, %1059, %1060 : vector<16x1xi32>
    %1062 = arith.andi %1057, %1061 : vector<16x1xi1>
    %1063 = arith.andi %1034, %1062 : vector<16x1xi1>
    %c16_431 = arith.constant 16 : index
    %c0_432 = arith.constant 0 : index
    %1064 = vector.load %arg9[%c16_431, %c0_432] : memref<96x128xf32, #tpu.memory_space<vmem>>, vector<16x32xf32>
    %cst_433 = arith.constant 0.000000e+00 : f32
    %1065 = vector.shape_cast %1063 : vector<16x1xi1> to vector<16x1xi1>
    %1066 = vector.broadcast %1065 : vector<16x1xi1> to vector<16x32xi1>
    %1067 = vector.broadcast %cst_433 : f32 to vector<16x32xf32>
    %1068 = arith.select %1066, %1064, %1067 : vector<16x32xi1>, vector<16x32xf32>
    %1069 = vector.extract_strided_slice %950 {offsets = [4, 0], sizes = [1, 32], strides = [1, 1]} : vector<9x32xf32> to vector<1x32xf32>
    %1070 = vector.broadcast %1069 : vector<1x32xf32> to vector<16x32xf32>
    %1071 = arith.mulf %1068, %1070 : vector<16x32xf32>
    %1072 = arith.addf %1053, %1071 : vector<16x32xf32>
    %c1_i32_434 = arith.constant 1 : i32
    %1073 = vector.broadcast %c1_i32_434 : i32 to vector<16x1xi32>
    %1074 = arith.addi %958, %1073 : vector<16x1xi32>
    %c0_i32_435 = arith.constant 0 : i32
    %1075 = vector.broadcast %c0_i32_435 : i32 to vector<16x1xi32>
    %1076 = arith.cmpi sge, %1074, %1075 : vector<16x1xi32>
    %c1_i32_436 = arith.constant 1 : i32
    %1077 = vector.broadcast %c1_i32_436 : i32 to vector<16x1xi32>
    %1078 = arith.addi %958, %1077 : vector<16x1xi32>
    %c3_i32_437 = arith.constant 3 : i32
    %1079 = vector.broadcast %c3_i32_437 : i32 to vector<16x1xi32>
    %1080 = arith.cmpi sle, %1078, %1079 : vector<16x1xi32>
    %1081 = arith.andi %1076, %1080 : vector<16x1xi1>
    %1082 = arith.andi %1034, %1081 : vector<16x1xi1>
    %c17_438 = arith.constant 17 : index
    %c0_439 = arith.constant 0 : index
    %1083 = vector.load %arg9[%c17_438, %c0_439] : memref<96x128xf32, #tpu.memory_space<vmem>>, vector<16x32xf32>
    %cst_440 = arith.constant 0.000000e+00 : f32
    %1084 = vector.shape_cast %1082 : vector<16x1xi1> to vector<16x1xi1>
    %1085 = vector.broadcast %1084 : vector<16x1xi1> to vector<16x32xi1>
    %1086 = vector.broadcast %cst_440 : f32 to vector<16x32xf32>
    %1087 = arith.select %1085, %1083, %1086 : vector<16x32xi1>, vector<16x32xf32>
    %1088 = vector.extract_strided_slice %950 {offsets = [5, 0], sizes = [1, 32], strides = [1, 1]} : vector<9x32xf32> to vector<1x32xf32>
    %1089 = vector.broadcast %1088 : vector<1x32xf32> to vector<16x32xf32>
    %1090 = arith.mulf %1087, %1089 : vector<16x32xf32>
    %1091 = arith.addf %1072, %1090 : vector<16x32xf32>
    %c1_i32_441 = arith.constant 1 : i32
    %1092 = vector.broadcast %c1_i32_441 : i32 to vector<16x1xi32>
    %1093 = arith.addi %956, %1092 : vector<16x1xi32>
    %c0_i32_442 = arith.constant 0 : i32
    %1094 = vector.broadcast %c0_i32_442 : i32 to vector<16x1xi32>
    %1095 = arith.cmpi sge, %1093, %1094 : vector<16x1xi32>
    %c1_i32_443 = arith.constant 1 : i32
    %1096 = vector.broadcast %c1_i32_443 : i32 to vector<16x1xi32>
    %1097 = arith.addi %956, %1096 : vector<16x1xi32>
    %c3_i32_444 = arith.constant 3 : i32
    %1098 = vector.broadcast %c3_i32_444 : i32 to vector<16x1xi32>
    %1099 = arith.cmpi sle, %1097, %1098 : vector<16x1xi32>
    %1100 = arith.andi %1095, %1099 : vector<16x1xi1>
    %c-1_i32_445 = arith.constant -1 : i32
    %1101 = vector.broadcast %c-1_i32_445 : i32 to vector<16x1xi32>
    %1102 = arith.addi %958, %1101 : vector<16x1xi32>
    %c0_i32_446 = arith.constant 0 : i32
    %1103 = vector.broadcast %c0_i32_446 : i32 to vector<16x1xi32>
    %1104 = arith.cmpi sge, %1102, %1103 : vector<16x1xi32>
    %c-1_i32_447 = arith.constant -1 : i32
    %1105 = vector.broadcast %c-1_i32_447 : i32 to vector<16x1xi32>
    %1106 = arith.addi %958, %1105 : vector<16x1xi32>
    %c3_i32_448 = arith.constant 3 : i32
    %1107 = vector.broadcast %c3_i32_448 : i32 to vector<16x1xi32>
    %1108 = arith.cmpi sle, %1106, %1107 : vector<16x1xi32>
    %1109 = arith.andi %1104, %1108 : vector<16x1xi1>
    %1110 = arith.andi %1100, %1109 : vector<16x1xi1>
    %c19_449 = arith.constant 19 : index
    %c0_450 = arith.constant 0 : index
    %1111 = vector.load %arg9[%c19_449, %c0_450] : memref<96x128xf32, #tpu.memory_space<vmem>>, vector<16x32xf32>
    %cst_451 = arith.constant 0.000000e+00 : f32
    %1112 = vector.shape_cast %1110 : vector<16x1xi1> to vector<16x1xi1>
    %1113 = vector.broadcast %1112 : vector<16x1xi1> to vector<16x32xi1>
    %1114 = vector.broadcast %cst_451 : f32 to vector<16x32xf32>
    %1115 = arith.select %1113, %1111, %1114 : vector<16x32xi1>, vector<16x32xf32>
    %1116 = vector.extract_strided_slice %950 {offsets = [6, 0], sizes = [1, 32], strides = [1, 1]} : vector<9x32xf32> to vector<1x32xf32>
    %1117 = vector.broadcast %1116 : vector<1x32xf32> to vector<16x32xf32>
    %1118 = arith.mulf %1115, %1117 : vector<16x32xf32>
    %1119 = arith.addf %1091, %1118 : vector<16x32xf32>
    %c0_i32_452 = arith.constant 0 : i32
    %1120 = vector.broadcast %c0_i32_452 : i32 to vector<16x1xi32>
    %1121 = arith.addi %958, %1120 : vector<16x1xi32>
    %c0_i32_453 = arith.constant 0 : i32
    %1122 = vector.broadcast %c0_i32_453 : i32 to vector<16x1xi32>
    %1123 = arith.cmpi sge, %1121, %1122 : vector<16x1xi32>
    %c0_i32_454 = arith.constant 0 : i32
    %1124 = vector.broadcast %c0_i32_454 : i32 to vector<16x1xi32>
    %1125 = arith.addi %958, %1124 : vector<16x1xi32>
    %c3_i32_455 = arith.constant 3 : i32
    %1126 = vector.broadcast %c3_i32_455 : i32 to vector<16x1xi32>
    %1127 = arith.cmpi sle, %1125, %1126 : vector<16x1xi32>
    %1128 = arith.andi %1123, %1127 : vector<16x1xi1>
    %1129 = arith.andi %1100, %1128 : vector<16x1xi1>
    %c20_456 = arith.constant 20 : index
    %c0_457 = arith.constant 0 : index
    %1130 = vector.load %arg9[%c20_456, %c0_457] : memref<96x128xf32, #tpu.memory_space<vmem>>, vector<16x32xf32>
    %cst_458 = arith.constant 0.000000e+00 : f32
    %1131 = vector.shape_cast %1129 : vector<16x1xi1> to vector<16x1xi1>
    %1132 = vector.broadcast %1131 : vector<16x1xi1> to vector<16x32xi1>
    %1133 = vector.broadcast %cst_458 : f32 to vector<16x32xf32>
    %1134 = arith.select %1132, %1130, %1133 : vector<16x32xi1>, vector<16x32xf32>
    %1135 = vector.extract_strided_slice %950 {offsets = [7, 0], sizes = [1, 32], strides = [1, 1]} : vector<9x32xf32> to vector<1x32xf32>
    %1136 = vector.broadcast %1135 : vector<1x32xf32> to vector<16x32xf32>
    %1137 = arith.mulf %1134, %1136 : vector<16x32xf32>
    %1138 = arith.addf %1119, %1137 : vector<16x32xf32>
    %c1_i32_459 = arith.constant 1 : i32
    %1139 = vector.broadcast %c1_i32_459 : i32 to vector<16x1xi32>
    %1140 = arith.addi %958, %1139 : vector<16x1xi32>
    %c0_i32_460 = arith.constant 0 : i32
    %1141 = vector.broadcast %c0_i32_460 : i32 to vector<16x1xi32>
    %1142 = arith.cmpi sge, %1140, %1141 : vector<16x1xi32>
    %c1_i32_461 = arith.constant 1 : i32
    %1143 = vector.broadcast %c1_i32_461 : i32 to vector<16x1xi32>
    %1144 = arith.addi %958, %1143 : vector<16x1xi32>
    %c3_i32_462 = arith.constant 3 : i32
    %1145 = vector.broadcast %c3_i32_462 : i32 to vector<16x1xi32>
    %1146 = arith.cmpi sle, %1144, %1145 : vector<16x1xi32>
    %1147 = arith.andi %1142, %1146 : vector<16x1xi1>
    %1148 = arith.andi %1100, %1147 : vector<16x1xi1>
    %c21_463 = arith.constant 21 : index
    %c0_464 = arith.constant 0 : index
    %1149 = vector.load %arg9[%c21_463, %c0_464] : memref<96x128xf32, #tpu.memory_space<vmem>>, vector<16x32xf32>
    %cst_465 = arith.constant 0.000000e+00 : f32
    %1150 = vector.shape_cast %1148 : vector<16x1xi1> to vector<16x1xi1>
    %1151 = vector.broadcast %1150 : vector<16x1xi1> to vector<16x32xi1>
    %1152 = vector.broadcast %cst_465 : f32 to vector<16x32xf32>
    %1153 = arith.select %1151, %1149, %1152 : vector<16x32xi1>, vector<16x32xf32>
    %1154 = vector.extract_strided_slice %950 {offsets = [8, 0], sizes = [1, 32], strides = [1, 1]} : vector<9x32xf32> to vector<1x32xf32>
    %1155 = vector.broadcast %1154 : vector<1x32xf32> to vector<16x32xf32>
    %1156 = arith.mulf %1153, %1155 : vector<16x32xf32>
    %1157 = arith.addf %1138, %1156 : vector<16x32xf32>
    %1158 = vector.broadcast %951 : vector<1x32xf32> to vector<16x32xf32>
    %1159 = arith.addf %1157, %1158 : vector<16x32xf32>
    %cst_466 = arith.constant 0.000000e+00 : f32
    %1160 = vector.broadcast %cst_466 : f32 to vector<16x32xf32>
    %1161 = arith.maximumf %1159, %1160 : vector<16x32xf32>
    %c7_467 = arith.constant 7 : index
    %c0_468 = arith.constant 0 : index
    %c0_469 = arith.constant 0 : index
    %1162 = vector.load %arg4[%c7_467, %c0_468, %c0_469] : memref<26x128x128xbf16, #tpu.memory_space<vmem>>, vector<1x32x16xbf16>
    %1163 = vector.shape_cast %1162 : vector<1x32x16xbf16> to vector<32x16xbf16>
    %1164 = arith.truncf %1161 : vector<16x32xf32> to vector<16x32xbf16>
    %cst_470 = arith.constant dense<0.000000e+00> : vector<16x16xf32>
    %1165 = tpu.matmul %1164, %1163, %cst_470 {dimension_numbers = #tpu.dot_dimension_numbers<[1], [0], [0], [1], [0, 0, 1, 1], [], []>} : vector<16x32xbf16>, vector<32x16xbf16>, vector<16x16xf32> -> vector<16x16xf32>
    %c7_471 = arith.constant 7 : index
    %c0_472 = arith.constant 0 : index
    %1166 = vector.load %arg5[%c7_471, %c0_472] : memref<26x128xf32, #tpu.memory_space<vmem>>, vector<1x16xf32>
    %1167 = vector.broadcast %1166 : vector<1x16xf32> to vector<16x16xf32>
    %1168 = arith.addf %1165, %1167 : vector<16x16xf32>
    %1169 = arith.addf %1168, %938 : vector<16x16xf32>
    %c8_473 = arith.constant 8 : index
    %c0_474 = arith.constant 0 : index
    %c0_475 = arith.constant 0 : index
    %1170 = vector.load %arg4[%c8_473, %c0_474, %c0_475] : memref<26x128x128xbf16, #tpu.memory_space<vmem>>, vector<1x16x32xbf16>
    %1171 = vector.shape_cast %1170 : vector<1x16x32xbf16> to vector<16x32xbf16>
    %1172 = arith.truncf %1169 : vector<16x16xf32> to vector<16x16xbf16>
    %cst_476 = arith.constant dense<0.000000e+00> : vector<16x32xf32>
    %1173 = tpu.matmul %1172, %1171, %cst_476 {dimension_numbers = #tpu.dot_dimension_numbers<[1], [0], [0], [1], [0, 0, 1, 1], [], []>} : vector<16x16xbf16>, vector<16x32xbf16>, vector<16x32xf32> -> vector<16x32xf32>
    %c8_477 = arith.constant 8 : index
    %c0_478 = arith.constant 0 : index
    %1174 = vector.load %arg5[%c8_477, %c0_478] : memref<26x128xf32, #tpu.memory_space<vmem>>, vector<1x32xf32>
    %1175 = vector.broadcast %1174 : vector<1x32xf32> to vector<16x32xf32>
    %1176 = arith.addf %1173, %1175 : vector<16x32xf32>
    %cst_479 = arith.constant 0.000000e+00 : f32
    %1177 = vector.broadcast %cst_479 : f32 to vector<16x32xf32>
    %1178 = arith.maximumf %1176, %1177 : vector<16x32xf32>
    %c16_480 = arith.constant 16 : index
    %c0_481 = arith.constant 0 : index
    %1179 = vector.load %arg9[%c16_480, %c0_481] : memref<96x128xf32, #tpu.memory_space<vmem>>, vector<16x32xf32>
    tpu.vector_store %arg9[%c16_480, %c0_481], %1178 {strides = array<i32>} : memref<96x128xf32, #tpu.memory_space<vmem>>, vector<16x32xf32>,
    %c5_482 = arith.constant 5 : index
    %c0_483 = arith.constant 0 : index
    %c0_484 = arith.constant 0 : index
    %1180 = vector.load %arg6[%c5_482, %c0_483, %c0_484] : memref<14x9x128xf32, #tpu.memory_space<vmem>>, vector<1x9x32xf32>
    %1181 = vector.shape_cast %1180 : vector<1x9x32xf32> to vector<9x32xf32>
    %c5_485 = arith.constant 5 : index
    %c0_486 = arith.constant 0 : index
    %1182 = vector.load %arg7[%c5_485, %c0_486] : memref<14x128xf32, #tpu.memory_space<vmem>>, vector<1x32xf32>
    %1183 = tpu.iota {dimensions = array<i32: 0>} : vector<16x1xi32>
    %c15_i32_487 = arith.constant 15 : i32
    %1184 = vector.broadcast %c15_i32_487 : i32 to vector<16x1xi32>
    %1185 = arith.andi %1183, %1184 : vector<16x1xi32>
    %c2_i32_488 = arith.constant 2 : i32
    %1186 = vector.broadcast %c2_i32_488 : i32 to vector<16x1xi32>
    %1187 = arith.shrsi %1185, %1186 : vector<16x1xi32>
    %c3_i32_489 = arith.constant 3 : i32
    %1188 = vector.broadcast %c3_i32_489 : i32 to vector<16x1xi32>
    %1189 = arith.andi %1185, %1188 : vector<16x1xi32>
    %cst_490 = arith.constant 0.000000e+00 : f32
    %1190 = vector.broadcast %cst_490 : f32 to vector<16x32xf32>
    %c-1_i32_491 = arith.constant -1 : i32
    %1191 = vector.broadcast %c-1_i32_491 : i32 to vector<16x1xi32>
    %1192 = arith.addi %1187, %1191 : vector<16x1xi32>
    %c0_i32_492 = arith.constant 0 : i32
    %1193 = vector.broadcast %c0_i32_492 : i32 to vector<16x1xi32>
    %1194 = arith.cmpi sge, %1192, %1193 : vector<16x1xi32>
    %c-1_i32_493 = arith.constant -1 : i32
    %1195 = vector.broadcast %c-1_i32_493 : i32 to vector<16x1xi32>
    %1196 = arith.addi %1187, %1195 : vector<16x1xi32>
    %c3_i32_494 = arith.constant 3 : i32
    %1197 = vector.broadcast %c3_i32_494 : i32 to vector<16x1xi32>
    %1198 = arith.cmpi sle, %1196, %1197 : vector<16x1xi32>
    %1199 = arith.andi %1194, %1198 : vector<16x1xi1>
    %c-1_i32_495 = arith.constant -1 : i32
    %1200 = vector.broadcast %c-1_i32_495 : i32 to vector<16x1xi32>
    %1201 = arith.addi %1189, %1200 : vector<16x1xi32>
    %c0_i32_496 = arith.constant 0 : i32
    %1202 = vector.broadcast %c0_i32_496 : i32 to vector<16x1xi32>
    %1203 = arith.cmpi sge, %1201, %1202 : vector<16x1xi32>
    %c-1_i32_497 = arith.constant -1 : i32
    %1204 = vector.broadcast %c-1_i32_497 : i32 to vector<16x1xi32>
    %1205 = arith.addi %1189, %1204 : vector<16x1xi32>
    %c3_i32_498 = arith.constant 3 : i32
    %1206 = vector.broadcast %c3_i32_498 : i32 to vector<16x1xi32>
    %1207 = arith.cmpi sle, %1205, %1206 : vector<16x1xi32>
    %1208 = arith.andi %1203, %1207 : vector<16x1xi1>
    %1209 = arith.andi %1199, %1208 : vector<16x1xi1>
    %c11_499 = arith.constant 11 : index
    %c0_500 = arith.constant 0 : index
    %1210 = vector.load %arg9[%c11_499, %c0_500] : memref<96x128xf32, #tpu.memory_space<vmem>>, vector<16x32xf32>
    %cst_501 = arith.constant 0.000000e+00 : f32
    %1211 = vector.shape_cast %1209 : vector<16x1xi1> to vector<16x1xi1>
    %1212 = vector.broadcast %1211 : vector<16x1xi1> to vector<16x32xi1>
    %1213 = vector.broadcast %cst_501 : f32 to vector<16x32xf32>
    %1214 = arith.select %1212, %1210, %1213 : vector<16x32xi1>, vector<16x32xf32>
    %1215 = vector.extract_strided_slice %1181 {offsets = [0, 0], sizes = [1, 32], strides = [1, 1]} : vector<9x32xf32> to vector<1x32xf32>
    %1216 = vector.broadcast %1215 : vector<1x32xf32> to vector<16x32xf32>
    %1217 = arith.mulf %1214, %1216 : vector<16x32xf32>
    %1218 = arith.addf %1190, %1217 : vector<16x32xf32>
    %c0_i32_502 = arith.constant 0 : i32
    %1219 = vector.broadcast %c0_i32_502 : i32 to vector<16x1xi32>
    %1220 = arith.addi %1189, %1219 : vector<16x1xi32>
    %c0_i32_503 = arith.constant 0 : i32
    %1221 = vector.broadcast %c0_i32_503 : i32 to vector<16x1xi32>
    %1222 = arith.cmpi sge, %1220, %1221 : vector<16x1xi32>
    %c0_i32_504 = arith.constant 0 : i32
    %1223 = vector.broadcast %c0_i32_504 : i32 to vector<16x1xi32>
    %1224 = arith.addi %1189, %1223 : vector<16x1xi32>
    %c3_i32_505 = arith.constant 3 : i32
    %1225 = vector.broadcast %c3_i32_505 : i32 to vector<16x1xi32>
    %1226 = arith.cmpi sle, %1224, %1225 : vector<16x1xi32>
    %1227 = arith.andi %1222, %1226 : vector<16x1xi1>
    %1228 = arith.andi %1199, %1227 : vector<16x1xi1>
    %c12_506 = arith.constant 12 : index
    %c0_507 = arith.constant 0 : index
    %1229 = vector.load %arg9[%c12_506, %c0_507] : memref<96x128xf32, #tpu.memory_space<vmem>>, vector<16x32xf32>
    %cst_508 = arith.constant 0.000000e+00 : f32
    %1230 = vector.shape_cast %1228 : vector<16x1xi1> to vector<16x1xi1>
    %1231 = vector.broadcast %1230 : vector<16x1xi1> to vector<16x32xi1>
    %1232 = vector.broadcast %cst_508 : f32 to vector<16x32xf32>
    %1233 = arith.select %1231, %1229, %1232 : vector<16x32xi1>, vector<16x32xf32>
    %1234 = vector.extract_strided_slice %1181 {offsets = [1, 0], sizes = [1, 32], strides = [1, 1]} : vector<9x32xf32> to vector<1x32xf32>
    %1235 = vector.broadcast %1234 : vector<1x32xf32> to vector<16x32xf32>
    %1236 = arith.mulf %1233, %1235 : vector<16x32xf32>
    %1237 = arith.addf %1218, %1236 : vector<16x32xf32>
    %c1_i32_509 = arith.constant 1 : i32
    %1238 = vector.broadcast %c1_i32_509 : i32 to vector<16x1xi32>
    %1239 = arith.addi %1189, %1238 : vector<16x1xi32>
    %c0_i32_510 = arith.constant 0 : i32
    %1240 = vector.broadcast %c0_i32_510 : i32 to vector<16x1xi32>
    %1241 = arith.cmpi sge, %1239, %1240 : vector<16x1xi32>
    %c1_i32_511 = arith.constant 1 : i32
    %1242 = vector.broadcast %c1_i32_511 : i32 to vector<16x1xi32>
    %1243 = arith.addi %1189, %1242 : vector<16x1xi32>
    %c3_i32_512 = arith.constant 3 : i32
    %1244 = vector.broadcast %c3_i32_512 : i32 to vector<16x1xi32>
    %1245 = arith.cmpi sle, %1243, %1244 : vector<16x1xi32>
    %1246 = arith.andi %1241, %1245 : vector<16x1xi1>
    %1247 = arith.andi %1199, %1246 : vector<16x1xi1>
    %c13_513 = arith.constant 13 : index
    %c0_514 = arith.constant 0 : index
    %1248 = vector.load %arg9[%c13_513, %c0_514] : memref<96x128xf32, #tpu.memory_space<vmem>>, vector<16x32xf32>
    %cst_515 = arith.constant 0.000000e+00 : f32
    %1249 = vector.shape_cast %1247 : vector<16x1xi1> to vector<16x1xi1>
    %1250 = vector.broadcast %1249 : vector<16x1xi1> to vector<16x32xi1>
    %1251 = vector.broadcast %cst_515 : f32 to vector<16x32xf32>
    %1252 = arith.select %1250, %1248, %1251 : vector<16x32xi1>, vector<16x32xf32>
    %1253 = vector.extract_strided_slice %1181 {offsets = [2, 0], sizes = [1, 32], strides = [1, 1]} : vector<9x32xf32> to vector<1x32xf32>
    %1254 = vector.broadcast %1253 : vector<1x32xf32> to vector<16x32xf32>
    %1255 = arith.mulf %1252, %1254 : vector<16x32xf32>
    %1256 = arith.addf %1237, %1255 : vector<16x32xf32>
    %c0_i32_516 = arith.constant 0 : i32
    %1257 = vector.broadcast %c0_i32_516 : i32 to vector<16x1xi32>
    %1258 = arith.addi %1187, %1257 : vector<16x1xi32>
    %c0_i32_517 = arith.constant 0 : i32
    %1259 = vector.broadcast %c0_i32_517 : i32 to vector<16x1xi32>
    %1260 = arith.cmpi sge, %1258, %1259 : vector<16x1xi32>
    %c0_i32_518 = arith.constant 0 : i32
    %1261 = vector.broadcast %c0_i32_518 : i32 to vector<16x1xi32>
    %1262 = arith.addi %1187, %1261 : vector<16x1xi32>
    %c3_i32_519 = arith.constant 3 : i32
    %1263 = vector.broadcast %c3_i32_519 : i32 to vector<16x1xi32>
    %1264 = arith.cmpi sle, %1262, %1263 : vector<16x1xi32>
    %1265 = arith.andi %1260, %1264 : vector<16x1xi1>
    %c-1_i32_520 = arith.constant -1 : i32
    %1266 = vector.broadcast %c-1_i32_520 : i32 to vector<16x1xi32>
    %1267 = arith.addi %1189, %1266 : vector<16x1xi32>
    %c0_i32_521 = arith.constant 0 : i32
    %1268 = vector.broadcast %c0_i32_521 : i32 to vector<16x1xi32>
    %1269 = arith.cmpi sge, %1267, %1268 : vector<16x1xi32>
    %c-1_i32_522 = arith.constant -1 : i32
    %1270 = vector.broadcast %c-1_i32_522 : i32 to vector<16x1xi32>
    %1271 = arith.addi %1189, %1270 : vector<16x1xi32>
    %c3_i32_523 = arith.constant 3 : i32
    %1272 = vector.broadcast %c3_i32_523 : i32 to vector<16x1xi32>
    %1273 = arith.cmpi sle, %1271, %1272 : vector<16x1xi32>
    %1274 = arith.andi %1269, %1273 : vector<16x1xi1>
    %1275 = arith.andi %1265, %1274 : vector<16x1xi1>
    %c15_524 = arith.constant 15 : index
    %c0_525 = arith.constant 0 : index
    %1276 = vector.load %arg9[%c15_524, %c0_525] : memref<96x128xf32, #tpu.memory_space<vmem>>, vector<16x32xf32>
    %cst_526 = arith.constant 0.000000e+00 : f32
    %1277 = vector.shape_cast %1275 : vector<16x1xi1> to vector<16x1xi1>
    %1278 = vector.broadcast %1277 : vector<16x1xi1> to vector<16x32xi1>
    %1279 = vector.broadcast %cst_526 : f32 to vector<16x32xf32>
    %1280 = arith.select %1278, %1276, %1279 : vector<16x32xi1>, vector<16x32xf32>
    %1281 = vector.extract_strided_slice %1181 {offsets = [3, 0], sizes = [1, 32], strides = [1, 1]} : vector<9x32xf32> to vector<1x32xf32>
    %1282 = vector.broadcast %1281 : vector<1x32xf32> to vector<16x32xf32>
    %1283 = arith.mulf %1280, %1282 : vector<16x32xf32>
    %1284 = arith.addf %1256, %1283 : vector<16x32xf32>
    %c0_i32_527 = arith.constant 0 : i32
    %1285 = vector.broadcast %c0_i32_527 : i32 to vector<16x1xi32>
    %1286 = arith.addi %1189, %1285 : vector<16x1xi32>
    %c0_i32_528 = arith.constant 0 : i32
    %1287 = vector.broadcast %c0_i32_528 : i32 to vector<16x1xi32>
    %1288 = arith.cmpi sge, %1286, %1287 : vector<16x1xi32>
    %c0_i32_529 = arith.constant 0 : i32
    %1289 = vector.broadcast %c0_i32_529 : i32 to vector<16x1xi32>
    %1290 = arith.addi %1189, %1289 : vector<16x1xi32>
    %c3_i32_530 = arith.constant 3 : i32
    %1291 = vector.broadcast %c3_i32_530 : i32 to vector<16x1xi32>
    %1292 = arith.cmpi sle, %1290, %1291 : vector<16x1xi32>
    %1293 = arith.andi %1288, %1292 : vector<16x1xi1>
    %1294 = arith.andi %1265, %1293 : vector<16x1xi1>
    %c16_531 = arith.constant 16 : index
    %c0_532 = arith.constant 0 : index
    %1295 = vector.load %arg9[%c16_531, %c0_532] : memref<96x128xf32, #tpu.memory_space<vmem>>, vector<16x32xf32>
    %cst_533 = arith.constant 0.000000e+00 : f32
    %1296 = vector.shape_cast %1294 : vector<16x1xi1> to vector<16x1xi1>
    %1297 = vector.broadcast %1296 : vector<16x1xi1> to vector<16x32xi1>
    %1298 = vector.broadcast %cst_533 : f32 to vector<16x32xf32>
    %1299 = arith.select %1297, %1295, %1298 : vector<16x32xi1>, vector<16x32xf32>
    %1300 = vector.extract_strided_slice %1181 {offsets = [4, 0], sizes = [1, 32], strides = [1, 1]} : vector<9x32xf32> to vector<1x32xf32>
    %1301 = vector.broadcast %1300 : vector<1x32xf32> to vector<16x32xf32>
    %1302 = arith.mulf %1299, %1301 : vector<16x32xf32>
    %1303 = arith.addf %1284, %1302 : vector<16x32xf32>
    %c1_i32_534 = arith.constant 1 : i32
    %1304 = vector.broadcast %c1_i32_534 : i32 to vector<16x1xi32>
    %1305 = arith.addi %1189, %1304 : vector<16x1xi32>
    %c0_i32_535 = arith.constant 0 : i32
    %1306 = vector.broadcast %c0_i32_535 : i32 to vector<16x1xi32>
    %1307 = arith.cmpi sge, %1305, %1306 : vector<16x1xi32>
    %c1_i32_536 = arith.constant 1 : i32
    %1308 = vector.broadcast %c1_i32_536 : i32 to vector<16x1xi32>
    %1309 = arith.addi %1189, %1308 : vector<16x1xi32>
    %c3_i32_537 = arith.constant 3 : i32
    %1310 = vector.broadcast %c3_i32_537 : i32 to vector<16x1xi32>
    %1311 = arith.cmpi sle, %1309, %1310 : vector<16x1xi32>
    %1312 = arith.andi %1307, %1311 : vector<16x1xi1>
    %1313 = arith.andi %1265, %1312 : vector<16x1xi1>
    %c17_538 = arith.constant 17 : index
    %c0_539 = arith.constant 0 : index
    %1314 = vector.load %arg9[%c17_538, %c0_539] : memref<96x128xf32, #tpu.memory_space<vmem>>, vector<16x32xf32>
    %cst_540 = arith.constant 0.000000e+00 : f32
    %1315 = vector.shape_cast %1313 : vector<16x1xi1> to vector<16x1xi1>
    %1316 = vector.broadcast %1315 : vector<16x1xi1> to vector<16x32xi1>
    %1317 = vector.broadcast %cst_540 : f32 to vector<16x32xf32>
    %1318 = arith.select %1316, %1314, %1317 : vector<16x32xi1>, vector<16x32xf32>
    %1319 = vector.extract_strided_slice %1181 {offsets = [5, 0], sizes = [1, 32], strides = [1, 1]} : vector<9x32xf32> to vector<1x32xf32>
    %1320 = vector.broadcast %1319 : vector<1x32xf32> to vector<16x32xf32>
    %1321 = arith.mulf %1318, %1320 : vector<16x32xf32>
    %1322 = arith.addf %1303, %1321 : vector<16x32xf32>
    %c1_i32_541 = arith.constant 1 : i32
    %1323 = vector.broadcast %c1_i32_541 : i32 to vector<16x1xi32>
    %1324 = arith.addi %1187, %1323 : vector<16x1xi32>
    %c0_i32_542 = arith.constant 0 : i32
    %1325 = vector.broadcast %c0_i32_542 : i32 to vector<16x1xi32>
    %1326 = arith.cmpi sge, %1324, %1325 : vector<16x1xi32>
    %c1_i32_543 = arith.constant 1 : i32
    %1327 = vector.broadcast %c1_i32_543 : i32 to vector<16x1xi32>
    %1328 = arith.addi %1187, %1327 : vector<16x1xi32>
    %c3_i32_544 = arith.constant 3 : i32
    %1329 = vector.broadcast %c3_i32_544 : i32 to vector<16x1xi32>
    %1330 = arith.cmpi sle, %1328, %1329 : vector<16x1xi32>
    %1331 = arith.andi %1326, %1330 : vector<16x1xi1>
    %c-1_i32_545 = arith.constant -1 : i32
    %1332 = vector.broadcast %c-1_i32_545 : i32 to vector<16x1xi32>
    %1333 = arith.addi %1189, %1332 : vector<16x1xi32>
    %c0_i32_546 = arith.constant 0 : i32
    %1334 = vector.broadcast %c0_i32_546 : i32 to vector<16x1xi32>
    %1335 = arith.cmpi sge, %1333, %1334 : vector<16x1xi32>
    %c-1_i32_547 = arith.constant -1 : i32
    %1336 = vector.broadcast %c-1_i32_547 : i32 to vector<16x1xi32>
    %1337 = arith.addi %1189, %1336 : vector<16x1xi32>
    %c3_i32_548 = arith.constant 3 : i32
    %1338 = vector.broadcast %c3_i32_548 : i32 to vector<16x1xi32>
    %1339 = arith.cmpi sle, %1337, %1338 : vector<16x1xi32>
    %1340 = arith.andi %1335, %1339 : vector<16x1xi1>
    %1341 = arith.andi %1331, %1340 : vector<16x1xi1>
    %c19_549 = arith.constant 19 : index
    %c0_550 = arith.constant 0 : index
    %1342 = vector.load %arg9[%c19_549, %c0_550] : memref<96x128xf32, #tpu.memory_space<vmem>>, vector<16x32xf32>
    %cst_551 = arith.constant 0.000000e+00 : f32
    %1343 = vector.shape_cast %1341 : vector<16x1xi1> to vector<16x1xi1>
    %1344 = vector.broadcast %1343 : vector<16x1xi1> to vector<16x32xi1>
    %1345 = vector.broadcast %cst_551 : f32 to vector<16x32xf32>
    %1346 = arith.select %1344, %1342, %1345 : vector<16x32xi1>, vector<16x32xf32>
    %1347 = vector.extract_strided_slice %1181 {offsets = [6, 0], sizes = [1, 32], strides = [1, 1]} : vector<9x32xf32> to vector<1x32xf32>
    %1348 = vector.broadcast %1347 : vector<1x32xf32> to vector<16x32xf32>
    %1349 = arith.mulf %1346, %1348 : vector<16x32xf32>
    %1350 = arith.addf %1322, %1349 : vector<16x32xf32>
    %c0_i32_552 = arith.constant 0 : i32
    %1351 = vector.broadcast %c0_i32_552 : i32 to vector<16x1xi32>
    %1352 = arith.addi %1189, %1351 : vector<16x1xi32>
    %c0_i32_553 = arith.constant 0 : i32
    %1353 = vector.broadcast %c0_i32_553 : i32 to vector<16x1xi32>
    %1354 = arith.cmpi sge, %1352, %1353 : vector<16x1xi32>
    %c0_i32_554 = arith.constant 0 : i32
    %1355 = vector.broadcast %c0_i32_554 : i32 to vector<16x1xi32>
    %1356 = arith.addi %1189, %1355 : vector<16x1xi32>
    %c3_i32_555 = arith.constant 3 : i32
    %1357 = vector.broadcast %c3_i32_555 : i32 to vector<16x1xi32>
    %1358 = arith.cmpi sle, %1356, %1357 : vector<16x1xi32>
    %1359 = arith.andi %1354, %1358 : vector<16x1xi1>
    %1360 = arith.andi %1331, %1359 : vector<16x1xi1>
    %c20_556 = arith.constant 20 : index
    %c0_557 = arith.constant 0 : index
    %1361 = vector.load %arg9[%c20_556, %c0_557] : memref<96x128xf32, #tpu.memory_space<vmem>>, vector<16x32xf32>
    %cst_558 = arith.constant 0.000000e+00 : f32
    %1362 = vector.shape_cast %1360 : vector<16x1xi1> to vector<16x1xi1>
    %1363 = vector.broadcast %1362 : vector<16x1xi1> to vector<16x32xi1>
    %1364 = vector.broadcast %cst_558 : f32 to vector<16x32xf32>
    %1365 = arith.select %1363, %1361, %1364 : vector<16x32xi1>, vector<16x32xf32>
    %1366 = vector.extract_strided_slice %1181 {offsets = [7, 0], sizes = [1, 32], strides = [1, 1]} : vector<9x32xf32> to vector<1x32xf32>
    %1367 = vector.broadcast %1366 : vector<1x32xf32> to vector<16x32xf32>
    %1368 = arith.mulf %1365, %1367 : vector<16x32xf32>
    %1369 = arith.addf %1350, %1368 : vector<16x32xf32>
    %c1_i32_559 = arith.constant 1 : i32
    %1370 = vector.broadcast %c1_i32_559 : i32 to vector<16x1xi32>
    %1371 = arith.addi %1189, %1370 : vector<16x1xi32>
    %c0_i32_560 = arith.constant 0 : i32
    %1372 = vector.broadcast %c0_i32_560 : i32 to vector<16x1xi32>
    %1373 = arith.cmpi sge, %1371, %1372 : vector<16x1xi32>
    %c1_i32_561 = arith.constant 1 : i32
    %1374 = vector.broadcast %c1_i32_561 : i32 to vector<16x1xi32>
    %1375 = arith.addi %1189, %1374 : vector<16x1xi32>
    %c3_i32_562 = arith.constant 3 : i32
    %1376 = vector.broadcast %c3_i32_562 : i32 to vector<16x1xi32>
    %1377 = arith.cmpi sle, %1375, %1376 : vector<16x1xi32>
    %1378 = arith.andi %1373, %1377 : vector<16x1xi1>
    %1379 = arith.andi %1331, %1378 : vector<16x1xi1>
    %c21_563 = arith.constant 21 : index
    %c0_564 = arith.constant 0 : index
    %1380 = vector.load %arg9[%c21_563, %c0_564] : memref<96x128xf32, #tpu.memory_space<vmem>>, vector<16x32xf32>
    %cst_565 = arith.constant 0.000000e+00 : f32
    %1381 = vector.shape_cast %1379 : vector<16x1xi1> to vector<16x1xi1>
    %1382 = vector.broadcast %1381 : vector<16x1xi1> to vector<16x32xi1>
    %1383 = vector.broadcast %cst_565 : f32 to vector<16x32xf32>
    %1384 = arith.select %1382, %1380, %1383 : vector<16x32xi1>, vector<16x32xf32>
    %1385 = vector.extract_strided_slice %1181 {offsets = [8, 0], sizes = [1, 32], strides = [1, 1]} : vector<9x32xf32> to vector<1x32xf32>
    %1386 = vector.broadcast %1385 : vector<1x32xf32> to vector<16x32xf32>
    %1387 = arith.mulf %1384, %1386 : vector<16x32xf32>
    %1388 = arith.addf %1369, %1387 : vector<16x32xf32>
    %1389 = vector.broadcast %1182 : vector<1x32xf32> to vector<16x32xf32>
    %1390 = arith.addf %1388, %1389 : vector<16x32xf32>
    %cst_566 = arith.constant 0.000000e+00 : f32
    %1391 = vector.broadcast %cst_566 : f32 to vector<16x32xf32>
    %1392 = arith.maximumf %1390, %1391 : vector<16x32xf32>
    %c9_567 = arith.constant 9 : index
    %c0_568 = arith.constant 0 : index
    %c0_569 = arith.constant 0 : index
    %1393 = vector.load %arg4[%c9_567, %c0_568, %c0_569] : memref<26x128x128xbf16, #tpu.memory_space<vmem>>, vector<1x32x16xbf16>
    %1394 = vector.shape_cast %1393 : vector<1x32x16xbf16> to vector<32x16xbf16>
    %1395 = arith.truncf %1392 : vector<16x32xf32> to vector<16x32xbf16>
    %cst_570 = arith.constant dense<0.000000e+00> : vector<16x16xf32>
    %1396 = tpu.matmul %1395, %1394, %cst_570 {dimension_numbers = #tpu.dot_dimension_numbers<[1], [0], [0], [1], [0, 0, 1, 1], [], []>} : vector<16x32xbf16>, vector<32x16xbf16>, vector<16x16xf32> -> vector<16x16xf32>
    %c9_571 = arith.constant 9 : index
    %c0_572 = arith.constant 0 : index
    %1397 = vector.load %arg5[%c9_571, %c0_572] : memref<26x128xf32, #tpu.memory_space<vmem>>, vector<1x16xf32>
    %1398 = vector.broadcast %1397 : vector<1x16xf32> to vector<16x16xf32>
    %1399 = arith.addf %1396, %1398 : vector<16x16xf32>
    %1400 = arith.addf %1399, %1169 : vector<16x16xf32>
    %c10 = arith.constant 10 : index
    %c0_573 = arith.constant 0 : index
    %c0_574 = arith.constant 0 : index
    %1401 = vector.load %arg4[%c10, %c0_573, %c0_574] : memref<26x128x128xbf16, #tpu.memory_space<vmem>>, vector<1x16x32xbf16>
    %1402 = vector.shape_cast %1401 : vector<1x16x32xbf16> to vector<16x32xbf16>
    %1403 = arith.truncf %1400 : vector<16x16xf32> to vector<16x16xbf16>
    %cst_575 = arith.constant dense<0.000000e+00> : vector<16x32xf32>
    %1404 = tpu.matmul %1403, %1402, %cst_575 {dimension_numbers = #tpu.dot_dimension_numbers<[1], [0], [0], [1], [0, 0, 1, 1], [], []>} : vector<16x16xbf16>, vector<16x32xbf16>, vector<16x32xf32> -> vector<16x32xf32>
    %c10_576 = arith.constant 10 : index
    %c0_577 = arith.constant 0 : index
    %1405 = vector.load %arg5[%c10_576, %c0_577] : memref<26x128xf32, #tpu.memory_space<vmem>>, vector<1x32xf32>
    %1406 = vector.broadcast %1405 : vector<1x32xf32> to vector<16x32xf32>
    %1407 = arith.addf %1404, %1406 : vector<16x32xf32>
    %cst_578 = arith.constant 0.000000e+00 : f32
    %1408 = vector.broadcast %cst_578 : f32 to vector<16x32xf32>
    %1409 = arith.maximumf %1407, %1408 : vector<16x32xf32>
    %c16_579 = arith.constant 16 : index
    %c0_580 = arith.constant 0 : index
    %1410 = vector.load %arg9[%c16_579, %c0_580] : memref<96x128xf32, #tpu.memory_space<vmem>>, vector<16x32xf32>
    tpu.vector_store %arg9[%c16_579, %c0_580], %1409 {strides = array<i32>} : memref<96x128xf32, #tpu.memory_space<vmem>>, vector<16x32xf32>,
    %c6_581 = arith.constant 6 : index
    %c0_582 = arith.constant 0 : index
    %c0_583 = arith.constant 0 : index
    %1411 = vector.load %arg6[%c6_581, %c0_582, %c0_583] : memref<14x9x128xf32, #tpu.memory_space<vmem>>, vector<1x9x32xf32>
    %1412 = vector.shape_cast %1411 : vector<1x9x32xf32> to vector<9x32xf32>
    %c6_584 = arith.constant 6 : index
    %c0_585 = arith.constant 0 : index
    %1413 = vector.load %arg7[%c6_584, %c0_585] : memref<14x128xf32, #tpu.memory_space<vmem>>, vector<1x32xf32>
    %1414 = tpu.iota {dimensions = array<i32: 0>} : vector<16x1xi32>
    %c15_i32_586 = arith.constant 15 : i32
    %1415 = vector.broadcast %c15_i32_586 : i32 to vector<16x1xi32>
    %1416 = arith.andi %1414, %1415 : vector<16x1xi32>
    %c2_i32_587 = arith.constant 2 : i32
    %1417 = vector.broadcast %c2_i32_587 : i32 to vector<16x1xi32>
    %1418 = arith.shrsi %1416, %1417 : vector<16x1xi32>
    %c3_i32_588 = arith.constant 3 : i32
    %1419 = vector.broadcast %c3_i32_588 : i32 to vector<16x1xi32>
    %1420 = arith.andi %1416, %1419 : vector<16x1xi32>
    %cst_589 = arith.constant 0.000000e+00 : f32
    %1421 = vector.broadcast %cst_589 : f32 to vector<16x32xf32>
    %c-1_i32_590 = arith.constant -1 : i32
    %1422 = vector.broadcast %c-1_i32_590 : i32 to vector<16x1xi32>
    %1423 = arith.addi %1418, %1422 : vector<16x1xi32>
    %c0_i32_591 = arith.constant 0 : i32
    %1424 = vector.broadcast %c0_i32_591 : i32 to vector<16x1xi32>
    %1425 = arith.cmpi sge, %1423, %1424 : vector<16x1xi32>
    %c-1_i32_592 = arith.constant -1 : i32
    %1426 = vector.broadcast %c-1_i32_592 : i32 to vector<16x1xi32>
    %1427 = arith.addi %1418, %1426 : vector<16x1xi32>
    %c3_i32_593 = arith.constant 3 : i32
    %1428 = vector.broadcast %c3_i32_593 : i32 to vector<16x1xi32>
    %1429 = arith.cmpi sle, %1427, %1428 : vector<16x1xi32>
    %1430 = arith.andi %1425, %1429 : vector<16x1xi1>
    %c-1_i32_594 = arith.constant -1 : i32
    %1431 = vector.broadcast %c-1_i32_594 : i32 to vector<16x1xi32>
    %1432 = arith.addi %1420, %1431 : vector<16x1xi32>
    %c0_i32_595 = arith.constant 0 : i32
    %1433 = vector.broadcast %c0_i32_595 : i32 to vector<16x1xi32>
    %1434 = arith.cmpi sge, %1432, %1433 : vector<16x1xi32>
    %c-1_i32_596 = arith.constant -1 : i32
    %1435 = vector.broadcast %c-1_i32_596 : i32 to vector<16x1xi32>
    %1436 = arith.addi %1420, %1435 : vector<16x1xi32>
    %c3_i32_597 = arith.constant 3 : i32
    %1437 = vector.broadcast %c3_i32_597 : i32 to vector<16x1xi32>
    %1438 = arith.cmpi sle, %1436, %1437 : vector<16x1xi32>
    %1439 = arith.andi %1434, %1438 : vector<16x1xi1>
    %1440 = arith.andi %1430, %1439 : vector<16x1xi1>
    %c11_598 = arith.constant 11 : index
    %c0_599 = arith.constant 0 : index
    %1441 = vector.load %arg9[%c11_598, %c0_599] : memref<96x128xf32, #tpu.memory_space<vmem>>, vector<16x32xf32>
    %cst_600 = arith.constant 0.000000e+00 : f32
    %1442 = vector.shape_cast %1440 : vector<16x1xi1> to vector<16x1xi1>
    %1443 = vector.broadcast %1442 : vector<16x1xi1> to vector<16x32xi1>
    %1444 = vector.broadcast %cst_600 : f32 to vector<16x32xf32>
    %1445 = arith.select %1443, %1441, %1444 : vector<16x32xi1>, vector<16x32xf32>
    %1446 = vector.extract_strided_slice %1412 {offsets = [0, 0], sizes = [1, 32], strides = [1, 1]} : vector<9x32xf32> to vector<1x32xf32>
    %1447 = vector.broadcast %1446 : vector<1x32xf32> to vector<16x32xf32>
    %1448 = arith.mulf %1445, %1447 : vector<16x32xf32>
    %1449 = arith.addf %1421, %1448 : vector<16x32xf32>
    %c0_i32_601 = arith.constant 0 : i32
    %1450 = vector.broadcast %c0_i32_601 : i32 to vector<16x1xi32>
    %1451 = arith.addi %1420, %1450 : vector<16x1xi32>
    %c0_i32_602 = arith.constant 0 : i32
    %1452 = vector.broadcast %c0_i32_602 : i32 to vector<16x1xi32>
    %1453 = arith.cmpi sge, %1451, %1452 : vector<16x1xi32>
    %c0_i32_603 = arith.constant 0 : i32
    %1454 = vector.broadcast %c0_i32_603 : i32 to vector<16x1xi32>
    %1455 = arith.addi %1420, %1454 : vector<16x1xi32>
    %c3_i32_604 = arith.constant 3 : i32
    %1456 = vector.broadcast %c3_i32_604 : i32 to vector<16x1xi32>
    %1457 = arith.cmpi sle, %1455, %1456 : vector<16x1xi32>
    %1458 = arith.andi %1453, %1457 : vector<16x1xi1>
    %1459 = arith.andi %1430, %1458 : vector<16x1xi1>
    %c12_605 = arith.constant 12 : index
    %c0_606 = arith.constant 0 : index
    %1460 = vector.load %arg9[%c12_605, %c0_606] : memref<96x128xf32, #tpu.memory_space<vmem>>, vector<16x32xf32>
    %cst_607 = arith.constant 0.000000e+00 : f32
    %1461 = vector.shape_cast %1459 : vector<16x1xi1> to vector<16x1xi1>
    %1462 = vector.broadcast %1461 : vector<16x1xi1> to vector<16x32xi1>
    %1463 = vector.broadcast %cst_607 : f32 to vector<16x32xf32>
    %1464 = arith.select %1462, %1460, %1463 : vector<16x32xi1>, vector<16x32xf32>
    %1465 = vector.extract_strided_slice %1412 {offsets = [1, 0], sizes = [1, 32], strides = [1, 1]} : vector<9x32xf32> to vector<1x32xf32>
    %1466 = vector.broadcast %1465 : vector<1x32xf32> to vector<16x32xf32>
    %1467 = arith.mulf %1464, %1466 : vector<16x32xf32>
    %1468 = arith.addf %1449, %1467 : vector<16x32xf32>
    %c1_i32_608 = arith.constant 1 : i32
    %1469 = vector.broadcast %c1_i32_608 : i32 to vector<16x1xi32>
    %1470 = arith.addi %1420, %1469 : vector<16x1xi32>
    %c0_i32_609 = arith.constant 0 : i32
    %1471 = vector.broadcast %c0_i32_609 : i32 to vector<16x1xi32>
    %1472 = arith.cmpi sge, %1470, %1471 : vector<16x1xi32>
    %c1_i32_610 = arith.constant 1 : i32
    %1473 = vector.broadcast %c1_i32_610 : i32 to vector<16x1xi32>
    %1474 = arith.addi %1420, %1473 : vector<16x1xi32>
    %c3_i32_611 = arith.constant 3 : i32
    %1475 = vector.broadcast %c3_i32_611 : i32 to vector<16x1xi32>
    %1476 = arith.cmpi sle, %1474, %1475 : vector<16x1xi32>
    %1477 = arith.andi %1472, %1476 : vector<16x1xi1>
    %1478 = arith.andi %1430, %1477 : vector<16x1xi1>
    %c13_612 = arith.constant 13 : index
    %c0_613 = arith.constant 0 : index
    %1479 = vector.load %arg9[%c13_612, %c0_613] : memref<96x128xf32, #tpu.memory_space<vmem>>, vector<16x32xf32>
    %cst_614 = arith.constant 0.000000e+00 : f32
    %1480 = vector.shape_cast %1478 : vector<16x1xi1> to vector<16x1xi1>
    %1481 = vector.broadcast %1480 : vector<16x1xi1> to vector<16x32xi1>
    %1482 = vector.broadcast %cst_614 : f32 to vector<16x32xf32>
    %1483 = arith.select %1481, %1479, %1482 : vector<16x32xi1>, vector<16x32xf32>
    %1484 = vector.extract_strided_slice %1412 {offsets = [2, 0], sizes = [1, 32], strides = [1, 1]} : vector<9x32xf32> to vector<1x32xf32>
    %1485 = vector.broadcast %1484 : vector<1x32xf32> to vector<16x32xf32>
    %1486 = arith.mulf %1483, %1485 : vector<16x32xf32>
    %1487 = arith.addf %1468, %1486 : vector<16x32xf32>
    %c0_i32_615 = arith.constant 0 : i32
    %1488 = vector.broadcast %c0_i32_615 : i32 to vector<16x1xi32>
    %1489 = arith.addi %1418, %1488 : vector<16x1xi32>
    %c0_i32_616 = arith.constant 0 : i32
    %1490 = vector.broadcast %c0_i32_616 : i32 to vector<16x1xi32>
    %1491 = arith.cmpi sge, %1489, %1490 : vector<16x1xi32>
    %c0_i32_617 = arith.constant 0 : i32
    %1492 = vector.broadcast %c0_i32_617 : i32 to vector<16x1xi32>
    %1493 = arith.addi %1418, %1492 : vector<16x1xi32>
    %c3_i32_618 = arith.constant 3 : i32
    %1494 = vector.broadcast %c3_i32_618 : i32 to vector<16x1xi32>
    %1495 = arith.cmpi sle, %1493, %1494 : vector<16x1xi32>
    %1496 = arith.andi %1491, %1495 : vector<16x1xi1>
    %c-1_i32_619 = arith.constant -1 : i32
    %1497 = vector.broadcast %c-1_i32_619 : i32 to vector<16x1xi32>
    %1498 = arith.addi %1420, %1497 : vector<16x1xi32>
    %c0_i32_620 = arith.constant 0 : i32
    %1499 = vector.broadcast %c0_i32_620 : i32 to vector<16x1xi32>
    %1500 = arith.cmpi sge, %1498, %1499 : vector<16x1xi32>
    %c-1_i32_621 = arith.constant -1 : i32
    %1501 = vector.broadcast %c-1_i32_621 : i32 to vector<16x1xi32>
    %1502 = arith.addi %1420, %1501 : vector<16x1xi32>
    %c3_i32_622 = arith.constant 3 : i32
    %1503 = vector.broadcast %c3_i32_622 : i32 to vector<16x1xi32>
    %1504 = arith.cmpi sle, %1502, %1503 : vector<16x1xi32>
    %1505 = arith.andi %1500, %1504 : vector<16x1xi1>
    %1506 = arith.andi %1496, %1505 : vector<16x1xi1>
    %c15_623 = arith.constant 15 : index
    %c0_624 = arith.constant 0 : index
    %1507 = vector.load %arg9[%c15_623, %c0_624] : memref<96x128xf32, #tpu.memory_space<vmem>>, vector<16x32xf32>
    %cst_625 = arith.constant 0.000000e+00 : f32
    %1508 = vector.shape_cast %1506 : vector<16x1xi1> to vector<16x1xi1>
    %1509 = vector.broadcast %1508 : vector<16x1xi1> to vector<16x32xi1>
    %1510 = vector.broadcast %cst_625 : f32 to vector<16x32xf32>
    %1511 = arith.select %1509, %1507, %1510 : vector<16x32xi1>, vector<16x32xf32>
    %1512 = vector.extract_strided_slice %1412 {offsets = [3, 0], sizes = [1, 32], strides = [1, 1]} : vector<9x32xf32> to vector<1x32xf32>
    %1513 = vector.broadcast %1512 : vector<1x32xf32> to vector<16x32xf32>
    %1514 = arith.mulf %1511, %1513 : vector<16x32xf32>
    %1515 = arith.addf %1487, %1514 : vector<16x32xf32>
    %c0_i32_626 = arith.constant 0 : i32
    %1516 = vector.broadcast %c0_i32_626 : i32 to vector<16x1xi32>
    %1517 = arith.addi %1420, %1516 : vector<16x1xi32>
    %c0_i32_627 = arith.constant 0 : i32
    %1518 = vector.broadcast %c0_i32_627 : i32 to vector<16x1xi32>
    %1519 = arith.cmpi sge, %1517, %1518 : vector<16x1xi32>
    %c0_i32_628 = arith.constant 0 : i32
    %1520 = vector.broadcast %c0_i32_628 : i32 to vector<16x1xi32>
    %1521 = arith.addi %1420, %1520 : vector<16x1xi32>
    %c3_i32_629 = arith.constant 3 : i32
    %1522 = vector.broadcast %c3_i32_629 : i32 to vector<16x1xi32>
    %1523 = arith.cmpi sle, %1521, %1522 : vector<16x1xi32>
    %1524 = arith.andi %1519, %1523 : vector<16x1xi1>
    %1525 = arith.andi %1496, %1524 : vector<16x1xi1>
    %c16_630 = arith.constant 16 : index
    %c0_631 = arith.constant 0 : index
    %1526 = vector.load %arg9[%c16_630, %c0_631] : memref<96x128xf32, #tpu.memory_space<vmem>>, vector<16x32xf32>
    %cst_632 = arith.constant 0.000000e+00 : f32
    %1527 = vector.shape_cast %1525 : vector<16x1xi1> to vector<16x1xi1>
    %1528 = vector.broadcast %1527 : vector<16x1xi1> to vector<16x32xi1>
    %1529 = vector.broadcast %cst_632 : f32 to vector<16x32xf32>
    %1530 = arith.select %1528, %1526, %1529 : vector<16x32xi1>, vector<16x32xf32>
    %1531 = vector.extract_strided_slice %1412 {offsets = [4, 0], sizes = [1, 32], strides = [1, 1]} : vector<9x32xf32> to vector<1x32xf32>
    %1532 = vector.broadcast %1531 : vector<1x32xf32> to vector<16x32xf32>
    %1533 = arith.mulf %1530, %1532 : vector<16x32xf32>
    %1534 = arith.addf %1515, %1533 : vector<16x32xf32>
    %c1_i32_633 = arith.constant 1 : i32
    %1535 = vector.broadcast %c1_i32_633 : i32 to vector<16x1xi32>
    %1536 = arith.addi %1420, %1535 : vector<16x1xi32>
    %c0_i32_634 = arith.constant 0 : i32
    %1537 = vector.broadcast %c0_i32_634 : i32 to vector<16x1xi32>
    %1538 = arith.cmpi sge, %1536, %1537 : vector<16x1xi32>
    %c1_i32_635 = arith.constant 1 : i32
    %1539 = vector.broadcast %c1_i32_635 : i32 to vector<16x1xi32>
    %1540 = arith.addi %1420, %1539 : vector<16x1xi32>
    %c3_i32_636 = arith.constant 3 : i32
    %1541 = vector.broadcast %c3_i32_636 : i32 to vector<16x1xi32>
    %1542 = arith.cmpi sle, %1540, %1541 : vector<16x1xi32>
    %1543 = arith.andi %1538, %1542 : vector<16x1xi1>
    %1544 = arith.andi %1496, %1543 : vector<16x1xi1>
    %c17_637 = arith.constant 17 : index
    %c0_638 = arith.constant 0 : index
    %1545 = vector.load %arg9[%c17_637, %c0_638] : memref<96x128xf32, #tpu.memory_space<vmem>>, vector<16x32xf32>
    %cst_639 = arith.constant 0.000000e+00 : f32
    %1546 = vector.shape_cast %1544 : vector<16x1xi1> to vector<16x1xi1>
    %1547 = vector.broadcast %1546 : vector<16x1xi1> to vector<16x32xi1>
    %1548 = vector.broadcast %cst_639 : f32 to vector<16x32xf32>
    %1549 = arith.select %1547, %1545, %1548 : vector<16x32xi1>, vector<16x32xf32>
    %1550 = vector.extract_strided_slice %1412 {offsets = [5, 0], sizes = [1, 32], strides = [1, 1]} : vector<9x32xf32> to vector<1x32xf32>
    %1551 = vector.broadcast %1550 : vector<1x32xf32> to vector<16x32xf32>
    %1552 = arith.mulf %1549, %1551 : vector<16x32xf32>
    %1553 = arith.addf %1534, %1552 : vector<16x32xf32>
    %c1_i32_640 = arith.constant 1 : i32
    %1554 = vector.broadcast %c1_i32_640 : i32 to vector<16x1xi32>
    %1555 = arith.addi %1418, %1554 : vector<16x1xi32>
    %c0_i32_641 = arith.constant 0 : i32
    %1556 = vector.broadcast %c0_i32_641 : i32 to vector<16x1xi32>
    %1557 = arith.cmpi sge, %1555, %1556 : vector<16x1xi32>
    %c1_i32_642 = arith.constant 1 : i32
    %1558 = vector.broadcast %c1_i32_642 : i32 to vector<16x1xi32>
    %1559 = arith.addi %1418, %1558 : vector<16x1xi32>
    %c3_i32_643 = arith.constant 3 : i32
    %1560 = vector.broadcast %c3_i32_643 : i32 to vector<16x1xi32>
    %1561 = arith.cmpi sle, %1559, %1560 : vector<16x1xi32>
    %1562 = arith.andi %1557, %1561 : vector<16x1xi1>
    %c-1_i32_644 = arith.constant -1 : i32
    %1563 = vector.broadcast %c-1_i32_644 : i32 to vector<16x1xi32>
    %1564 = arith.addi %1420, %1563 : vector<16x1xi32>
    %c0_i32_645 = arith.constant 0 : i32
    %1565 = vector.broadcast %c0_i32_645 : i32 to vector<16x1xi32>
    %1566 = arith.cmpi sge, %1564, %1565 : vector<16x1xi32>
    %c-1_i32_646 = arith.constant -1 : i32
    %1567 = vector.broadcast %c-1_i32_646 : i32 to vector<16x1xi32>
    %1568 = arith.addi %1420, %1567 : vector<16x1xi32>
    %c3_i32_647 = arith.constant 3 : i32
    %1569 = vector.broadcast %c3_i32_647 : i32 to vector<16x1xi32>
    %1570 = arith.cmpi sle, %1568, %1569 : vector<16x1xi32>
    %1571 = arith.andi %1566, %1570 : vector<16x1xi1>
    %1572 = arith.andi %1562, %1571 : vector<16x1xi1>
    %c19_648 = arith.constant 19 : index
    %c0_649 = arith.constant 0 : index
    %1573 = vector.load %arg9[%c19_648, %c0_649] : memref<96x128xf32, #tpu.memory_space<vmem>>, vector<16x32xf32>
    %cst_650 = arith.constant 0.000000e+00 : f32
    %1574 = vector.shape_cast %1572 : vector<16x1xi1> to vector<16x1xi1>
    %1575 = vector.broadcast %1574 : vector<16x1xi1> to vector<16x32xi1>
    %1576 = vector.broadcast %cst_650 : f32 to vector<16x32xf32>
    %1577 = arith.select %1575, %1573, %1576 : vector<16x32xi1>, vector<16x32xf32>
    %1578 = vector.extract_strided_slice %1412 {offsets = [6, 0], sizes = [1, 32], strides = [1, 1]} : vector<9x32xf32> to vector<1x32xf32>
    %1579 = vector.broadcast %1578 : vector<1x32xf32> to vector<16x32xf32>
    %1580 = arith.mulf %1577, %1579 : vector<16x32xf32>
    %1581 = arith.addf %1553, %1580 : vector<16x32xf32>
    %c0_i32_651 = arith.constant 0 : i32
    %1582 = vector.broadcast %c0_i32_651 : i32 to vector<16x1xi32>
    %1583 = arith.addi %1420, %1582 : vector<16x1xi32>
    %c0_i32_652 = arith.constant 0 : i32
    %1584 = vector.broadcast %c0_i32_652 : i32 to vector<16x1xi32>
    %1585 = arith.cmpi sge, %1583, %1584 : vector<16x1xi32>
    %c0_i32_653 = arith.constant 0 : i32
    %1586 = vector.broadcast %c0_i32_653 : i32 to vector<16x1xi32>
    %1587 = arith.addi %1420, %1586 : vector<16x1xi32>
    %c3_i32_654 = arith.constant 3 : i32
    %1588 = vector.broadcast %c3_i32_654 : i32 to vector<16x1xi32>
    %1589 = arith.cmpi sle, %1587, %1588 : vector<16x1xi32>
    %1590 = arith.andi %1585, %1589 : vector<16x1xi1>
    %1591 = arith.andi %1562, %1590 : vector<16x1xi1>
    %c20_655 = arith.constant 20 : index
    %c0_656 = arith.constant 0 : index
    %1592 = vector.load %arg9[%c20_655, %c0_656] : memref<96x128xf32, #tpu.memory_space<vmem>>, vector<16x32xf32>
    %cst_657 = arith.constant 0.000000e+00 : f32
    %1593 = vector.shape_cast %1591 : vector<16x1xi1> to vector<16x1xi1>
    %1594 = vector.broadcast %1593 : vector<16x1xi1> to vector<16x32xi1>
    %1595 = vector.broadcast %cst_657 : f32 to vector<16x32xf32>
    %1596 = arith.select %1594, %1592, %1595 : vector<16x32xi1>, vector<16x32xf32>
    %1597 = vector.extract_strided_slice %1412 {offsets = [7, 0], sizes = [1, 32], strides = [1, 1]} : vector<9x32xf32> to vector<1x32xf32>
    %1598 = vector.broadcast %1597 : vector<1x32xf32> to vector<16x32xf32>
    %1599 = arith.mulf %1596, %1598 : vector<16x32xf32>
    %1600 = arith.addf %1581, %1599 : vector<16x32xf32>
    %c1_i32_658 = arith.constant 1 : i32
    %1601 = vector.broadcast %c1_i32_658 : i32 to vector<16x1xi32>
    %1602 = arith.addi %1420, %1601 : vector<16x1xi32>
    %c0_i32_659 = arith.constant 0 : i32
    %1603 = vector.broadcast %c0_i32_659 : i32 to vector<16x1xi32>
    %1604 = arith.cmpi sge, %1602, %1603 : vector<16x1xi32>
    %c1_i32_660 = arith.constant 1 : i32
    %1605 = vector.broadcast %c1_i32_660 : i32 to vector<16x1xi32>
    %1606 = arith.addi %1420, %1605 : vector<16x1xi32>
    %c3_i32_661 = arith.constant 3 : i32
    %1607 = vector.broadcast %c3_i32_661 : i32 to vector<16x1xi32>
    %1608 = arith.cmpi sle, %1606, %1607 : vector<16x1xi32>
    %1609 = arith.andi %1604, %1608 : vector<16x1xi1>
    %1610 = arith.andi %1562, %1609 : vector<16x1xi1>
    %c21_662 = arith.constant 21 : index
    %c0_663 = arith.constant 0 : index
    %1611 = vector.load %arg9[%c21_662, %c0_663] : memref<96x128xf32, #tpu.memory_space<vmem>>, vector<16x32xf32>
    %cst_664 = arith.constant 0.000000e+00 : f32
    %1612 = vector.shape_cast %1610 : vector<16x1xi1> to vector<16x1xi1>
    %1613 = vector.broadcast %1612 : vector<16x1xi1> to vector<16x32xi1>
    %1614 = vector.broadcast %cst_664 : f32 to vector<16x32xf32>
    %1615 = arith.select %1613, %1611, %1614 : vector<16x32xi1>, vector<16x32xf32>
    %1616 = vector.extract_strided_slice %1412 {offsets = [8, 0], sizes = [1, 32], strides = [1, 1]} : vector<9x32xf32> to vector<1x32xf32>
    %1617 = vector.broadcast %1616 : vector<1x32xf32> to vector<16x32xf32>
    %1618 = arith.mulf %1615, %1617 : vector<16x32xf32>
    %1619 = arith.addf %1600, %1618 : vector<16x32xf32>
    %1620 = vector.broadcast %1413 : vector<1x32xf32> to vector<16x32xf32>
    %1621 = arith.addf %1619, %1620 : vector<16x32xf32>
    %cst_665 = arith.constant 0.000000e+00 : f32
    %1622 = vector.broadcast %cst_665 : f32 to vector<16x32xf32>
    %1623 = arith.maximumf %1621, %1622 : vector<16x32xf32>
    %1624 = tpu.iota {dimensions = array<i32: 0>} : vector<4x16xi32>
    %1625 = tpu.iota {dimensions = array<i32: 1>} : vector<4x16xi32>
    %c2_i32_666 = arith.constant 2 : i32
    %1626 = vector.broadcast %c2_i32_666 : i32 to vector<4x16xi32>
    %1627 = arith.shrsi %1624, %1626 : vector<4x16xi32>
    %c3_i32_667 = arith.constant 3 : i32
    %1628 = vector.broadcast %c3_i32_667 : i32 to vector<4x16xi32>
    %1629 = arith.andi %1624, %1628 : vector<4x16xi32>
    %c1_i32_668 = arith.constant 1 : i32
    %1630 = vector.broadcast %c1_i32_668 : i32 to vector<4x16xi32>
    %1631 = arith.shrsi %1629, %1630 : vector<4x16xi32>
    %c1_i32_669 = arith.constant 1 : i32
    %1632 = vector.broadcast %c1_i32_669 : i32 to vector<4x16xi32>
    %1633 = arith.andi %1629, %1632 : vector<4x16xi32>
    %c16_i32_670 = arith.constant 16 : i32
    %1634 = vector.broadcast %c16_i32_670 : i32 to vector<4x16xi32>
    %1635 = arith.muli %1627, %1634 : vector<4x16xi32>
    %c8_i32 = arith.constant 8 : i32
    %1636 = vector.broadcast %c8_i32 : i32 to vector<4x16xi32>
    %1637 = arith.muli %1636, %1631 : vector<4x16xi32>
    %1638 = arith.addi %1635, %1637 : vector<4x16xi32>
    %c2_i32_671 = arith.constant 2 : i32
    %1639 = vector.broadcast %c2_i32_671 : i32 to vector<4x16xi32>
    %1640 = arith.muli %1639, %1633 : vector<4x16xi32>
    %1641 = arith.addi %1638, %1640 : vector<4x16xi32>
    %1642 = arith.cmpi eq, %1625, %1641 : vector<4x16xi32>
    %1643 = arith.extui %1642 : vector<4x16xi1> to vector<4x16xi32>
    %1644 = arith.sitofp %1643 : vector<4x16xi32> to vector<4x16xf32>
    %cst_672 = arith.constant dense<0.000000e+00> : vector<4x32xf32>
    %1645 = tpu.matmul %1644, %1623, %cst_672 {dimension_numbers = #tpu.dot_dimension_numbers<[1], [0], [0], [1], [0, 0, 1, 1], [], []>} : vector<4x16xf32>, vector<16x32xf32>, vector<4x32xf32> -> vector<4x32xf32>
    %c11_673 = arith.constant 11 : index
    %c0_674 = arith.constant 0 : index
    %c0_675 = arith.constant 0 : index
    %1646 = vector.load %arg4[%c11_673, %c0_674, %c0_675] : memref<26x128x128xbf16, #tpu.memory_space<vmem>>, vector<1x32x32xbf16>
    %1647 = vector.shape_cast %1646 : vector<1x32x32xbf16> to vector<32x32xbf16>
    %1648 = arith.truncf %1645 : vector<4x32xf32> to vector<4x32xbf16>
    %cst_676 = arith.constant dense<0.000000e+00> : vector<4x32xf32>
    %1649 = tpu.matmul %1648, %1647, %cst_676 {dimension_numbers = #tpu.dot_dimension_numbers<[1], [0], [0], [1], [0, 0, 1, 1], [], []>} : vector<4x32xbf16>, vector<32x32xbf16>, vector<4x32xf32> -> vector<4x32xf32>
    %c11_677 = arith.constant 11 : index
    %c0_678 = arith.constant 0 : index
    %1650 = vector.load %arg5[%c11_677, %c0_678] : memref<26x128xf32, #tpu.memory_space<vmem>>, vector<1x32xf32>
    %1651 = vector.broadcast %1650 : vector<1x32xf32> to vector<4x32xf32>
    %1652 = arith.addf %1649, %1651 : vector<4x32xf32>
    %c12_679 = arith.constant 12 : index
    %c0_680 = arith.constant 0 : index
    %c0_681 = arith.constant 0 : index
    %1653 = vector.load %arg4[%c12_679, %c0_680, %c0_681] : memref<26x128x128xbf16, #tpu.memory_space<vmem>>, vector<1x32x128xbf16>
    %1654 = vector.shape_cast %1653 : vector<1x32x128xbf16> to vector<32x128xbf16>
    %1655 = arith.truncf %1652 : vector<4x32xf32> to vector<4x32xbf16>
    %cst_682 = arith.constant dense<0.000000e+00> : vector<4x128xf32>
    %1656 = tpu.matmul %1655, %1654, %cst_682 {dimension_numbers = #tpu.dot_dimension_numbers<[1], [0], [0], [1], [0, 0, 1, 1], [], []>} : vector<4x32xbf16>, vector<32x128xbf16>, vector<4x128xf32> -> vector<4x128xf32>
    %c12_683 = arith.constant 12 : index
    %c0_684 = arith.constant 0 : index
    %1657 = vector.load %arg5[%c12_683, %c0_684] : memref<26x128xf32, #tpu.memory_space<vmem>>, vector<1x128xf32>
    %1658 = vector.broadcast %1657 : vector<1x128xf32> to vector<4x128xf32>
    %1659 = arith.addf %1656, %1658 : vector<4x128xf32>
    %cst_685 = arith.constant 0.000000e+00 : f32
    %1660 = vector.broadcast %cst_685 : f32 to vector<4x128xf32>
    %1661 = arith.maximumf %1659, %1660 : vector<4x128xf32>
    %c16_686 = arith.constant 16 : index
    %c0_687 = arith.constant 0 : index
    %1662 = vector.load %arg9[%c16_686, %c0_687] : memref<96x128xf32, #tpu.memory_space<vmem>>, vector<4x128xf32>
    tpu.vector_store %arg9[%c16_686, %c0_687], %1661 {strides = array<i32>} : memref<96x128xf32, #tpu.memory_space<vmem>>, vector<4x128xf32>,
    %c7_688 = arith.constant 7 : index
    %c0_689 = arith.constant 0 : index
    %c0_690 = arith.constant 0 : index
    %1663 = vector.load %arg6[%c7_688, %c0_689, %c0_690] : memref<14x9x128xf32, #tpu.memory_space<vmem>>, vector<1x9x128xf32>
    %1664 = vector.shape_cast %1663 : vector<1x9x128xf32> to vector<9x128xf32>
    %c7_691 = arith.constant 7 : index
    %c0_692 = arith.constant 0 : index
    %1665 = vector.load %arg7[%c7_691, %c0_692] : memref<14x128xf32, #tpu.memory_space<vmem>>, vector<1x128xf32>
    %1666 = tpu.iota {dimensions = array<i32: 0>} : vector<4x1xi32>
    %c3_i32_693 = arith.constant 3 : i32
    %1667 = vector.broadcast %c3_i32_693 : i32 to vector<4x1xi32>
    %1668 = arith.andi %1666, %1667 : vector<4x1xi32>
    %c1_i32_694 = arith.constant 1 : i32
    %1669 = vector.broadcast %c1_i32_694 : i32 to vector<4x1xi32>
    %1670 = arith.shrsi %1668, %1669 : vector<4x1xi32>
    %c1_i32_695 = arith.constant 1 : i32
    %1671 = vector.broadcast %c1_i32_695 : i32 to vector<4x1xi32>
    %1672 = arith.andi %1668, %1671 : vector<4x1xi32>
    %cst_696 = arith.constant 0.000000e+00 : f32
    %1673 = vector.broadcast %cst_696 : f32 to vector<4x128xf32>
    %c-1_i32_697 = arith.constant -1 : i32
    %1674 = vector.broadcast %c-1_i32_697 : i32 to vector<4x1xi32>
    %1675 = arith.addi %1670, %1674 : vector<4x1xi32>
    %c0_i32_698 = arith.constant 0 : i32
    %1676 = vector.broadcast %c0_i32_698 : i32 to vector<4x1xi32>
    %1677 = arith.cmpi sge, %1675, %1676 : vector<4x1xi32>
    %c-1_i32_699 = arith.constant -1 : i32
    %1678 = vector.broadcast %c-1_i32_699 : i32 to vector<4x1xi32>
    %1679 = arith.addi %1670, %1678 : vector<4x1xi32>
    %c1_i32_700 = arith.constant 1 : i32
    %1680 = vector.broadcast %c1_i32_700 : i32 to vector<4x1xi32>
    %1681 = arith.cmpi sle, %1679, %1680 : vector<4x1xi32>
    %1682 = arith.andi %1677, %1681 : vector<4x1xi1>
    %c-1_i32_701 = arith.constant -1 : i32
    %1683 = vector.broadcast %c-1_i32_701 : i32 to vector<4x1xi32>
    %1684 = arith.addi %1672, %1683 : vector<4x1xi32>
    %c0_i32_702 = arith.constant 0 : i32
    %1685 = vector.broadcast %c0_i32_702 : i32 to vector<4x1xi32>
    %1686 = arith.cmpi sge, %1684, %1685 : vector<4x1xi32>
    %c-1_i32_703 = arith.constant -1 : i32
    %1687 = vector.broadcast %c-1_i32_703 : i32 to vector<4x1xi32>
    %1688 = arith.addi %1672, %1687 : vector<4x1xi32>
    %c1_i32_704 = arith.constant 1 : i32
    %1689 = vector.broadcast %c1_i32_704 : i32 to vector<4x1xi32>
    %1690 = arith.cmpi sle, %1688, %1689 : vector<4x1xi32>
    %1691 = arith.andi %1686, %1690 : vector<4x1xi1>
    %1692 = arith.andi %1682, %1691 : vector<4x1xi1>
    %c13_705 = arith.constant 13 : index
    %c0_706 = arith.constant 0 : index
    %1693 = vector.load %arg9[%c13_705, %c0_706] : memref<96x128xf32, #tpu.memory_space<vmem>>, vector<4x128xf32>
    %cst_707 = arith.constant 0.000000e+00 : f32
    %1694 = vector.shape_cast %1692 : vector<4x1xi1> to vector<4x1xi1>
    %1695 = vector.broadcast %1694 : vector<4x1xi1> to vector<4x128xi1>
    %1696 = vector.broadcast %cst_707 : f32 to vector<4x128xf32>
    %1697 = arith.select %1695, %1693, %1696 : vector<4x128xi1>, vector<4x128xf32>
    %1698 = vector.extract_strided_slice %1664 {offsets = [0, 0], sizes = [1, 128], strides = [1, 1]} : vector<9x128xf32> to vector<1x128xf32>
    %1699 = vector.broadcast %1698 : vector<1x128xf32> to vector<4x128xf32>
    %1700 = arith.mulf %1697, %1699 : vector<4x128xf32>
    %1701 = arith.addf %1673, %1700 : vector<4x128xf32>
    %c0_i32_708 = arith.constant 0 : i32
    %1702 = vector.broadcast %c0_i32_708 : i32 to vector<4x1xi32>
    %1703 = arith.addi %1672, %1702 : vector<4x1xi32>
    %c0_i32_709 = arith.constant 0 : i32
    %1704 = vector.broadcast %c0_i32_709 : i32 to vector<4x1xi32>
    %1705 = arith.cmpi sge, %1703, %1704 : vector<4x1xi32>
    %c0_i32_710 = arith.constant 0 : i32
    %1706 = vector.broadcast %c0_i32_710 : i32 to vector<4x1xi32>
    %1707 = arith.addi %1672, %1706 : vector<4x1xi32>
    %c1_i32_711 = arith.constant 1 : i32
    %1708 = vector.broadcast %c1_i32_711 : i32 to vector<4x1xi32>
    %1709 = arith.cmpi sle, %1707, %1708 : vector<4x1xi32>
    %1710 = arith.andi %1705, %1709 : vector<4x1xi1>
    %1711 = arith.andi %1682, %1710 : vector<4x1xi1>
    %c14 = arith.constant 14 : index
    %c0_712 = arith.constant 0 : index
    %1712 = vector.load %arg9[%c14, %c0_712] : memref<96x128xf32, #tpu.memory_space<vmem>>, vector<4x128xf32>
    %cst_713 = arith.constant 0.000000e+00 : f32
    %1713 = vector.shape_cast %1711 : vector<4x1xi1> to vector<4x1xi1>
    %1714 = vector.broadcast %1713 : vector<4x1xi1> to vector<4x128xi1>
    %1715 = vector.broadcast %cst_713 : f32 to vector<4x128xf32>
    %1716 = arith.select %1714, %1712, %1715 : vector<4x128xi1>, vector<4x128xf32>
    %1717 = vector.extract_strided_slice %1664 {offsets = [1, 0], sizes = [1, 128], strides = [1, 1]} : vector<9x128xf32> to vector<1x128xf32>
    %1718 = vector.broadcast %1717 : vector<1x128xf32> to vector<4x128xf32>
    %1719 = arith.mulf %1716, %1718 : vector<4x128xf32>
    %1720 = arith.addf %1701, %1719 : vector<4x128xf32>
    %c1_i32_714 = arith.constant 1 : i32
    %1721 = vector.broadcast %c1_i32_714 : i32 to vector<4x1xi32>
    %1722 = arith.addi %1672, %1721 : vector<4x1xi32>
    %c0_i32_715 = arith.constant 0 : i32
    %1723 = vector.broadcast %c0_i32_715 : i32 to vector<4x1xi32>
    %1724 = arith.cmpi sge, %1722, %1723 : vector<4x1xi32>
    %c1_i32_716 = arith.constant 1 : i32
    %1725 = vector.broadcast %c1_i32_716 : i32 to vector<4x1xi32>
    %1726 = arith.addi %1672, %1725 : vector<4x1xi32>
    %c1_i32_717 = arith.constant 1 : i32
    %1727 = vector.broadcast %c1_i32_717 : i32 to vector<4x1xi32>
    %1728 = arith.cmpi sle, %1726, %1727 : vector<4x1xi32>
    %1729 = arith.andi %1724, %1728 : vector<4x1xi1>
    %1730 = arith.andi %1682, %1729 : vector<4x1xi1>
    %c15_718 = arith.constant 15 : index
    %c0_719 = arith.constant 0 : index
    %1731 = vector.load %arg9[%c15_718, %c0_719] : memref<96x128xf32, #tpu.memory_space<vmem>>, vector<4x128xf32>
    %cst_720 = arith.constant 0.000000e+00 : f32
    %1732 = vector.shape_cast %1730 : vector<4x1xi1> to vector<4x1xi1>
    %1733 = vector.broadcast %1732 : vector<4x1xi1> to vector<4x128xi1>
    %1734 = vector.broadcast %cst_720 : f32 to vector<4x128xf32>
    %1735 = arith.select %1733, %1731, %1734 : vector<4x128xi1>, vector<4x128xf32>
    %1736 = vector.extract_strided_slice %1664 {offsets = [2, 0], sizes = [1, 128], strides = [1, 1]} : vector<9x128xf32> to vector<1x128xf32>
    %1737 = vector.broadcast %1736 : vector<1x128xf32> to vector<4x128xf32>
    %1738 = arith.mulf %1735, %1737 : vector<4x128xf32>
    %1739 = arith.addf %1720, %1738 : vector<4x128xf32>
    %c0_i32_721 = arith.constant 0 : i32
    %1740 = vector.broadcast %c0_i32_721 : i32 to vector<4x1xi32>
    %1741 = arith.addi %1670, %1740 : vector<4x1xi32>
    %c0_i32_722 = arith.constant 0 : i32
    %1742 = vector.broadcast %c0_i32_722 : i32 to vector<4x1xi32>
    %1743 = arith.cmpi sge, %1741, %1742 : vector<4x1xi32>
    %c0_i32_723 = arith.constant 0 : i32
    %1744 = vector.broadcast %c0_i32_723 : i32 to vector<4x1xi32>
    %1745 = arith.addi %1670, %1744 : vector<4x1xi32>
    %c1_i32_724 = arith.constant 1 : i32
    %1746 = vector.broadcast %c1_i32_724 : i32 to vector<4x1xi32>
    %1747 = arith.cmpi sle, %1745, %1746 : vector<4x1xi32>
    %1748 = arith.andi %1743, %1747 : vector<4x1xi1>
    %c-1_i32_725 = arith.constant -1 : i32
    %1749 = vector.broadcast %c-1_i32_725 : i32 to vector<4x1xi32>
    %1750 = arith.addi %1672, %1749 : vector<4x1xi32>
    %c0_i32_726 = arith.constant 0 : i32
    %1751 = vector.broadcast %c0_i32_726 : i32 to vector<4x1xi32>
    %1752 = arith.cmpi sge, %1750, %1751 : vector<4x1xi32>
    %c-1_i32_727 = arith.constant -1 : i32
    %1753 = vector.broadcast %c-1_i32_727 : i32 to vector<4x1xi32>
    %1754 = arith.addi %1672, %1753 : vector<4x1xi32>
    %c1_i32_728 = arith.constant 1 : i32
    %1755 = vector.broadcast %c1_i32_728 : i32 to vector<4x1xi32>
    %1756 = arith.cmpi sle, %1754, %1755 : vector<4x1xi32>
    %1757 = arith.andi %1752, %1756 : vector<4x1xi1>
    %1758 = arith.andi %1748, %1757 : vector<4x1xi1>
    %c15_729 = arith.constant 15 : index
    %c0_730 = arith.constant 0 : index
    %1759 = vector.load %arg9[%c15_729, %c0_730] : memref<96x128xf32, #tpu.memory_space<vmem>>, vector<4x128xf32>
    %cst_731 = arith.constant 0.000000e+00 : f32
    %1760 = vector.shape_cast %1758 : vector<4x1xi1> to vector<4x1xi1>
    %1761 = vector.broadcast %1760 : vector<4x1xi1> to vector<4x128xi1>
    %1762 = vector.broadcast %cst_731 : f32 to vector<4x128xf32>
    %1763 = arith.select %1761, %1759, %1762 : vector<4x128xi1>, vector<4x128xf32>
    %1764 = vector.extract_strided_slice %1664 {offsets = [3, 0], sizes = [1, 128], strides = [1, 1]} : vector<9x128xf32> to vector<1x128xf32>
    %1765 = vector.broadcast %1764 : vector<1x128xf32> to vector<4x128xf32>
    %1766 = arith.mulf %1763, %1765 : vector<4x128xf32>
    %1767 = arith.addf %1739, %1766 : vector<4x128xf32>
    %c0_i32_732 = arith.constant 0 : i32
    %1768 = vector.broadcast %c0_i32_732 : i32 to vector<4x1xi32>
    %1769 = arith.addi %1672, %1768 : vector<4x1xi32>
    %c0_i32_733 = arith.constant 0 : i32
    %1770 = vector.broadcast %c0_i32_733 : i32 to vector<4x1xi32>
    %1771 = arith.cmpi sge, %1769, %1770 : vector<4x1xi32>
    %c0_i32_734 = arith.constant 0 : i32
    %1772 = vector.broadcast %c0_i32_734 : i32 to vector<4x1xi32>
    %1773 = arith.addi %1672, %1772 : vector<4x1xi32>
    %c1_i32_735 = arith.constant 1 : i32
    %1774 = vector.broadcast %c1_i32_735 : i32 to vector<4x1xi32>
    %1775 = arith.cmpi sle, %1773, %1774 : vector<4x1xi32>
    %1776 = arith.andi %1771, %1775 : vector<4x1xi1>
    %1777 = arith.andi %1748, %1776 : vector<4x1xi1>
    %c16_736 = arith.constant 16 : index
    %c0_737 = arith.constant 0 : index
    %1778 = vector.load %arg9[%c16_736, %c0_737] : memref<96x128xf32, #tpu.memory_space<vmem>>, vector<4x128xf32>
    %cst_738 = arith.constant 0.000000e+00 : f32
    %1779 = vector.shape_cast %1777 : vector<4x1xi1> to vector<4x1xi1>
    %1780 = vector.broadcast %1779 : vector<4x1xi1> to vector<4x128xi1>
    %1781 = vector.broadcast %cst_738 : f32 to vector<4x128xf32>
    %1782 = arith.select %1780, %1778, %1781 : vector<4x128xi1>, vector<4x128xf32>
    %1783 = vector.extract_strided_slice %1664 {offsets = [4, 0], sizes = [1, 128], strides = [1, 1]} : vector<9x128xf32> to vector<1x128xf32>
    %1784 = vector.broadcast %1783 : vector<1x128xf32> to vector<4x128xf32>
    %1785 = arith.mulf %1782, %1784 : vector<4x128xf32>
    %1786 = arith.addf %1767, %1785 : vector<4x128xf32>
    %c1_i32_739 = arith.constant 1 : i32
    %1787 = vector.broadcast %c1_i32_739 : i32 to vector<4x1xi32>
    %1788 = arith.addi %1672, %1787 : vector<4x1xi32>
    %c0_i32_740 = arith.constant 0 : i32
    %1789 = vector.broadcast %c0_i32_740 : i32 to vector<4x1xi32>
    %1790 = arith.cmpi sge, %1788, %1789 : vector<4x1xi32>
    %c1_i32_741 = arith.constant 1 : i32
    %1791 = vector.broadcast %c1_i32_741 : i32 to vector<4x1xi32>
    %1792 = arith.addi %1672, %1791 : vector<4x1xi32>
    %c1_i32_742 = arith.constant 1 : i32
    %1793 = vector.broadcast %c1_i32_742 : i32 to vector<4x1xi32>
    %1794 = arith.cmpi sle, %1792, %1793 : vector<4x1xi32>
    %1795 = arith.andi %1790, %1794 : vector<4x1xi1>
    %1796 = arith.andi %1748, %1795 : vector<4x1xi1>
    %c17_743 = arith.constant 17 : index
    %c0_744 = arith.constant 0 : index
    %1797 = vector.load %arg9[%c17_743, %c0_744] : memref<96x128xf32, #tpu.memory_space<vmem>>, vector<4x128xf32>
    %cst_745 = arith.constant 0.000000e+00 : f32
    %1798 = vector.shape_cast %1796 : vector<4x1xi1> to vector<4x1xi1>
    %1799 = vector.broadcast %1798 : vector<4x1xi1> to vector<4x128xi1>
    %1800 = vector.broadcast %cst_745 : f32 to vector<4x128xf32>
    %1801 = arith.select %1799, %1797, %1800 : vector<4x128xi1>, vector<4x128xf32>
    %1802 = vector.extract_strided_slice %1664 {offsets = [5, 0], sizes = [1, 128], strides = [1, 1]} : vector<9x128xf32> to vector<1x128xf32>
    %1803 = vector.broadcast %1802 : vector<1x128xf32> to vector<4x128xf32>
    %1804 = arith.mulf %1801, %1803 : vector<4x128xf32>
    %1805 = arith.addf %1786, %1804 : vector<4x128xf32>
    %c1_i32_746 = arith.constant 1 : i32
    %1806 = vector.broadcast %c1_i32_746 : i32 to vector<4x1xi32>
    %1807 = arith.addi %1670, %1806 : vector<4x1xi32>
    %c0_i32_747 = arith.constant 0 : i32
    %1808 = vector.broadcast %c0_i32_747 : i32 to vector<4x1xi32>
    %1809 = arith.cmpi sge, %1807, %1808 : vector<4x1xi32>
    %c1_i32_748 = arith.constant 1 : i32
    %1810 = vector.broadcast %c1_i32_748 : i32 to vector<4x1xi32>
    %1811 = arith.addi %1670, %1810 : vector<4x1xi32>
    %c1_i32_749 = arith.constant 1 : i32
    %1812 = vector.broadcast %c1_i32_749 : i32 to vector<4x1xi32>
    %1813 = arith.cmpi sle, %1811, %1812 : vector<4x1xi32>
    %1814 = arith.andi %1809, %1813 : vector<4x1xi1>
    %c-1_i32_750 = arith.constant -1 : i32
    %1815 = vector.broadcast %c-1_i32_750 : i32 to vector<4x1xi32>
    %1816 = arith.addi %1672, %1815 : vector<4x1xi32>
    %c0_i32_751 = arith.constant 0 : i32
    %1817 = vector.broadcast %c0_i32_751 : i32 to vector<4x1xi32>
    %1818 = arith.cmpi sge, %1816, %1817 : vector<4x1xi32>
    %c-1_i32_752 = arith.constant -1 : i32
    %1819 = vector.broadcast %c-1_i32_752 : i32 to vector<4x1xi32>
    %1820 = arith.addi %1672, %1819 : vector<4x1xi32>
    %c1_i32_753 = arith.constant 1 : i32
    %1821 = vector.broadcast %c1_i32_753 : i32 to vector<4x1xi32>
    %1822 = arith.cmpi sle, %1820, %1821 : vector<4x1xi32>
    %1823 = arith.andi %1818, %1822 : vector<4x1xi1>
    %1824 = arith.andi %1814, %1823 : vector<4x1xi1>
    %c17_754 = arith.constant 17 : index
    %c0_755 = arith.constant 0 : index
    %1825 = vector.load %arg9[%c17_754, %c0_755] : memref<96x128xf32, #tpu.memory_space<vmem>>, vector<4x128xf32>
    %cst_756 = arith.constant 0.000000e+00 : f32
    %1826 = vector.shape_cast %1824 : vector<4x1xi1> to vector<4x1xi1>
    %1827 = vector.broadcast %1826 : vector<4x1xi1> to vector<4x128xi1>
    %1828 = vector.broadcast %cst_756 : f32 to vector<4x128xf32>
    %1829 = arith.select %1827, %1825, %1828 : vector<4x128xi1>, vector<4x128xf32>
    %1830 = vector.extract_strided_slice %1664 {offsets = [6, 0], sizes = [1, 128], strides = [1, 1]} : vector<9x128xf32> to vector<1x128xf32>
    %1831 = vector.broadcast %1830 : vector<1x128xf32> to vector<4x128xf32>
    %1832 = arith.mulf %1829, %1831 : vector<4x128xf32>
    %1833 = arith.addf %1805, %1832 : vector<4x128xf32>
    %c0_i32_757 = arith.constant 0 : i32
    %1834 = vector.broadcast %c0_i32_757 : i32 to vector<4x1xi32>
    %1835 = arith.addi %1672, %1834 : vector<4x1xi32>
    %c0_i32_758 = arith.constant 0 : i32
    %1836 = vector.broadcast %c0_i32_758 : i32 to vector<4x1xi32>
    %1837 = arith.cmpi sge, %1835, %1836 : vector<4x1xi32>
    %c0_i32_759 = arith.constant 0 : i32
    %1838 = vector.broadcast %c0_i32_759 : i32 to vector<4x1xi32>
    %1839 = arith.addi %1672, %1838 : vector<4x1xi32>
    %c1_i32_760 = arith.constant 1 : i32
    %1840 = vector.broadcast %c1_i32_760 : i32 to vector<4x1xi32>
    %1841 = arith.cmpi sle, %1839, %1840 : vector<4x1xi32>
    %1842 = arith.andi %1837, %1841 : vector<4x1xi1>
    %1843 = arith.andi %1814, %1842 : vector<4x1xi1>
    %c18 = arith.constant 18 : index
    %c0_761 = arith.constant 0 : index
    %1844 = vector.load %arg9[%c18, %c0_761] : memref<96x128xf32, #tpu.memory_space<vmem>>, vector<4x128xf32>
    %cst_762 = arith.constant 0.000000e+00 : f32
    %1845 = vector.shape_cast %1843 : vector<4x1xi1> to vector<4x1xi1>
    %1846 = vector.broadcast %1845 : vector<4x1xi1> to vector<4x128xi1>
    %1847 = vector.broadcast %cst_762 : f32 to vector<4x128xf32>
    %1848 = arith.select %1846, %1844, %1847 : vector<4x128xi1>, vector<4x128xf32>
    %1849 = vector.extract_strided_slice %1664 {offsets = [7, 0], sizes = [1, 128], strides = [1, 1]} : vector<9x128xf32> to vector<1x128xf32>
    %1850 = vector.broadcast %1849 : vector<1x128xf32> to vector<4x128xf32>
    %1851 = arith.mulf %1848, %1850 : vector<4x128xf32>
    %1852 = arith.addf %1833, %1851 : vector<4x128xf32>
    %c1_i32_763 = arith.constant 1 : i32
    %1853 = vector.broadcast %c1_i32_763 : i32 to vector<4x1xi32>
    %1854 = arith.addi %1672, %1853 : vector<4x1xi32>
    %c0_i32_764 = arith.constant 0 : i32
    %1855 = vector.broadcast %c0_i32_764 : i32 to vector<4x1xi32>
    %1856 = arith.cmpi sge, %1854, %1855 : vector<4x1xi32>
    %c1_i32_765 = arith.constant 1 : i32
    %1857 = vector.broadcast %c1_i32_765 : i32 to vector<4x1xi32>
    %1858 = arith.addi %1672, %1857 : vector<4x1xi32>
    %c1_i32_766 = arith.constant 1 : i32
    %1859 = vector.broadcast %c1_i32_766 : i32 to vector<4x1xi32>
    %1860 = arith.cmpi sle, %1858, %1859 : vector<4x1xi32>
    %1861 = arith.andi %1856, %1860 : vector<4x1xi1>
    %1862 = arith.andi %1814, %1861 : vector<4x1xi1>
    %c19_767 = arith.constant 19 : index
    %c0_768 = arith.constant 0 : index
    %1863 = vector.load %arg9[%c19_767, %c0_768] : memref<96x128xf32, #tpu.memory_space<vmem>>, vector<4x128xf32>
    %cst_769 = arith.constant 0.000000e+00 : f32
    %1864 = vector.shape_cast %1862 : vector<4x1xi1> to vector<4x1xi1>
    %1865 = vector.broadcast %1864 : vector<4x1xi1> to vector<4x128xi1>
    %1866 = vector.broadcast %cst_769 : f32 to vector<4x128xf32>
    %1867 = arith.select %1865, %1863, %1866 : vector<4x128xi1>, vector<4x128xf32>
    %1868 = vector.extract_strided_slice %1664 {offsets = [8, 0], sizes = [1, 128], strides = [1, 1]} : vector<9x128xf32> to vector<1x128xf32>
    %1869 = vector.broadcast %1868 : vector<1x128xf32> to vector<4x128xf32>
    %1870 = arith.mulf %1867, %1869 : vector<4x128xf32>
    %1871 = arith.addf %1852, %1870 : vector<4x128xf32>
    %1872 = vector.broadcast %1665 : vector<1x128xf32> to vector<4x128xf32>
    %1873 = arith.addf %1871, %1872 : vector<4x128xf32>
    %cst_770 = arith.constant 0.000000e+00 : f32
    %1874 = vector.broadcast %cst_770 : f32 to vector<4x128xf32>
    %1875 = arith.maximumf %1873, %1874 : vector<4x128xf32>
    %c13_771 = arith.constant 13 : index
    %c0_772 = arith.constant 0 : index
    %c0_773 = arith.constant 0 : index
    %1876 = vector.load %arg4[%c13_771, %c0_772, %c0_773] : memref<26x128x128xbf16, #tpu.memory_space<vmem>>, vector<1x128x32xbf16>
    %1877 = vector.shape_cast %1876 : vector<1x128x32xbf16> to vector<128x32xbf16>
    %1878 = arith.truncf %1875 : vector<4x128xf32> to vector<4x128xbf16>
    %cst_774 = arith.constant dense<0.000000e+00> : vector<4x32xf32>
    %1879 = tpu.matmul %1878, %1877, %cst_774 {dimension_numbers = #tpu.dot_dimension_numbers<[1], [0], [0], [1], [0, 0, 1, 1], [], []>} : vector<4x128xbf16>, vector<128x32xbf16>, vector<4x32xf32> -> vector<4x32xf32>
    %c13_775 = arith.constant 13 : index
    %c0_776 = arith.constant 0 : index
    %1880 = vector.load %arg5[%c13_775, %c0_776] : memref<26x128xf32, #tpu.memory_space<vmem>>, vector<1x32xf32>
    %1881 = vector.broadcast %1880 : vector<1x32xf32> to vector<4x32xf32>
    %1882 = arith.addf %1879, %1881 : vector<4x32xf32>
    %1883 = arith.addf %1882, %1652 : vector<4x32xf32>
    %c14_777 = arith.constant 14 : index
    %c0_778 = arith.constant 0 : index
    %c0_779 = arith.constant 0 : index
    %1884 = vector.load %arg4[%c14_777, %c0_778, %c0_779] : memref<26x128x128xbf16, #tpu.memory_space<vmem>>, vector<1x32x128xbf16>
    %1885 = vector.shape_cast %1884 : vector<1x32x128xbf16> to vector<32x128xbf16>
    %1886 = arith.truncf %1883 : vector<4x32xf32> to vector<4x32xbf16>
    %cst_780 = arith.constant dense<0.000000e+00> : vector<4x128xf32>
    %1887 = tpu.matmul %1886, %1885, %cst_780 {dimension_numbers = #tpu.dot_dimension_numbers<[1], [0], [0], [1], [0, 0, 1, 1], [], []>} : vector<4x32xbf16>, vector<32x128xbf16>, vector<4x128xf32> -> vector<4x128xf32>
    %c14_781 = arith.constant 14 : index
    %c0_782 = arith.constant 0 : index
    %1888 = vector.load %arg5[%c14_781, %c0_782] : memref<26x128xf32, #tpu.memory_space<vmem>>, vector<1x128xf32>
    %1889 = vector.broadcast %1888 : vector<1x128xf32> to vector<4x128xf32>
    %1890 = arith.addf %1887, %1889 : vector<4x128xf32>
    %cst_783 = arith.constant 0.000000e+00 : f32
    %1891 = vector.broadcast %cst_783 : f32 to vector<4x128xf32>
    %1892 = arith.maximumf %1890, %1891 : vector<4x128xf32>
    %c16_784 = arith.constant 16 : index
    %c0_785 = arith.constant 0 : index
    %1893 = vector.load %arg9[%c16_784, %c0_785] : memref<96x128xf32, #tpu.memory_space<vmem>>, vector<4x128xf32>
    tpu.vector_store %arg9[%c16_784, %c0_785], %1892 {strides = array<i32>} : memref<96x128xf32, #tpu.memory_space<vmem>>, vector<4x128xf32>,
    %c8_786 = arith.constant 8 : index
    %c0_787 = arith.constant 0 : index
    %c0_788 = arith.constant 0 : index
    %1894 = vector.load %arg6[%c8_786, %c0_787, %c0_788] : memref<14x9x128xf32, #tpu.memory_space<vmem>>, vector<1x9x128xf32>
    %1895 = vector.shape_cast %1894 : vector<1x9x128xf32> to vector<9x128xf32>
    %c8_789 = arith.constant 8 : index
    %c0_790 = arith.constant 0 : index
    %1896 = vector.load %arg7[%c8_789, %c0_790] : memref<14x128xf32, #tpu.memory_space<vmem>>, vector<1x128xf32>
    %1897 = tpu.iota {dimensions = array<i32: 0>} : vector<4x1xi32>
    %c3_i32_791 = arith.constant 3 : i32
    %1898 = vector.broadcast %c3_i32_791 : i32 to vector<4x1xi32>
    %1899 = arith.andi %1897, %1898 : vector<4x1xi32>
    %c1_i32_792 = arith.constant 1 : i32
    %1900 = vector.broadcast %c1_i32_792 : i32 to vector<4x1xi32>
    %1901 = arith.shrsi %1899, %1900 : vector<4x1xi32>
    %c1_i32_793 = arith.constant 1 : i32
    %1902 = vector.broadcast %c1_i32_793 : i32 to vector<4x1xi32>
    %1903 = arith.andi %1899, %1902 : vector<4x1xi32>
    %cst_794 = arith.constant 0.000000e+00 : f32
    %1904 = vector.broadcast %cst_794 : f32 to vector<4x128xf32>
    %c-1_i32_795 = arith.constant -1 : i32
    %1905 = vector.broadcast %c-1_i32_795 : i32 to vector<4x1xi32>
    %1906 = arith.addi %1901, %1905 : vector<4x1xi32>
    %c0_i32_796 = arith.constant 0 : i32
    %1907 = vector.broadcast %c0_i32_796 : i32 to vector<4x1xi32>
    %1908 = arith.cmpi sge, %1906, %1907 : vector<4x1xi32>
    %c-1_i32_797 = arith.constant -1 : i32
    %1909 = vector.broadcast %c-1_i32_797 : i32 to vector<4x1xi32>
    %1910 = arith.addi %1901, %1909 : vector<4x1xi32>
    %c1_i32_798 = arith.constant 1 : i32
    %1911 = vector.broadcast %c1_i32_798 : i32 to vector<4x1xi32>
    %1912 = arith.cmpi sle, %1910, %1911 : vector<4x1xi32>
    %1913 = arith.andi %1908, %1912 : vector<4x1xi1>
    %c-1_i32_799 = arith.constant -1 : i32
    %1914 = vector.broadcast %c-1_i32_799 : i32 to vector<4x1xi32>
    %1915 = arith.addi %1903, %1914 : vector<4x1xi32>
    %c0_i32_800 = arith.constant 0 : i32
    %1916 = vector.broadcast %c0_i32_800 : i32 to vector<4x1xi32>
    %1917 = arith.cmpi sge, %1915, %1916 : vector<4x1xi32>
    %c-1_i32_801 = arith.constant -1 : i32
    %1918 = vector.broadcast %c-1_i32_801 : i32 to vector<4x1xi32>
    %1919 = arith.addi %1903, %1918 : vector<4x1xi32>
    %c1_i32_802 = arith.constant 1 : i32
    %1920 = vector.broadcast %c1_i32_802 : i32 to vector<4x1xi32>
    %1921 = arith.cmpi sle, %1919, %1920 : vector<4x1xi32>
    %1922 = arith.andi %1917, %1921 : vector<4x1xi1>
    %1923 = arith.andi %1913, %1922 : vector<4x1xi1>
    %c13_803 = arith.constant 13 : index
    %c0_804 = arith.constant 0 : index
    %1924 = vector.load %arg9[%c13_803, %c0_804] : memref<96x128xf32, #tpu.memory_space<vmem>>, vector<4x128xf32>
    %cst_805 = arith.constant 0.000000e+00 : f32
    %1925 = vector.shape_cast %1923 : vector<4x1xi1> to vector<4x1xi1>
    %1926 = vector.broadcast %1925 : vector<4x1xi1> to vector<4x128xi1>
    %1927 = vector.broadcast %cst_805 : f32 to vector<4x128xf32>
    %1928 = arith.select %1926, %1924, %1927 : vector<4x128xi1>, vector<4x128xf32>
    %1929 = vector.extract_strided_slice %1895 {offsets = [0, 0], sizes = [1, 128], strides = [1, 1]} : vector<9x128xf32> to vector<1x128xf32>
    %1930 = vector.broadcast %1929 : vector<1x128xf32> to vector<4x128xf32>
    %1931 = arith.mulf %1928, %1930 : vector<4x128xf32>
    %1932 = arith.addf %1904, %1931 : vector<4x128xf32>
    %c0_i32_806 = arith.constant 0 : i32
    %1933 = vector.broadcast %c0_i32_806 : i32 to vector<4x1xi32>
    %1934 = arith.addi %1903, %1933 : vector<4x1xi32>
    %c0_i32_807 = arith.constant 0 : i32
    %1935 = vector.broadcast %c0_i32_807 : i32 to vector<4x1xi32>
    %1936 = arith.cmpi sge, %1934, %1935 : vector<4x1xi32>
    %c0_i32_808 = arith.constant 0 : i32
    %1937 = vector.broadcast %c0_i32_808 : i32 to vector<4x1xi32>
    %1938 = arith.addi %1903, %1937 : vector<4x1xi32>
    %c1_i32_809 = arith.constant 1 : i32
    %1939 = vector.broadcast %c1_i32_809 : i32 to vector<4x1xi32>
    %1940 = arith.cmpi sle, %1938, %1939 : vector<4x1xi32>
    %1941 = arith.andi %1936, %1940 : vector<4x1xi1>
    %1942 = arith.andi %1913, %1941 : vector<4x1xi1>
    %c14_810 = arith.constant 14 : index
    %c0_811 = arith.constant 0 : index
    %1943 = vector.load %arg9[%c14_810, %c0_811] : memref<96x128xf32, #tpu.memory_space<vmem>>, vector<4x128xf32>
    %cst_812 = arith.constant 0.000000e+00 : f32
    %1944 = vector.shape_cast %1942 : vector<4x1xi1> to vector<4x1xi1>
    %1945 = vector.broadcast %1944 : vector<4x1xi1> to vector<4x128xi1>
    %1946 = vector.broadcast %cst_812 : f32 to vector<4x128xf32>
    %1947 = arith.select %1945, %1943, %1946 : vector<4x128xi1>, vector<4x128xf32>
    %1948 = vector.extract_strided_slice %1895 {offsets = [1, 0], sizes = [1, 128], strides = [1, 1]} : vector<9x128xf32> to vector<1x128xf32>
    %1949 = vector.broadcast %1948 : vector<1x128xf32> to vector<4x128xf32>
    %1950 = arith.mulf %1947, %1949 : vector<4x128xf32>
    %1951 = arith.addf %1932, %1950 : vector<4x128xf32>
    %c1_i32_813 = arith.constant 1 : i32
    %1952 = vector.broadcast %c1_i32_813 : i32 to vector<4x1xi32>
    %1953 = arith.addi %1903, %1952 : vector<4x1xi32>
    %c0_i32_814 = arith.constant 0 : i32
    %1954 = vector.broadcast %c0_i32_814 : i32 to vector<4x1xi32>
    %1955 = arith.cmpi sge, %1953, %1954 : vector<4x1xi32>
    %c1_i32_815 = arith.constant 1 : i32
    %1956 = vector.broadcast %c1_i32_815 : i32 to vector<4x1xi32>
    %1957 = arith.addi %1903, %1956 : vector<4x1xi32>
    %c1_i32_816 = arith.constant 1 : i32
    %1958 = vector.broadcast %c1_i32_816 : i32 to vector<4x1xi32>
    %1959 = arith.cmpi sle, %1957, %1958 : vector<4x1xi32>
    %1960 = arith.andi %1955, %1959 : vector<4x1xi1>
    %1961 = arith.andi %1913, %1960 : vector<4x1xi1>
    %c15_817 = arith.constant 15 : index
    %c0_818 = arith.constant 0 : index
    %1962 = vector.load %arg9[%c15_817, %c0_818] : memref<96x128xf32, #tpu.memory_space<vmem>>, vector<4x128xf32>
    %cst_819 = arith.constant 0.000000e+00 : f32
    %1963 = vector.shape_cast %1961 : vector<4x1xi1> to vector<4x1xi1>
    %1964 = vector.broadcast %1963 : vector<4x1xi1> to vector<4x128xi1>
    %1965 = vector.broadcast %cst_819 : f32 to vector<4x128xf32>
    %1966 = arith.select %1964, %1962, %1965 : vector<4x128xi1>, vector<4x128xf32>
    %1967 = vector.extract_strided_slice %1895 {offsets = [2, 0], sizes = [1, 128], strides = [1, 1]} : vector<9x128xf32> to vector<1x128xf32>
    %1968 = vector.broadcast %1967 : vector<1x128xf32> to vector<4x128xf32>
    %1969 = arith.mulf %1966, %1968 : vector<4x128xf32>
    %1970 = arith.addf %1951, %1969 : vector<4x128xf32>
    %c0_i32_820 = arith.constant 0 : i32
    %1971 = vector.broadcast %c0_i32_820 : i32 to vector<4x1xi32>
    %1972 = arith.addi %1901, %1971 : vector<4x1xi32>
    %c0_i32_821 = arith.constant 0 : i32
    %1973 = vector.broadcast %c0_i32_821 : i32 to vector<4x1xi32>
    %1974 = arith.cmpi sge, %1972, %1973 : vector<4x1xi32>
    %c0_i32_822 = arith.constant 0 : i32
    %1975 = vector.broadcast %c0_i32_822 : i32 to vector<4x1xi32>
    %1976 = arith.addi %1901, %1975 : vector<4x1xi32>
    %c1_i32_823 = arith.constant 1 : i32
    %1977 = vector.broadcast %c1_i32_823 : i32 to vector<4x1xi32>
    %1978 = arith.cmpi sle, %1976, %1977 : vector<4x1xi32>
    %1979 = arith.andi %1974, %1978 : vector<4x1xi1>
    %c-1_i32_824 = arith.constant -1 : i32
    %1980 = vector.broadcast %c-1_i32_824 : i32 to vector<4x1xi32>
    %1981 = arith.addi %1903, %1980 : vector<4x1xi32>
    %c0_i32_825 = arith.constant 0 : i32
    %1982 = vector.broadcast %c0_i32_825 : i32 to vector<4x1xi32>
    %1983 = arith.cmpi sge, %1981, %1982 : vector<4x1xi32>
    %c-1_i32_826 = arith.constant -1 : i32
    %1984 = vector.broadcast %c-1_i32_826 : i32 to vector<4x1xi32>
    %1985 = arith.addi %1903, %1984 : vector<4x1xi32>
    %c1_i32_827 = arith.constant 1 : i32
    %1986 = vector.broadcast %c1_i32_827 : i32 to vector<4x1xi32>
    %1987 = arith.cmpi sle, %1985, %1986 : vector<4x1xi32>
    %1988 = arith.andi %1983, %1987 : vector<4x1xi1>
    %1989 = arith.andi %1979, %1988 : vector<4x1xi1>
    %c15_828 = arith.constant 15 : index
    %c0_829 = arith.constant 0 : index
    %1990 = vector.load %arg9[%c15_828, %c0_829] : memref<96x128xf32, #tpu.memory_space<vmem>>, vector<4x128xf32>
    %cst_830 = arith.constant 0.000000e+00 : f32
    %1991 = vector.shape_cast %1989 : vector<4x1xi1> to vector<4x1xi1>
    %1992 = vector.broadcast %1991 : vector<4x1xi1> to vector<4x128xi1>
    %1993 = vector.broadcast %cst_830 : f32 to vector<4x128xf32>
    %1994 = arith.select %1992, %1990, %1993 : vector<4x128xi1>, vector<4x128xf32>
    %1995 = vector.extract_strided_slice %1895 {offsets = [3, 0], sizes = [1, 128], strides = [1, 1]} : vector<9x128xf32> to vector<1x128xf32>
    %1996 = vector.broadcast %1995 : vector<1x128xf32> to vector<4x128xf32>
    %1997 = arith.mulf %1994, %1996 : vector<4x128xf32>
    %1998 = arith.addf %1970, %1997 : vector<4x128xf32>
    %c0_i32_831 = arith.constant 0 : i32
    %1999 = vector.broadcast %c0_i32_831 : i32 to vector<4x1xi32>
    %2000 = arith.addi %1903, %1999 : vector<4x1xi32>
    %c0_i32_832 = arith.constant 0 : i32
    %2001 = vector.broadcast %c0_i32_832 : i32 to vector<4x1xi32>
    %2002 = arith.cmpi sge, %2000, %2001 : vector<4x1xi32>
    %c0_i32_833 = arith.constant 0 : i32
    %2003 = vector.broadcast %c0_i32_833 : i32 to vector<4x1xi32>
    %2004 = arith.addi %1903, %2003 : vector<4x1xi32>
    %c1_i32_834 = arith.constant 1 : i32
    %2005 = vector.broadcast %c1_i32_834 : i32 to vector<4x1xi32>
    %2006 = arith.cmpi sle, %2004, %2005 : vector<4x1xi32>
    %2007 = arith.andi %2002, %2006 : vector<4x1xi1>
    %2008 = arith.andi %1979, %2007 : vector<4x1xi1>
    %c16_835 = arith.constant 16 : index
    %c0_836 = arith.constant 0 : index
    %2009 = vector.load %arg9[%c16_835, %c0_836] : memref<96x128xf32, #tpu.memory_space<vmem>>, vector<4x128xf32>
    %cst_837 = arith.constant 0.000000e+00 : f32
    %2010 = vector.shape_cast %2008 : vector<4x1xi1> to vector<4x1xi1>
    %2011 = vector.broadcast %2010 : vector<4x1xi1> to vector<4x128xi1>
    %2012 = vector.broadcast %cst_837 : f32 to vector<4x128xf32>
    %2013 = arith.select %2011, %2009, %2012 : vector<4x128xi1>, vector<4x128xf32>
    %2014 = vector.extract_strided_slice %1895 {offsets = [4, 0], sizes = [1, 128], strides = [1, 1]} : vector<9x128xf32> to vector<1x128xf32>
    %2015 = vector.broadcast %2014 : vector<1x128xf32> to vector<4x128xf32>
    %2016 = arith.mulf %2013, %2015 : vector<4x128xf32>
    %2017 = arith.addf %1998, %2016 : vector<4x128xf32>
    %c1_i32_838 = arith.constant 1 : i32
    %2018 = vector.broadcast %c1_i32_838 : i32 to vector<4x1xi32>
    %2019 = arith.addi %1903, %2018 : vector<4x1xi32>
    %c0_i32_839 = arith.constant 0 : i32
    %2020 = vector.broadcast %c0_i32_839 : i32 to vector<4x1xi32>
    %2021 = arith.cmpi sge, %2019, %2020 : vector<4x1xi32>
    %c1_i32_840 = arith.constant 1 : i32
    %2022 = vector.broadcast %c1_i32_840 : i32 to vector<4x1xi32>
    %2023 = arith.addi %1903, %2022 : vector<4x1xi32>
    %c1_i32_841 = arith.constant 1 : i32
    %2024 = vector.broadcast %c1_i32_841 : i32 to vector<4x1xi32>
    %2025 = arith.cmpi sle, %2023, %2024 : vector<4x1xi32>
    %2026 = arith.andi %2021, %2025 : vector<4x1xi1>
    %2027 = arith.andi %1979, %2026 : vector<4x1xi1>
    %c17_842 = arith.constant 17 : index
    %c0_843 = arith.constant 0 : index
    %2028 = vector.load %arg9[%c17_842, %c0_843] : memref<96x128xf32, #tpu.memory_space<vmem>>, vector<4x128xf32>
    %cst_844 = arith.constant 0.000000e+00 : f32
    %2029 = vector.shape_cast %2027 : vector<4x1xi1> to vector<4x1xi1>
    %2030 = vector.broadcast %2029 : vector<4x1xi1> to vector<4x128xi1>
    %2031 = vector.broadcast %cst_844 : f32 to vector<4x128xf32>
    %2032 = arith.select %2030, %2028, %2031 : vector<4x128xi1>, vector<4x128xf32>
    %2033 = vector.extract_strided_slice %1895 {offsets = [5, 0], sizes = [1, 128], strides = [1, 1]} : vector<9x128xf32> to vector<1x128xf32>
    %2034 = vector.broadcast %2033 : vector<1x128xf32> to vector<4x128xf32>
    %2035 = arith.mulf %2032, %2034 : vector<4x128xf32>
    %2036 = arith.addf %2017, %2035 : vector<4x128xf32>
    %c1_i32_845 = arith.constant 1 : i32
    %2037 = vector.broadcast %c1_i32_845 : i32 to vector<4x1xi32>
    %2038 = arith.addi %1901, %2037 : vector<4x1xi32>
    %c0_i32_846 = arith.constant 0 : i32
    %2039 = vector.broadcast %c0_i32_846 : i32 to vector<4x1xi32>
    %2040 = arith.cmpi sge, %2038, %2039 : vector<4x1xi32>
    %c1_i32_847 = arith.constant 1 : i32
    %2041 = vector.broadcast %c1_i32_847 : i32 to vector<4x1xi32>
    %2042 = arith.addi %1901, %2041 : vector<4x1xi32>
    %c1_i32_848 = arith.constant 1 : i32
    %2043 = vector.broadcast %c1_i32_848 : i32 to vector<4x1xi32>
    %2044 = arith.cmpi sle, %2042, %2043 : vector<4x1xi32>
    %2045 = arith.andi %2040, %2044 : vector<4x1xi1>
    %c-1_i32_849 = arith.constant -1 : i32
    %2046 = vector.broadcast %c-1_i32_849 : i32 to vector<4x1xi32>
    %2047 = arith.addi %1903, %2046 : vector<4x1xi32>
    %c0_i32_850 = arith.constant 0 : i32
    %2048 = vector.broadcast %c0_i32_850 : i32 to vector<4x1xi32>
    %2049 = arith.cmpi sge, %2047, %2048 : vector<4x1xi32>
    %c-1_i32_851 = arith.constant -1 : i32
    %2050 = vector.broadcast %c-1_i32_851 : i32 to vector<4x1xi32>
    %2051 = arith.addi %1903, %2050 : vector<4x1xi32>
    %c1_i32_852 = arith.constant 1 : i32
    %2052 = vector.broadcast %c1_i32_852 : i32 to vector<4x1xi32>
    %2053 = arith.cmpi sle, %2051, %2052 : vector<4x1xi32>
    %2054 = arith.andi %2049, %2053 : vector<4x1xi1>
    %2055 = arith.andi %2045, %2054 : vector<4x1xi1>
    %c17_853 = arith.constant 17 : index
    %c0_854 = arith.constant 0 : index
    %2056 = vector.load %arg9[%c17_853, %c0_854] : memref<96x128xf32, #tpu.memory_space<vmem>>, vector<4x128xf32>
    %cst_855 = arith.constant 0.000000e+00 : f32
    %2057 = vector.shape_cast %2055 : vector<4x1xi1> to vector<4x1xi1>
    %2058 = vector.broadcast %2057 : vector<4x1xi1> to vector<4x128xi1>
    %2059 = vector.broadcast %cst_855 : f32 to vector<4x128xf32>
    %2060 = arith.select %2058, %2056, %2059 : vector<4x128xi1>, vector<4x128xf32>
    %2061 = vector.extract_strided_slice %1895 {offsets = [6, 0], sizes = [1, 128], strides = [1, 1]} : vector<9x128xf32> to vector<1x128xf32>
    %2062 = vector.broadcast %2061 : vector<1x128xf32> to vector<4x128xf32>
    %2063 = arith.mulf %2060, %2062 : vector<4x128xf32>
    %2064 = arith.addf %2036, %2063 : vector<4x128xf32>
    %c0_i32_856 = arith.constant 0 : i32
    %2065 = vector.broadcast %c0_i32_856 : i32 to vector<4x1xi32>
    %2066 = arith.addi %1903, %2065 : vector<4x1xi32>
    %c0_i32_857 = arith.constant 0 : i32
    %2067 = vector.broadcast %c0_i32_857 : i32 to vector<4x1xi32>
    %2068 = arith.cmpi sge, %2066, %2067 : vector<4x1xi32>
    %c0_i32_858 = arith.constant 0 : i32
    %2069 = vector.broadcast %c0_i32_858 : i32 to vector<4x1xi32>
    %2070 = arith.addi %1903, %2069 : vector<4x1xi32>
    %c1_i32_859 = arith.constant 1 : i32
    %2071 = vector.broadcast %c1_i32_859 : i32 to vector<4x1xi32>
    %2072 = arith.cmpi sle, %2070, %2071 : vector<4x1xi32>
    %2073 = arith.andi %2068, %2072 : vector<4x1xi1>
    %2074 = arith.andi %2045, %2073 : vector<4x1xi1>
    %c18_860 = arith.constant 18 : index
    %c0_861 = arith.constant 0 : index
    %2075 = vector.load %arg9[%c18_860, %c0_861] : memref<96x128xf32, #tpu.memory_space<vmem>>, vector<4x128xf32>
    %cst_862 = arith.constant 0.000000e+00 : f32
    %2076 = vector.shape_cast %2074 : vector<4x1xi1> to vector<4x1xi1>
    %2077 = vector.broadcast %2076 : vector<4x1xi1> to vector<4x128xi1>
    %2078 = vector.broadcast %cst_862 : f32 to vector<4x128xf32>
    %2079 = arith.select %2077, %2075, %2078 : vector<4x128xi1>, vector<4x128xf32>
    %2080 = vector.extract_strided_slice %1895 {offsets = [7, 0], sizes = [1, 128], strides = [1, 1]} : vector<9x128xf32> to vector<1x128xf32>
    %2081 = vector.broadcast %2080 : vector<1x128xf32> to vector<4x128xf32>
    %2082 = arith.mulf %2079, %2081 : vector<4x128xf32>
    %2083 = arith.addf %2064, %2082 : vector<4x128xf32>
    %c1_i32_863 = arith.constant 1 : i32
    %2084 = vector.broadcast %c1_i32_863 : i32 to vector<4x1xi32>
    %2085 = arith.addi %1903, %2084 : vector<4x1xi32>
    %c0_i32_864 = arith.constant 0 : i32
    %2086 = vector.broadcast %c0_i32_864 : i32 to vector<4x1xi32>
    %2087 = arith.cmpi sge, %2085, %2086 : vector<4x1xi32>
    %c1_i32_865 = arith.constant 1 : i32
    %2088 = vector.broadcast %c1_i32_865 : i32 to vector<4x1xi32>
    %2089 = arith.addi %1903, %2088 : vector<4x1xi32>
    %c1_i32_866 = arith.constant 1 : i32
    %2090 = vector.broadcast %c1_i32_866 : i32 to vector<4x1xi32>
    %2091 = arith.cmpi sle, %2089, %2090 : vector<4x1xi32>
    %2092 = arith.andi %2087, %2091 : vector<4x1xi1>
    %2093 = arith.andi %2045, %2092 : vector<4x1xi1>
    %c19_867 = arith.constant 19 : index
    %c0_868 = arith.constant 0 : index
    %2094 = vector.load %arg9[%c19_867, %c0_868] : memref<96x128xf32, #tpu.memory_space<vmem>>, vector<4x128xf32>
    %cst_869 = arith.constant 0.000000e+00 : f32
    %2095 = vector.shape_cast %2093 : vector<4x1xi1> to vector<4x1xi1>
    %2096 = vector.broadcast %2095 : vector<4x1xi1> to vector<4x128xi1>
    %2097 = vector.broadcast %cst_869 : f32 to vector<4x128xf32>
    %2098 = arith.select %2096, %2094, %2097 : vector<4x128xi1>, vector<4x128xf32>
    %2099 = vector.extract_strided_slice %1895 {offsets = [8, 0], sizes = [1, 128], strides = [1, 1]} : vector<9x128xf32> to vector<1x128xf32>
    %2100 = vector.broadcast %2099 : vector<1x128xf32> to vector<4x128xf32>
    %2101 = arith.mulf %2098, %2100 : vector<4x128xf32>
    %2102 = arith.addf %2083, %2101 : vector<4x128xf32>
    %2103 = vector.broadcast %1896 : vector<1x128xf32> to vector<4x128xf32>
    %2104 = arith.addf %2102, %2103 : vector<4x128xf32>
    %cst_870 = arith.constant 0.000000e+00 : f32
    %2105 = vector.broadcast %cst_870 : f32 to vector<4x128xf32>
    %2106 = arith.maximumf %2104, %2105 : vector<4x128xf32>
    %c15_871 = arith.constant 15 : index
    %c0_872 = arith.constant 0 : index
    %c0_873 = arith.constant 0 : index
    %2107 = vector.load %arg4[%c15_871, %c0_872, %c0_873] : memref<26x128x128xbf16, #tpu.memory_space<vmem>>, vector<1x128x32xbf16>
    %2108 = vector.shape_cast %2107 : vector<1x128x32xbf16> to vector<128x32xbf16>
    %2109 = arith.truncf %2106 : vector<4x128xf32> to vector<4x128xbf16>
    %cst_874 = arith.constant dense<0.000000e+00> : vector<4x32xf32>
    %2110 = tpu.matmul %2109, %2108, %cst_874 {dimension_numbers = #tpu.dot_dimension_numbers<[1], [0], [0], [1], [0, 0, 1, 1], [], []>} : vector<4x128xbf16>, vector<128x32xbf16>, vector<4x32xf32> -> vector<4x32xf32>
    %c15_875 = arith.constant 15 : index
    %c0_876 = arith.constant 0 : index
    %2111 = vector.load %arg5[%c15_875, %c0_876] : memref<26x128xf32, #tpu.memory_space<vmem>>, vector<1x32xf32>
    %2112 = vector.broadcast %2111 : vector<1x32xf32> to vector<4x32xf32>
    %2113 = arith.addf %2110, %2112 : vector<4x32xf32>
    %2114 = arith.addf %2113, %1883 : vector<4x32xf32>
    %c16_877 = arith.constant 16 : index
    %c0_878 = arith.constant 0 : index
    %c0_879 = arith.constant 0 : index
    %2115 = vector.load %arg4[%c16_877, %c0_878, %c0_879] : memref<26x128x128xbf16, #tpu.memory_space<vmem>>, vector<1x32x128xbf16>
    %2116 = vector.shape_cast %2115 : vector<1x32x128xbf16> to vector<32x128xbf16>
    %2117 = arith.truncf %2114 : vector<4x32xf32> to vector<4x32xbf16>
    %cst_880 = arith.constant dense<0.000000e+00> : vector<4x128xf32>
    %2118 = tpu.matmul %2117, %2116, %cst_880 {dimension_numbers = #tpu.dot_dimension_numbers<[1], [0], [0], [1], [0, 0, 1, 1], [], []>} : vector<4x32xbf16>, vector<32x128xbf16>, vector<4x128xf32> -> vector<4x128xf32>
    %c16_881 = arith.constant 16 : index
    %c0_882 = arith.constant 0 : index
    %2119 = vector.load %arg5[%c16_881, %c0_882] : memref<26x128xf32, #tpu.memory_space<vmem>>, vector<1x128xf32>
    %2120 = vector.broadcast %2119 : vector<1x128xf32> to vector<4x128xf32>
    %2121 = arith.addf %2118, %2120 : vector<4x128xf32>
    %cst_883 = arith.constant 0.000000e+00 : f32
    %2122 = vector.broadcast %cst_883 : f32 to vector<4x128xf32>
    %2123 = arith.maximumf %2121, %2122 : vector<4x128xf32>
    %c16_884 = arith.constant 16 : index
    %c0_885 = arith.constant 0 : index
    %2124 = vector.load %arg9[%c16_884, %c0_885] : memref<96x128xf32, #tpu.memory_space<vmem>>, vector<4x128xf32>
    tpu.vector_store %arg9[%c16_884, %c0_885], %2123 {strides = array<i32>} : memref<96x128xf32, #tpu.memory_space<vmem>>, vector<4x128xf32>,
    %c9_886 = arith.constant 9 : index
    %c0_887 = arith.constant 0 : index
    %c0_888 = arith.constant 0 : index
    %2125 = vector.load %arg6[%c9_886, %c0_887, %c0_888] : memref<14x9x128xf32, #tpu.memory_space<vmem>>, vector<1x9x128xf32>
    %2126 = vector.shape_cast %2125 : vector<1x9x128xf32> to vector<9x128xf32>
    %c9_889 = arith.constant 9 : index
    %c0_890 = arith.constant 0 : index
    %2127 = vector.load %arg7[%c9_889, %c0_890] : memref<14x128xf32, #tpu.memory_space<vmem>>, vector<1x128xf32>
    %2128 = tpu.iota {dimensions = array<i32: 0>} : vector<4x1xi32>
    %c3_i32_891 = arith.constant 3 : i32
    %2129 = vector.broadcast %c3_i32_891 : i32 to vector<4x1xi32>
    %2130 = arith.andi %2128, %2129 : vector<4x1xi32>
    %c1_i32_892 = arith.constant 1 : i32
    %2131 = vector.broadcast %c1_i32_892 : i32 to vector<4x1xi32>
    %2132 = arith.shrsi %2130, %2131 : vector<4x1xi32>
    %c1_i32_893 = arith.constant 1 : i32
    %2133 = vector.broadcast %c1_i32_893 : i32 to vector<4x1xi32>
    %2134 = arith.andi %2130, %2133 : vector<4x1xi32>
    %cst_894 = arith.constant 0.000000e+00 : f32
    %2135 = vector.broadcast %cst_894 : f32 to vector<4x128xf32>
    %c-1_i32_895 = arith.constant -1 : i32
    %2136 = vector.broadcast %c-1_i32_895 : i32 to vector<4x1xi32>
    %2137 = arith.addi %2132, %2136 : vector<4x1xi32>
    %c0_i32_896 = arith.constant 0 : i32
    %2138 = vector.broadcast %c0_i32_896 : i32 to vector<4x1xi32>
    %2139 = arith.cmpi sge, %2137, %2138 : vector<4x1xi32>
    %c-1_i32_897 = arith.constant -1 : i32
    %2140 = vector.broadcast %c-1_i32_897 : i32 to vector<4x1xi32>
    %2141 = arith.addi %2132, %2140 : vector<4x1xi32>
    %c1_i32_898 = arith.constant 1 : i32
    %2142 = vector.broadcast %c1_i32_898 : i32 to vector<4x1xi32>
    %2143 = arith.cmpi sle, %2141, %2142 : vector<4x1xi32>
    %2144 = arith.andi %2139, %2143 : vector<4x1xi1>
    %c-1_i32_899 = arith.constant -1 : i32
    %2145 = vector.broadcast %c-1_i32_899 : i32 to vector<4x1xi32>
    %2146 = arith.addi %2134, %2145 : vector<4x1xi32>
    %c0_i32_900 = arith.constant 0 : i32
    %2147 = vector.broadcast %c0_i32_900 : i32 to vector<4x1xi32>
    %2148 = arith.cmpi sge, %2146, %2147 : vector<4x1xi32>
    %c-1_i32_901 = arith.constant -1 : i32
    %2149 = vector.broadcast %c-1_i32_901 : i32 to vector<4x1xi32>
    %2150 = arith.addi %2134, %2149 : vector<4x1xi32>
    %c1_i32_902 = arith.constant 1 : i32
    %2151 = vector.broadcast %c1_i32_902 : i32 to vector<4x1xi32>
    %2152 = arith.cmpi sle, %2150, %2151 : vector<4x1xi32>
    %2153 = arith.andi %2148, %2152 : vector<4x1xi1>
    %2154 = arith.andi %2144, %2153 : vector<4x1xi1>
    %c13_903 = arith.constant 13 : index
    %c0_904 = arith.constant 0 : index
    %2155 = vector.load %arg9[%c13_903, %c0_904] : memref<96x128xf32, #tpu.memory_space<vmem>>, vector<4x128xf32>
    %cst_905 = arith.constant 0.000000e+00 : f32
    %2156 = vector.shape_cast %2154 : vector<4x1xi1> to vector<4x1xi1>
    %2157 = vector.broadcast %2156 : vector<4x1xi1> to vector<4x128xi1>
    %2158 = vector.broadcast %cst_905 : f32 to vector<4x128xf32>
    %2159 = arith.select %2157, %2155, %2158 : vector<4x128xi1>, vector<4x128xf32>
    %2160 = vector.extract_strided_slice %2126 {offsets = [0, 0], sizes = [1, 128], strides = [1, 1]} : vector<9x128xf32> to vector<1x128xf32>
    %2161 = vector.broadcast %2160 : vector<1x128xf32> to vector<4x128xf32>
    %2162 = arith.mulf %2159, %2161 : vector<4x128xf32>
    %2163 = arith.addf %2135, %2162 : vector<4x128xf32>
    %c0_i32_906 = arith.constant 0 : i32
    %2164 = vector.broadcast %c0_i32_906 : i32 to vector<4x1xi32>
    %2165 = arith.addi %2134, %2164 : vector<4x1xi32>
    %c0_i32_907 = arith.constant 0 : i32
    %2166 = vector.broadcast %c0_i32_907 : i32 to vector<4x1xi32>
    %2167 = arith.cmpi sge, %2165, %2166 : vector<4x1xi32>
    %c0_i32_908 = arith.constant 0 : i32
    %2168 = vector.broadcast %c0_i32_908 : i32 to vector<4x1xi32>
    %2169 = arith.addi %2134, %2168 : vector<4x1xi32>
    %c1_i32_909 = arith.constant 1 : i32
    %2170 = vector.broadcast %c1_i32_909 : i32 to vector<4x1xi32>
    %2171 = arith.cmpi sle, %2169, %2170 : vector<4x1xi32>
    %2172 = arith.andi %2167, %2171 : vector<4x1xi1>
    %2173 = arith.andi %2144, %2172 : vector<4x1xi1>
    %c14_910 = arith.constant 14 : index
    %c0_911 = arith.constant 0 : index
    %2174 = vector.load %arg9[%c14_910, %c0_911] : memref<96x128xf32, #tpu.memory_space<vmem>>, vector<4x128xf32>
    %cst_912 = arith.constant 0.000000e+00 : f32
    %2175 = vector.shape_cast %2173 : vector<4x1xi1> to vector<4x1xi1>
    %2176 = vector.broadcast %2175 : vector<4x1xi1> to vector<4x128xi1>
    %2177 = vector.broadcast %cst_912 : f32 to vector<4x128xf32>
    %2178 = arith.select %2176, %2174, %2177 : vector<4x128xi1>, vector<4x128xf32>
    %2179 = vector.extract_strided_slice %2126 {offsets = [1, 0], sizes = [1, 128], strides = [1, 1]} : vector<9x128xf32> to vector<1x128xf32>
    %2180 = vector.broadcast %2179 : vector<1x128xf32> to vector<4x128xf32>
    %2181 = arith.mulf %2178, %2180 : vector<4x128xf32>
    %2182 = arith.addf %2163, %2181 : vector<4x128xf32>
    %c1_i32_913 = arith.constant 1 : i32
    %2183 = vector.broadcast %c1_i32_913 : i32 to vector<4x1xi32>
    %2184 = arith.addi %2134, %2183 : vector<4x1xi32>
    %c0_i32_914 = arith.constant 0 : i32
    %2185 = vector.broadcast %c0_i32_914 : i32 to vector<4x1xi32>
    %2186 = arith.cmpi sge, %2184, %2185 : vector<4x1xi32>
    %c1_i32_915 = arith.constant 1 : i32
    %2187 = vector.broadcast %c1_i32_915 : i32 to vector<4x1xi32>
    %2188 = arith.addi %2134, %2187 : vector<4x1xi32>
    %c1_i32_916 = arith.constant 1 : i32
    %2189 = vector.broadcast %c1_i32_916 : i32 to vector<4x1xi32>
    %2190 = arith.cmpi sle, %2188, %2189 : vector<4x1xi32>
    %2191 = arith.andi %2186, %2190 : vector<4x1xi1>
    %2192 = arith.andi %2144, %2191 : vector<4x1xi1>
    %c15_917 = arith.constant 15 : index
    %c0_918 = arith.constant 0 : index
    %2193 = vector.load %arg9[%c15_917, %c0_918] : memref<96x128xf32, #tpu.memory_space<vmem>>, vector<4x128xf32>
    %cst_919 = arith.constant 0.000000e+00 : f32
    %2194 = vector.shape_cast %2192 : vector<4x1xi1> to vector<4x1xi1>
    %2195 = vector.broadcast %2194 : vector<4x1xi1> to vector<4x128xi1>
    %2196 = vector.broadcast %cst_919 : f32 to vector<4x128xf32>
    %2197 = arith.select %2195, %2193, %2196 : vector<4x128xi1>, vector<4x128xf32>
    %2198 = vector.extract_strided_slice %2126 {offsets = [2, 0], sizes = [1, 128], strides = [1, 1]} : vector<9x128xf32> to vector<1x128xf32>
    %2199 = vector.broadcast %2198 : vector<1x128xf32> to vector<4x128xf32>
    %2200 = arith.mulf %2197, %2199 : vector<4x128xf32>
    %2201 = arith.addf %2182, %2200 : vector<4x128xf32>
    %c0_i32_920 = arith.constant 0 : i32
    %2202 = vector.broadcast %c0_i32_920 : i32 to vector<4x1xi32>
    %2203 = arith.addi %2132, %2202 : vector<4x1xi32>
    %c0_i32_921 = arith.constant 0 : i32
    %2204 = vector.broadcast %c0_i32_921 : i32 to vector<4x1xi32>
    %2205 = arith.cmpi sge, %2203, %2204 : vector<4x1xi32>
    %c0_i32_922 = arith.constant 0 : i32
    %2206 = vector.broadcast %c0_i32_922 : i32 to vector<4x1xi32>
    %2207 = arith.addi %2132, %2206 : vector<4x1xi32>
    %c1_i32_923 = arith.constant 1 : i32
    %2208 = vector.broadcast %c1_i32_923 : i32 to vector<4x1xi32>
    %2209 = arith.cmpi sle, %2207, %2208 : vector<4x1xi32>
    %2210 = arith.andi %2205, %2209 : vector<4x1xi1>
    %c-1_i32_924 = arith.constant -1 : i32
    %2211 = vector.broadcast %c-1_i32_924 : i32 to vector<4x1xi32>
    %2212 = arith.addi %2134, %2211 : vector<4x1xi32>
    %c0_i32_925 = arith.constant 0 : i32
    %2213 = vector.broadcast %c0_i32_925 : i32 to vector<4x1xi32>
    %2214 = arith.cmpi sge, %2212, %2213 : vector<4x1xi32>
    %c-1_i32_926 = arith.constant -1 : i32
    %2215 = vector.broadcast %c-1_i32_926 : i32 to vector<4x1xi32>
    %2216 = arith.addi %2134, %2215 : vector<4x1xi32>
    %c1_i32_927 = arith.constant 1 : i32
    %2217 = vector.broadcast %c1_i32_927 : i32 to vector<4x1xi32>
    %2218 = arith.cmpi sle, %2216, %2217 : vector<4x1xi32>
    %2219 = arith.andi %2214, %2218 : vector<4x1xi1>
    %2220 = arith.andi %2210, %2219 : vector<4x1xi1>
    %c15_928 = arith.constant 15 : index
    %c0_929 = arith.constant 0 : index
    %2221 = vector.load %arg9[%c15_928, %c0_929] : memref<96x128xf32, #tpu.memory_space<vmem>>, vector<4x128xf32>
    %cst_930 = arith.constant 0.000000e+00 : f32
    %2222 = vector.shape_cast %2220 : vector<4x1xi1> to vector<4x1xi1>
    %2223 = vector.broadcast %2222 : vector<4x1xi1> to vector<4x128xi1>
    %2224 = vector.broadcast %cst_930 : f32 to vector<4x128xf32>
    %2225 = arith.select %2223, %2221, %2224 : vector<4x128xi1>, vector<4x128xf32>
    %2226 = vector.extract_strided_slice %2126 {offsets = [3, 0], sizes = [1, 128], strides = [1, 1]} : vector<9x128xf32> to vector<1x128xf32>
    %2227 = vector.broadcast %2226 : vector<1x128xf32> to vector<4x128xf32>
    %2228 = arith.mulf %2225, %2227 : vector<4x128xf32>
    %2229 = arith.addf %2201, %2228 : vector<4x128xf32>
    %c0_i32_931 = arith.constant 0 : i32
    %2230 = vector.broadcast %c0_i32_931 : i32 to vector<4x1xi32>
    %2231 = arith.addi %2134, %2230 : vector<4x1xi32>
    %c0_i32_932 = arith.constant 0 : i32
    %2232 = vector.broadcast %c0_i32_932 : i32 to vector<4x1xi32>
    %2233 = arith.cmpi sge, %2231, %2232 : vector<4x1xi32>
    %c0_i32_933 = arith.constant 0 : i32
    %2234 = vector.broadcast %c0_i32_933 : i32 to vector<4x1xi32>
    %2235 = arith.addi %2134, %2234 : vector<4x1xi32>
    %c1_i32_934 = arith.constant 1 : i32
    %2236 = vector.broadcast %c1_i32_934 : i32 to vector<4x1xi32>
    %2237 = arith.cmpi sle, %2235, %2236 : vector<4x1xi32>
    %2238 = arith.andi %2233, %2237 : vector<4x1xi1>
    %2239 = arith.andi %2210, %2238 : vector<4x1xi1>
    %c16_935 = arith.constant 16 : index
    %c0_936 = arith.constant 0 : index
    %2240 = vector.load %arg9[%c16_935, %c0_936] : memref<96x128xf32, #tpu.memory_space<vmem>>, vector<4x128xf32>
    %cst_937 = arith.constant 0.000000e+00 : f32
    %2241 = vector.shape_cast %2239 : vector<4x1xi1> to vector<4x1xi1>
    %2242 = vector.broadcast %2241 : vector<4x1xi1> to vector<4x128xi1>
    %2243 = vector.broadcast %cst_937 : f32 to vector<4x128xf32>
    %2244 = arith.select %2242, %2240, %2243 : vector<4x128xi1>, vector<4x128xf32>
    %2245 = vector.extract_strided_slice %2126 {offsets = [4, 0], sizes = [1, 128], strides = [1, 1]} : vector<9x128xf32> to vector<1x128xf32>
    %2246 = vector.broadcast %2245 : vector<1x128xf32> to vector<4x128xf32>
    %2247 = arith.mulf %2244, %2246 : vector<4x128xf32>
    %2248 = arith.addf %2229, %2247 : vector<4x128xf32>
    %c1_i32_938 = arith.constant 1 : i32
    %2249 = vector.broadcast %c1_i32_938 : i32 to vector<4x1xi32>
    %2250 = arith.addi %2134, %2249 : vector<4x1xi32>
    %c0_i32_939 = arith.constant 0 : i32
    %2251 = vector.broadcast %c0_i32_939 : i32 to vector<4x1xi32>
    %2252 = arith.cmpi sge, %2250, %2251 : vector<4x1xi32>
    %c1_i32_940 = arith.constant 1 : i32
    %2253 = vector.broadcast %c1_i32_940 : i32 to vector<4x1xi32>
    %2254 = arith.addi %2134, %2253 : vector<4x1xi32>
    %c1_i32_941 = arith.constant 1 : i32
    %2255 = vector.broadcast %c1_i32_941 : i32 to vector<4x1xi32>
    %2256 = arith.cmpi sle, %2254, %2255 : vector<4x1xi32>
    %2257 = arith.andi %2252, %2256 : vector<4x1xi1>
    %2258 = arith.andi %2210, %2257 : vector<4x1xi1>
    %c17_942 = arith.constant 17 : index
    %c0_943 = arith.constant 0 : index
    %2259 = vector.load %arg9[%c17_942, %c0_943] : memref<96x128xf32, #tpu.memory_space<vmem>>, vector<4x128xf32>
    %cst_944 = arith.constant 0.000000e+00 : f32
    %2260 = vector.shape_cast %2258 : vector<4x1xi1> to vector<4x1xi1>
    %2261 = vector.broadcast %2260 : vector<4x1xi1> to vector<4x128xi1>
    %2262 = vector.broadcast %cst_944 : f32 to vector<4x128xf32>
    %2263 = arith.select %2261, %2259, %2262 : vector<4x128xi1>, vector<4x128xf32>
    %2264 = vector.extract_strided_slice %2126 {offsets = [5, 0], sizes = [1, 128], strides = [1, 1]} : vector<9x128xf32> to vector<1x128xf32>
    %2265 = vector.broadcast %2264 : vector<1x128xf32> to vector<4x128xf32>
    %2266 = arith.mulf %2263, %2265 : vector<4x128xf32>
    %2267 = arith.addf %2248, %2266 : vector<4x128xf32>
    %c1_i32_945 = arith.constant 1 : i32
    %2268 = vector.broadcast %c1_i32_945 : i32 to vector<4x1xi32>
    %2269 = arith.addi %2132, %2268 : vector<4x1xi32>
    %c0_i32_946 = arith.constant 0 : i32
    %2270 = vector.broadcast %c0_i32_946 : i32 to vector<4x1xi32>
    %2271 = arith.cmpi sge, %2269, %2270 : vector<4x1xi32>
    %c1_i32_947 = arith.constant 1 : i32
    %2272 = vector.broadcast %c1_i32_947 : i32 to vector<4x1xi32>
    %2273 = arith.addi %2132, %2272 : vector<4x1xi32>
    %c1_i32_948 = arith.constant 1 : i32
    %2274 = vector.broadcast %c1_i32_948 : i32 to vector<4x1xi32>
    %2275 = arith.cmpi sle, %2273, %2274 : vector<4x1xi32>
    %2276 = arith.andi %2271, %2275 : vector<4x1xi1>
    %c-1_i32_949 = arith.constant -1 : i32
    %2277 = vector.broadcast %c-1_i32_949 : i32 to vector<4x1xi32>
    %2278 = arith.addi %2134, %2277 : vector<4x1xi32>
    %c0_i32_950 = arith.constant 0 : i32
    %2279 = vector.broadcast %c0_i32_950 : i32 to vector<4x1xi32>
    %2280 = arith.cmpi sge, %2278, %2279 : vector<4x1xi32>
    %c-1_i32_951 = arith.constant -1 : i32
    %2281 = vector.broadcast %c-1_i32_951 : i32 to vector<4x1xi32>
    %2282 = arith.addi %2134, %2281 : vector<4x1xi32>
    %c1_i32_952 = arith.constant 1 : i32
    %2283 = vector.broadcast %c1_i32_952 : i32 to vector<4x1xi32>
    %2284 = arith.cmpi sle, %2282, %2283 : vector<4x1xi32>
    %2285 = arith.andi %2280, %2284 : vector<4x1xi1>
    %2286 = arith.andi %2276, %2285 : vector<4x1xi1>
    %c17_953 = arith.constant 17 : index
    %c0_954 = arith.constant 0 : index
    %2287 = vector.load %arg9[%c17_953, %c0_954] : memref<96x128xf32, #tpu.memory_space<vmem>>, vector<4x128xf32>
    %cst_955 = arith.constant 0.000000e+00 : f32
    %2288 = vector.shape_cast %2286 : vector<4x1xi1> to vector<4x1xi1>
    %2289 = vector.broadcast %2288 : vector<4x1xi1> to vector<4x128xi1>
    %2290 = vector.broadcast %cst_955 : f32 to vector<4x128xf32>
    %2291 = arith.select %2289, %2287, %2290 : vector<4x128xi1>, vector<4x128xf32>
    %2292 = vector.extract_strided_slice %2126 {offsets = [6, 0], sizes = [1, 128], strides = [1, 1]} : vector<9x128xf32> to vector<1x128xf32>
    %2293 = vector.broadcast %2292 : vector<1x128xf32> to vector<4x128xf32>
    %2294 = arith.mulf %2291, %2293 : vector<4x128xf32>
    %2295 = arith.addf %2267, %2294 : vector<4x128xf32>
    %c0_i32_956 = arith.constant 0 : i32
    %2296 = vector.broadcast %c0_i32_956 : i32 to vector<4x1xi32>
    %2297 = arith.addi %2134, %2296 : vector<4x1xi32>
    %c0_i32_957 = arith.constant 0 : i32
    %2298 = vector.broadcast %c0_i32_957 : i32 to vector<4x1xi32>
    %2299 = arith.cmpi sge, %2297, %2298 : vector<4x1xi32>
    %c0_i32_958 = arith.constant 0 : i32
    %2300 = vector.broadcast %c0_i32_958 : i32 to vector<4x1xi32>
    %2301 = arith.addi %2134, %2300 : vector<4x1xi32>
    %c1_i32_959 = arith.constant 1 : i32
    %2302 = vector.broadcast %c1_i32_959 : i32 to vector<4x1xi32>
    %2303 = arith.cmpi sle, %2301, %2302 : vector<4x1xi32>
    %2304 = arith.andi %2299, %2303 : vector<4x1xi1>
    %2305 = arith.andi %2276, %2304 : vector<4x1xi1>
    %c18_960 = arith.constant 18 : index
    %c0_961 = arith.constant 0 : index
    %2306 = vector.load %arg9[%c18_960, %c0_961] : memref<96x128xf32, #tpu.memory_space<vmem>>, vector<4x128xf32>
    %cst_962 = arith.constant 0.000000e+00 : f32
    %2307 = vector.shape_cast %2305 : vector<4x1xi1> to vector<4x1xi1>
    %2308 = vector.broadcast %2307 : vector<4x1xi1> to vector<4x128xi1>
    %2309 = vector.broadcast %cst_962 : f32 to vector<4x128xf32>
    %2310 = arith.select %2308, %2306, %2309 : vector<4x128xi1>, vector<4x128xf32>
    %2311 = vector.extract_strided_slice %2126 {offsets = [7, 0], sizes = [1, 128], strides = [1, 1]} : vector<9x128xf32> to vector<1x128xf32>
    %2312 = vector.broadcast %2311 : vector<1x128xf32> to vector<4x128xf32>
    %2313 = arith.mulf %2310, %2312 : vector<4x128xf32>
    %2314 = arith.addf %2295, %2313 : vector<4x128xf32>
    %c1_i32_963 = arith.constant 1 : i32
    %2315 = vector.broadcast %c1_i32_963 : i32 to vector<4x1xi32>
    %2316 = arith.addi %2134, %2315 : vector<4x1xi32>
    %c0_i32_964 = arith.constant 0 : i32
    %2317 = vector.broadcast %c0_i32_964 : i32 to vector<4x1xi32>
    %2318 = arith.cmpi sge, %2316, %2317 : vector<4x1xi32>
    %c1_i32_965 = arith.constant 1 : i32
    %2319 = vector.broadcast %c1_i32_965 : i32 to vector<4x1xi32>
    %2320 = arith.addi %2134, %2319 : vector<4x1xi32>
    %c1_i32_966 = arith.constant 1 : i32
    %2321 = vector.broadcast %c1_i32_966 : i32 to vector<4x1xi32>
    %2322 = arith.cmpi sle, %2320, %2321 : vector<4x1xi32>
    %2323 = arith.andi %2318, %2322 : vector<4x1xi1>
    %2324 = arith.andi %2276, %2323 : vector<4x1xi1>
    %c19_967 = arith.constant 19 : index
    %c0_968 = arith.constant 0 : index
    %2325 = vector.load %arg9[%c19_967, %c0_968] : memref<96x128xf32, #tpu.memory_space<vmem>>, vector<4x128xf32>
    %cst_969 = arith.constant 0.000000e+00 : f32
    %2326 = vector.shape_cast %2324 : vector<4x1xi1> to vector<4x1xi1>
    %2327 = vector.broadcast %2326 : vector<4x1xi1> to vector<4x128xi1>
    %2328 = vector.broadcast %cst_969 : f32 to vector<4x128xf32>
    %2329 = arith.select %2327, %2325, %2328 : vector<4x128xi1>, vector<4x128xf32>
    %2330 = vector.extract_strided_slice %2126 {offsets = [8, 0], sizes = [1, 128], strides = [1, 1]} : vector<9x128xf32> to vector<1x128xf32>
    %2331 = vector.broadcast %2330 : vector<1x128xf32> to vector<4x128xf32>
    %2332 = arith.mulf %2329, %2331 : vector<4x128xf32>
    %2333 = arith.addf %2314, %2332 : vector<4x128xf32>
    %2334 = vector.broadcast %2127 : vector<1x128xf32> to vector<4x128xf32>
    %2335 = arith.addf %2333, %2334 : vector<4x128xf32>
    %cst_970 = arith.constant 0.000000e+00 : f32
    %2336 = vector.broadcast %cst_970 : f32 to vector<4x128xf32>
    %2337 = arith.maximumf %2335, %2336 : vector<4x128xf32>
    %c17_971 = arith.constant 17 : index
    %c0_972 = arith.constant 0 : index
    %c0_973 = arith.constant 0 : index
    %2338 = vector.load %arg4[%c17_971, %c0_972, %c0_973] : memref<26x128x128xbf16, #tpu.memory_space<vmem>>, vector<1x128x32xbf16>
    %2339 = vector.shape_cast %2338 : vector<1x128x32xbf16> to vector<128x32xbf16>
    %2340 = arith.truncf %2337 : vector<4x128xf32> to vector<4x128xbf16>
    %cst_974 = arith.constant dense<0.000000e+00> : vector<4x32xf32>
    %2341 = tpu.matmul %2340, %2339, %cst_974 {dimension_numbers = #tpu.dot_dimension_numbers<[1], [0], [0], [1], [0, 0, 1, 1], [], []>} : vector<4x128xbf16>, vector<128x32xbf16>, vector<4x32xf32> -> vector<4x32xf32>
    %c17_975 = arith.constant 17 : index
    %c0_976 = arith.constant 0 : index
    %2342 = vector.load %arg5[%c17_975, %c0_976] : memref<26x128xf32, #tpu.memory_space<vmem>>, vector<1x32xf32>
    %2343 = vector.broadcast %2342 : vector<1x32xf32> to vector<4x32xf32>
    %2344 = arith.addf %2341, %2343 : vector<4x32xf32>
    %2345 = arith.addf %2344, %2114 : vector<4x32xf32>
    %c18_977 = arith.constant 18 : index
    %c0_978 = arith.constant 0 : index
    %c0_979 = arith.constant 0 : index
    %2346 = vector.load %arg4[%c18_977, %c0_978, %c0_979] : memref<26x128x128xbf16, #tpu.memory_space<vmem>>, vector<1x32x128xbf16>
    %2347 = vector.shape_cast %2346 : vector<1x32x128xbf16> to vector<32x128xbf16>
    %2348 = arith.truncf %2345 : vector<4x32xf32> to vector<4x32xbf16>
    %cst_980 = arith.constant dense<0.000000e+00> : vector<4x128xf32>
    %2349 = tpu.matmul %2348, %2347, %cst_980 {dimension_numbers = #tpu.dot_dimension_numbers<[1], [0], [0], [1], [0, 0, 1, 1], [], []>} : vector<4x32xbf16>, vector<32x128xbf16>, vector<4x128xf32> -> vector<4x128xf32>
    %c18_981 = arith.constant 18 : index
    %c0_982 = arith.constant 0 : index
    %2350 = vector.load %arg5[%c18_981, %c0_982] : memref<26x128xf32, #tpu.memory_space<vmem>>, vector<1x128xf32>
    %2351 = vector.broadcast %2350 : vector<1x128xf32> to vector<4x128xf32>
    %2352 = arith.addf %2349, %2351 : vector<4x128xf32>
    %cst_983 = arith.constant 0.000000e+00 : f32
    %2353 = vector.broadcast %cst_983 : f32 to vector<4x128xf32>
    %2354 = arith.maximumf %2352, %2353 : vector<4x128xf32>
    %c16_984 = arith.constant 16 : index
    %c0_985 = arith.constant 0 : index
    %2355 = vector.load %arg9[%c16_984, %c0_985] : memref<96x128xf32, #tpu.memory_space<vmem>>, vector<4x128xf32>
    tpu.vector_store %arg9[%c16_984, %c0_985], %2354 {strides = array<i32>} : memref<96x128xf32, #tpu.memory_space<vmem>>, vector<4x128xf32>,
    %c10_986 = arith.constant 10 : index
    %c0_987 = arith.constant 0 : index
    %c0_988 = arith.constant 0 : index
    %2356 = vector.load %arg6[%c10_986, %c0_987, %c0_988] : memref<14x9x128xf32, #tpu.memory_space<vmem>>, vector<1x9x128xf32>
    %2357 = vector.shape_cast %2356 : vector<1x9x128xf32> to vector<9x128xf32>
    %c10_989 = arith.constant 10 : index
    %c0_990 = arith.constant 0 : index
    %2358 = vector.load %arg7[%c10_989, %c0_990] : memref<14x128xf32, #tpu.memory_space<vmem>>, vector<1x128xf32>
    %2359 = tpu.iota {dimensions = array<i32: 0>} : vector<4x1xi32>
    %c3_i32_991 = arith.constant 3 : i32
    %2360 = vector.broadcast %c3_i32_991 : i32 to vector<4x1xi32>
    %2361 = arith.andi %2359, %2360 : vector<4x1xi32>
    %c1_i32_992 = arith.constant 1 : i32
    %2362 = vector.broadcast %c1_i32_992 : i32 to vector<4x1xi32>
    %2363 = arith.shrsi %2361, %2362 : vector<4x1xi32>
    %c1_i32_993 = arith.constant 1 : i32
    %2364 = vector.broadcast %c1_i32_993 : i32 to vector<4x1xi32>
    %2365 = arith.andi %2361, %2364 : vector<4x1xi32>
    %cst_994 = arith.constant 0.000000e+00 : f32
    %2366 = vector.broadcast %cst_994 : f32 to vector<4x128xf32>
    %c-1_i32_995 = arith.constant -1 : i32
    %2367 = vector.broadcast %c-1_i32_995 : i32 to vector<4x1xi32>
    %2368 = arith.addi %2363, %2367 : vector<4x1xi32>
    %c0_i32_996 = arith.constant 0 : i32
    %2369 = vector.broadcast %c0_i32_996 : i32 to vector<4x1xi32>
    %2370 = arith.cmpi sge, %2368, %2369 : vector<4x1xi32>
    %c-1_i32_997 = arith.constant -1 : i32
    %2371 = vector.broadcast %c-1_i32_997 : i32 to vector<4x1xi32>
    %2372 = arith.addi %2363, %2371 : vector<4x1xi32>
    %c1_i32_998 = arith.constant 1 : i32
    %2373 = vector.broadcast %c1_i32_998 : i32 to vector<4x1xi32>
    %2374 = arith.cmpi sle, %2372, %2373 : vector<4x1xi32>
    %2375 = arith.andi %2370, %2374 : vector<4x1xi1>
    %c-1_i32_999 = arith.constant -1 : i32
    %2376 = vector.broadcast %c-1_i32_999 : i32 to vector<4x1xi32>
    %2377 = arith.addi %2365, %2376 : vector<4x1xi32>
    %c0_i32_1000 = arith.constant 0 : i32
    %2378 = vector.broadcast %c0_i32_1000 : i32 to vector<4x1xi32>
    %2379 = arith.cmpi sge, %2377, %2378 : vector<4x1xi32>
    %c-1_i32_1001 = arith.constant -1 : i32
    %2380 = vector.broadcast %c-1_i32_1001 : i32 to vector<4x1xi32>
    %2381 = arith.addi %2365, %2380 : vector<4x1xi32>
    %c1_i32_1002 = arith.constant 1 : i32
    %2382 = vector.broadcast %c1_i32_1002 : i32 to vector<4x1xi32>
    %2383 = arith.cmpi sle, %2381, %2382 : vector<4x1xi32>
    %2384 = arith.andi %2379, %2383 : vector<4x1xi1>
    %2385 = arith.andi %2375, %2384 : vector<4x1xi1>
    %c13_1003 = arith.constant 13 : index
    %c0_1004 = arith.constant 0 : index
    %2386 = vector.load %arg9[%c13_1003, %c0_1004] : memref<96x128xf32, #tpu.memory_space<vmem>>, vector<4x128xf32>
    %cst_1005 = arith.constant 0.000000e+00 : f32
    %2387 = vector.shape_cast %2385 : vector<4x1xi1> to vector<4x1xi1>
    %2388 = vector.broadcast %2387 : vector<4x1xi1> to vector<4x128xi1>
    %2389 = vector.broadcast %cst_1005 : f32 to vector<4x128xf32>
    %2390 = arith.select %2388, %2386, %2389 : vector<4x128xi1>, vector<4x128xf32>
    %2391 = vector.extract_strided_slice %2357 {offsets = [0, 0], sizes = [1, 128], strides = [1, 1]} : vector<9x128xf32> to vector<1x128xf32>
    %2392 = vector.broadcast %2391 : vector<1x128xf32> to vector<4x128xf32>
    %2393 = arith.mulf %2390, %2392 : vector<4x128xf32>
    %2394 = arith.addf %2366, %2393 : vector<4x128xf32>
    %c0_i32_1006 = arith.constant 0 : i32
    %2395 = vector.broadcast %c0_i32_1006 : i32 to vector<4x1xi32>
    %2396 = arith.addi %2365, %2395 : vector<4x1xi32>
    %c0_i32_1007 = arith.constant 0 : i32
    %2397 = vector.broadcast %c0_i32_1007 : i32 to vector<4x1xi32>
    %2398 = arith.cmpi sge, %2396, %2397 : vector<4x1xi32>
    %c0_i32_1008 = arith.constant 0 : i32
    %2399 = vector.broadcast %c0_i32_1008 : i32 to vector<4x1xi32>
    %2400 = arith.addi %2365, %2399 : vector<4x1xi32>
    %c1_i32_1009 = arith.constant 1 : i32
    %2401 = vector.broadcast %c1_i32_1009 : i32 to vector<4x1xi32>
    %2402 = arith.cmpi sle, %2400, %2401 : vector<4x1xi32>
    %2403 = arith.andi %2398, %2402 : vector<4x1xi1>
    %2404 = arith.andi %2375, %2403 : vector<4x1xi1>
    %c14_1010 = arith.constant 14 : index
    %c0_1011 = arith.constant 0 : index
    %2405 = vector.load %arg9[%c14_1010, %c0_1011] : memref<96x128xf32, #tpu.memory_space<vmem>>, vector<4x128xf32>
    %cst_1012 = arith.constant 0.000000e+00 : f32
    %2406 = vector.shape_cast %2404 : vector<4x1xi1> to vector<4x1xi1>
    %2407 = vector.broadcast %2406 : vector<4x1xi1> to vector<4x128xi1>
    %2408 = vector.broadcast %cst_1012 : f32 to vector<4x128xf32>
    %2409 = arith.select %2407, %2405, %2408 : vector<4x128xi1>, vector<4x128xf32>
    %2410 = vector.extract_strided_slice %2357 {offsets = [1, 0], sizes = [1, 128], strides = [1, 1]} : vector<9x128xf32> to vector<1x128xf32>
    %2411 = vector.broadcast %2410 : vector<1x128xf32> to vector<4x128xf32>
    %2412 = arith.mulf %2409, %2411 : vector<4x128xf32>
    %2413 = arith.addf %2394, %2412 : vector<4x128xf32>
    %c1_i32_1013 = arith.constant 1 : i32
    %2414 = vector.broadcast %c1_i32_1013 : i32 to vector<4x1xi32>
    %2415 = arith.addi %2365, %2414 : vector<4x1xi32>
    %c0_i32_1014 = arith.constant 0 : i32
    %2416 = vector.broadcast %c0_i32_1014 : i32 to vector<4x1xi32>
    %2417 = arith.cmpi sge, %2415, %2416 : vector<4x1xi32>
    %c1_i32_1015 = arith.constant 1 : i32
    %2418 = vector.broadcast %c1_i32_1015 : i32 to vector<4x1xi32>
    %2419 = arith.addi %2365, %2418 : vector<4x1xi32>
    %c1_i32_1016 = arith.constant 1 : i32
    %2420 = vector.broadcast %c1_i32_1016 : i32 to vector<4x1xi32>
    %2421 = arith.cmpi sle, %2419, %2420 : vector<4x1xi32>
    %2422 = arith.andi %2417, %2421 : vector<4x1xi1>
    %2423 = arith.andi %2375, %2422 : vector<4x1xi1>
    %c15_1017 = arith.constant 15 : index
    %c0_1018 = arith.constant 0 : index
    %2424 = vector.load %arg9[%c15_1017, %c0_1018] : memref<96x128xf32, #tpu.memory_space<vmem>>, vector<4x128xf32>
    %cst_1019 = arith.constant 0.000000e+00 : f32
    %2425 = vector.shape_cast %2423 : vector<4x1xi1> to vector<4x1xi1>
    %2426 = vector.broadcast %2425 : vector<4x1xi1> to vector<4x128xi1>
    %2427 = vector.broadcast %cst_1019 : f32 to vector<4x128xf32>
    %2428 = arith.select %2426, %2424, %2427 : vector<4x128xi1>, vector<4x128xf32>
    %2429 = vector.extract_strided_slice %2357 {offsets = [2, 0], sizes = [1, 128], strides = [1, 1]} : vector<9x128xf32> to vector<1x128xf32>
    %2430 = vector.broadcast %2429 : vector<1x128xf32> to vector<4x128xf32>
    %2431 = arith.mulf %2428, %2430 : vector<4x128xf32>
    %2432 = arith.addf %2413, %2431 : vector<4x128xf32>
    %c0_i32_1020 = arith.constant 0 : i32
    %2433 = vector.broadcast %c0_i32_1020 : i32 to vector<4x1xi32>
    %2434 = arith.addi %2363, %2433 : vector<4x1xi32>
    %c0_i32_1021 = arith.constant 0 : i32
    %2435 = vector.broadcast %c0_i32_1021 : i32 to vector<4x1xi32>
    %2436 = arith.cmpi sge, %2434, %2435 : vector<4x1xi32>
    %c0_i32_1022 = arith.constant 0 : i32
    %2437 = vector.broadcast %c0_i32_1022 : i32 to vector<4x1xi32>
    %2438 = arith.addi %2363, %2437 : vector<4x1xi32>
    %c1_i32_1023 = arith.constant 1 : i32
    %2439 = vector.broadcast %c1_i32_1023 : i32 to vector<4x1xi32>
    %2440 = arith.cmpi sle, %2438, %2439 : vector<4x1xi32>
    %2441 = arith.andi %2436, %2440 : vector<4x1xi1>
    %c-1_i32_1024 = arith.constant -1 : i32
    %2442 = vector.broadcast %c-1_i32_1024 : i32 to vector<4x1xi32>
    %2443 = arith.addi %2365, %2442 : vector<4x1xi32>
    %c0_i32_1025 = arith.constant 0 : i32
    %2444 = vector.broadcast %c0_i32_1025 : i32 to vector<4x1xi32>
    %2445 = arith.cmpi sge, %2443, %2444 : vector<4x1xi32>
    %c-1_i32_1026 = arith.constant -1 : i32
    %2446 = vector.broadcast %c-1_i32_1026 : i32 to vector<4x1xi32>
    %2447 = arith.addi %2365, %2446 : vector<4x1xi32>
    %c1_i32_1027 = arith.constant 1 : i32
    %2448 = vector.broadcast %c1_i32_1027 : i32 to vector<4x1xi32>
    %2449 = arith.cmpi sle, %2447, %2448 : vector<4x1xi32>
    %2450 = arith.andi %2445, %2449 : vector<4x1xi1>
    %2451 = arith.andi %2441, %2450 : vector<4x1xi1>
    %c15_1028 = arith.constant 15 : index
    %c0_1029 = arith.constant 0 : index
    %2452 = vector.load %arg9[%c15_1028, %c0_1029] : memref<96x128xf32, #tpu.memory_space<vmem>>, vector<4x128xf32>
    %cst_1030 = arith.constant 0.000000e+00 : f32
    %2453 = vector.shape_cast %2451 : vector<4x1xi1> to vector<4x1xi1>
    %2454 = vector.broadcast %2453 : vector<4x1xi1> to vector<4x128xi1>
    %2455 = vector.broadcast %cst_1030 : f32 to vector<4x128xf32>
    %2456 = arith.select %2454, %2452, %2455 : vector<4x128xi1>, vector<4x128xf32>
    %2457 = vector.extract_strided_slice %2357 {offsets = [3, 0], sizes = [1, 128], strides = [1, 1]} : vector<9x128xf32> to vector<1x128xf32>
    %2458 = vector.broadcast %2457 : vector<1x128xf32> to vector<4x128xf32>
    %2459 = arith.mulf %2456, %2458 : vector<4x128xf32>
    %2460 = arith.addf %2432, %2459 : vector<4x128xf32>
    %c0_i32_1031 = arith.constant 0 : i32
    %2461 = vector.broadcast %c0_i32_1031 : i32 to vector<4x1xi32>
    %2462 = arith.addi %2365, %2461 : vector<4x1xi32>
    %c0_i32_1032 = arith.constant 0 : i32
    %2463 = vector.broadcast %c0_i32_1032 : i32 to vector<4x1xi32>
    %2464 = arith.cmpi sge, %2462, %2463 : vector<4x1xi32>
    %c0_i32_1033 = arith.constant 0 : i32
    %2465 = vector.broadcast %c0_i32_1033 : i32 to vector<4x1xi32>
    %2466 = arith.addi %2365, %2465 : vector<4x1xi32>
    %c1_i32_1034 = arith.constant 1 : i32
    %2467 = vector.broadcast %c1_i32_1034 : i32 to vector<4x1xi32>
    %2468 = arith.cmpi sle, %2466, %2467 : vector<4x1xi32>
    %2469 = arith.andi %2464, %2468 : vector<4x1xi1>
    %2470 = arith.andi %2441, %2469 : vector<4x1xi1>
    %c16_1035 = arith.constant 16 : index
    %c0_1036 = arith.constant 0 : index
    %2471 = vector.load %arg9[%c16_1035, %c0_1036] : memref<96x128xf32, #tpu.memory_space<vmem>>, vector<4x128xf32>
    %cst_1037 = arith.constant 0.000000e+00 : f32
    %2472 = vector.shape_cast %2470 : vector<4x1xi1> to vector<4x1xi1>
    %2473 = vector.broadcast %2472 : vector<4x1xi1> to vector<4x128xi1>
    %2474 = vector.broadcast %cst_1037 : f32 to vector<4x128xf32>
    %2475 = arith.select %2473, %2471, %2474 : vector<4x128xi1>, vector<4x128xf32>
    %2476 = vector.extract_strided_slice %2357 {offsets = [4, 0], sizes = [1, 128], strides = [1, 1]} : vector<9x128xf32> to vector<1x128xf32>
    %2477 = vector.broadcast %2476 : vector<1x128xf32> to vector<4x128xf32>
    %2478 = arith.mulf %2475, %2477 : vector<4x128xf32>
    %2479 = arith.addf %2460, %2478 : vector<4x128xf32>
    %c1_i32_1038 = arith.constant 1 : i32
    %2480 = vector.broadcast %c1_i32_1038 : i32 to vector<4x1xi32>
    %2481 = arith.addi %2365, %2480 : vector<4x1xi32>
    %c0_i32_1039 = arith.constant 0 : i32
    %2482 = vector.broadcast %c0_i32_1039 : i32 to vector<4x1xi32>
    %2483 = arith.cmpi sge, %2481, %2482 : vector<4x1xi32>
    %c1_i32_1040 = arith.constant 1 : i32
    %2484 = vector.broadcast %c1_i32_1040 : i32 to vector<4x1xi32>
    %2485 = arith.addi %2365, %2484 : vector<4x1xi32>
    %c1_i32_1041 = arith.constant 1 : i32
    %2486 = vector.broadcast %c1_i32_1041 : i32 to vector<4x1xi32>
    %2487 = arith.cmpi sle, %2485, %2486 : vector<4x1xi32>
    %2488 = arith.andi %2483, %2487 : vector<4x1xi1>
    %2489 = arith.andi %2441, %2488 : vector<4x1xi1>
    %c17_1042 = arith.constant 17 : index
    %c0_1043 = arith.constant 0 : index
    %2490 = vector.load %arg9[%c17_1042, %c0_1043] : memref<96x128xf32, #tpu.memory_space<vmem>>, vector<4x128xf32>
    %cst_1044 = arith.constant 0.000000e+00 : f32
    %2491 = vector.shape_cast %2489 : vector<4x1xi1> to vector<4x1xi1>
    %2492 = vector.broadcast %2491 : vector<4x1xi1> to vector<4x128xi1>
    %2493 = vector.broadcast %cst_1044 : f32 to vector<4x128xf32>
    %2494 = arith.select %2492, %2490, %2493 : vector<4x128xi1>, vector<4x128xf32>
    %2495 = vector.extract_strided_slice %2357 {offsets = [5, 0], sizes = [1, 128], strides = [1, 1]} : vector<9x128xf32> to vector<1x128xf32>
    %2496 = vector.broadcast %2495 : vector<1x128xf32> to vector<4x128xf32>
    %2497 = arith.mulf %2494, %2496 : vector<4x128xf32>
    %2498 = arith.addf %2479, %2497 : vector<4x128xf32>
    %c1_i32_1045 = arith.constant 1 : i32
    %2499 = vector.broadcast %c1_i32_1045 : i32 to vector<4x1xi32>
    %2500 = arith.addi %2363, %2499 : vector<4x1xi32>
    %c0_i32_1046 = arith.constant 0 : i32
    %2501 = vector.broadcast %c0_i32_1046 : i32 to vector<4x1xi32>
    %2502 = arith.cmpi sge, %2500, %2501 : vector<4x1xi32>
    %c1_i32_1047 = arith.constant 1 : i32
    %2503 = vector.broadcast %c1_i32_1047 : i32 to vector<4x1xi32>
    %2504 = arith.addi %2363, %2503 : vector<4x1xi32>
    %c1_i32_1048 = arith.constant 1 : i32
    %2505 = vector.broadcast %c1_i32_1048 : i32 to vector<4x1xi32>
    %2506 = arith.cmpi sle, %2504, %2505 : vector<4x1xi32>
    %2507 = arith.andi %2502, %2506 : vector<4x1xi1>
    %c-1_i32_1049 = arith.constant -1 : i32
    %2508 = vector.broadcast %c-1_i32_1049 : i32 to vector<4x1xi32>
    %2509 = arith.addi %2365, %2508 : vector<4x1xi32>
    %c0_i32_1050 = arith.constant 0 : i32
    %2510 = vector.broadcast %c0_i32_1050 : i32 to vector<4x1xi32>
    %2511 = arith.cmpi sge, %2509, %2510 : vector<4x1xi32>
    %c-1_i32_1051 = arith.constant -1 : i32
    %2512 = vector.broadcast %c-1_i32_1051 : i32 to vector<4x1xi32>
    %2513 = arith.addi %2365, %2512 : vector<4x1xi32>
    %c1_i32_1052 = arith.constant 1 : i32
    %2514 = vector.broadcast %c1_i32_1052 : i32 to vector<4x1xi32>
    %2515 = arith.cmpi sle, %2513, %2514 : vector<4x1xi32>
    %2516 = arith.andi %2511, %2515 : vector<4x1xi1>
    %2517 = arith.andi %2507, %2516 : vector<4x1xi1>
    %c17_1053 = arith.constant 17 : index
    %c0_1054 = arith.constant 0 : index
    %2518 = vector.load %arg9[%c17_1053, %c0_1054] : memref<96x128xf32, #tpu.memory_space<vmem>>, vector<4x128xf32>
    %cst_1055 = arith.constant 0.000000e+00 : f32
    %2519 = vector.shape_cast %2517 : vector<4x1xi1> to vector<4x1xi1>
    %2520 = vector.broadcast %2519 : vector<4x1xi1> to vector<4x128xi1>
    %2521 = vector.broadcast %cst_1055 : f32 to vector<4x128xf32>
    %2522 = arith.select %2520, %2518, %2521 : vector<4x128xi1>, vector<4x128xf32>
    %2523 = vector.extract_strided_slice %2357 {offsets = [6, 0], sizes = [1, 128], strides = [1, 1]} : vector<9x128xf32> to vector<1x128xf32>
    %2524 = vector.broadcast %2523 : vector<1x128xf32> to vector<4x128xf32>
    %2525 = arith.mulf %2522, %2524 : vector<4x128xf32>
    %2526 = arith.addf %2498, %2525 : vector<4x128xf32>
    %c0_i32_1056 = arith.constant 0 : i32
    %2527 = vector.broadcast %c0_i32_1056 : i32 to vector<4x1xi32>
    %2528 = arith.addi %2365, %2527 : vector<4x1xi32>
    %c0_i32_1057 = arith.constant 0 : i32
    %2529 = vector.broadcast %c0_i32_1057 : i32 to vector<4x1xi32>
    %2530 = arith.cmpi sge, %2528, %2529 : vector<4x1xi32>
    %c0_i32_1058 = arith.constant 0 : i32
    %2531 = vector.broadcast %c0_i32_1058 : i32 to vector<4x1xi32>
    %2532 = arith.addi %2365, %2531 : vector<4x1xi32>
    %c1_i32_1059 = arith.constant 1 : i32
    %2533 = vector.broadcast %c1_i32_1059 : i32 to vector<4x1xi32>
    %2534 = arith.cmpi sle, %2532, %2533 : vector<4x1xi32>
    %2535 = arith.andi %2530, %2534 : vector<4x1xi1>
    %2536 = arith.andi %2507, %2535 : vector<4x1xi1>
    %c18_1060 = arith.constant 18 : index
    %c0_1061 = arith.constant 0 : index
    %2537 = vector.load %arg9[%c18_1060, %c0_1061] : memref<96x128xf32, #tpu.memory_space<vmem>>, vector<4x128xf32>
    %cst_1062 = arith.constant 0.000000e+00 : f32
    %2538 = vector.shape_cast %2536 : vector<4x1xi1> to vector<4x1xi1>
    %2539 = vector.broadcast %2538 : vector<4x1xi1> to vector<4x128xi1>
    %2540 = vector.broadcast %cst_1062 : f32 to vector<4x128xf32>
    %2541 = arith.select %2539, %2537, %2540 : vector<4x128xi1>, vector<4x128xf32>
    %2542 = vector.extract_strided_slice %2357 {offsets = [7, 0], sizes = [1, 128], strides = [1, 1]} : vector<9x128xf32> to vector<1x128xf32>
    %2543 = vector.broadcast %2542 : vector<1x128xf32> to vector<4x128xf32>
    %2544 = arith.mulf %2541, %2543 : vector<4x128xf32>
    %2545 = arith.addf %2526, %2544 : vector<4x128xf32>
    %c1_i32_1063 = arith.constant 1 : i32
    %2546 = vector.broadcast %c1_i32_1063 : i32 to vector<4x1xi32>
    %2547 = arith.addi %2365, %2546 : vector<4x1xi32>
    %c0_i32_1064 = arith.constant 0 : i32
    %2548 = vector.broadcast %c0_i32_1064 : i32 to vector<4x1xi32>
    %2549 = arith.cmpi sge, %2547, %2548 : vector<4x1xi32>
    %c1_i32_1065 = arith.constant 1 : i32
    %2550 = vector.broadcast %c1_i32_1065 : i32 to vector<4x1xi32>
    %2551 = arith.addi %2365, %2550 : vector<4x1xi32>
    %c1_i32_1066 = arith.constant 1 : i32
    %2552 = vector.broadcast %c1_i32_1066 : i32 to vector<4x1xi32>
    %2553 = arith.cmpi sle, %2551, %2552 : vector<4x1xi32>
    %2554 = arith.andi %2549, %2553 : vector<4x1xi1>
    %2555 = arith.andi %2507, %2554 : vector<4x1xi1>
    %c19_1067 = arith.constant 19 : index
    %c0_1068 = arith.constant 0 : index
    %2556 = vector.load %arg9[%c19_1067, %c0_1068] : memref<96x128xf32, #tpu.memory_space<vmem>>, vector<4x128xf32>
    %cst_1069 = arith.constant 0.000000e+00 : f32
    %2557 = vector.shape_cast %2555 : vector<4x1xi1> to vector<4x1xi1>
    %2558 = vector.broadcast %2557 : vector<4x1xi1> to vector<4x128xi1>
    %2559 = vector.broadcast %cst_1069 : f32 to vector<4x128xf32>
    %2560 = arith.select %2558, %2556, %2559 : vector<4x128xi1>, vector<4x128xf32>
    %2561 = vector.extract_strided_slice %2357 {offsets = [8, 0], sizes = [1, 128], strides = [1, 1]} : vector<9x128xf32> to vector<1x128xf32>
    %2562 = vector.broadcast %2561 : vector<1x128xf32> to vector<4x128xf32>
    %2563 = arith.mulf %2560, %2562 : vector<4x128xf32>
    %2564 = arith.addf %2545, %2563 : vector<4x128xf32>
    %2565 = vector.broadcast %2358 : vector<1x128xf32> to vector<4x128xf32>
    %2566 = arith.addf %2564, %2565 : vector<4x128xf32>
    %cst_1070 = arith.constant 0.000000e+00 : f32
    %2567 = vector.broadcast %cst_1070 : f32 to vector<4x128xf32>
    %2568 = arith.maximumf %2566, %2567 : vector<4x128xf32>
    %c19_1071 = arith.constant 19 : index
    %c0_1072 = arith.constant 0 : index
    %c0_1073 = arith.constant 0 : index
    %2569 = vector.load %arg4[%c19_1071, %c0_1072, %c0_1073] : memref<26x128x128xbf16, #tpu.memory_space<vmem>>, vector<1x128x32xbf16>
    %2570 = vector.shape_cast %2569 : vector<1x128x32xbf16> to vector<128x32xbf16>
    %2571 = arith.truncf %2568 : vector<4x128xf32> to vector<4x128xbf16>
    %cst_1074 = arith.constant dense<0.000000e+00> : vector<4x32xf32>
    %2572 = tpu.matmul %2571, %2570, %cst_1074 {dimension_numbers = #tpu.dot_dimension_numbers<[1], [0], [0], [1], [0, 0, 1, 1], [], []>} : vector<4x128xbf16>, vector<128x32xbf16>, vector<4x32xf32> -> vector<4x32xf32>
    %c19_1075 = arith.constant 19 : index
    %c0_1076 = arith.constant 0 : index
    %2573 = vector.load %arg5[%c19_1075, %c0_1076] : memref<26x128xf32, #tpu.memory_space<vmem>>, vector<1x32xf32>
    %2574 = vector.broadcast %2573 : vector<1x32xf32> to vector<4x32xf32>
    %2575 = arith.addf %2572, %2574 : vector<4x32xf32>
    %2576 = arith.addf %2575, %2345 : vector<4x32xf32>
    %c20_1077 = arith.constant 20 : index
    %c0_1078 = arith.constant 0 : index
    %c0_1079 = arith.constant 0 : index
    %2577 = vector.load %arg4[%c20_1077, %c0_1078, %c0_1079] : memref<26x128x128xbf16, #tpu.memory_space<vmem>>, vector<1x32x128xbf16>
    %2578 = vector.shape_cast %2577 : vector<1x32x128xbf16> to vector<32x128xbf16>
    %2579 = arith.truncf %2576 : vector<4x32xf32> to vector<4x32xbf16>
    %cst_1080 = arith.constant dense<0.000000e+00> : vector<4x128xf32>
    %2580 = tpu.matmul %2579, %2578, %cst_1080 {dimension_numbers = #tpu.dot_dimension_numbers<[1], [0], [0], [1], [0, 0, 1, 1], [], []>} : vector<4x32xbf16>, vector<32x128xbf16>, vector<4x128xf32> -> vector<4x128xf32>
    %c20_1081 = arith.constant 20 : index
    %c0_1082 = arith.constant 0 : index
    %2581 = vector.load %arg5[%c20_1081, %c0_1082] : memref<26x128xf32, #tpu.memory_space<vmem>>, vector<1x128xf32>
    %2582 = vector.broadcast %2581 : vector<1x128xf32> to vector<4x128xf32>
    %2583 = arith.addf %2580, %2582 : vector<4x128xf32>
    %cst_1083 = arith.constant 0.000000e+00 : f32
    %2584 = vector.broadcast %cst_1083 : f32 to vector<4x128xf32>
    %2585 = arith.maximumf %2583, %2584 : vector<4x128xf32>
    %c16_1084 = arith.constant 16 : index
    %c0_1085 = arith.constant 0 : index
    %2586 = vector.load %arg9[%c16_1084, %c0_1085] : memref<96x128xf32, #tpu.memory_space<vmem>>, vector<4x128xf32>
    tpu.vector_store %arg9[%c16_1084, %c0_1085], %2585 {strides = array<i32>} : memref<96x128xf32, #tpu.memory_space<vmem>>, vector<4x128xf32>,
    %c11_1086 = arith.constant 11 : index
    %c0_1087 = arith.constant 0 : index
    %c0_1088 = arith.constant 0 : index
    %2587 = vector.load %arg6[%c11_1086, %c0_1087, %c0_1088] : memref<14x9x128xf32, #tpu.memory_space<vmem>>, vector<1x9x128xf32>
    %2588 = vector.shape_cast %2587 : vector<1x9x128xf32> to vector<9x128xf32>
    %c11_1089 = arith.constant 11 : index
    %c0_1090 = arith.constant 0 : index
    %2589 = vector.load %arg7[%c11_1089, %c0_1090] : memref<14x128xf32, #tpu.memory_space<vmem>>, vector<1x128xf32>
    %2590 = tpu.iota {dimensions = array<i32: 0>} : vector<4x1xi32>
    %c3_i32_1091 = arith.constant 3 : i32
    %2591 = vector.broadcast %c3_i32_1091 : i32 to vector<4x1xi32>
    %2592 = arith.andi %2590, %2591 : vector<4x1xi32>
    %c1_i32_1092 = arith.constant 1 : i32
    %2593 = vector.broadcast %c1_i32_1092 : i32 to vector<4x1xi32>
    %2594 = arith.shrsi %2592, %2593 : vector<4x1xi32>
    %c1_i32_1093 = arith.constant 1 : i32
    %2595 = vector.broadcast %c1_i32_1093 : i32 to vector<4x1xi32>
    %2596 = arith.andi %2592, %2595 : vector<4x1xi32>
    %cst_1094 = arith.constant 0.000000e+00 : f32
    %2597 = vector.broadcast %cst_1094 : f32 to vector<4x128xf32>
    %c-1_i32_1095 = arith.constant -1 : i32
    %2598 = vector.broadcast %c-1_i32_1095 : i32 to vector<4x1xi32>
    %2599 = arith.addi %2594, %2598 : vector<4x1xi32>
    %c0_i32_1096 = arith.constant 0 : i32
    %2600 = vector.broadcast %c0_i32_1096 : i32 to vector<4x1xi32>
    %2601 = arith.cmpi sge, %2599, %2600 : vector<4x1xi32>
    %c-1_i32_1097 = arith.constant -1 : i32
    %2602 = vector.broadcast %c-1_i32_1097 : i32 to vector<4x1xi32>
    %2603 = arith.addi %2594, %2602 : vector<4x1xi32>
    %c1_i32_1098 = arith.constant 1 : i32
    %2604 = vector.broadcast %c1_i32_1098 : i32 to vector<4x1xi32>
    %2605 = arith.cmpi sle, %2603, %2604 : vector<4x1xi32>
    %2606 = arith.andi %2601, %2605 : vector<4x1xi1>
    %c-1_i32_1099 = arith.constant -1 : i32
    %2607 = vector.broadcast %c-1_i32_1099 : i32 to vector<4x1xi32>
    %2608 = arith.addi %2596, %2607 : vector<4x1xi32>
    %c0_i32_1100 = arith.constant 0 : i32
    %2609 = vector.broadcast %c0_i32_1100 : i32 to vector<4x1xi32>
    %2610 = arith.cmpi sge, %2608, %2609 : vector<4x1xi32>
    %c-1_i32_1101 = arith.constant -1 : i32
    %2611 = vector.broadcast %c-1_i32_1101 : i32 to vector<4x1xi32>
    %2612 = arith.addi %2596, %2611 : vector<4x1xi32>
    %c1_i32_1102 = arith.constant 1 : i32
    %2613 = vector.broadcast %c1_i32_1102 : i32 to vector<4x1xi32>
    %2614 = arith.cmpi sle, %2612, %2613 : vector<4x1xi32>
    %2615 = arith.andi %2610, %2614 : vector<4x1xi1>
    %2616 = arith.andi %2606, %2615 : vector<4x1xi1>
    %c13_1103 = arith.constant 13 : index
    %c0_1104 = arith.constant 0 : index
    %2617 = vector.load %arg9[%c13_1103, %c0_1104] : memref<96x128xf32, #tpu.memory_space<vmem>>, vector<4x128xf32>
    %cst_1105 = arith.constant 0.000000e+00 : f32
    %2618 = vector.shape_cast %2616 : vector<4x1xi1> to vector<4x1xi1>
    %2619 = vector.broadcast %2618 : vector<4x1xi1> to vector<4x128xi1>
    %2620 = vector.broadcast %cst_1105 : f32 to vector<4x128xf32>
    %2621 = arith.select %2619, %2617, %2620 : vector<4x128xi1>, vector<4x128xf32>
    %2622 = vector.extract_strided_slice %2588 {offsets = [0, 0], sizes = [1, 128], strides = [1, 1]} : vector<9x128xf32> to vector<1x128xf32>
    %2623 = vector.broadcast %2622 : vector<1x128xf32> to vector<4x128xf32>
    %2624 = arith.mulf %2621, %2623 : vector<4x128xf32>
    %2625 = arith.addf %2597, %2624 : vector<4x128xf32>
    %c0_i32_1106 = arith.constant 0 : i32
    %2626 = vector.broadcast %c0_i32_1106 : i32 to vector<4x1xi32>
    %2627 = arith.addi %2596, %2626 : vector<4x1xi32>
    %c0_i32_1107 = arith.constant 0 : i32
    %2628 = vector.broadcast %c0_i32_1107 : i32 to vector<4x1xi32>
    %2629 = arith.cmpi sge, %2627, %2628 : vector<4x1xi32>
    %c0_i32_1108 = arith.constant 0 : i32
    %2630 = vector.broadcast %c0_i32_1108 : i32 to vector<4x1xi32>
    %2631 = arith.addi %2596, %2630 : vector<4x1xi32>
    %c1_i32_1109 = arith.constant 1 : i32
    %2632 = vector.broadcast %c1_i32_1109 : i32 to vector<4x1xi32>
    %2633 = arith.cmpi sle, %2631, %2632 : vector<4x1xi32>
    %2634 = arith.andi %2629, %2633 : vector<4x1xi1>
    %2635 = arith.andi %2606, %2634 : vector<4x1xi1>
    %c14_1110 = arith.constant 14 : index
    %c0_1111 = arith.constant 0 : index
    %2636 = vector.load %arg9[%c14_1110, %c0_1111] : memref<96x128xf32, #tpu.memory_space<vmem>>, vector<4x128xf32>
    %cst_1112 = arith.constant 0.000000e+00 : f32
    %2637 = vector.shape_cast %2635 : vector<4x1xi1> to vector<4x1xi1>
    %2638 = vector.broadcast %2637 : vector<4x1xi1> to vector<4x128xi1>
    %2639 = vector.broadcast %cst_1112 : f32 to vector<4x128xf32>
    %2640 = arith.select %2638, %2636, %2639 : vector<4x128xi1>, vector<4x128xf32>
    %2641 = vector.extract_strided_slice %2588 {offsets = [1, 0], sizes = [1, 128], strides = [1, 1]} : vector<9x128xf32> to vector<1x128xf32>
    %2642 = vector.broadcast %2641 : vector<1x128xf32> to vector<4x128xf32>
    %2643 = arith.mulf %2640, %2642 : vector<4x128xf32>
    %2644 = arith.addf %2625, %2643 : vector<4x128xf32>
    %c1_i32_1113 = arith.constant 1 : i32
    %2645 = vector.broadcast %c1_i32_1113 : i32 to vector<4x1xi32>
    %2646 = arith.addi %2596, %2645 : vector<4x1xi32>
    %c0_i32_1114 = arith.constant 0 : i32
    %2647 = vector.broadcast %c0_i32_1114 : i32 to vector<4x1xi32>
    %2648 = arith.cmpi sge, %2646, %2647 : vector<4x1xi32>
    %c1_i32_1115 = arith.constant 1 : i32
    %2649 = vector.broadcast %c1_i32_1115 : i32 to vector<4x1xi32>
    %2650 = arith.addi %2596, %2649 : vector<4x1xi32>
    %c1_i32_1116 = arith.constant 1 : i32
    %2651 = vector.broadcast %c1_i32_1116 : i32 to vector<4x1xi32>
    %2652 = arith.cmpi sle, %2650, %2651 : vector<4x1xi32>
    %2653 = arith.andi %2648, %2652 : vector<4x1xi1>
    %2654 = arith.andi %2606, %2653 : vector<4x1xi1>
    %c15_1117 = arith.constant 15 : index
    %c0_1118 = arith.constant 0 : index
    %2655 = vector.load %arg9[%c15_1117, %c0_1118] : memref<96x128xf32, #tpu.memory_space<vmem>>, vector<4x128xf32>
    %cst_1119 = arith.constant 0.000000e+00 : f32
    %2656 = vector.shape_cast %2654 : vector<4x1xi1> to vector<4x1xi1>
    %2657 = vector.broadcast %2656 : vector<4x1xi1> to vector<4x128xi1>
    %2658 = vector.broadcast %cst_1119 : f32 to vector<4x128xf32>
    %2659 = arith.select %2657, %2655, %2658 : vector<4x128xi1>, vector<4x128xf32>
    %2660 = vector.extract_strided_slice %2588 {offsets = [2, 0], sizes = [1, 128], strides = [1, 1]} : vector<9x128xf32> to vector<1x128xf32>
    %2661 = vector.broadcast %2660 : vector<1x128xf32> to vector<4x128xf32>
    %2662 = arith.mulf %2659, %2661 : vector<4x128xf32>
    %2663 = arith.addf %2644, %2662 : vector<4x128xf32>
    %c0_i32_1120 = arith.constant 0 : i32
    %2664 = vector.broadcast %c0_i32_1120 : i32 to vector<4x1xi32>
    %2665 = arith.addi %2594, %2664 : vector<4x1xi32>
    %c0_i32_1121 = arith.constant 0 : i32
    %2666 = vector.broadcast %c0_i32_1121 : i32 to vector<4x1xi32>
    %2667 = arith.cmpi sge, %2665, %2666 : vector<4x1xi32>
    %c0_i32_1122 = arith.constant 0 : i32
    %2668 = vector.broadcast %c0_i32_1122 : i32 to vector<4x1xi32>
    %2669 = arith.addi %2594, %2668 : vector<4x1xi32>
    %c1_i32_1123 = arith.constant 1 : i32
    %2670 = vector.broadcast %c1_i32_1123 : i32 to vector<4x1xi32>
    %2671 = arith.cmpi sle, %2669, %2670 : vector<4x1xi32>
    %2672 = arith.andi %2667, %2671 : vector<4x1xi1>
    %c-1_i32_1124 = arith.constant -1 : i32
    %2673 = vector.broadcast %c-1_i32_1124 : i32 to vector<4x1xi32>
    %2674 = arith.addi %2596, %2673 : vector<4x1xi32>
    %c0_i32_1125 = arith.constant 0 : i32
    %2675 = vector.broadcast %c0_i32_1125 : i32 to vector<4x1xi32>
    %2676 = arith.cmpi sge, %2674, %2675 : vector<4x1xi32>
    %c-1_i32_1126 = arith.constant -1 : i32
    %2677 = vector.broadcast %c-1_i32_1126 : i32 to vector<4x1xi32>
    %2678 = arith.addi %2596, %2677 : vector<4x1xi32>
    %c1_i32_1127 = arith.constant 1 : i32
    %2679 = vector.broadcast %c1_i32_1127 : i32 to vector<4x1xi32>
    %2680 = arith.cmpi sle, %2678, %2679 : vector<4x1xi32>
    %2681 = arith.andi %2676, %2680 : vector<4x1xi1>
    %2682 = arith.andi %2672, %2681 : vector<4x1xi1>
    %c15_1128 = arith.constant 15 : index
    %c0_1129 = arith.constant 0 : index
    %2683 = vector.load %arg9[%c15_1128, %c0_1129] : memref<96x128xf32, #tpu.memory_space<vmem>>, vector<4x128xf32>
    %cst_1130 = arith.constant 0.000000e+00 : f32
    %2684 = vector.shape_cast %2682 : vector<4x1xi1> to vector<4x1xi1>
    %2685 = vector.broadcast %2684 : vector<4x1xi1> to vector<4x128xi1>
    %2686 = vector.broadcast %cst_1130 : f32 to vector<4x128xf32>
    %2687 = arith.select %2685, %2683, %2686 : vector<4x128xi1>, vector<4x128xf32>
    %2688 = vector.extract_strided_slice %2588 {offsets = [3, 0], sizes = [1, 128], strides = [1, 1]} : vector<9x128xf32> to vector<1x128xf32>
    %2689 = vector.broadcast %2688 : vector<1x128xf32> to vector<4x128xf32>
    %2690 = arith.mulf %2687, %2689 : vector<4x128xf32>
    %2691 = arith.addf %2663, %2690 : vector<4x128xf32>
    %c0_i32_1131 = arith.constant 0 : i32
    %2692 = vector.broadcast %c0_i32_1131 : i32 to vector<4x1xi32>
    %2693 = arith.addi %2596, %2692 : vector<4x1xi32>
    %c0_i32_1132 = arith.constant 0 : i32
    %2694 = vector.broadcast %c0_i32_1132 : i32 to vector<4x1xi32>
    %2695 = arith.cmpi sge, %2693, %2694 : vector<4x1xi32>
    %c0_i32_1133 = arith.constant 0 : i32
    %2696 = vector.broadcast %c0_i32_1133 : i32 to vector<4x1xi32>
    %2697 = arith.addi %2596, %2696 : vector<4x1xi32>
    %c1_i32_1134 = arith.constant 1 : i32
    %2698 = vector.broadcast %c1_i32_1134 : i32 to vector<4x1xi32>
    %2699 = arith.cmpi sle, %2697, %2698 : vector<4x1xi32>
    %2700 = arith.andi %2695, %2699 : vector<4x1xi1>
    %2701 = arith.andi %2672, %2700 : vector<4x1xi1>
    %c16_1135 = arith.constant 16 : index
    %c0_1136 = arith.constant 0 : index
    %2702 = vector.load %arg9[%c16_1135, %c0_1136] : memref<96x128xf32, #tpu.memory_space<vmem>>, vector<4x128xf32>
    %cst_1137 = arith.constant 0.000000e+00 : f32
    %2703 = vector.shape_cast %2701 : vector<4x1xi1> to vector<4x1xi1>
    %2704 = vector.broadcast %2703 : vector<4x1xi1> to vector<4x128xi1>
    %2705 = vector.broadcast %cst_1137 : f32 to vector<4x128xf32>
    %2706 = arith.select %2704, %2702, %2705 : vector<4x128xi1>, vector<4x128xf32>
    %2707 = vector.extract_strided_slice %2588 {offsets = [4, 0], sizes = [1, 128], strides = [1, 1]} : vector<9x128xf32> to vector<1x128xf32>
    %2708 = vector.broadcast %2707 : vector<1x128xf32> to vector<4x128xf32>
    %2709 = arith.mulf %2706, %2708 : vector<4x128xf32>
    %2710 = arith.addf %2691, %2709 : vector<4x128xf32>
    %c1_i32_1138 = arith.constant 1 : i32
    %2711 = vector.broadcast %c1_i32_1138 : i32 to vector<4x1xi32>
    %2712 = arith.addi %2596, %2711 : vector<4x1xi32>
    %c0_i32_1139 = arith.constant 0 : i32
    %2713 = vector.broadcast %c0_i32_1139 : i32 to vector<4x1xi32>
    %2714 = arith.cmpi sge, %2712, %2713 : vector<4x1xi32>
    %c1_i32_1140 = arith.constant 1 : i32
    %2715 = vector.broadcast %c1_i32_1140 : i32 to vector<4x1xi32>
    %2716 = arith.addi %2596, %2715 : vector<4x1xi32>
    %c1_i32_1141 = arith.constant 1 : i32
    %2717 = vector.broadcast %c1_i32_1141 : i32 to vector<4x1xi32>
    %2718 = arith.cmpi sle, %2716, %2717 : vector<4x1xi32>
    %2719 = arith.andi %2714, %2718 : vector<4x1xi1>
    %2720 = arith.andi %2672, %2719 : vector<4x1xi1>
    %c17_1142 = arith.constant 17 : index
    %c0_1143 = arith.constant 0 : index
    %2721 = vector.load %arg9[%c17_1142, %c0_1143] : memref<96x128xf32, #tpu.memory_space<vmem>>, vector<4x128xf32>
    %cst_1144 = arith.constant 0.000000e+00 : f32
    %2722 = vector.shape_cast %2720 : vector<4x1xi1> to vector<4x1xi1>
    %2723 = vector.broadcast %2722 : vector<4x1xi1> to vector<4x128xi1>
    %2724 = vector.broadcast %cst_1144 : f32 to vector<4x128xf32>
    %2725 = arith.select %2723, %2721, %2724 : vector<4x128xi1>, vector<4x128xf32>
    %2726 = vector.extract_strided_slice %2588 {offsets = [5, 0], sizes = [1, 128], strides = [1, 1]} : vector<9x128xf32> to vector<1x128xf32>
    %2727 = vector.broadcast %2726 : vector<1x128xf32> to vector<4x128xf32>
    %2728 = arith.mulf %2725, %2727 : vector<4x128xf32>
    %2729 = arith.addf %2710, %2728 : vector<4x128xf32>
    %c1_i32_1145 = arith.constant 1 : i32
    %2730 = vector.broadcast %c1_i32_1145 : i32 to vector<4x1xi32>
    %2731 = arith.addi %2594, %2730 : vector<4x1xi32>
    %c0_i32_1146 = arith.constant 0 : i32
    %2732 = vector.broadcast %c0_i32_1146 : i32 to vector<4x1xi32>
    %2733 = arith.cmpi sge, %2731, %2732 : vector<4x1xi32>
    %c1_i32_1147 = arith.constant 1 : i32
    %2734 = vector.broadcast %c1_i32_1147 : i32 to vector<4x1xi32>
    %2735 = arith.addi %2594, %2734 : vector<4x1xi32>
    %c1_i32_1148 = arith.constant 1 : i32
    %2736 = vector.broadcast %c1_i32_1148 : i32 to vector<4x1xi32>
    %2737 = arith.cmpi sle, %2735, %2736 : vector<4x1xi32>
    %2738 = arith.andi %2733, %2737 : vector<4x1xi1>
    %c-1_i32_1149 = arith.constant -1 : i32
    %2739 = vector.broadcast %c-1_i32_1149 : i32 to vector<4x1xi32>
    %2740 = arith.addi %2596, %2739 : vector<4x1xi32>
    %c0_i32_1150 = arith.constant 0 : i32
    %2741 = vector.broadcast %c0_i32_1150 : i32 to vector<4x1xi32>
    %2742 = arith.cmpi sge, %2740, %2741 : vector<4x1xi32>
    %c-1_i32_1151 = arith.constant -1 : i32
    %2743 = vector.broadcast %c-1_i32_1151 : i32 to vector<4x1xi32>
    %2744 = arith.addi %2596, %2743 : vector<4x1xi32>
    %c1_i32_1152 = arith.constant 1 : i32
    %2745 = vector.broadcast %c1_i32_1152 : i32 to vector<4x1xi32>
    %2746 = arith.cmpi sle, %2744, %2745 : vector<4x1xi32>
    %2747 = arith.andi %2742, %2746 : vector<4x1xi1>
    %2748 = arith.andi %2738, %2747 : vector<4x1xi1>
    %c17_1153 = arith.constant 17 : index
    %c0_1154 = arith.constant 0 : index
    %2749 = vector.load %arg9[%c17_1153, %c0_1154] : memref<96x128xf32, #tpu.memory_space<vmem>>, vector<4x128xf32>
    %cst_1155 = arith.constant 0.000000e+00 : f32
    %2750 = vector.shape_cast %2748 : vector<4x1xi1> to vector<4x1xi1>
    %2751 = vector.broadcast %2750 : vector<4x1xi1> to vector<4x128xi1>
    %2752 = vector.broadcast %cst_1155 : f32 to vector<4x128xf32>
    %2753 = arith.select %2751, %2749, %2752 : vector<4x128xi1>, vector<4x128xf32>
    %2754 = vector.extract_strided_slice %2588 {offsets = [6, 0], sizes = [1, 128], strides = [1, 1]} : vector<9x128xf32> to vector<1x128xf32>
    %2755 = vector.broadcast %2754 : vector<1x128xf32> to vector<4x128xf32>
    %2756 = arith.mulf %2753, %2755 : vector<4x128xf32>
    %2757 = arith.addf %2729, %2756 : vector<4x128xf32>
    %c0_i32_1156 = arith.constant 0 : i32
    %2758 = vector.broadcast %c0_i32_1156 : i32 to vector<4x1xi32>
    %2759 = arith.addi %2596, %2758 : vector<4x1xi32>
    %c0_i32_1157 = arith.constant 0 : i32
    %2760 = vector.broadcast %c0_i32_1157 : i32 to vector<4x1xi32>
    %2761 = arith.cmpi sge, %2759, %2760 : vector<4x1xi32>
    %c0_i32_1158 = arith.constant 0 : i32
    %2762 = vector.broadcast %c0_i32_1158 : i32 to vector<4x1xi32>
    %2763 = arith.addi %2596, %2762 : vector<4x1xi32>
    %c1_i32_1159 = arith.constant 1 : i32
    %2764 = vector.broadcast %c1_i32_1159 : i32 to vector<4x1xi32>
    %2765 = arith.cmpi sle, %2763, %2764 : vector<4x1xi32>
    %2766 = arith.andi %2761, %2765 : vector<4x1xi1>
    %2767 = arith.andi %2738, %2766 : vector<4x1xi1>
    %c18_1160 = arith.constant 18 : index
    %c0_1161 = arith.constant 0 : index
    %2768 = vector.load %arg9[%c18_1160, %c0_1161] : memref<96x128xf32, #tpu.memory_space<vmem>>, vector<4x128xf32>
    %cst_1162 = arith.constant 0.000000e+00 : f32
    %2769 = vector.shape_cast %2767 : vector<4x1xi1> to vector<4x1xi1>
    %2770 = vector.broadcast %2769 : vector<4x1xi1> to vector<4x128xi1>
    %2771 = vector.broadcast %cst_1162 : f32 to vector<4x128xf32>
    %2772 = arith.select %2770, %2768, %2771 : vector<4x128xi1>, vector<4x128xf32>
    %2773 = vector.extract_strided_slice %2588 {offsets = [7, 0], sizes = [1, 128], strides = [1, 1]} : vector<9x128xf32> to vector<1x128xf32>
    %2774 = vector.broadcast %2773 : vector<1x128xf32> to vector<4x128xf32>
    %2775 = arith.mulf %2772, %2774 : vector<4x128xf32>
    %2776 = arith.addf %2757, %2775 : vector<4x128xf32>
    %c1_i32_1163 = arith.constant 1 : i32
    %2777 = vector.broadcast %c1_i32_1163 : i32 to vector<4x1xi32>
    %2778 = arith.addi %2596, %2777 : vector<4x1xi32>
    %c0_i32_1164 = arith.constant 0 : i32
    %2779 = vector.broadcast %c0_i32_1164 : i32 to vector<4x1xi32>
    %2780 = arith.cmpi sge, %2778, %2779 : vector<4x1xi32>
    %c1_i32_1165 = arith.constant 1 : i32
    %2781 = vector.broadcast %c1_i32_1165 : i32 to vector<4x1xi32>
    %2782 = arith.addi %2596, %2781 : vector<4x1xi32>
    %c1_i32_1166 = arith.constant 1 : i32
    %2783 = vector.broadcast %c1_i32_1166 : i32 to vector<4x1xi32>
    %2784 = arith.cmpi sle, %2782, %2783 : vector<4x1xi32>
    %2785 = arith.andi %2780, %2784 : vector<4x1xi1>
    %2786 = arith.andi %2738, %2785 : vector<4x1xi1>
    %c19_1167 = arith.constant 19 : index
    %c0_1168 = arith.constant 0 : index
    %2787 = vector.load %arg9[%c19_1167, %c0_1168] : memref<96x128xf32, #tpu.memory_space<vmem>>, vector<4x128xf32>
    %cst_1169 = arith.constant 0.000000e+00 : f32
    %2788 = vector.shape_cast %2786 : vector<4x1xi1> to vector<4x1xi1>
    %2789 = vector.broadcast %2788 : vector<4x1xi1> to vector<4x128xi1>
    %2790 = vector.broadcast %cst_1169 : f32 to vector<4x128xf32>
    %2791 = arith.select %2789, %2787, %2790 : vector<4x128xi1>, vector<4x128xf32>
    %2792 = vector.extract_strided_slice %2588 {offsets = [8, 0], sizes = [1, 128], strides = [1, 1]} : vector<9x128xf32> to vector<1x128xf32>
    %2793 = vector.broadcast %2792 : vector<1x128xf32> to vector<4x128xf32>
    %2794 = arith.mulf %2791, %2793 : vector<4x128xf32>
    %2795 = arith.addf %2776, %2794 : vector<4x128xf32>
    %2796 = vector.broadcast %2589 : vector<1x128xf32> to vector<4x128xf32>
    %2797 = arith.addf %2795, %2796 : vector<4x128xf32>
    %cst_1170 = arith.constant 0.000000e+00 : f32
    %2798 = vector.broadcast %cst_1170 : f32 to vector<4x128xf32>
    %2799 = arith.maximumf %2797, %2798 : vector<4x128xf32>
    %c21_1171 = arith.constant 21 : index
    %c0_1172 = arith.constant 0 : index
    %c0_1173 = arith.constant 0 : index
    %2800 = vector.load %arg4[%c21_1171, %c0_1172, %c0_1173] : memref<26x128x128xbf16, #tpu.memory_space<vmem>>, vector<1x128x32xbf16>
    %2801 = vector.shape_cast %2800 : vector<1x128x32xbf16> to vector<128x32xbf16>
    %2802 = arith.truncf %2799 : vector<4x128xf32> to vector<4x128xbf16>
    %cst_1174 = arith.constant dense<0.000000e+00> : vector<4x32xf32>
    %2803 = tpu.matmul %2802, %2801, %cst_1174 {dimension_numbers = #tpu.dot_dimension_numbers<[1], [0], [0], [1], [0, 0, 1, 1], [], []>} : vector<4x128xbf16>, vector<128x32xbf16>, vector<4x32xf32> -> vector<4x32xf32>
    %c21_1175 = arith.constant 21 : index
    %c0_1176 = arith.constant 0 : index
    %2804 = vector.load %arg5[%c21_1175, %c0_1176] : memref<26x128xf32, #tpu.memory_space<vmem>>, vector<1x32xf32>
    %2805 = vector.broadcast %2804 : vector<1x32xf32> to vector<4x32xf32>
    %2806 = arith.addf %2803, %2805 : vector<4x32xf32>
    %2807 = arith.addf %2806, %2576 : vector<4x32xf32>
    %c22 = arith.constant 22 : index
    %c0_1177 = arith.constant 0 : index
    %c0_1178 = arith.constant 0 : index
    %2808 = vector.load %arg4[%c22, %c0_1177, %c0_1178] : memref<26x128x128xbf16, #tpu.memory_space<vmem>>, vector<1x32x128xbf16>
    %2809 = vector.shape_cast %2808 : vector<1x32x128xbf16> to vector<32x128xbf16>
    %2810 = arith.truncf %2807 : vector<4x32xf32> to vector<4x32xbf16>
    %cst_1179 = arith.constant dense<0.000000e+00> : vector<4x128xf32>
    %2811 = tpu.matmul %2810, %2809, %cst_1179 {dimension_numbers = #tpu.dot_dimension_numbers<[1], [0], [0], [1], [0, 0, 1, 1], [], []>} : vector<4x32xbf16>, vector<32x128xbf16>, vector<4x128xf32> -> vector<4x128xf32>
    %c22_1180 = arith.constant 22 : index
    %c0_1181 = arith.constant 0 : index
    %2812 = vector.load %arg5[%c22_1180, %c0_1181] : memref<26x128xf32, #tpu.memory_space<vmem>>, vector<1x128xf32>
    %2813 = vector.broadcast %2812 : vector<1x128xf32> to vector<4x128xf32>
    %2814 = arith.addf %2811, %2813 : vector<4x128xf32>
    %cst_1182 = arith.constant 0.000000e+00 : f32
    %2815 = vector.broadcast %cst_1182 : f32 to vector<4x128xf32>
    %2816 = arith.maximumf %2814, %2815 : vector<4x128xf32>
    %c16_1183 = arith.constant 16 : index
    %c0_1184 = arith.constant 0 : index
    %2817 = vector.load %arg9[%c16_1183, %c0_1184] : memref<96x128xf32, #tpu.memory_space<vmem>>, vector<4x128xf32>
    tpu.vector_store %arg9[%c16_1183, %c0_1184], %2816 {strides = array<i32>} : memref<96x128xf32, #tpu.memory_space<vmem>>, vector<4x128xf32>,
    %c12_1185 = arith.constant 12 : index
    %c0_1186 = arith.constant 0 : index
    %c0_1187 = arith.constant 0 : index
    %2818 = vector.load %arg6[%c12_1185, %c0_1186, %c0_1187] : memref<14x9x128xf32, #tpu.memory_space<vmem>>, vector<1x9x128xf32>
    %2819 = vector.shape_cast %2818 : vector<1x9x128xf32> to vector<9x128xf32>
    %c12_1188 = arith.constant 12 : index
    %c0_1189 = arith.constant 0 : index
    %2820 = vector.load %arg7[%c12_1188, %c0_1189] : memref<14x128xf32, #tpu.memory_space<vmem>>, vector<1x128xf32>
    %2821 = tpu.iota {dimensions = array<i32: 0>} : vector<4x1xi32>
    %c3_i32_1190 = arith.constant 3 : i32
    %2822 = vector.broadcast %c3_i32_1190 : i32 to vector<4x1xi32>
    %2823 = arith.andi %2821, %2822 : vector<4x1xi32>
    %c1_i32_1191 = arith.constant 1 : i32
    %2824 = vector.broadcast %c1_i32_1191 : i32 to vector<4x1xi32>
    %2825 = arith.shrsi %2823, %2824 : vector<4x1xi32>
    %c1_i32_1192 = arith.constant 1 : i32
    %2826 = vector.broadcast %c1_i32_1192 : i32 to vector<4x1xi32>
    %2827 = arith.andi %2823, %2826 : vector<4x1xi32>
    %cst_1193 = arith.constant 0.000000e+00 : f32
    %2828 = vector.broadcast %cst_1193 : f32 to vector<4x128xf32>
    %c-1_i32_1194 = arith.constant -1 : i32
    %2829 = vector.broadcast %c-1_i32_1194 : i32 to vector<4x1xi32>
    %2830 = arith.addi %2825, %2829 : vector<4x1xi32>
    %c0_i32_1195 = arith.constant 0 : i32
    %2831 = vector.broadcast %c0_i32_1195 : i32 to vector<4x1xi32>
    %2832 = arith.cmpi sge, %2830, %2831 : vector<4x1xi32>
    %c-1_i32_1196 = arith.constant -1 : i32
    %2833 = vector.broadcast %c-1_i32_1196 : i32 to vector<4x1xi32>
    %2834 = arith.addi %2825, %2833 : vector<4x1xi32>
    %c1_i32_1197 = arith.constant 1 : i32
    %2835 = vector.broadcast %c1_i32_1197 : i32 to vector<4x1xi32>
    %2836 = arith.cmpi sle, %2834, %2835 : vector<4x1xi32>
    %2837 = arith.andi %2832, %2836 : vector<4x1xi1>
    %c-1_i32_1198 = arith.constant -1 : i32
    %2838 = vector.broadcast %c-1_i32_1198 : i32 to vector<4x1xi32>
    %2839 = arith.addi %2827, %2838 : vector<4x1xi32>
    %c0_i32_1199 = arith.constant 0 : i32
    %2840 = vector.broadcast %c0_i32_1199 : i32 to vector<4x1xi32>
    %2841 = arith.cmpi sge, %2839, %2840 : vector<4x1xi32>
    %c-1_i32_1200 = arith.constant -1 : i32
    %2842 = vector.broadcast %c-1_i32_1200 : i32 to vector<4x1xi32>
    %2843 = arith.addi %2827, %2842 : vector<4x1xi32>
    %c1_i32_1201 = arith.constant 1 : i32
    %2844 = vector.broadcast %c1_i32_1201 : i32 to vector<4x1xi32>
    %2845 = arith.cmpi sle, %2843, %2844 : vector<4x1xi32>
    %2846 = arith.andi %2841, %2845 : vector<4x1xi1>
    %2847 = arith.andi %2837, %2846 : vector<4x1xi1>
    %c13_1202 = arith.constant 13 : index
    %c0_1203 = arith.constant 0 : index
    %2848 = vector.load %arg9[%c13_1202, %c0_1203] : memref<96x128xf32, #tpu.memory_space<vmem>>, vector<4x128xf32>
    %cst_1204 = arith.constant 0.000000e+00 : f32
    %2849 = vector.shape_cast %2847 : vector<4x1xi1> to vector<4x1xi1>
    %2850 = vector.broadcast %2849 : vector<4x1xi1> to vector<4x128xi1>
    %2851 = vector.broadcast %cst_1204 : f32 to vector<4x128xf32>
    %2852 = arith.select %2850, %2848, %2851 : vector<4x128xi1>, vector<4x128xf32>
    %2853 = vector.extract_strided_slice %2819 {offsets = [0, 0], sizes = [1, 128], strides = [1, 1]} : vector<9x128xf32> to vector<1x128xf32>
    %2854 = vector.broadcast %2853 : vector<1x128xf32> to vector<4x128xf32>
    %2855 = arith.mulf %2852, %2854 : vector<4x128xf32>
    %2856 = arith.addf %2828, %2855 : vector<4x128xf32>
    %c0_i32_1205 = arith.constant 0 : i32
    %2857 = vector.broadcast %c0_i32_1205 : i32 to vector<4x1xi32>
    %2858 = arith.addi %2827, %2857 : vector<4x1xi32>
    %c0_i32_1206 = arith.constant 0 : i32
    %2859 = vector.broadcast %c0_i32_1206 : i32 to vector<4x1xi32>
    %2860 = arith.cmpi sge, %2858, %2859 : vector<4x1xi32>
    %c0_i32_1207 = arith.constant 0 : i32
    %2861 = vector.broadcast %c0_i32_1207 : i32 to vector<4x1xi32>
    %2862 = arith.addi %2827, %2861 : vector<4x1xi32>
    %c1_i32_1208 = arith.constant 1 : i32
    %2863 = vector.broadcast %c1_i32_1208 : i32 to vector<4x1xi32>
    %2864 = arith.cmpi sle, %2862, %2863 : vector<4x1xi32>
    %2865 = arith.andi %2860, %2864 : vector<4x1xi1>
    %2866 = arith.andi %2837, %2865 : vector<4x1xi1>
    %c14_1209 = arith.constant 14 : index
    %c0_1210 = arith.constant 0 : index
    %2867 = vector.load %arg9[%c14_1209, %c0_1210] : memref<96x128xf32, #tpu.memory_space<vmem>>, vector<4x128xf32>
    %cst_1211 = arith.constant 0.000000e+00 : f32
    %2868 = vector.shape_cast %2866 : vector<4x1xi1> to vector<4x1xi1>
    %2869 = vector.broadcast %2868 : vector<4x1xi1> to vector<4x128xi1>
    %2870 = vector.broadcast %cst_1211 : f32 to vector<4x128xf32>
    %2871 = arith.select %2869, %2867, %2870 : vector<4x128xi1>, vector<4x128xf32>
    %2872 = vector.extract_strided_slice %2819 {offsets = [1, 0], sizes = [1, 128], strides = [1, 1]} : vector<9x128xf32> to vector<1x128xf32>
    %2873 = vector.broadcast %2872 : vector<1x128xf32> to vector<4x128xf32>
    %2874 = arith.mulf %2871, %2873 : vector<4x128xf32>
    %2875 = arith.addf %2856, %2874 : vector<4x128xf32>
    %c1_i32_1212 = arith.constant 1 : i32
    %2876 = vector.broadcast %c1_i32_1212 : i32 to vector<4x1xi32>
    %2877 = arith.addi %2827, %2876 : vector<4x1xi32>
    %c0_i32_1213 = arith.constant 0 : i32
    %2878 = vector.broadcast %c0_i32_1213 : i32 to vector<4x1xi32>
    %2879 = arith.cmpi sge, %2877, %2878 : vector<4x1xi32>
    %c1_i32_1214 = arith.constant 1 : i32
    %2880 = vector.broadcast %c1_i32_1214 : i32 to vector<4x1xi32>
    %2881 = arith.addi %2827, %2880 : vector<4x1xi32>
    %c1_i32_1215 = arith.constant 1 : i32
    %2882 = vector.broadcast %c1_i32_1215 : i32 to vector<4x1xi32>
    %2883 = arith.cmpi sle, %2881, %2882 : vector<4x1xi32>
    %2884 = arith.andi %2879, %2883 : vector<4x1xi1>
    %2885 = arith.andi %2837, %2884 : vector<4x1xi1>
    %c15_1216 = arith.constant 15 : index
    %c0_1217 = arith.constant 0 : index
    %2886 = vector.load %arg9[%c15_1216, %c0_1217] : memref<96x128xf32, #tpu.memory_space<vmem>>, vector<4x128xf32>
    %cst_1218 = arith.constant 0.000000e+00 : f32
    %2887 = vector.shape_cast %2885 : vector<4x1xi1> to vector<4x1xi1>
    %2888 = vector.broadcast %2887 : vector<4x1xi1> to vector<4x128xi1>
    %2889 = vector.broadcast %cst_1218 : f32 to vector<4x128xf32>
    %2890 = arith.select %2888, %2886, %2889 : vector<4x128xi1>, vector<4x128xf32>
    %2891 = vector.extract_strided_slice %2819 {offsets = [2, 0], sizes = [1, 128], strides = [1, 1]} : vector<9x128xf32> to vector<1x128xf32>
    %2892 = vector.broadcast %2891 : vector<1x128xf32> to vector<4x128xf32>
    %2893 = arith.mulf %2890, %2892 : vector<4x128xf32>
    %2894 = arith.addf %2875, %2893 : vector<4x128xf32>
    %c0_i32_1219 = arith.constant 0 : i32
    %2895 = vector.broadcast %c0_i32_1219 : i32 to vector<4x1xi32>
    %2896 = arith.addi %2825, %2895 : vector<4x1xi32>
    %c0_i32_1220 = arith.constant 0 : i32
    %2897 = vector.broadcast %c0_i32_1220 : i32 to vector<4x1xi32>
    %2898 = arith.cmpi sge, %2896, %2897 : vector<4x1xi32>
    %c0_i32_1221 = arith.constant 0 : i32
    %2899 = vector.broadcast %c0_i32_1221 : i32 to vector<4x1xi32>
    %2900 = arith.addi %2825, %2899 : vector<4x1xi32>
    %c1_i32_1222 = arith.constant 1 : i32
    %2901 = vector.broadcast %c1_i32_1222 : i32 to vector<4x1xi32>
    %2902 = arith.cmpi sle, %2900, %2901 : vector<4x1xi32>
    %2903 = arith.andi %2898, %2902 : vector<4x1xi1>
    %c-1_i32_1223 = arith.constant -1 : i32
    %2904 = vector.broadcast %c-1_i32_1223 : i32 to vector<4x1xi32>
    %2905 = arith.addi %2827, %2904 : vector<4x1xi32>
    %c0_i32_1224 = arith.constant 0 : i32
    %2906 = vector.broadcast %c0_i32_1224 : i32 to vector<4x1xi32>
    %2907 = arith.cmpi sge, %2905, %2906 : vector<4x1xi32>
    %c-1_i32_1225 = arith.constant -1 : i32
    %2908 = vector.broadcast %c-1_i32_1225 : i32 to vector<4x1xi32>
    %2909 = arith.addi %2827, %2908 : vector<4x1xi32>
    %c1_i32_1226 = arith.constant 1 : i32
    %2910 = vector.broadcast %c1_i32_1226 : i32 to vector<4x1xi32>
    %2911 = arith.cmpi sle, %2909, %2910 : vector<4x1xi32>
    %2912 = arith.andi %2907, %2911 : vector<4x1xi1>
    %2913 = arith.andi %2903, %2912 : vector<4x1xi1>
    %c15_1227 = arith.constant 15 : index
    %c0_1228 = arith.constant 0 : index
    %2914 = vector.load %arg9[%c15_1227, %c0_1228] : memref<96x128xf32, #tpu.memory_space<vmem>>, vector<4x128xf32>
    %cst_1229 = arith.constant 0.000000e+00 : f32
    %2915 = vector.shape_cast %2913 : vector<4x1xi1> to vector<4x1xi1>
    %2916 = vector.broadcast %2915 : vector<4x1xi1> to vector<4x128xi1>
    %2917 = vector.broadcast %cst_1229 : f32 to vector<4x128xf32>
    %2918 = arith.select %2916, %2914, %2917 : vector<4x128xi1>, vector<4x128xf32>
    %2919 = vector.extract_strided_slice %2819 {offsets = [3, 0], sizes = [1, 128], strides = [1, 1]} : vector<9x128xf32> to vector<1x128xf32>
    %2920 = vector.broadcast %2919 : vector<1x128xf32> to vector<4x128xf32>
    %2921 = arith.mulf %2918, %2920 : vector<4x128xf32>
    %2922 = arith.addf %2894, %2921 : vector<4x128xf32>
    %c0_i32_1230 = arith.constant 0 : i32
    %2923 = vector.broadcast %c0_i32_1230 : i32 to vector<4x1xi32>
    %2924 = arith.addi %2827, %2923 : vector<4x1xi32>
    %c0_i32_1231 = arith.constant 0 : i32
    %2925 = vector.broadcast %c0_i32_1231 : i32 to vector<4x1xi32>
    %2926 = arith.cmpi sge, %2924, %2925 : vector<4x1xi32>
    %c0_i32_1232 = arith.constant 0 : i32
    %2927 = vector.broadcast %c0_i32_1232 : i32 to vector<4x1xi32>
    %2928 = arith.addi %2827, %2927 : vector<4x1xi32>
    %c1_i32_1233 = arith.constant 1 : i32
    %2929 = vector.broadcast %c1_i32_1233 : i32 to vector<4x1xi32>
    %2930 = arith.cmpi sle, %2928, %2929 : vector<4x1xi32>
    %2931 = arith.andi %2926, %2930 : vector<4x1xi1>
    %2932 = arith.andi %2903, %2931 : vector<4x1xi1>
    %c16_1234 = arith.constant 16 : index
    %c0_1235 = arith.constant 0 : index
    %2933 = vector.load %arg9[%c16_1234, %c0_1235] : memref<96x128xf32, #tpu.memory_space<vmem>>, vector<4x128xf32>
    %cst_1236 = arith.constant 0.000000e+00 : f32
    %2934 = vector.shape_cast %2932 : vector<4x1xi1> to vector<4x1xi1>
    %2935 = vector.broadcast %2934 : vector<4x1xi1> to vector<4x128xi1>
    %2936 = vector.broadcast %cst_1236 : f32 to vector<4x128xf32>
    %2937 = arith.select %2935, %2933, %2936 : vector<4x128xi1>, vector<4x128xf32>
    %2938 = vector.extract_strided_slice %2819 {offsets = [4, 0], sizes = [1, 128], strides = [1, 1]} : vector<9x128xf32> to vector<1x128xf32>
    %2939 = vector.broadcast %2938 : vector<1x128xf32> to vector<4x128xf32>
    %2940 = arith.mulf %2937, %2939 : vector<4x128xf32>
    %2941 = arith.addf %2922, %2940 : vector<4x128xf32>
    %c1_i32_1237 = arith.constant 1 : i32
    %2942 = vector.broadcast %c1_i32_1237 : i32 to vector<4x1xi32>
    %2943 = arith.addi %2827, %2942 : vector<4x1xi32>
    %c0_i32_1238 = arith.constant 0 : i32
    %2944 = vector.broadcast %c0_i32_1238 : i32 to vector<4x1xi32>
    %2945 = arith.cmpi sge, %2943, %2944 : vector<4x1xi32>
    %c1_i32_1239 = arith.constant 1 : i32
    %2946 = vector.broadcast %c1_i32_1239 : i32 to vector<4x1xi32>
    %2947 = arith.addi %2827, %2946 : vector<4x1xi32>
    %c1_i32_1240 = arith.constant 1 : i32
    %2948 = vector.broadcast %c1_i32_1240 : i32 to vector<4x1xi32>
    %2949 = arith.cmpi sle, %2947, %2948 : vector<4x1xi32>
    %2950 = arith.andi %2945, %2949 : vector<4x1xi1>
    %2951 = arith.andi %2903, %2950 : vector<4x1xi1>
    %c17_1241 = arith.constant 17 : index
    %c0_1242 = arith.constant 0 : index
    %2952 = vector.load %arg9[%c17_1241, %c0_1242] : memref<96x128xf32, #tpu.memory_space<vmem>>, vector<4x128xf32>
    %cst_1243 = arith.constant 0.000000e+00 : f32
    %2953 = vector.shape_cast %2951 : vector<4x1xi1> to vector<4x1xi1>
    %2954 = vector.broadcast %2953 : vector<4x1xi1> to vector<4x128xi1>
    %2955 = vector.broadcast %cst_1243 : f32 to vector<4x128xf32>
    %2956 = arith.select %2954, %2952, %2955 : vector<4x128xi1>, vector<4x128xf32>
    %2957 = vector.extract_strided_slice %2819 {offsets = [5, 0], sizes = [1, 128], strides = [1, 1]} : vector<9x128xf32> to vector<1x128xf32>
    %2958 = vector.broadcast %2957 : vector<1x128xf32> to vector<4x128xf32>
    %2959 = arith.mulf %2956, %2958 : vector<4x128xf32>
    %2960 = arith.addf %2941, %2959 : vector<4x128xf32>
    %c1_i32_1244 = arith.constant 1 : i32
    %2961 = vector.broadcast %c1_i32_1244 : i32 to vector<4x1xi32>
    %2962 = arith.addi %2825, %2961 : vector<4x1xi32>
    %c0_i32_1245 = arith.constant 0 : i32
    %2963 = vector.broadcast %c0_i32_1245 : i32 to vector<4x1xi32>
    %2964 = arith.cmpi sge, %2962, %2963 : vector<4x1xi32>
    %c1_i32_1246 = arith.constant 1 : i32
    %2965 = vector.broadcast %c1_i32_1246 : i32 to vector<4x1xi32>
    %2966 = arith.addi %2825, %2965 : vector<4x1xi32>
    %c1_i32_1247 = arith.constant 1 : i32
    %2967 = vector.broadcast %c1_i32_1247 : i32 to vector<4x1xi32>
    %2968 = arith.cmpi sle, %2966, %2967 : vector<4x1xi32>
    %2969 = arith.andi %2964, %2968 : vector<4x1xi1>
    %c-1_i32_1248 = arith.constant -1 : i32
    %2970 = vector.broadcast %c-1_i32_1248 : i32 to vector<4x1xi32>
    %2971 = arith.addi %2827, %2970 : vector<4x1xi32>
    %c0_i32_1249 = arith.constant 0 : i32
    %2972 = vector.broadcast %c0_i32_1249 : i32 to vector<4x1xi32>
    %2973 = arith.cmpi sge, %2971, %2972 : vector<4x1xi32>
    %c-1_i32_1250 = arith.constant -1 : i32
    %2974 = vector.broadcast %c-1_i32_1250 : i32 to vector<4x1xi32>
    %2975 = arith.addi %2827, %2974 : vector<4x1xi32>
    %c1_i32_1251 = arith.constant 1 : i32
    %2976 = vector.broadcast %c1_i32_1251 : i32 to vector<4x1xi32>
    %2977 = arith.cmpi sle, %2975, %2976 : vector<4x1xi32>
    %2978 = arith.andi %2973, %2977 : vector<4x1xi1>
    %2979 = arith.andi %2969, %2978 : vector<4x1xi1>
    %c17_1252 = arith.constant 17 : index
    %c0_1253 = arith.constant 0 : index
    %2980 = vector.load %arg9[%c17_1252, %c0_1253] : memref<96x128xf32, #tpu.memory_space<vmem>>, vector<4x128xf32>
    %cst_1254 = arith.constant 0.000000e+00 : f32
    %2981 = vector.shape_cast %2979 : vector<4x1xi1> to vector<4x1xi1>
    %2982 = vector.broadcast %2981 : vector<4x1xi1> to vector<4x128xi1>
    %2983 = vector.broadcast %cst_1254 : f32 to vector<4x128xf32>
    %2984 = arith.select %2982, %2980, %2983 : vector<4x128xi1>, vector<4x128xf32>
    %2985 = vector.extract_strided_slice %2819 {offsets = [6, 0], sizes = [1, 128], strides = [1, 1]} : vector<9x128xf32> to vector<1x128xf32>
    %2986 = vector.broadcast %2985 : vector<1x128xf32> to vector<4x128xf32>
    %2987 = arith.mulf %2984, %2986 : vector<4x128xf32>
    %2988 = arith.addf %2960, %2987 : vector<4x128xf32>
    %c0_i32_1255 = arith.constant 0 : i32
    %2989 = vector.broadcast %c0_i32_1255 : i32 to vector<4x1xi32>
    %2990 = arith.addi %2827, %2989 : vector<4x1xi32>
    %c0_i32_1256 = arith.constant 0 : i32
    %2991 = vector.broadcast %c0_i32_1256 : i32 to vector<4x1xi32>
    %2992 = arith.cmpi sge, %2990, %2991 : vector<4x1xi32>
    %c0_i32_1257 = arith.constant 0 : i32
    %2993 = vector.broadcast %c0_i32_1257 : i32 to vector<4x1xi32>
    %2994 = arith.addi %2827, %2993 : vector<4x1xi32>
    %c1_i32_1258 = arith.constant 1 : i32
    %2995 = vector.broadcast %c1_i32_1258 : i32 to vector<4x1xi32>
    %2996 = arith.cmpi sle, %2994, %2995 : vector<4x1xi32>
    %2997 = arith.andi %2992, %2996 : vector<4x1xi1>
    %2998 = arith.andi %2969, %2997 : vector<4x1xi1>
    %c18_1259 = arith.constant 18 : index
    %c0_1260 = arith.constant 0 : index
    %2999 = vector.load %arg9[%c18_1259, %c0_1260] : memref<96x128xf32, #tpu.memory_space<vmem>>, vector<4x128xf32>
    %cst_1261 = arith.constant 0.000000e+00 : f32
    %3000 = vector.shape_cast %2998 : vector<4x1xi1> to vector<4x1xi1>
    %3001 = vector.broadcast %3000 : vector<4x1xi1> to vector<4x128xi1>
    %3002 = vector.broadcast %cst_1261 : f32 to vector<4x128xf32>
    %3003 = arith.select %3001, %2999, %3002 : vector<4x128xi1>, vector<4x128xf32>
    %3004 = vector.extract_strided_slice %2819 {offsets = [7, 0], sizes = [1, 128], strides = [1, 1]} : vector<9x128xf32> to vector<1x128xf32>
    %3005 = vector.broadcast %3004 : vector<1x128xf32> to vector<4x128xf32>
    %3006 = arith.mulf %3003, %3005 : vector<4x128xf32>
    %3007 = arith.addf %2988, %3006 : vector<4x128xf32>
    %c1_i32_1262 = arith.constant 1 : i32
    %3008 = vector.broadcast %c1_i32_1262 : i32 to vector<4x1xi32>
    %3009 = arith.addi %2827, %3008 : vector<4x1xi32>
    %c0_i32_1263 = arith.constant 0 : i32
    %3010 = vector.broadcast %c0_i32_1263 : i32 to vector<4x1xi32>
    %3011 = arith.cmpi sge, %3009, %3010 : vector<4x1xi32>
    %c1_i32_1264 = arith.constant 1 : i32
    %3012 = vector.broadcast %c1_i32_1264 : i32 to vector<4x1xi32>
    %3013 = arith.addi %2827, %3012 : vector<4x1xi32>
    %c1_i32_1265 = arith.constant 1 : i32
    %3014 = vector.broadcast %c1_i32_1265 : i32 to vector<4x1xi32>
    %3015 = arith.cmpi sle, %3013, %3014 : vector<4x1xi32>
    %3016 = arith.andi %3011, %3015 : vector<4x1xi1>
    %3017 = arith.andi %2969, %3016 : vector<4x1xi1>
    %c19_1266 = arith.constant 19 : index
    %c0_1267 = arith.constant 0 : index
    %3018 = vector.load %arg9[%c19_1266, %c0_1267] : memref<96x128xf32, #tpu.memory_space<vmem>>, vector<4x128xf32>
    %cst_1268 = arith.constant 0.000000e+00 : f32
    %3019 = vector.shape_cast %3017 : vector<4x1xi1> to vector<4x1xi1>
    %3020 = vector.broadcast %3019 : vector<4x1xi1> to vector<4x128xi1>
    %3021 = vector.broadcast %cst_1268 : f32 to vector<4x128xf32>
    %3022 = arith.select %3020, %3018, %3021 : vector<4x128xi1>, vector<4x128xf32>
    %3023 = vector.extract_strided_slice %2819 {offsets = [8, 0], sizes = [1, 128], strides = [1, 1]} : vector<9x128xf32> to vector<1x128xf32>
    %3024 = vector.broadcast %3023 : vector<1x128xf32> to vector<4x128xf32>
    %3025 = arith.mulf %3022, %3024 : vector<4x128xf32>
    %3026 = arith.addf %3007, %3025 : vector<4x128xf32>
    %3027 = vector.broadcast %2820 : vector<1x128xf32> to vector<4x128xf32>
    %3028 = arith.addf %3026, %3027 : vector<4x128xf32>
    %cst_1269 = arith.constant 0.000000e+00 : f32
    %3029 = vector.broadcast %cst_1269 : f32 to vector<4x128xf32>
    %3030 = arith.maximumf %3028, %3029 : vector<4x128xf32>
    %c23_1270 = arith.constant 23 : index
    %c0_1271 = arith.constant 0 : index
    %c0_1272 = arith.constant 0 : index
    %3031 = vector.load %arg4[%c23_1270, %c0_1271, %c0_1272] : memref<26x128x128xbf16, #tpu.memory_space<vmem>>, vector<1x128x32xbf16>
    %3032 = vector.shape_cast %3031 : vector<1x128x32xbf16> to vector<128x32xbf16>
    %3033 = arith.truncf %3030 : vector<4x128xf32> to vector<4x128xbf16>
    %cst_1273 = arith.constant dense<0.000000e+00> : vector<4x32xf32>
    %3034 = tpu.matmul %3033, %3032, %cst_1273 {dimension_numbers = #tpu.dot_dimension_numbers<[1], [0], [0], [1], [0, 0, 1, 1], [], []>} : vector<4x128xbf16>, vector<128x32xbf16>, vector<4x32xf32> -> vector<4x32xf32>
    %c23_1274 = arith.constant 23 : index
    %c0_1275 = arith.constant 0 : index
    %3035 = vector.load %arg5[%c23_1274, %c0_1275] : memref<26x128xf32, #tpu.memory_space<vmem>>, vector<1x32xf32>
    %3036 = vector.broadcast %3035 : vector<1x32xf32> to vector<4x32xf32>
    %3037 = arith.addf %3034, %3036 : vector<4x32xf32>
    %3038 = arith.addf %3037, %2807 : vector<4x32xf32>
    %c24_1276 = arith.constant 24 : index
    %c0_1277 = arith.constant 0 : index
    %c0_1278 = arith.constant 0 : index
    %3039 = vector.load %arg4[%c24_1276, %c0_1277, %c0_1278] : memref<26x128x128xbf16, #tpu.memory_space<vmem>>, vector<1x32x64xbf16>
    %3040 = vector.shape_cast %3039 : vector<1x32x64xbf16> to vector<32x64xbf16>
    %3041 = arith.truncf %3038 : vector<4x32xf32> to vector<4x32xbf16>
    %cst_1279 = arith.constant dense<0.000000e+00> : vector<4x64xf32>
    %3042 = tpu.matmul %3041, %3040, %cst_1279 {dimension_numbers = #tpu.dot_dimension_numbers<[1], [0], [0], [1], [0, 0, 1, 1], [], []>} : vector<4x32xbf16>, vector<32x64xbf16>, vector<4x64xf32> -> vector<4x64xf32>
    %c24_1280 = arith.constant 24 : index
    %c0_1281 = arith.constant 0 : index
    %3043 = vector.load %arg5[%c24_1280, %c0_1281] : memref<26x128xf32, #tpu.memory_space<vmem>>, vector<1x64xf32>
    %3044 = vector.broadcast %3043 : vector<1x64xf32> to vector<4x64xf32>
    %3045 = arith.addf %3042, %3044 : vector<4x64xf32>
    %cst_1282 = arith.constant 0.000000e+00 : f32
    %3046 = vector.broadcast %cst_1282 : f32 to vector<4x64xf32>
    %3047 = arith.maximumf %3045, %3046 : vector<4x64xf32>
    %c16_1283 = arith.constant 16 : index
    %c0_1284 = arith.constant 0 : index
    %3048 = vector.load %arg9[%c16_1283, %c0_1284] : memref<96x128xf32, #tpu.memory_space<vmem>>, vector<4x64xf32>
    tpu.vector_store %arg9[%c16_1283, %c0_1284], %3047 {strides = array<i32>} : memref<96x128xf32, #tpu.memory_space<vmem>>, vector<4x64xf32>,
    %c13_1285 = arith.constant 13 : index
    %c0_1286 = arith.constant 0 : index
    %c0_1287 = arith.constant 0 : index
    %3049 = vector.load %arg6[%c13_1285, %c0_1286, %c0_1287] : memref<14x9x128xf32, #tpu.memory_space<vmem>>, vector<1x9x64xf32>
    %3050 = vector.shape_cast %3049 : vector<1x9x64xf32> to vector<9x64xf32>
    %c13_1288 = arith.constant 13 : index
    %c0_1289 = arith.constant 0 : index
    %3051 = vector.load %arg7[%c13_1288, %c0_1289] : memref<14x128xf32, #tpu.memory_space<vmem>>, vector<1x64xf32>
    %3052 = tpu.iota {dimensions = array<i32: 0>} : vector<4x1xi32>
    %c3_i32_1290 = arith.constant 3 : i32
    %3053 = vector.broadcast %c3_i32_1290 : i32 to vector<4x1xi32>
    %3054 = arith.andi %3052, %3053 : vector<4x1xi32>
    %c1_i32_1291 = arith.constant 1 : i32
    %3055 = vector.broadcast %c1_i32_1291 : i32 to vector<4x1xi32>
    %3056 = arith.shrsi %3054, %3055 : vector<4x1xi32>
    %c1_i32_1292 = arith.constant 1 : i32
    %3057 = vector.broadcast %c1_i32_1292 : i32 to vector<4x1xi32>
    %3058 = arith.andi %3054, %3057 : vector<4x1xi32>
    %cst_1293 = arith.constant 0.000000e+00 : f32
    %3059 = vector.broadcast %cst_1293 : f32 to vector<4x64xf32>
    %c-1_i32_1294 = arith.constant -1 : i32
    %3060 = vector.broadcast %c-1_i32_1294 : i32 to vector<4x1xi32>
    %3061 = arith.addi %3056, %3060 : vector<4x1xi32>
    %c0_i32_1295 = arith.constant 0 : i32
    %3062 = vector.broadcast %c0_i32_1295 : i32 to vector<4x1xi32>
    %3063 = arith.cmpi sge, %3061, %3062 : vector<4x1xi32>
    %c-1_i32_1296 = arith.constant -1 : i32
    %3064 = vector.broadcast %c-1_i32_1296 : i32 to vector<4x1xi32>
    %3065 = arith.addi %3056, %3064 : vector<4x1xi32>
    %c1_i32_1297 = arith.constant 1 : i32
    %3066 = vector.broadcast %c1_i32_1297 : i32 to vector<4x1xi32>
    %3067 = arith.cmpi sle, %3065, %3066 : vector<4x1xi32>
    %3068 = arith.andi %3063, %3067 : vector<4x1xi1>
    %c-1_i32_1298 = arith.constant -1 : i32
    %3069 = vector.broadcast %c-1_i32_1298 : i32 to vector<4x1xi32>
    %3070 = arith.addi %3058, %3069 : vector<4x1xi32>
    %c0_i32_1299 = arith.constant 0 : i32
    %3071 = vector.broadcast %c0_i32_1299 : i32 to vector<4x1xi32>
    %3072 = arith.cmpi sge, %3070, %3071 : vector<4x1xi32>
    %c-1_i32_1300 = arith.constant -1 : i32
    %3073 = vector.broadcast %c-1_i32_1300 : i32 to vector<4x1xi32>
    %3074 = arith.addi %3058, %3073 : vector<4x1xi32>
    %c1_i32_1301 = arith.constant 1 : i32
    %3075 = vector.broadcast %c1_i32_1301 : i32 to vector<4x1xi32>
    %3076 = arith.cmpi sle, %3074, %3075 : vector<4x1xi32>
    %3077 = arith.andi %3072, %3076 : vector<4x1xi1>
    %3078 = arith.andi %3068, %3077 : vector<4x1xi1>
    %c13_1302 = arith.constant 13 : index
    %c0_1303 = arith.constant 0 : index
    %3079 = vector.load %arg9[%c13_1302, %c0_1303] : memref<96x128xf32, #tpu.memory_space<vmem>>, vector<4x64xf32>
    %cst_1304 = arith.constant 0.000000e+00 : f32
    %3080 = vector.shape_cast %3078 : vector<4x1xi1> to vector<4x1xi1>
    %3081 = vector.broadcast %3080 : vector<4x1xi1> to vector<4x64xi1>
    %3082 = vector.broadcast %cst_1304 : f32 to vector<4x64xf32>
    %3083 = arith.select %3081, %3079, %3082 : vector<4x64xi1>, vector<4x64xf32>
    %3084 = vector.extract_strided_slice %3050 {offsets = [0, 0], sizes = [1, 64], strides = [1, 1]} : vector<9x64xf32> to vector<1x64xf32>
    %3085 = vector.broadcast %3084 : vector<1x64xf32> to vector<4x64xf32>
    %3086 = arith.mulf %3083, %3085 : vector<4x64xf32>
    %3087 = arith.addf %3059, %3086 : vector<4x64xf32>
    %c0_i32_1305 = arith.constant 0 : i32
    %3088 = vector.broadcast %c0_i32_1305 : i32 to vector<4x1xi32>
    %3089 = arith.addi %3058, %3088 : vector<4x1xi32>
    %c0_i32_1306 = arith.constant 0 : i32
    %3090 = vector.broadcast %c0_i32_1306 : i32 to vector<4x1xi32>
    %3091 = arith.cmpi sge, %3089, %3090 : vector<4x1xi32>
    %c0_i32_1307 = arith.constant 0 : i32
    %3092 = vector.broadcast %c0_i32_1307 : i32 to vector<4x1xi32>
    %3093 = arith.addi %3058, %3092 : vector<4x1xi32>
    %c1_i32_1308 = arith.constant 1 : i32
    %3094 = vector.broadcast %c1_i32_1308 : i32 to vector<4x1xi32>
    %3095 = arith.cmpi sle, %3093, %3094 : vector<4x1xi32>
    %3096 = arith.andi %3091, %3095 : vector<4x1xi1>
    %3097 = arith.andi %3068, %3096 : vector<4x1xi1>
    %c14_1309 = arith.constant 14 : index
    %c0_1310 = arith.constant 0 : index
    %3098 = vector.load %arg9[%c14_1309, %c0_1310] : memref<96x128xf32, #tpu.memory_space<vmem>>, vector<4x64xf32>
    %cst_1311 = arith.constant 0.000000e+00 : f32
    %3099 = vector.shape_cast %3097 : vector<4x1xi1> to vector<4x1xi1>
    %3100 = vector.broadcast %3099 : vector<4x1xi1> to vector<4x64xi1>
    %3101 = vector.broadcast %cst_1311 : f32 to vector<4x64xf32>
    %3102 = arith.select %3100, %3098, %3101 : vector<4x64xi1>, vector<4x64xf32>
    %3103 = vector.extract_strided_slice %3050 {offsets = [1, 0], sizes = [1, 64], strides = [1, 1]} : vector<9x64xf32> to vector<1x64xf32>
    %3104 = vector.broadcast %3103 : vector<1x64xf32> to vector<4x64xf32>
    %3105 = arith.mulf %3102, %3104 : vector<4x64xf32>
    %3106 = arith.addf %3087, %3105 : vector<4x64xf32>
    %c1_i32_1312 = arith.constant 1 : i32
    %3107 = vector.broadcast %c1_i32_1312 : i32 to vector<4x1xi32>
    %3108 = arith.addi %3058, %3107 : vector<4x1xi32>
    %c0_i32_1313 = arith.constant 0 : i32
    %3109 = vector.broadcast %c0_i32_1313 : i32 to vector<4x1xi32>
    %3110 = arith.cmpi sge, %3108, %3109 : vector<4x1xi32>
    %c1_i32_1314 = arith.constant 1 : i32
    %3111 = vector.broadcast %c1_i32_1314 : i32 to vector<4x1xi32>
    %3112 = arith.addi %3058, %3111 : vector<4x1xi32>
    %c1_i32_1315 = arith.constant 1 : i32
    %3113 = vector.broadcast %c1_i32_1315 : i32 to vector<4x1xi32>
    %3114 = arith.cmpi sle, %3112, %3113 : vector<4x1xi32>
    %3115 = arith.andi %3110, %3114 : vector<4x1xi1>
    %3116 = arith.andi %3068, %3115 : vector<4x1xi1>
    %c15_1316 = arith.constant 15 : index
    %c0_1317 = arith.constant 0 : index
    %3117 = vector.load %arg9[%c15_1316, %c0_1317] : memref<96x128xf32, #tpu.memory_space<vmem>>, vector<4x64xf32>
    %cst_1318 = arith.constant 0.000000e+00 : f32
    %3118 = vector.shape_cast %3116 : vector<4x1xi1> to vector<4x1xi1>
    %3119 = vector.broadcast %3118 : vector<4x1xi1> to vector<4x64xi1>
    %3120 = vector.broadcast %cst_1318 : f32 to vector<4x64xf32>
    %3121 = arith.select %3119, %3117, %3120 : vector<4x64xi1>, vector<4x64xf32>
    %3122 = vector.extract_strided_slice %3050 {offsets = [2, 0], sizes = [1, 64], strides = [1, 1]} : vector<9x64xf32> to vector<1x64xf32>
    %3123 = vector.broadcast %3122 : vector<1x64xf32> to vector<4x64xf32>
    %3124 = arith.mulf %3121, %3123 : vector<4x64xf32>
    %3125 = arith.addf %3106, %3124 : vector<4x64xf32>
    %c0_i32_1319 = arith.constant 0 : i32
    %3126 = vector.broadcast %c0_i32_1319 : i32 to vector<4x1xi32>
    %3127 = arith.addi %3056, %3126 : vector<4x1xi32>
    %c0_i32_1320 = arith.constant 0 : i32
    %3128 = vector.broadcast %c0_i32_1320 : i32 to vector<4x1xi32>
    %3129 = arith.cmpi sge, %3127, %3128 : vector<4x1xi32>
    %c0_i32_1321 = arith.constant 0 : i32
    %3130 = vector.broadcast %c0_i32_1321 : i32 to vector<4x1xi32>
    %3131 = arith.addi %3056, %3130 : vector<4x1xi32>
    %c1_i32_1322 = arith.constant 1 : i32
    %3132 = vector.broadcast %c1_i32_1322 : i32 to vector<4x1xi32>
    %3133 = arith.cmpi sle, %3131, %3132 : vector<4x1xi32>
    %3134 = arith.andi %3129, %3133 : vector<4x1xi1>
    %c-1_i32_1323 = arith.constant -1 : i32
    %3135 = vector.broadcast %c-1_i32_1323 : i32 to vector<4x1xi32>
    %3136 = arith.addi %3058, %3135 : vector<4x1xi32>
    %c0_i32_1324 = arith.constant 0 : i32
    %3137 = vector.broadcast %c0_i32_1324 : i32 to vector<4x1xi32>
    %3138 = arith.cmpi sge, %3136, %3137 : vector<4x1xi32>
    %c-1_i32_1325 = arith.constant -1 : i32
    %3139 = vector.broadcast %c-1_i32_1325 : i32 to vector<4x1xi32>
    %3140 = arith.addi %3058, %3139 : vector<4x1xi32>
    %c1_i32_1326 = arith.constant 1 : i32
    %3141 = vector.broadcast %c1_i32_1326 : i32 to vector<4x1xi32>
    %3142 = arith.cmpi sle, %3140, %3141 : vector<4x1xi32>
    %3143 = arith.andi %3138, %3142 : vector<4x1xi1>
    %3144 = arith.andi %3134, %3143 : vector<4x1xi1>
    %c15_1327 = arith.constant 15 : index
    %c0_1328 = arith.constant 0 : index
    %3145 = vector.load %arg9[%c15_1327, %c0_1328] : memref<96x128xf32, #tpu.memory_space<vmem>>, vector<4x64xf32>
    %cst_1329 = arith.constant 0.000000e+00 : f32
    %3146 = vector.shape_cast %3144 : vector<4x1xi1> to vector<4x1xi1>
    %3147 = vector.broadcast %3146 : vector<4x1xi1> to vector<4x64xi1>
    %3148 = vector.broadcast %cst_1329 : f32 to vector<4x64xf32>
    %3149 = arith.select %3147, %3145, %3148 : vector<4x64xi1>, vector<4x64xf32>
    %3150 = vector.extract_strided_slice %3050 {offsets = [3, 0], sizes = [1, 64], strides = [1, 1]} : vector<9x64xf32> to vector<1x64xf32>
    %3151 = vector.broadcast %3150 : vector<1x64xf32> to vector<4x64xf32>
    %3152 = arith.mulf %3149, %3151 : vector<4x64xf32>
    %3153 = arith.addf %3125, %3152 : vector<4x64xf32>
    %c0_i32_1330 = arith.constant 0 : i32
    %3154 = vector.broadcast %c0_i32_1330 : i32 to vector<4x1xi32>
    %3155 = arith.addi %3058, %3154 : vector<4x1xi32>
    %c0_i32_1331 = arith.constant 0 : i32
    %3156 = vector.broadcast %c0_i32_1331 : i32 to vector<4x1xi32>
    %3157 = arith.cmpi sge, %3155, %3156 : vector<4x1xi32>
    %c0_i32_1332 = arith.constant 0 : i32
    %3158 = vector.broadcast %c0_i32_1332 : i32 to vector<4x1xi32>
    %3159 = arith.addi %3058, %3158 : vector<4x1xi32>
    %c1_i32_1333 = arith.constant 1 : i32
    %3160 = vector.broadcast %c1_i32_1333 : i32 to vector<4x1xi32>
    %3161 = arith.cmpi sle, %3159, %3160 : vector<4x1xi32>
    %3162 = arith.andi %3157, %3161 : vector<4x1xi1>
    %3163 = arith.andi %3134, %3162 : vector<4x1xi1>
    %c16_1334 = arith.constant 16 : index
    %c0_1335 = arith.constant 0 : index
    %3164 = vector.load %arg9[%c16_1334, %c0_1335] : memref<96x128xf32, #tpu.memory_space<vmem>>, vector<4x64xf32>
    %cst_1336 = arith.constant 0.000000e+00 : f32
    %3165 = vector.shape_cast %3163 : vector<4x1xi1> to vector<4x1xi1>
    %3166 = vector.broadcast %3165 : vector<4x1xi1> to vector<4x64xi1>
    %3167 = vector.broadcast %cst_1336 : f32 to vector<4x64xf32>
    %3168 = arith.select %3166, %3164, %3167 : vector<4x64xi1>, vector<4x64xf32>
    %3169 = vector.extract_strided_slice %3050 {offsets = [4, 0], sizes = [1, 64], strides = [1, 1]} : vector<9x64xf32> to vector<1x64xf32>
    %3170 = vector.broadcast %3169 : vector<1x64xf32> to vector<4x64xf32>
    %3171 = arith.mulf %3168, %3170 : vector<4x64xf32>
    %3172 = arith.addf %3153, %3171 : vector<4x64xf32>
    %c1_i32_1337 = arith.constant 1 : i32
    %3173 = vector.broadcast %c1_i32_1337 : i32 to vector<4x1xi32>
    %3174 = arith.addi %3058, %3173 : vector<4x1xi32>
    %c0_i32_1338 = arith.constant 0 : i32
    %3175 = vector.broadcast %c0_i32_1338 : i32 to vector<4x1xi32>
    %3176 = arith.cmpi sge, %3174, %3175 : vector<4x1xi32>
    %c1_i32_1339 = arith.constant 1 : i32
    %3177 = vector.broadcast %c1_i32_1339 : i32 to vector<4x1xi32>
    %3178 = arith.addi %3058, %3177 : vector<4x1xi32>
    %c1_i32_1340 = arith.constant 1 : i32
    %3179 = vector.broadcast %c1_i32_1340 : i32 to vector<4x1xi32>
    %3180 = arith.cmpi sle, %3178, %3179 : vector<4x1xi32>
    %3181 = arith.andi %3176, %3180 : vector<4x1xi1>
    %3182 = arith.andi %3134, %3181 : vector<4x1xi1>
    %c17_1341 = arith.constant 17 : index
    %c0_1342 = arith.constant 0 : index
    %3183 = vector.load %arg9[%c17_1341, %c0_1342] : memref<96x128xf32, #tpu.memory_space<vmem>>, vector<4x64xf32>
    %cst_1343 = arith.constant 0.000000e+00 : f32
    %3184 = vector.shape_cast %3182 : vector<4x1xi1> to vector<4x1xi1>
    %3185 = vector.broadcast %3184 : vector<4x1xi1> to vector<4x64xi1>
    %3186 = vector.broadcast %cst_1343 : f32 to vector<4x64xf32>
    %3187 = arith.select %3185, %3183, %3186 : vector<4x64xi1>, vector<4x64xf32>
    %3188 = vector.extract_strided_slice %3050 {offsets = [5, 0], sizes = [1, 64], strides = [1, 1]} : vector<9x64xf32> to vector<1x64xf32>
    %3189 = vector.broadcast %3188 : vector<1x64xf32> to vector<4x64xf32>
    %3190 = arith.mulf %3187, %3189 : vector<4x64xf32>
    %3191 = arith.addf %3172, %3190 : vector<4x64xf32>
    %c1_i32_1344 = arith.constant 1 : i32
    %3192 = vector.broadcast %c1_i32_1344 : i32 to vector<4x1xi32>
    %3193 = arith.addi %3056, %3192 : vector<4x1xi32>
    %c0_i32_1345 = arith.constant 0 : i32
    %3194 = vector.broadcast %c0_i32_1345 : i32 to vector<4x1xi32>
    %3195 = arith.cmpi sge, %3193, %3194 : vector<4x1xi32>
    %c1_i32_1346 = arith.constant 1 : i32
    %3196 = vector.broadcast %c1_i32_1346 : i32 to vector<4x1xi32>
    %3197 = arith.addi %3056, %3196 : vector<4x1xi32>
    %c1_i32_1347 = arith.constant 1 : i32
    %3198 = vector.broadcast %c1_i32_1347 : i32 to vector<4x1xi32>
    %3199 = arith.cmpi sle, %3197, %3198 : vector<4x1xi32>
    %3200 = arith.andi %3195, %3199 : vector<4x1xi1>
    %c-1_i32_1348 = arith.constant -1 : i32
    %3201 = vector.broadcast %c-1_i32_1348 : i32 to vector<4x1xi32>
    %3202 = arith.addi %3058, %3201 : vector<4x1xi32>
    %c0_i32_1349 = arith.constant 0 : i32
    %3203 = vector.broadcast %c0_i32_1349 : i32 to vector<4x1xi32>
    %3204 = arith.cmpi sge, %3202, %3203 : vector<4x1xi32>
    %c-1_i32_1350 = arith.constant -1 : i32
    %3205 = vector.broadcast %c-1_i32_1350 : i32 to vector<4x1xi32>
    %3206 = arith.addi %3058, %3205 : vector<4x1xi32>
    %c1_i32_1351 = arith.constant 1 : i32
    %3207 = vector.broadcast %c1_i32_1351 : i32 to vector<4x1xi32>
    %3208 = arith.cmpi sle, %3206, %3207 : vector<4x1xi32>
    %3209 = arith.andi %3204, %3208 : vector<4x1xi1>
    %3210 = arith.andi %3200, %3209 : vector<4x1xi1>
    %c17_1352 = arith.constant 17 : index
    %c0_1353 = arith.constant 0 : index
    %3211 = vector.load %arg9[%c17_1352, %c0_1353] : memref<96x128xf32, #tpu.memory_space<vmem>>, vector<4x64xf32>
    %cst_1354 = arith.constant 0.000000e+00 : f32
    %3212 = vector.shape_cast %3210 : vector<4x1xi1> to vector<4x1xi1>
    %3213 = vector.broadcast %3212 : vector<4x1xi1> to vector<4x64xi1>
    %3214 = vector.broadcast %cst_1354 : f32 to vector<4x64xf32>
    %3215 = arith.select %3213, %3211, %3214 : vector<4x64xi1>, vector<4x64xf32>
    %3216 = vector.extract_strided_slice %3050 {offsets = [6, 0], sizes = [1, 64], strides = [1, 1]} : vector<9x64xf32> to vector<1x64xf32>
    %3217 = vector.broadcast %3216 : vector<1x64xf32> to vector<4x64xf32>
    %3218 = arith.mulf %3215, %3217 : vector<4x64xf32>
    %3219 = arith.addf %3191, %3218 : vector<4x64xf32>
    %c0_i32_1355 = arith.constant 0 : i32
    %3220 = vector.broadcast %c0_i32_1355 : i32 to vector<4x1xi32>
    %3221 = arith.addi %3058, %3220 : vector<4x1xi32>
    %c0_i32_1356 = arith.constant 0 : i32
    %3222 = vector.broadcast %c0_i32_1356 : i32 to vector<4x1xi32>
    %3223 = arith.cmpi sge, %3221, %3222 : vector<4x1xi32>
    %c0_i32_1357 = arith.constant 0 : i32
    %3224 = vector.broadcast %c0_i32_1357 : i32 to vector<4x1xi32>
    %3225 = arith.addi %3058, %3224 : vector<4x1xi32>
    %c1_i32_1358 = arith.constant 1 : i32
    %3226 = vector.broadcast %c1_i32_1358 : i32 to vector<4x1xi32>
    %3227 = arith.cmpi sle, %3225, %3226 : vector<4x1xi32>
    %3228 = arith.andi %3223, %3227 : vector<4x1xi1>
    %3229 = arith.andi %3200, %3228 : vector<4x1xi1>
    %c18_1359 = arith.constant 18 : index
    %c0_1360 = arith.constant 0 : index
    %3230 = vector.load %arg9[%c18_1359, %c0_1360] : memref<96x128xf32, #tpu.memory_space<vmem>>, vector<4x64xf32>
    %cst_1361 = arith.constant 0.000000e+00 : f32
    %3231 = vector.shape_cast %3229 : vector<4x1xi1> to vector<4x1xi1>
    %3232 = vector.broadcast %3231 : vector<4x1xi1> to vector<4x64xi1>
    %3233 = vector.broadcast %cst_1361 : f32 to vector<4x64xf32>
    %3234 = arith.select %3232, %3230, %3233 : vector<4x64xi1>, vector<4x64xf32>
    %3235 = vector.extract_strided_slice %3050 {offsets = [7, 0], sizes = [1, 64], strides = [1, 1]} : vector<9x64xf32> to vector<1x64xf32>
    %3236 = vector.broadcast %3235 : vector<1x64xf32> to vector<4x64xf32>
    %3237 = arith.mulf %3234, %3236 : vector<4x64xf32>
    %3238 = arith.addf %3219, %3237 : vector<4x64xf32>
    %c1_i32_1362 = arith.constant 1 : i32
    %3239 = vector.broadcast %c1_i32_1362 : i32 to vector<4x1xi32>
    %3240 = arith.addi %3058, %3239 : vector<4x1xi32>
    %c0_i32_1363 = arith.constant 0 : i32
    %3241 = vector.broadcast %c0_i32_1363 : i32 to vector<4x1xi32>
    %3242 = arith.cmpi sge, %3240, %3241 : vector<4x1xi32>
    %c1_i32_1364 = arith.constant 1 : i32
    %3243 = vector.broadcast %c1_i32_1364 : i32 to vector<4x1xi32>
    %3244 = arith.addi %3058, %3243 : vector<4x1xi32>
    %c1_i32_1365 = arith.constant 1 : i32
    %3245 = vector.broadcast %c1_i32_1365 : i32 to vector<4x1xi32>
    %3246 = arith.cmpi sle, %3244, %3245 : vector<4x1xi32>
    %3247 = arith.andi %3242, %3246 : vector<4x1xi1>
    %3248 = arith.andi %3200, %3247 : vector<4x1xi1>
    %c19_1366 = arith.constant 19 : index
    %c0_1367 = arith.constant 0 : index
    %3249 = vector.load %arg9[%c19_1366, %c0_1367] : memref<96x128xf32, #tpu.memory_space<vmem>>, vector<4x64xf32>
    %cst_1368 = arith.constant 0.000000e+00 : f32
    %3250 = vector.shape_cast %3248 : vector<4x1xi1> to vector<4x1xi1>
    %3251 = vector.broadcast %3250 : vector<4x1xi1> to vector<4x64xi1>
    %3252 = vector.broadcast %cst_1368 : f32 to vector<4x64xf32>
    %3253 = arith.select %3251, %3249, %3252 : vector<4x64xi1>, vector<4x64xf32>
    %3254 = vector.extract_strided_slice %3050 {offsets = [8, 0], sizes = [1, 64], strides = [1, 1]} : vector<9x64xf32> to vector<1x64xf32>
    %3255 = vector.broadcast %3254 : vector<1x64xf32> to vector<4x64xf32>
    %3256 = arith.mulf %3253, %3255 : vector<4x64xf32>
    %3257 = arith.addf %3238, %3256 : vector<4x64xf32>
    %3258 = vector.broadcast %3051 : vector<1x64xf32> to vector<4x64xf32>
    %3259 = arith.addf %3257, %3258 : vector<4x64xf32>
    %cst_1369 = arith.constant 0.000000e+00 : f32
    %3260 = vector.broadcast %cst_1369 : f32 to vector<4x64xf32>
    %3261 = arith.maximumf %3259, %3260 : vector<4x64xf32>
    %c25_1370 = arith.constant 25 : index
    %c0_1371 = arith.constant 0 : index
    %c0_1372 = arith.constant 0 : index
    %3262 = vector.load %arg4[%c25_1370, %c0_1371, %c0_1372] : memref<26x128x128xbf16, #tpu.memory_space<vmem>>, vector<1x64x16xbf16>
    %3263 = vector.shape_cast %3262 : vector<1x64x16xbf16> to vector<64x16xbf16>
    %3264 = arith.truncf %3261 : vector<4x64xf32> to vector<4x64xbf16>
    %cst_1373 = arith.constant dense<0.000000e+00> : vector<4x16xf32>
    %3265 = tpu.matmul %3264, %3263, %cst_1373 {dimension_numbers = #tpu.dot_dimension_numbers<[1], [0], [0], [1], [0, 0, 1, 1], [], []>} : vector<4x64xbf16>, vector<64x16xbf16>, vector<4x16xf32> -> vector<4x16xf32>
    %c25_1374 = arith.constant 25 : index
    %c0_1375 = arith.constant 0 : index
    %3266 = vector.load %arg5[%c25_1374, %c0_1375] : memref<26x128xf32, #tpu.memory_space<vmem>>, vector<1x16xf32>
    %3267 = vector.broadcast %3266 : vector<1x16xf32> to vector<4x16xf32>
    %3268 = arith.addf %3265, %3267 : vector<4x16xf32>
    %c0_1376 = arith.constant 0 : index
    %c0_1377 = arith.constant 0 : index
    %c0_1378 = arith.constant 0 : index
    %3269 = vector.load %arg8[%c0_1376, %c0_1377, %c0_1378] : memref<1x4x16xf32, #tpu.memory_space<vmem>>, vector<1x4x16xf32>
    %3270 = vector.shape_cast %3269 : vector<1x4x16xf32> to vector<4x16xf32>
    %3271 = vector.shape_cast %3268 : vector<4x16xf32> to vector<1x4x16xf32>
    tpu.vector_store %arg8[%c0_1376, %c0_1377, %c0_1378], %3271 {strides = array<i32>} : memref<1x4x16xf32, #tpu.memory_space<vmem>>, vector<1x4x16xf32>,
    return
  }
  func.func @transform_0(%arg0: i32) -> (i32, i32, i32) {
    %c0_i32 = arith.constant 0 : i32
    %c0_i32_0 = arith.constant 0 : i32
    %c0_i32_1 = arith.constant 0 : i32
    return %arg0, %c0_i32, %c0_i32_0 : i32, i32, i32
  }
  func.func @transform_1(%arg0: i32) -> (i32, i32) {
    %c0_i32 = arith.constant 0 : i32
    %c0_i32_0 = arith.constant 0 : i32
    %c0_i32_1 = arith.constant 0 : i32
    return %c0_i32, %c0_i32_0 : i32, i32
  }
  func.func @transform_2(%arg0: i32) -> (i32, i32) {
    %c0_i32 = arith.constant 0 : i32
    %c0_i32_0 = arith.constant 0 : i32
    %c0_i32_1 = arith.constant 0 : i32
    return %c0_i32, %c0_i32_0 : i32, i32
  }
  func.func @transform_3(%arg0: i32) -> (i32, i32, i32) {
    %c0_i32 = arith.constant 0 : i32
    %c0_i32_0 = arith.constant 0 : i32
    %c0_i32_1 = arith.constant 0 : i32
    %c0_i32_2 = arith.constant 0 : i32
    return %c0_i32, %c0_i32_0, %c0_i32_1 : i32, i32, i32
  }
  func.func @transform_4(%arg0: i32) -> (i32, i32) {
    %c0_i32 = arith.constant 0 : i32
    %c0_i32_0 = arith.constant 0 : i32
    %c0_i32_1 = arith.constant 0 : i32
    return %c0_i32, %c0_i32_0 : i32, i32
  }
  func.func @transform_5(%arg0: i32) -> (i32, i32, i32) {
    %c0_i32 = arith.constant 0 : i32
    %c0_i32_0 = arith.constant 0 : i32
    %c0_i32_1 = arith.constant 0 : i32
    %c0_i32_2 = arith.constant 0 : i32
    return %c0_i32, %c0_i32_0, %c0_i32_1 : i32, i32, i32
  }
  func.func @transform_6(%arg0: i32) -> (i32, i32) {
    %c0_i32 = arith.constant 0 : i32
    %c0_i32_0 = arith.constant 0 : i32
    %c0_i32_1 = arith.constant 0 : i32
    return %c0_i32, %c0_i32_0 : i32, i32
  }
  func.func @transform_7(%arg0: i32) -> (i32, i32, i32) {
    %c0_i32 = arith.constant 0 : i32
    %c0_i32_0 = arith.constant 0 : i32
    %c0_i32_1 = arith.constant 0 : i32
    return %arg0, %c0_i32, %c0_i32_0 : i32, i32, i32
  }
}

</mosaic_0001>

<llo_original>
// kernel: forward.1
$region0: #{forward.1}
  #allocation0 [shape = 'u32[]', space=smem, size = 0x4, offset = 0x4, fixed_abs, tag = 'smem constant byte address 0x4 - core index']
  #allocation1 [shape = 'u32[72,128]{1,0:T(1,128)}', space=vmem, size = 0x9000, scoped, tag = 'internal scratch']
  #allocation2 [shape = 'f32[96,128]{1,0:T(8,128)}', space=vmem, size = 0xc000, scoped, tag = 'scratch operand']
  %s0 = inlined_call_operand.vmem [shape: f32[2,64,27], index: 0, kind: input, shape index: {}]
  %s1 = inlined_call_operand.vmem [shape: f32[27,32], index: 1, kind: input, shape index: {}]
  %s2 = inlined_call_operand.vmem [shape: f32[1,32], index: 2, kind: input, shape index: {}]
  %s3 = inlined_call_operand.vmem [shape: bf16[26,128,128], index: 3, kind: input, shape index: {}]
  %s4 = inlined_call_operand.vmem [shape: f32[26,128], index: 4, kind: input, shape index: {}]
  %s5 = inlined_call_operand.vmem [shape: f32[14,9,128], index: 5, kind: input, shape index: {}]
  %s6 = inlined_call_operand.vmem [shape: f32[14,128], index: 6, kind: input, shape index: {}]
  %s7 = inlined_call_operand.hbm [shape: f32[2,4,16], index: 7, kind: output, shape index: {}]
  %s8 = sld [smem:[#allocation0]]
  $region61: #{forward.1} parent=0
    _
  %s10 = ssub.s32 1, %s8
  %s11 = scalar_select 0, %s10, %s8
  $region1: #{forward.1} parent=0
    #allocation3 [shape = 'u8[4096]{0}', space=vmem, size = 0x1000, scoped, tag = 'output window, operand 0']
    #allocation4 [shape = 's32[2]{0}', space=sflag, size = 0x8, scoped, tag = 'scoped memory for forward.1']
    %12 = vsyncpa [#allocation4], 0
    %s13 = scalar_lea.sflag [#allocation4], 1
    %14 = vsyncpa %s13, 0
    loop: start=0, step=1, limit=4
    $region2: #{forward.1} parent=1 // loop_pre_header
      _
    $region3: #{forward.1} parent=1 // loop_header
      %s16 = sphi 0, %s20
      %p17 = scmp.ge.s32.totalorder %s16, 4
      %s26 = sphi 0, %s28
      %s29 = sphi 0, %s26
      %s30 = sphi 0, %s29
      %s46 = sphi 0, %s30
      %s50 = sphi 0, %s50
      %s52 = sphi 0, %s50
      %s53 = sphi 0, %s52
      %s67 = sphi 0, %s53
      %s71 = sphi 0, %s71
      %s73 = sphi 0, %s71
      %s74 = sphi 0, %s73
      %s88 = sphi 0, %s74
      %s92 = sphi 0, %s92
      %s94 = sphi 0, %s92
      %s95 = sphi 0, %s94
      %s109 = sphi 0, %s95
      %s113 = sphi 0, %s113
      %s115 = sphi 0, %s113
      %s116 = sphi 0, %s115
      %s130 = sphi 0, %s116
      %s134 = sphi 0, %s134
      %s136 = sphi 0, %s134
      %s137 = sphi 0, %s136
      %s151 = sphi 0, %s137
      %s155 = sphi 0, %s155
      %s157 = sphi 0, %s155
      %s158 = sphi 0, %s157
      %s172 = sphi 0, %s158
      %s178 = sphi 0, %s180
      %s181 = sphi 0, %s178
      %s182 = sphi 0, %s181
      %s198 = sphi 0, %s182
    $region4: #{forward.1} parent=1 // loop_header_branch
      %19 = sbr.rel (%p17) target = $region8
    $region5: #{forward.1} parent=1 // loop_body
      %s21 = ssub.s32 %s16, 1
      %s22 = ssub.s32 %s16, 2
      %s23 = sadd.s32 %s16, 1
      %s24 = ssub.s32 %s16, %s23
      %p25 = scmp.eq.s32.totalorder %s24, 0
      %s27 = sadd.s32 %s26, 1
      %s28 = scalar_select %p25, %s26, %s27
      %p31 = pneg %p25
      %p32 = scmp.eq.s32.totalorder %s16, 1
      %p33 = por %p31, %p32
      %p34 = scmp.ne.s32.totalorder %s26, %s29
      %p35 = scmp.eq.s32.totalorder %s16, 0
      %p36 = por %p34, %p35
      %p37 = scmp.ne.s32.totalorder %s26, %s29
      %p38 = scmp.eq.s32.totalorder %s21, 1
      %p39 = por %p37, %p38
      %p40 = scmp.ne.s32.totalorder %s29, %s30
      %p41 = scmp.eq.s32.totalorder %s21, 0
      %p42 = por %p40, %p41
      %p43 = scmp.ne.s32.totalorder %s29, %s30
      %p44 = scmp.eq.s32.totalorder %s22, 1
      %p45 = por %p43, %p44
      %p47 = scmp.ne.s32.totalorder %s30, %s46
      %p48 = scmp.eq.s32.totalorder %s22, 0
      %p49 = por %p47, %p48
      %s51 = sadd.s32 %s50, 1
      %p54 = scmp.eq.s32.totalorder %s16, 1
      %p55 = scmp.ne.s32.totalorder %s50, %s52
      %p56 = scmp.eq.s32.totalorder %s16, 0
      %p57 = por %p55, %p56
      %p58 = scmp.ne.s32.totalorder %s50, %s52
      %p59 = scmp.eq.s32.totalorder %s21, 1
      %p60 = por %p58, %p59
      %p61 = scmp.ne.s32.totalorder %s52, %s53
      %p62 = scmp.eq.s32.totalorder %s21, 0
      %p63 = por %p61, %p62
      %p64 = scmp.ne.s32.totalorder %s52, %s53
      %p65 = scmp.eq.s32.totalorder %s22, 1
      %p66 = por %p64, %p65
      %p68 = scmp.ne.s32.totalorder %s53, %s67
      %p69 = scmp.eq.s32.totalorder %s22, 0
      %p70 = por %p68, %p69
      %s72 = sadd.s32 %s71, 1
      %p75 = scmp.eq.s32.totalorder %s16, 1
      %p76 = scmp.ne.s32.totalorder %s71, %s73
      %p77 = scmp.eq.s32.totalorder %s16, 0
      %p78 = por %p76, %p77
      %p79 = scmp.ne.s32.totalorder %s71, %s73
      %p80 = scmp.eq.s32.totalorder %s21, 1
      %p81 = por %p79, %p80
      %p82 = scmp.ne.s32.totalorder %s73, %s74
      %p83 = scmp.eq.s32.totalorder %s21, 0
      %p84 = por %p82, %p83
      %p85 = scmp.ne.s32.totalorder %s73, %s74
      %p86 = scmp.eq.s32.totalorder %s22, 1
      %p87 = por %p85, %p86
      %p89 = scmp.ne.s32.totalorder %s74, %s88
      %p90 = scmp.eq.s32.totalorder %s22, 0
      %p91 = por %p89, %p90
      %s93 = sadd.s32 %s92, 1
      %p96 = scmp.eq.s32.totalorder %s16, 1
      %p97 = scmp.ne.s32.totalorder %s92, %s94
      %p98 = scmp.eq.s32.totalorder %s16, 0
      %p99 = por %p97, %p98
      %p100 = scmp.ne.s32.totalorder %s92, %s94
      %p101 = scmp.eq.s32.totalorder %s21, 1
      %p102 = por %p100, %p101
      %p103 = scmp.ne.s32.totalorder %s94, %s95
      %p104 = scmp.eq.s32.totalorder %s21, 0
      %p105 = por %p103, %p104
      %p106 = scmp.ne.s32.totalorder %s94, %s95
      %p107 = scmp.eq.s32.totalorder %s22, 1
      %p108 = por %p106, %p107
      %p110 = scmp.ne.s32.totalorder %s95, %s109
      %p111 = scmp.eq.s32.totalorder %s22, 0
      %p112 = por %p110, %p111
      %s114 = sadd.s32 %s113, 1
      %p117 = scmp.eq.s32.totalorder %s16, 1
      %p118 = scmp.ne.s32.totalorder %s113, %s115
      %p119 = scmp.eq.s32.totalorder %s16, 0
      %p120 = por %p118, %p119
      %p121 = scmp.ne.s32.totalorder %s113, %s115
      %p122 = scmp.eq.s32.totalorder %s21, 1
      %p123 = por %p121, %p122
      %p124 = scmp.ne.s32.totalorder %s115, %s116
      %p125 = scmp.eq.s32.totalorder %s21, 0
      %p126 = por %p124, %p125
      %p127 = scmp.ne.s32.totalorder %s115, %s116
      %p128 = scmp.eq.s32.totalorder %s22, 1
      %p129 = por %p127, %p128
      %p131 = scmp.ne.s32.totalorder %s116, %s130
      %p132 = scmp.eq.s32.totalorder %s22, 0
      %p133 = por %p131, %p132
      %s135 = sadd.s32 %s134, 1
      %p138 = scmp.eq.s32.totalorder %s16, 1
      %p139 = scmp.ne.s32.totalorder %s134, %s136
      %p140 = scmp.eq.s32.totalorder %s16, 0
      %p141 = por %p139, %p140
      %p142 = scmp.ne.s32.totalorder %s134, %s136
      %p143 = scmp.eq.s32.totalorder %s21, 1
      %p144 = por %p142, %p143
      %p145 = scmp.ne.s32.totalorder %s136, %s137
      %p146 = scmp.eq.s32.totalorder %s21, 0
      %p147 = por %p145, %p146
      %p148 = scmp.ne.s32.totalorder %s136, %s137
      %p149 = scmp.eq.s32.totalorder %s22, 1
      %p150 = por %p148, %p149
      %p152 = scmp.ne.s32.totalorder %s137, %s151
      %p153 = scmp.eq.s32.totalorder %s22, 0
      %p154 = por %p152, %p153
      %s156 = sadd.s32 %s155, 1
      %p159 = scmp.eq.s32.totalorder %s16, 1
      %p160 = scmp.ne.s32.totalorder %s155, %s157
      %p161 = scmp.eq.s32.totalorder %s16, 0
      %p162 = por %p160, %p161
      %p163 = scmp.ne.s32.totalorder %s155, %s157
      %p164 = scmp.eq.s32.totalorder %s21, 1
      %p165 = por %p163, %p164
      %p166 = scmp.ne.s32.totalorder %s157, %s158
      %p167 = scmp.eq.s32.totalorder %s21, 0
      %p168 = por %p166, %p167
      %p169 = scmp.ne.s32.totalorder %s157, %s158
      %p170 = scmp.eq.s32.totalorder %s22, 1
      %p171 = por %p169, %p170
      %p173 = scmp.ne.s32.totalorder %s158, %s172
      %p174 = scmp.eq.s32.totalorder %s22, 0
      %p175 = por %p173, %p174
      %s176 = ssub.s32 %s16, %s23
      %p177 = scmp.eq.s32.totalorder %s176, 0
      %s179 = sadd.s32 %s178, 1
      %s180 = scalar_select %p177, %s178, %s179
      %p183 = pneg %p177
      %p184 = scmp.eq.s32.totalorder %s16, 1
      %p185 = por %p183, %p184
      %p186 = scmp.ne.s32.totalorder %s178, %s181
      %p187 = scmp.eq.s32.totalorder %s16, 0
      %p188 = por %p186, %p187
      %p189 = scmp.ne.s32.totalorder %s178, %s181
      %p190 = scmp.eq.s32.totalorder %s21, 1
      %p191 = por %p189, %p190
      %p192 = scmp.ne.s32.totalorder %s181, %s182
      %p193 = scmp.eq.s32.totalorder %s21, 0
      %p194 = por %p192, %p193
      %p195 = scmp.ne.s32.totalorder %s181, %s182
      %p196 = scmp.eq.s32.totalorder %s22, 1
      %p197 = por %p195, %p196
      %p199 = scmp.ne.s32.totalorder %s182, %s198
      %p200 = scmp.eq.s32.totalorder %s22, 0
      %p201 = por %p199, %p200
      %p202 = scmp.le.s32.totalorder 1, %s16
      %p203 = scmp.lt.s32.totalorder %s16, 3
      %p204 = pnand %p202, %p203
      %p205 = pneg %p204
      // Predicated region
      $region9: #{forward.1} parent=5 // pred_check
        _
      $region10: #{forward.1} parent=5 // pred_check_branch
        %207 = sbr.rel (%p204) target = $region12
      $region11: #{forward.1} parent=5 // pred_region
        %s208 = ssub.s32 %s16, 1
        // Predicated region
        $region13: #{forward.1} parent=11 // pred_check
          %p209 = pneg %p63
        $region14: #{forward.1} parent=11 // pred_check_branch
          %211 = sbr.rel (%p209) target = $region16
        $region15: #{forward.1} parent=11 // pred_region
          _
        $region16: #{forward.1} parent=11 // pred_fallthru
          _
        // Predicated region
        $region17: #{forward.1} parent=11 // pred_check
          %p212 = pneg %p84
        $region18: #{forward.1} parent=11 // pred_check_branch
          %214 = sbr.rel (%p212) target = $region20
        $region19: #{forward.1} parent=11 // pred_region
          _
        $region20: #{forward.1} parent=11 // pred_fallthru
          _
        // Predicated region
        $region21: #{forward.1} parent=11 // pred_check
          %p215 = pneg %p105
        $region22: #{forward.1} parent=11 // pred_check_branch
          %217 = sbr.rel (%p215) target = $region24
        $region23: #{forward.1} parent=11 // pred_region
          _
        $region24: #{forward.1} parent=11 // pred_fallthru
          _
        // Predicated region
        $region25: #{forward.1} parent=11 // pred_check
          %p218 = pneg %p126
        $region26: #{forward.1} parent=11 // pred_check_branch
          %220 = sbr.rel (%p218) target = $region28
        $region27: #{forward.1} parent=11 // pred_region
          _
        $region28: #{forward.1} parent=11 // pred_fallthru
          _
        // Predicated region
        $region29: #{forward.1} parent=11 // pred_check
          %p221 = pneg %p147
        $region30: #{forward.1} parent=11 // pred_check_branch
          %223 = sbr.rel (%p221) target = $region32
        $region31: #{forward.1} parent=11 // pred_region
          _
        $region32: #{forward.1} parent=11 // pred_fallthru
          _
        // Predicated region
        $region33: #{forward.1} parent=11 // pred_check
          %p224 = pneg %p168
        $region34: #{forward.1} parent=11 // pred_check_branch
          %226 = sbr.rel (%p224) target = $region36
        $region35: #{forward.1} parent=11 // pred_region
          _
        $region36: #{forward.1} parent=11 // pred_fallthru
          _
      $region12: #{forward.1} parent=5 // pred_fallthru
        _
      %p227 = scmp.lt.s32.totalorder %s16, 2
      // Predicated region
      $region37: #{forward.1} parent=5 // pred_check
        %p228 = pneg %p227
      $region38: #{forward.1} parent=5 // pred_check_branch
        %230 = sbr.rel (%p228) target = $region40
      $region39: #{forward.1} parent=5 // pred_region
        // Predicated region
        $region41: #{forward.1} parent=39 // pred_check
          %p231 = pneg %p36
        $region42: #{forward.1} parent=39 // pred_check_branch
          %233 = sbr.rel (%p231) target = $region44
        $region43: #{forward.1} parent=39 // pred_region
          %p234 = scmp.lt.s32.totalorder %s16, 1
          %s235 = scalar_select %p234, %s16, 1
          %s236 = smul.addr %s235, 8
          %s237 = smul.addr %s236, 8
          %s238 = scalar_lea.vmem %s0, %s237
        $region44: #{forward.1} parent=39 // pred_fallthru
          _
      $region40: #{forward.1} parent=5 // pred_fallthru
        _
      %p239 = scmp.le.s32.totalorder 1, %s16
      %p240 = scmp.lt.s32.totalorder %s16, 3
      %p241 = pnand %p239, %p240
      %p242 = pneg %p241
      // Predicated region
      $region45: #{forward.1} parent=5 // pred_check
        _
      $region46: #{forward.1} parent=5 // pred_check_branch
        %244 = sbr.rel (%p241) target = $region48
      $region47: #{forward.1} parent=5 // pred_region
        %s245 = ssub.s32 %s16, 1
        %p246 = scmp.lt.s32.totalorder %s21, 1
        %s247 = scalar_select %p246, %s21, 1
        %s248 = smul.addr %s247, 8
        %s249 = smul.addr %s248, 8
        %s250 = scalar_lea.vmem %s0, %s249
        %p251 = pneg %p42
        %p252 = pneg %p39
        %p253 = pneg %p63
        %p254 = pneg %p60
        %p255 = pneg %p84
        %p256 = pneg %p81
        %p257 = pneg %p105
        %p258 = pneg %p102
        %p259 = pneg %p126
        %p260 = pneg %p123
        %p261 = pneg %p147
        %p262 = pneg %p144
        %p263 = pneg %p168
        %p264 = pneg %p165
        %p265 = pneg %p194
        %p266 = pneg %p191
        %s267 = sand.u32 %s181, 1
        %s268 = scalar_lea.sflag [#allocation4], %s267
        %s269 = sand.u32 %s181, 1
        %s270 = smul.addr %s269, 4
        %s271 = scalar_lea.vmem [#allocation3], %s270
        %p272 = scmp.lt.s32.totalorder %s21, 1
        %s273 = scalar_select %p272, %s21, 1
        %s274 = smul.addr %s273, 8
        %s275 = smul.addr %s274, 8
        %s276 = scalar_lea.vmem %s0, %s275
        %278 = vst [vmem:[#allocation2] sm:$0xff] 0.0
        %279 = vst [vmem:[#allocation2 + $0x8] sm:$0xff] 0.0
        %280 = vst [vmem:[#allocation2 + $0x10] sm:$0xff] 0.0
        %281 = vst [vmem:[#allocation2 + $0x18] sm:$0xff] 0.0
        %282 = vst [vmem:[#allocation2 + $0x20] sm:$0xff] 0.0
        %283 = vst [vmem:[#allocation2 + $0x28] sm:$0xff] 0.0
        %284 = vst [vmem:[#allocation2 + $0x30] sm:$0xff] 0.0
        %285 = vst [vmem:[#allocation2 + $0x38] sm:$0xff] 0.0
        %286 = vst [vmem:[#allocation2 + $0x40] sm:$0xff] 0.0
        %287 = vst [vmem:[#allocation2 + $0x48] sm:$0xff] 0.0
        %288 = vst [vmem:[#allocation2 + $0x50] sm:$0xff] 0.0
        %289 = vst [vmem:[#allocation2 + $0x58] sm:$0xff] 0.0
        %v290 = vld [vmem:[%s276] sm:$0xff]
        %v291 = vld [vmem:[%s276 + $0x8] sm:$0xff]
        %v292 = vld [vmem:[%s276 + $0x10] sm:$0xff]
        %v293 = vld [vmem:[%s276 + $0x18] sm:$0xff]
        %v294 = vld [vmem:[%s276 + $0x20] sm:$0xff]
        %v295 = vld [vmem:[%s276 + $0x28] sm:$0xff]
        %v296 = vld [vmem:[%s276 + $0x30] sm:$0xff]
        %v297 = vld [vmem:[%s276 + $0x38] sm:$0xff]
        %v298 = vld [vmem:[%s1] sm:$0xff]
        %v299 = vld [vmem:[%s1 + $0x8] sm:$0xff]
        %v300 = vld [vmem:[%s1 + $0x10] sm:$0xff]
        %v301 = vld [vmem:[%s1 + $0x18] sm:$0x7]
        %v302 = vld [vmem:[%s2] sm:$0x1]
        %v304 = vperm.slane %v302, 0
        %vm306 = vcmask 220160
        %v308 = vsel %vm306, %v290, 0
        %v311 = vsel %vm306, %v291, 0
        %v314 = vsel %vm306, %v292, 0
        %v317 = vsel %vm306, %v293, 0
        %v320 = vsel %vm306, %v294, 0
        %v323 = vsel %vm306, %v295, 0
        %v326 = vsel %vm306, %v296, 0
        %v329 = vsel %vm306, %v297, 0
        %vm331 = vcmask 1042432
        %v333 = vsel %vm331, %v301, 0
        %335 = vmatpush.msra.mxu0 0.0
        %336 = vmatpush.msra.mxu0 0.0
        %337 = vmatpush.msra.mxu0 0.0
        %338 = vmatpush.msra.mxu0 0.0
        %339 = vmatpush.msra.mxu0 0.0
        %340 = vmatpush.msra.mxu0 0.0
        %341 = vmatpush.msra.mxu0 0.0
        %342 = vmatpush.msra.mxu0 0.0
        %343 = vmatpush.msra.mxu0 0.0
        %344 = vmatpush.msra.mxu0 0.0
        %345 = vmatpush.msra.mxu0 0.0
        %346 = vmatpush.msra.mxu0 0.0
        %347 = vmatpush.msra.mxu0 %v333
        %348 = vmatpush.msra.mxu0 %v300
        %349 = vmatpush.msra.mxu0 %v299
        %350 = vmatpush.msra.mxu0 %v298
        %351 = vmatmul.f32.gmra.mxu0 %v308
        %v352 = vpop.f32.mrf.mxu0
        %v353 = vadd.f32 %v304, %v352
        %354 = vmatmul.f32.gmra.mxu0 %v311
        %v355 = vpop.f32.mrf.mxu0
        %v356 = vadd.f32 %v304, %v355
        %357 = vmatmul.f32.gmra.mxu0 %v314
        %v358 = vpop.f32.mrf.mxu0
        %v359 = vadd.f32 %v304, %v358
        %360 = vmatmul.f32.gmra.mxu0 %v317
        %v361 = vpop.f32.mrf.mxu0
        %v362 = vadd.f32 %v304, %v361
        %363 = vmatmul.f32.gmra.mxu0 %v320
        %v364 = vpop.f32.mrf.mxu0
        %v365 = vadd.f32 %v304, %v364
        %366 = vmatmul.f32.gmra.mxu0 %v323
        %v367 = vpop.f32.mrf.mxu0
        %v368 = vadd.f32 %v304, %v367
        %369 = vmatmul.f32.gmra.mxu0 %v326
        %v370 = vpop.f32.mrf.mxu0
        %v371 = vadd.f32 %v304, %v370
        %372 = vmatmul.f32.gmra.mxu0 %v329
        %v373 = vpop.f32.mrf.mxu0
        %v374 = vadd.f32 %v304, %v373
        %375 = vdwg.mxu0
        %v376 = vmax.f32 %v353, 0.0
        %v377 = vmax.f32 %v356, 0.0
        %v378 = vmax.f32 %v359, 0.0
        %v379 = vmax.f32 %v362, 0.0
        %v380 = vmax.f32 %v365, 0.0
        %v381 = vmax.f32 %v368, 0.0
        %v382 = vmax.f32 %v371, 0.0
        %v383 = vmax.f32 %v374, 0.0
        %vm384 = vcmask 261120
        %385 = vst.msk [vmem:[#allocation2 + $0x10] sm:$0xff] %vm384, %v376
        %386 = vst.msk [vmem:[#allocation2 + $0x18] sm:$0xff] %vm384, %v377
        %387 = vst.msk [vmem:[#allocation2 + $0x20] sm:$0xff] %vm384, %v378
        %388 = vst.msk [vmem:[#allocation2 + $0x28] sm:$0xff] %vm384, %v379
        %389 = vst.msk [vmem:[#allocation2 + $0x30] sm:$0xff] %vm384, %v380
        %390 = vst.msk [vmem:[#allocation2 + $0x38] sm:$0xff] %vm384, %v381
        %391 = vst.msk [vmem:[#allocation2 + $0x40] sm:$0xff] %vm384, %v382
        %392 = vst.msk [vmem:[#allocation2 + $0x48] sm:$0xff] %vm384, %v383
        %v393 = vld [vmem:[%s5] sm:$0xff]
        %v394 = vld [vmem:[%s5 + $0x8] sm:$0x1]
        %v395 = vld [vmem:[%s6] sm:$0x1]
        %v396 = vlaneseq
        %v397 = vshrl.u32 %v396, 7
        %v398 = vadd.s32 %v397, 8
        %v399 = vadd.s32 %v397, 16
        %v400 = vadd.s32 %v397, 24
        %v401 = vadd.s32 %v397, 32
        %v402 = vadd.s32 %v397, 40
        %v403 = vadd.s32 %v397, 48
        %v404 = vadd.s32 %v397, 56
        %v405 = vand.u32 %v397, 63
        %v406 = vand.u32 %v398, 63
        %v407 = vand.u32 %v399, 63
        %v408 = vand.u32 %v400, 63
        %v409 = vand.u32 %v401, 63
        %v410 = vand.u32 %v402, 63
        %v411 = vand.u32 %v403, 63
        %v412 = vand.u32 %v404, 63
        %v413 = vshra.s32 %v405, 3
        %v414 = vshra.s32 %v406, 3
        %v415 = vshra.s32 %v407, 3
        %v416 = vshra.s32 %v408, 3
        %v417 = vshra.s32 %v409, 3
        %v418 = vshra.s32 %v410, 3
        %v419 = vshra.s32 %v411, 3
        %v420 = vshra.s32 %v412, 3
        %v421 = vand.u32 %v405, 7
        %v422 = vand.u32 %v406, 7
        %v423 = vand.u32 %v407, 7
        %v424 = vand.u32 %v408, 7
        %v425 = vand.u32 %v409, 7
        %v426 = vand.u32 %v410, 7
        %v427 = vand.u32 %v411, 7
        %v428 = vand.u32 %v412, 7
        %v429 = vadd.s32 %v413, 4294967295
        %v430 = vadd.s32 %v414, 4294967295
        %v431 = vadd.s32 %v415, 4294967295
        %v432 = vadd.s32 %v416, 4294967295
        %v433 = vadd.s32 %v417, 4294967295
        %v434 = vadd.s32 %v418, 4294967295
        %v435 = vadd.s32 %v419, 4294967295
        %v436 = vadd.s32 %v420, 4294967295
        %vm437 = vcmp.ge.s32.totalorder %v429, 0
        %vm438 = vcmp.ge.s32.totalorder %v430, 0
        %vm439 = vcmp.ge.s32.totalorder %v431, 0
        %vm440 = vcmp.ge.s32.totalorder %v432, 0
        %vm441 = vcmp.ge.s32.totalorder %v433, 0
        %vm442 = vcmp.ge.s32.totalorder %v434, 0
        %vm443 = vcmp.ge.s32.totalorder %v435, 0
        %vm444 = vcmp.ge.s32.totalorder %v436, 0
        %vm445 = vcmp.le.s32.totalorder %v429, 7
        %vm446 = vcmp.le.s32.totalorder %v430, 7
        %vm447 = vcmp.le.s32.totalorder %v431, 7
        %vm448 = vcmp.le.s32.totalorder %v432, 7
        %vm449 = vcmp.le.s32.totalorder %v433, 7
        %vm450 = vcmp.le.s32.totalorder %v434, 7
        %vm451 = vcmp.le.s32.totalorder %v435, 7
        %vm452 = vcmp.le.s32.totalorder %v436, 7
        %vm453 = vmand %vm437, %vm445
        %vm454 = vmand %vm438, %vm446
        %vm455 = vmand %vm439, %vm447
        %vm456 = vmand %vm440, %vm448
        %vm457 = vmand %vm441, %vm449
        %vm458 = vmand %vm442, %vm450
        %vm459 = vmand %vm443, %vm451
        %vm460 = vmand %vm444, %vm452
        %v461 = vadd.s32 %v421, 4294967295
        %v462 = vadd.s32 %v422, 4294967295
        %v463 = vadd.s32 %v423, 4294967295
        %v464 = vadd.s32 %v424, 4294967295
        %v465 = vadd.s32 %v425, 4294967295
        %v466 = vadd.s32 %v426, 4294967295
        %v467 = vadd.s32 %v427, 4294967295
        %v468 = vadd.s32 %v428, 4294967295
        %vm469 = vcmp.ge.s32.totalorder %v461, 0
        %vm470 = vcmp.ge.s32.totalorder %v462, 0
        %vm471 = vcmp.ge.s32.totalorder %v463, 0
        %vm472 = vcmp.ge.s32.totalorder %v464, 0
        %vm473 = vcmp.ge.s32.totalorder %v465, 0
        %vm474 = vcmp.ge.s32.totalorder %v466, 0
        %vm475 = vcmp.ge.s32.totalorder %v467, 0
        %vm476 = vcmp.ge.s32.totalorder %v468, 0
        %vm477 = vcmp.le.s32.totalorder %v461, 7
        %vm478 = vcmp.le.s32.totalorder %v462, 7
        %vm479 = vcmp.le.s32.totalorder %v463, 7
        %vm480 = vcmp.le.s32.totalorder %v464, 7
        %vm481 = vcmp.le.s32.totalorder %v465, 7
        %vm482 = vcmp.le.s32.totalorder %v466, 7
        %vm483 = vcmp.le.s32.totalorder %v467, 7
        %vm484 = vcmp.le.s32.totalorder %v468, 7
        %vm485 = vmand %vm469, %vm477
        %vm486 = vmand %vm470, %vm478
        %vm487 = vmand %vm471, %vm479
        %vm488 = vmand %vm472, %vm480
        %vm489 = vmand %vm473, %vm481
        %vm490 = vmand %vm474, %vm482
        %vm491 = vmand %vm475, %vm483
        %vm492 = vmand %vm476, %vm484
        %vm493 = vmand %vm453, %vm485
        %vm494 = vmand %vm454, %vm486
        %vm495 = vmand %vm455, %vm487
        %vm496 = vmand %vm456, %vm488
        %vm497 = vmand %vm457, %vm489
        %vm498 = vmand %vm458, %vm490
        %vm499 = vmand %vm459, %vm491
        %vm500 = vmand %vm460, %vm492
        %v501 = vld [vmem:[#allocation2 + $0x7] sm:$0xff]
        %v502 = vld [vmem:[#allocation2 + $0xf] sm:$0xff]
        %v503 = vld [vmem:[#allocation2 + $0x17] sm:$0xff]
        %v504 = vld [vmem:[#allocation2 + $0x1f] sm:$0xff]
        %v505 = vld [vmem:[#allocation2 + $0x27] sm:$0xff]
        %v506 = vld [vmem:[#allocation2 + $0x2f] sm:$0xff]
        %v507 = vld [vmem:[#allocation2 + $0x37] sm:$0xff]
        %v508 = vld [vmem:[#allocation2 + $0x3f] sm:$0xff]
        %v509 = vsel %vm493, 1, 0
        %v510 = vsel %vm494, 1, 0
        %v511 = vsel %vm495, 1, 0
        %v512 = vsel %vm496, 1, 0
        %v513 = vsel %vm497, 1, 0
        %v514 = vsel %vm498, 1, 0
        %v515 = vsel %vm499, 1, 0
        %v516 = vsel %vm500, 1, 0
        %vm517 = vcmp.eq.s32.totalorder %v509, 1
        %vm518 = vcmp.eq.s32.totalorder %v510, 1
        %vm519 = vcmp.eq.s32.totalorder %v511, 1
        %vm520 = vcmp.eq.s32.totalorder %v512, 1
        %vm521 = vcmp.eq.s32.totalorder %v513, 1
        %vm522 = vcmp.eq.s32.totalorder %v514, 1
        %vm523 = vcmp.eq.s32.totalorder %v515, 1
        %vm524 = vcmp.eq.s32.totalorder %v516, 1
        %v525 = vsel %vm517, %v501, 0.0
        %v526 = vsel %vm518, %v502, 0.0
        %v527 = vsel %vm519, %v503, 0.0
        %v528 = vsel %vm520, %v504, 0.0
        %v529 = vsel %vm521, %v505, 0.0
        %v530 = vsel %vm522, %v506, 0.0
        %v531 = vsel %vm523, %v507, 0.0
        %v532 = vsel %vm524, %v508, 0.0
        %v533 = vperm.slane %v393, 0
        %v534 = vmul.f32 %v525, %v533
        %v535 = vmul.f32 %v526, %v533
        %v536 = vmul.f32 %v527, %v533
        %v537 = vmul.f32 %v528, %v533
        %v538 = vmul.f32 %v529, %v533
        %v539 = vmul.f32 %v530, %v533
        %v540 = vmul.f32 %v531, %v533
        %v541 = vmul.f32 %v532, %v533
        %v542 = vadd.f32 %v534, 0.0
        %v543 = vadd.f32 %v535, 0.0
        %v544 = vadd.f32 %v536, 0.0
        %v545 = vadd.f32 %v537, 0.0
        %v546 = vadd.f32 %v538, 0.0
        %v547 = vadd.f32 %v539, 0.0
        %v548 = vadd.f32 %v540, 0.0
        %v549 = vadd.f32 %v541, 0.0
        %vm550 = vcmp.ge.s32.totalorder %v421, 0
        %vm551 = vcmp.ge.s32.totalorder %v422, 0
        %vm552 = vcmp.ge.s32.totalorder %v423, 0
        %vm553 = vcmp.ge.s32.totalorder %v424, 0
        %vm554 = vcmp.ge.s32.totalorder %v425, 0
        %vm555 = vcmp.ge.s32.totalorder %v426, 0
        %vm556 = vcmp.ge.s32.totalorder %v427, 0
        %vm557 = vcmp.ge.s32.totalorder %v428, 0
        %vm558 = vcmp.le.s32.totalorder %v421, 7
        %vm559 = vcmp.le.s32.totalorder %v422, 7
        %vm560 = vcmp.le.s32.totalorder %v423, 7
        %vm561 = vcmp.le.s32.totalorder %v424, 7
        %vm562 = vcmp.le.s32.totalorder %v425, 7
        %vm563 = vcmp.le.s32.totalorder %v426, 7
        %vm564 = vcmp.le.s32.totalorder %v427, 7
        %vm565 = vcmp.le.s32.totalorder %v428, 7
        %vm566 = vmand %vm550, %vm558
        %vm567 = vmand %vm551, %vm559
        %vm568 = vmand %vm552, %vm560
        %vm569 = vmand %vm553, %vm561
        %vm570 = vmand %vm554, %vm562
        %vm571 = vmand %vm555, %vm563
        %vm572 = vmand %vm556, %vm564
        %vm573 = vmand %vm557, %vm565
        %vm574 = vmand %vm453, %vm566
        %vm575 = vmand %vm454, %vm567
        %vm576 = vmand %vm455, %vm568
        %vm577 = vmand %vm456, %vm569
        %vm578 = vmand %vm457, %vm570
        %vm579 = vmand %vm458, %vm571
        %vm580 = vmand %vm459, %vm572
        %vm581 = vmand %vm460, %vm573
        %v582 = vld [vmem:[#allocation2 + $0x8] sm:$0xff]
        %v583 = vld [vmem:[#allocation2 + $0x10] sm:$0xff]
        %v584 = vld [vmem:[#allocation2 + $0x18] sm:$0xff]
        %v585 = vld [vmem:[#allocation2 + $0x20] sm:$0xff]
        %v586 = vld [vmem:[#allocation2 + $0x28] sm:$0xff]
        %v587 = vld [vmem:[#allocation2 + $0x30] sm:$0xff]
        %v588 = vld [vmem:[#allocation2 + $0x38] sm:$0xff]
        %v589 = vld [vmem:[#allocation2 + $0x40] sm:$0xff]
        %v590 = vsel %vm574, 1, 0
        %v591 = vsel %vm575, 1, 0
        %v592 = vsel %vm576, 1, 0
        %v593 = vsel %vm577, 1, 0
        %v594 = vsel %vm578, 1, 0
        %v595 = vsel %vm579, 1, 0
        %v596 = vsel %vm580, 1, 0
        %v597 = vsel %vm581, 1, 0
        %vm598 = vcmp.eq.s32.totalorder %v590, 1
        %vm599 = vcmp.eq.s32.totalorder %v591, 1
        %vm600 = vcmp.eq.s32.totalorder %v592, 1
        %vm601 = vcmp.eq.s32.totalorder %v593, 1
        %vm602 = vcmp.eq.s32.totalorder %v594, 1
        %vm603 = vcmp.eq.s32.totalorder %v595, 1
        %vm604 = vcmp.eq.s32.totalorder %v596, 1
        %vm605 = vcmp.eq.s32.totalorder %v597, 1
        %v606 = vsel %vm598, %v582, 0.0
        %v607 = vsel %vm599, %v583, 0.0
        %v608 = vsel %vm600, %v584, 0.0
        %v609 = vsel %vm601, %v585, 0.0
        %v610 = vsel %vm602, %v586, 0.0
        %v611 = vsel %vm603, %v587, 0.0
        %v612 = vsel %vm604, %v588, 0.0
        %v613 = vsel %vm605, %v589, 0.0
        %v614 = vperm.slane %v393, 1
        %v615 = vmul.f32 %v606, %v614
        %v616 = vmul.f32 %v607, %v614
        %v617 = vmul.f32 %v608, %v614
        %v618 = vmul.f32 %v609, %v614
        %v619 = vmul.f32 %v610, %v614
        %v620 = vmul.f32 %v611, %v614
        %v621 = vmul.f32 %v612, %v614
        %v622 = vmul.f32 %v613, %v614
        %v623 = vadd.f32 %v542, %v615
        %v624 = vadd.f32 %v543, %v616
        %v625 = vadd.f32 %v544, %v617
        %v626 = vadd.f32 %v545, %v618
        %v627 = vadd.f32 %v546, %v619
        %v628 = vadd.f32 %v547, %v620
        %v629 = vadd.f32 %v548, %v621
        %v630 = vadd.f32 %v549, %v622
        %v631 = vadd.s32 %v421, 1
        %v632 = vadd.s32 %v422, 1
        %v633 = vadd.s32 %v423, 1
        %v634 = vadd.s32 %v424, 1
        %v635 = vadd.s32 %v425, 1
        %v636 = vadd.s32 %v426, 1
        %v637 = vadd.s32 %v427, 1
        %v638 = vadd.s32 %v428, 1
        %vm639 = vcmp.ge.s32.totalorder %v631, 0
        %vm640 = vcmp.ge.s32.totalorder %v632, 0
        %vm641 = vcmp.ge.s32.totalorder %v633, 0
        %vm642 = vcmp.ge.s32.totalorder %v634, 0
        %vm643 = vcmp.ge.s32.totalorder %v635, 0
        %vm644 = vcmp.ge.s32.totalorder %v636, 0
        %vm645 = vcmp.ge.s32.totalorder %v637, 0
        %vm646 = vcmp.ge.s32.totalorder %v638, 0
        %vm647 = vcmp.le.s32.totalorder %v631, 7
        %vm648 = vcmp.le.s32.totalorder %v632, 7
        %vm649 = vcmp.le.s32.totalorder %v633, 7
        %vm650 = vcmp.le.s32.totalorder %v634, 7
        %vm651 = vcmp.le.s32.totalorder %v635, 7
        %vm652 = vcmp.le.s32.totalorder %v636, 7
        %vm653 = vcmp.le.s32.totalorder %v637, 7
        %vm654 = vcmp.le.s32.totalorder %v638, 7
        %vm655 = vmand %vm639, %vm647
        %vm656 = vmand %vm640, %vm648
        %vm657 = vmand %vm641, %vm649
        %vm658 = vmand %vm642, %vm650
        %vm659 = vmand %vm643, %vm651
        %vm660 = vmand %vm644, %vm652
        %vm661 = vmand %vm645, %vm653
        %vm662 = vmand %vm646, %vm654
        %vm663 = vmand %vm453, %vm655
        %vm664 = vmand %vm454, %vm656
        %vm665 = vmand %vm455, %vm657
        %vm666 = vmand %vm456, %vm658
        %vm667 = vmand %vm457, %vm659
        %vm668 = vmand %vm458, %vm660
        %vm669 = vmand %vm459, %vm661
        %vm670 = vmand %vm460, %vm662
        %v671 = vld [vmem:[#allocation2 + $0x9] sm:$0xff]
        %v672 = vld [vmem:[#allocation2 + $0x11] sm:$0xff]
        %v673 = vld [vmem:[#allocation2 + $0x19] sm:$0xff]
        %v674 = vld [vmem:[#allocation2 + $0x21] sm:$0xff]
        %v675 = vld [vmem:[#allocation2 + $0x29] sm:$0xff]
        %v676 = vld [vmem:[#allocation2 + $0x31] sm:$0xff]
        %v677 = vld [vmem:[#allocation2 + $0x39] sm:$0xff]
        %v678 = vld [vmem:[#allocation2 + $0x41] sm:$0xff]
        %v679 = vsel %vm663, 1, 0
        %v680 = vsel %vm664, 1, 0
        %v681 = vsel %vm665, 1, 0
        %v682 = vsel %vm666, 1, 0
        %v683 = vsel %vm667, 1, 0
        %v684 = vsel %vm668, 1, 0
        %v685 = vsel %vm669, 1, 0
        %v686 = vsel %vm670, 1, 0
        %vm687 = vcmp.eq.s32.totalorder %v679, 1
        %vm688 = vcmp.eq.s32.totalorder %v680, 1
        %vm689 = vcmp.eq.s32.totalorder %v681, 1
        %vm690 = vcmp.eq.s32.totalorder %v682, 1
        %vm691 = vcmp.eq.s32.totalorder %v683, 1
        %vm692 = vcmp.eq.s32.totalorder %v684, 1
        %vm693 = vcmp.eq.s32.totalorder %v685, 1
        %vm694 = vcmp.eq.s32.totalorder %v686, 1
        %v695 = vsel %vm687, %v671, 0.0
        %v696 = vsel %vm688, %v672, 0.0
        %v697 = vsel %vm689, %v673, 0.0
        %v698 = vsel %vm690, %v674, 0.0
        %v699 = vsel %vm691, %v675, 0.0
        %v700 = vsel %vm692, %v676, 0.0
        %v701 = vsel %vm693, %v677, 0.0
        %v702 = vsel %vm694, %v678, 0.0
        %v703 = vperm.slane %v393, 2
        %v704 = vmul.f32 %v695, %v703
        %v705 = vmul.f32 %v696, %v703
        %v706 = vmul.f32 %v697, %v703
        %v707 = vmul.f32 %v698, %v703
        %v708 = vmul.f32 %v699, %v703
        %v709 = vmul.f32 %v700, %v703
        %v710 = vmul.f32 %v701, %v703
        %v711 = vmul.f32 %v702, %v703
        %v712 = vadd.f32 %v623, %v704
        %v713 = vadd.f32 %v624, %v705
        %v714 = vadd.f32 %v625, %v706
        %v715 = vadd.f32 %v626, %v707
        %v716 = vadd.f32 %v627, %v708
        %v717 = vadd.f32 %v628, %v709
        %v718 = vadd.f32 %v629, %v710
        %v719 = vadd.f32 %v630, %v711
        %vm720 = vcmp.ge.s32.totalorder %v413, 0
        %vm721 = vcmp.ge.s32.totalorder %v414, 0
        %vm722 = vcmp.ge.s32.totalorder %v415, 0
        %vm723 = vcmp.ge.s32.totalorder %v416, 0
        %vm724 = vcmp.ge.s32.totalorder %v417, 0
        %vm725 = vcmp.ge.s32.totalorder %v418, 0
        %vm726 = vcmp.ge.s32.totalorder %v419, 0
        %vm727 = vcmp.ge.s32.totalorder %v420, 0
        %vm728 = vcmp.le.s32.totalorder %v413, 7
        %vm729 = vcmp.le.s32.totalorder %v414, 7
        %vm730 = vcmp.le.s32.totalorder %v415, 7
        %vm731 = vcmp.le.s32.totalorder %v416, 7
        %vm732 = vcmp.le.s32.totalorder %v417, 7
        %vm733 = vcmp.le.s32.totalorder %v418, 7
        %vm734 = vcmp.le.s32.totalorder %v419, 7
        %vm735 = vcmp.le.s32.totalorder %v420, 7
        %vm736 = vmand %vm720, %vm728
        %vm737 = vmand %vm721, %vm729
        %vm738 = vmand %vm722, %vm730
        %vm739 = vmand %vm723, %vm731
        %vm740 = vmand %vm724, %vm732
        %vm741 = vmand %vm725, %vm733
        %vm742 = vmand %vm726, %vm734
        %vm743 = vmand %vm727, %vm735
        %vm744 = vmand %vm736, %vm485
        %vm745 = vmand %vm737, %vm486
        %vm746 = vmand %vm738, %vm487
        %vm747 = vmand %vm739, %vm488
        %vm748 = vmand %vm740, %vm489
        %vm749 = vmand %vm741, %vm490
        %vm750 = vmand %vm742, %vm491
        %vm751 = vmand %vm743, %vm492
        %v752 = vld [vmem:[#allocation2 + $0x47] sm:$0xff]
        %v753 = vsel %vm744, 1, 0
        %v754 = vsel %vm745, 1, 0
        %v755 = vsel %vm746, 1, 0
        %v756 = vsel %vm747, 1, 0
        %v757 = vsel %vm748, 1, 0
        %v758 = vsel %vm749, 1, 0
        %v759 = vsel %vm750, 1, 0
        %v760 = vsel %vm751, 1, 0
        %vm761 = vcmp.eq.s32.totalorder %v753, 1
        %vm762 = vcmp.eq.s32.totalorder %v754, 1
        %vm763 = vcmp.eq.s32.totalorder %v755, 1
        %vm764 = vcmp.eq.s32.totalorder %v756, 1
        %vm765 = vcmp.eq.s32.totalorder %v757, 1
        %vm766 = vcmp.eq.s32.totalorder %v758, 1
        %vm767 = vcmp.eq.s32.totalorder %v759, 1
        %vm768 = vcmp.eq.s32.totalorder %v760, 1
        %v769 = vsel %vm761, %v502, 0.0
        %v770 = vsel %vm762, %v503, 0.0
        %v771 = vsel %vm763, %v504, 0.0
        %v772 = vsel %vm764, %v505, 0.0
        %v773 = vsel %vm765, %v506, 0.0
        %v774 = vsel %vm766, %v507, 0.0
        %v775 = vsel %vm767, %v508, 0.0
        %v776 = vsel %vm768, %v752, 0.0
        %v777 = vperm.slane %v393, 3
        %v778 = vmul.f32 %v769, %v777
        %v779 = vmul.f32 %v770, %v777
        %v780 = vmul.f32 %v771, %v777
        %v781 = vmul.f32 %v772, %v777
        %v782 = vmul.f32 %v773, %v777
        %v783 = vmul.f32 %v774, %v777
        %v784 = vmul.f32 %v775, %v777
        %v785 = vmul.f32 %v776, %v777
        %v786 = vadd.f32 %v712, %v778
        %v787 = vadd.f32 %v713, %v779
        %v788 = vadd.f32 %v714, %v780
        %v789 = vadd.f32 %v715, %v781
        %v790 = vadd.f32 %v716, %v782
        %v791 = vadd.f32 %v717, %v783
        %v792 = vadd.f32 %v718, %v784
        %v793 = vadd.f32 %v719, %v785
        %vm794 = vmand %vm736, %vm566
        %vm795 = vmand %vm737, %vm567
        %vm796 = vmand %vm738, %vm568
        %vm797 = vmand %vm739, %vm569
        %vm798 = vmand %vm740, %vm570
        %vm799 = vmand %vm741, %vm571
        %vm800 = vmand %vm742, %vm572
        %vm801 = vmand %vm743, %vm573
        %v802 = vld [vmem:[#allocation2 + $0x48] sm:$0xff]
        %v803 = vsel %vm794, 1, 0
        %v804 = vsel %vm795, 1, 0
        %v805 = vsel %vm796, 1, 0
        %v806 = vsel %vm797, 1, 0
        %v807 = vsel %vm798, 1, 0
        %v808 = vsel %vm799, 1, 0
        %v809 = vsel %vm800, 1, 0
        %v810 = vsel %vm801, 1, 0
        %vm811 = vcmp.eq.s32.totalorder %v803, 1
        %vm812 = vcmp.eq.s32.totalorder %v804, 1
        %vm813 = vcmp.eq.s32.totalorder %v805, 1
        %vm814 = vcmp.eq.s32.totalorder %v806, 1
        %vm815 = vcmp.eq.s32.totalorder %v807, 1
        %vm816 = vcmp.eq.s32.totalorder %v808, 1
        %vm817 = vcmp.eq.s32.totalorder %v809, 1
        %vm818 = vcmp.eq.s32.totalorder %v810, 1
        %v819 = vsel %vm811, %v583, 0.0
        %v820 = vsel %vm812, %v584, 0.0
        %v821 = vsel %vm813, %v585, 0.0
        %v822 = vsel %vm814, %v586, 0.0
        %v823 = vsel %vm815, %v587, 0.0
        %v824 = vsel %vm816, %v588, 0.0
        %v825 = vsel %vm817, %v589, 0.0
        %v826 = vsel %vm818, %v802, 0.0
        %v827 = vperm.slane %v393, 4
        %v828 = vmul.f32 %v819, %v827
        %v829 = vmul.f32 %v820, %v827
        %v830 = vmul.f32 %v821, %v827
        %v831 = vmul.f32 %v822, %v827
        %v832 = vmul.f32 %v823, %v827
        %v833 = vmul.f32 %v824, %v827
        %v834 = vmul.f32 %v825, %v827
        %v835 = vmul.f32 %v826, %v827
        %v836 = vadd.f32 %v786, %v828
        %v837 = vadd.f32 %v787, %v829
        %v838 = vadd.f32 %v788, %v830
        %v839 = vadd.f32 %v789, %v831
        %v840 = vadd.f32 %v790, %v832
        %v841 = vadd.f32 %v791, %v833
        %v842 = vadd.f32 %v792, %v834
        %v843 = vadd.f32 %v793, %v835
        %vm844 = vmand %vm736, %vm655
        %vm845 = vmand %vm737, %vm656
        %vm846 = vmand %vm738, %vm657
        %vm847 = vmand %vm739, %vm658
        %vm848 = vmand %vm740, %vm659
        %vm849 = vmand %vm741, %vm660
        %vm850 = vmand %vm742, %vm661
        %vm851 = vmand %vm743, %vm662
        %v852 = vld [vmem:[#allocation2 + $0x49] sm:$0xff]
        %v853 = vsel %vm844, 1, 0
        %v854 = vsel %vm845, 1, 0
        %v855 = vsel %vm846, 1, 0
        %v856 = vsel %vm847, 1, 0
        %v857 = vsel %vm848, 1, 0
        %v858 = vsel %vm849, 1, 0
        %v859 = vsel %vm850, 1, 0
        %v860 = vsel %vm851, 1, 0
        %vm861 = vcmp.eq.s32.totalorder %v853, 1
        %vm862 = vcmp.eq.s32.totalorder %v854, 1
        %vm863 = vcmp.eq.s32.totalorder %v855, 1
        %vm864 = vcmp.eq.s32.totalorder %v856, 1
        %vm865 = vcmp.eq.s32.totalorder %v857, 1
        %vm866 = vcmp.eq.s32.totalorder %v858, 1
        %vm867 = vcmp.eq.s32.totalorder %v859, 1
        %vm868 = vcmp.eq.s32.totalorder %v860, 1
        %v869 = vsel %vm861, %v672, 0.0
        %v870 = vsel %vm862, %v673, 0.0
        %v871 = vsel %vm863, %v674, 0.0
        %v872 = vsel %vm864, %v675, 0.0
        %v873 = vsel %vm865, %v676, 0.0
        %v874 = vsel %vm866, %v677, 0.0
        %v875 = vsel %vm867, %v678, 0.0
        %v876 = vsel %vm868, %v852, 0.0
        %v877 = vperm.slane %v393, 5
        %v878 = vmul.f32 %v869, %v877
        %v879 = vmul.f32 %v870, %v877
        %v880 = vmul.f32 %v871, %v877
        %v881 = vmul.f32 %v872, %v877
        %v882 = vmul.f32 %v873, %v877
        %v883 = vmul.f32 %v874, %v877
        %v884 = vmul.f32 %v875, %v877
        %v885 = vmul.f32 %v876, %v877
        %v886 = vadd.f32 %v836, %v878
        %v887 = vadd.f32 %v837, %v879
        %v888 = vadd.f32 %v838, %v880
        %v889 = vadd.f32 %v839, %v881
        %v890 = vadd.f32 %v840, %v882
        %v891 = vadd.f32 %v841, %v883
        %v892 = vadd.f32 %v842, %v884
        %v893 = vadd.f32 %v843, %v885
        %v894 = vadd.s32 %v413, 1
        %v895 = vadd.s32 %v414, 1
        %v896 = vadd.s32 %v415, 1
        %v897 = vadd.s32 %v416, 1
        %v898 = vadd.s32 %v417, 1
        %v899 = vadd.s32 %v418, 1
        %v900 = vadd.s32 %v419, 1
        %v901 = vadd.s32 %v420, 1
        %vm902 = vcmp.ge.s32.totalorder %v894, 0
        %vm903 = vcmp.ge.s32.totalorder %v895, 0
        %vm904 = vcmp.ge.s32.totalorder %v896, 0
        %vm905 = vcmp.ge.s32.totalorder %v897, 0
        %vm906 = vcmp.ge.s32.totalorder %v898, 0
        %vm907 = vcmp.ge.s32.totalorder %v899, 0
        %vm908 = vcmp.ge.s32.totalorder %v900, 0
        %vm909 = vcmp.ge.s32.totalorder %v901, 0
        %vm910 = vcmp.le.s32.totalorder %v894, 7
        %vm911 = vcmp.le.s32.totalorder %v895, 7
        %vm912 = vcmp.le.s32.totalorder %v896, 7
        %vm913 = vcmp.le.s32.totalorder %v897, 7
        %vm914 = vcmp.le.s32.totalorder %v898, 7
        %vm915 = vcmp.le.s32.totalorder %v899, 7
        %vm916 = vcmp.le.s32.totalorder %v900, 7
        %vm917 = vcmp.le.s32.totalorder %v901, 7
        %vm918 = vmand %vm902, %vm910
        %vm919 = vmand %vm903, %vm911
        %vm920 = vmand %vm904, %vm912
        %vm921 = vmand %vm905, %vm913
        %vm922 = vmand %vm906, %vm914
        %vm923 = vmand %vm907, %vm915
        %vm924 = vmand %vm908, %vm916
        %vm925 = vmand %vm909, %vm917
        %vm926 = vmand %vm918, %vm485
        %vm927 = vmand %vm919, %vm486
        %vm928 = vmand %vm920, %vm487
        %vm929 = vmand %vm921, %vm488
        %vm930 = vmand %vm922, %vm489
        %vm931 = vmand %vm923, %vm490
        %vm932 = vmand %vm924, %vm491
        %vm933 = vmand %vm925, %vm492
        %v934 = vld [vmem:[#allocation2 + $0x4f] sm:$0xff]
        %v935 = vsel %vm926, 1, 0
        %v936 = vsel %vm927, 1, 0
        %v937 = vsel %vm928, 1, 0
        %v938 = vsel %vm929, 1, 0
        %v939 = vsel %vm930, 1, 0
        %v940 = vsel %vm931, 1, 0
        %v941 = vsel %vm932, 1, 0
        %v942 = vsel %vm933, 1, 0
        %vm943 = vcmp.eq.s32.totalorder %v935, 1
        %vm944 = vcmp.eq.s32.totalorder %v936, 1
        %vm945 = vcmp.eq.s32.totalorder %v937, 1
        %vm946 = vcmp.eq.s32.totalorder %v938, 1
        %vm947 = vcmp.eq.s32.totalorder %v939, 1
        %vm948 = vcmp.eq.s32.totalorder %v940, 1
        %vm949 = vcmp.eq.s32.totalorder %v941, 1
        %vm950 = vcmp.eq.s32.totalorder %v942, 1
        %v951 = vsel %vm943, %v503, 0.0
        %v952 = vsel %vm944, %v504, 0.0
        %v953 = vsel %vm945, %v505, 0.0
        %v954 = vsel %vm946, %v506, 0.0
        %v955 = vsel %vm947, %v507, 0.0
        %v956 = vsel %vm948, %v508, 0.0
        %v957 = vsel %vm949, %v752, 0.0
        %v958 = vsel %vm950, %v934, 0.0
        %v959 = vperm.slane %v393, 6
        %v960 = vmul.f32 %v951, %v959
        %v961 = vmul.f32 %v952, %v959
        %v962 = vmul.f32 %v953, %v959
        %v963 = vmul.f32 %v954, %v959
        %v964 = vmul.f32 %v955, %v959
        %v965 = vmul.f32 %v956, %v959
        %v966 = vmul.f32 %v957, %v959
        %v967 = vmul.f32 %v958, %v959
        %v968 = vadd.f32 %v886, %v960
        %v969 = vadd.f32 %v887, %v961
        %v970 = vadd.f32 %v888, %v962
        %v971 = vadd.f32 %v889, %v963
        %v972 = vadd.f32 %v890, %v964
        %v973 = vadd.f32 %v891, %v965
        %v974 = vadd.f32 %v892, %v966
        %v975 = vadd.f32 %v893, %v967
        %vm976 = vmand %vm918, %vm566
        %vm977 = vmand %vm919, %vm567
        %vm978 = vmand %vm920, %vm568
        %vm979 = vmand %vm921, %vm569
        %vm980 = vmand %vm922, %vm570
        %vm981 = vmand %vm923, %vm571
        %vm982 = vmand %vm924, %vm572
        %vm983 = vmand %vm925, %vm573
        %v984 = vld [vmem:[#allocation2 + $0x50] sm:$0xff]
        %v985 = vsel %vm976, 1, 0
        %v986 = vsel %vm977, 1, 0
        %v987 = vsel %vm978, 1, 0
        %v988 = vsel %vm979, 1, 0
        %v989 = vsel %vm980, 1, 0
        %v990 = vsel %vm981, 1, 0
        %v991 = vsel %vm982, 1, 0
        %v992 = vsel %vm983, 1, 0
        %vm993 = vcmp.eq.s32.totalorder %v985, 1
        %vm994 = vcmp.eq.s32.totalorder %v986, 1
        %vm995 = vcmp.eq.s32.totalorder %v987, 1
        %vm996 = vcmp.eq.s32.totalorder %v988, 1
        %vm997 = vcmp.eq.s32.totalorder %v989, 1
        %vm998 = vcmp.eq.s32.totalorder %v990, 1
        %vm999 = vcmp.eq.s32.totalorder %v991, 1
        %vm1000 = vcmp.eq.s32.totalorder %v992, 1
        %v1001 = vsel %vm993, %v584, 0.0
        %v1002 = vsel %vm994, %v585, 0.0
        %v1003 = vsel %vm995, %v586, 0.0
        %v1004 = vsel %vm996, %v587, 0.0
        %v1005 = vsel %vm997, %v588, 0.0
        %v1006 = vsel %vm998, %v589, 0.0
        %v1007 = vsel %vm999, %v802, 0.0
        %v1008 = vsel %vm1000, %v984, 0.0
        %v1009 = vperm.slane %v393, 7
        %v1010 = vmul.f32 %v1001, %v1009
        %v1011 = vmul.f32 %v1002, %v1009
        %v1012 = vmul.f32 %v1003, %v1009
        %v1013 = vmul.f32 %v1004, %v1009
        %v1014 = vmul.f32 %v1005, %v1009
        %v1015 = vmul.f32 %v1006, %v1009
        %v1016 = vmul.f32 %v1007, %v1009
        %v1017 = vmul.f32 %v1008, %v1009
        %v1018 = vadd.f32 %v968, %v1010
        %v1019 = vadd.f32 %v969, %v1011
        %v1020 = vadd.f32 %v970, %v1012
        %v1021 = vadd.f32 %v971, %v1013
        %v1022 = vadd.f32 %v972, %v1014
        %v1023 = vadd.f32 %v973, %v1015
        %v1024 = vadd.f32 %v974, %v1016
        %v1025 = vadd.f32 %v975, %v1017
        %vm1026 = vmand %vm918, %vm655
        %vm1027 = vmand %vm919, %vm656
        %vm1028 = vmand %vm920, %vm657
        %vm1029 = vmand %vm921, %vm658
        %vm1030 = vmand %vm922, %vm659
        %vm1031 = vmand %vm923, %vm660
        %vm1032 = vmand %vm924, %vm661
        %vm1033 = vmand %vm925, %vm662
        %v1034 = vld [vmem:[#allocation2 + $0x51] sm:$0xff]
        %v1035 = vsel %vm1026, 1, 0
        %v1036 = vsel %vm1027, 1, 0
        %v1037 = vsel %vm1028, 1, 0
        %v1038 = vsel %vm1029, 1, 0
        %v1039 = vsel %vm1030, 1, 0
        %v1040 = vsel %vm1031, 1, 0
        %v1041 = vsel %vm1032, 1, 0
        %v1042 = vsel %vm1033, 1, 0
        %vm1043 = vcmp.eq.s32.totalorder %v1035, 1
        %vm1044 = vcmp.eq.s32.totalorder %v1036, 1
        %vm1045 = vcmp.eq.s32.totalorder %v1037, 1
        %vm1046 = vcmp.eq.s32.totalorder %v1038, 1
        %vm1047 = vcmp.eq.s32.totalorder %v1039, 1
        %vm1048 = vcmp.eq.s32.totalorder %v1040, 1
        %vm1049 = vcmp.eq.s32.totalorder %v1041, 1
        %vm1050 = vcmp.eq.s32.totalorder %v1042, 1
        %v1051 = vsel %vm1043, %v673, 0.0
        %v1052 = vsel %vm1044, %v674, 0.0
        %v1053 = vsel %vm1045, %v675, 0.0
        %v1054 = vsel %vm1046, %v676, 0.0
        %v1055 = vsel %vm1047, %v677, 0.0
        %v1056 = vsel %vm1048, %v678, 0.0
        %v1057 = vsel %vm1049, %v852, 0.0
        %v1058 = vsel %vm1050, %v1034, 0.0
        %v1059 = vperm.slane %v394, 0
        %v1060 = vmul.f32 %v1051, %v1059
        %v1061 = vmul.f32 %v1052, %v1059
        %v1062 = vmul.f32 %v1053, %v1059
        %v1063 = vmul.f32 %v1054, %v1059
        %v1064 = vmul.f32 %v1055, %v1059
        %v1065 = vmul.f32 %v1056, %v1059
        %v1066 = vmul.f32 %v1057, %v1059
        %v1067 = vmul.f32 %v1058, %v1059
        %v1068 = vadd.f32 %v1018, %v1060
        %v1069 = vadd.f32 %v1019, %v1061
        %v1070 = vadd.f32 %v1020, %v1062
        %v1071 = vadd.f32 %v1021, %v1063
        %v1072 = vadd.f32 %v1022, %v1064
        %v1073 = vadd.f32 %v1023, %v1065
        %v1074 = vadd.f32 %v1024, %v1066
        %v1075 = vadd.f32 %v1025, %v1067
        %v1076 = vperm.slane %v395, 0
        %v1077 = vadd.f32 %v1068, %v1076
        %v1078 = vadd.f32 %v1069, %v1076
        %v1079 = vadd.f32 %v1070, %v1076
        %v1080 = vadd.f32 %v1071, %v1076
        %v1081 = vadd.f32 %v1072, %v1076
        %v1082 = vadd.f32 %v1073, %v1076
        %v1083 = vadd.f32 %v1074, %v1076
        %v1084 = vadd.f32 %v1075, %v1076
        %v1085 = vmax.f32 %v1077, 0.0
        %v1086 = vmax.f32 %v1078, 0.0
        %v1087 = vmax.f32 %v1079, 0.0
        %v1088 = vmax.f32 %v1080, 0.0
        %v1089 = vmax.f32 %v1081, 0.0
        %v1090 = vmax.f32 %v1082, 0.0
        %v1091 = vmax.f32 %v1083, 0.0
        %v1092 = vmax.f32 %v1084, 0.0
        %v1093 = vld [vmem:[%s3] sm:$0xf]
        %v1094 = vld [vmem:[%s3 + $0x4] sm:$0xf]
        %v1095 = vld [vmem:[%s3 + $0x8] sm:$0xf]
        %v1096 = vld [vmem:[%s3 + $0xc] sm:$0xf]
        %v1097 = vpack.c.bf16 %v1086, %v1085
        %v1098 = vpack.c.bf16 %v1088, %v1087
        %v1099 = vpack.c.bf16 %v1090, %v1089
        %v1100 = vpack.c.bf16 %v1092, %v1091
        %v1101 = vld [vmem:[%s4] sm:$0x1]
        %v1102 = vperm.slane %v1101, 0
        %v1107 = vunpack.c.l.b16 %v1093
        %v1108 = vunpack.c.l.b16 %v1094
        %v1109 = vunpack.c.l.b16 %v1095
        %v1110 = vunpack.c.l.b16 %v1096
        %v1111 = vpack.c.b16 %v1108, %v1107
        %v1112 = vpack.c.b16 %v1110, %v1109
        %v1116 = vsel %vm384, %v1097, 0
        %v1119 = vsel %vm384, %v1098, 0
        %v1122 = vsel %vm384, %v1099, 0
        %v1125 = vsel %vm384, %v1100, 0
        %1127 = vmatpush.bf16.msra.mxu0 0
        %1128 = vmatpush.bf16.msra.mxu0 0
        %1129 = vmatpush.bf16.msra.mxu0 0
        %1130 = vmatpush.bf16.msra.mxu0 0
        %1131 = vmatpush.bf16.msra.mxu0 0
        %1132 = vmatpush.bf16.msra.mxu0 0
        %1133 = vmatpush.bf16.msra.mxu0 %v1112
        %1134 = vmatpush.bf16.msra.mxu0 %v1111
        %1135 = vmatmul.bf16.gmra.mxu0 %v1116
        %v1136 = vpop.f32.mrf.mxu0
        %v1137 = vadd.f32 %v1102, %v1136
        %v1138 = vpop.f32.mrf.mxu0
        %v1139 = vadd.f32 %v1102, %v1138
        %1140 = vmatmul.bf16.gmra.mxu0 %v1119
        %v1141 = vpop.f32.mrf.mxu0
        %v1142 = vadd.f32 %v1102, %v1141
        %v1143 = vpop.f32.mrf.mxu0
        %v1144 = vadd.f32 %v1102, %v1143
        %1145 = vmatmul.bf16.gmra.mxu0 %v1122
        %v1146 = vpop.f32.mrf.mxu0
        %v1147 = vadd.f32 %v1102, %v1146
        %v1148 = vpop.f32.mrf.mxu0
        %v1149 = vadd.f32 %v1102, %v1148
        %1150 = vmatmul.bf16.gmra.mxu0 %v1125
        %v1151 = vpop.f32.mrf.mxu0
        %v1152 = vadd.f32 %v1102, %v1151
        %v1153 = vpop.f32.mrf.mxu0
        %v1154 = vadd.f32 %v1102, %v1153
        %1155 = vdwg.mxu0
        %v1156 = vmax.f32 %v1137, 0.0
        %v1157 = vmax.f32 %v1139, 0.0
        %v1158 = vmax.f32 %v1142, 0.0
        %v1159 = vmax.f32 %v1144, 0.0
        %v1160 = vmax.f32 %v1147, 0.0
        %v1161 = vmax.f32 %v1149, 0.0
        %v1162 = vmax.f32 %v1152, 0.0
        %v1163 = vmax.f32 %v1154, 0.0
        %vm1164 = vcmask 523264
        %1165 = vst.msk [vmem:[#allocation2 + $0x10] sm:$0xff] %vm1164, %v1156
        %1166 = vst.msk [vmem:[#allocation2 + $0x18] sm:$0xff] %vm1164, %v1157
        %1167 = vst.msk [vmem:[#allocation2 + $0x20] sm:$0xff] %vm1164, %v1158
        %1168 = vst.msk [vmem:[#allocation2 + $0x28] sm:$0xff] %vm1164, %v1159
        %1169 = vst.msk [vmem:[#allocation2 + $0x30] sm:$0xff] %vm1164, %v1160
        %1170 = vst.msk [vmem:[#allocation2 + $0x38] sm:$0xff] %vm1164, %v1161
        %1171 = vst.msk [vmem:[#allocation2 + $0x40] sm:$0xff] %vm1164, %v1162
        %1172 = vst.msk [vmem:[#allocation2 + $0x48] sm:$0xff] %vm1164, %v1163
        %s1173 = scalar_lea.vmem %s5, 16
        %v1174 = vld [vmem:[%s1173] sm:$0xff]
        %v1175 = vld [vmem:[%s1173 + $0x8] sm:$0x1]
        %v1176 = vld [vmem:[%s6 + $0x1] sm:$0x1]
        %v1177 = vld [vmem:[#allocation2 + $0x7] sm:$0xff]
        %v1178 = vld [vmem:[#allocation2 + $0xf] sm:$0xff]
        %v1179 = vld [vmem:[#allocation2 + $0x17] sm:$0xff]
        %v1180 = vld [vmem:[#allocation2 + $0x1f] sm:$0xff]
        %v1181 = vld [vmem:[#allocation2 + $0x27] sm:$0xff]
        %v1182 = vld [vmem:[#allocation2 + $0x2f] sm:$0xff]
        %v1183 = vld [vmem:[#allocation2 + $0x37] sm:$0xff]
        %v1184 = vld [vmem:[#allocation2 + $0x3f] sm:$0xff]
        %v1185 = vsel %vm517, %v1177, 0.0
        %v1186 = vsel %vm518, %v1178, 0.0
        %v1187 = vsel %vm519, %v1179, 0.0
        %v1188 = vsel %vm520, %v1180, 0.0
        %v1189 = vsel %vm521, %v1181, 0.0
        %v1190 = vsel %vm522, %v1182, 0.0
        %v1191 = vsel %vm523, %v1183, 0.0
        %v1192 = vsel %vm524, %v1184, 0.0
        %v1193 = vperm.slane %v1174, 0
        %v1194 = vmul.f32 %v1185, %v1193
        %v1195 = vmul.f32 %v1186, %v1193
        %v1196 = vmul.f32 %v1187, %v1193
        %v1197 = vmul.f32 %v1188, %v1193
        %v1198 = vmul.f32 %v1189, %v1193
        %v1199 = vmul.f32 %v1190, %v1193
        %v1200 = vmul.f32 %v1191, %v1193
        %v1201 = vmul.f32 %v1192, %v1193
        %v1202 = vadd.f32 %v1194, 0.0
        %v1203 = vadd.f32 %v1195, 0.0
        %v1204 = vadd.f32 %v1196, 0.0
        %v1205 = vadd.f32 %v1197, 0.0
        %v1206 = vadd.f32 %v1198, 0.0
        %v1207 = vadd.f32 %v1199, 0.0
        %v1208 = vadd.f32 %v1200, 0.0
        %v1209 = vadd.f32 %v1201, 0.0
        %v1210 = vld [vmem:[#allocation2 + $0x8] sm:$0xff]
        %v1211 = vld [vmem:[#allocation2 + $0x10] sm:$0xff]
        %v1212 = vld [vmem:[#allocation2 + $0x18] sm:$0xff]
        %v1213 = vld [vmem:[#allocation2 + $0x20] sm:$0xff]
        %v1214 = vld [vmem:[#allocation2 + $0x28] sm:$0xff]
        %v1215 = vld [vmem:[#allocation2 + $0x30] sm:$0xff]
        %v1216 = vld [vmem:[#allocation2 + $0x38] sm:$0xff]
        %v1217 = vld [vmem:[#allocation2 + $0x40] sm:$0xff]
        %v1218 = vsel %vm598, %v1210, 0.0
        %v1219 = vsel %vm599, %v1211, 0.0
        %v1220 = vsel %vm600, %v1212, 0.0
        %v1221 = vsel %vm601, %v1213, 0.0
        %v1222 = vsel %vm602, %v1214, 0.0
        %v1223 = vsel %vm603, %v1215, 0.0
        %v1224 = vsel %vm604, %v1216, 0.0
        %v1225 = vsel %vm605, %v1217, 0.0
        %v1226 = vperm.slane %v1174, 1
        %v1227 = vmul.f32 %v1218, %v1226
        %v1228 = vmul.f32 %v1219, %v1226
        %v1229 = vmul.f32 %v1220, %v1226
        %v1230 = vmul.f32 %v1221, %v1226
        %v1231 = vmul.f32 %v1222, %v1226
        %v1232 = vmul.f32 %v1223, %v1226
        %v1233 = vmul.f32 %v1224, %v1226
        %v1234 = vmul.f32 %v1225, %v1226
        %v1235 = vadd.f32 %v1202, %v1227
        %v1236 = vadd.f32 %v1203, %v1228
        %v1237 = vadd.f32 %v1204, %v1229
        %v1238 = vadd.f32 %v1205, %v1230
        %v1239 = vadd.f32 %v1206, %v1231
        %v1240 = vadd.f32 %v1207, %v1232
        %v1241 = vadd.f32 %v1208, %v1233
        %v1242 = vadd.f32 %v1209, %v1234
        %v1243 = vld [vmem:[#allocation2 + $0x9] sm:$0xff]
        %v1244 = vld [vmem:[#allocation2 + $0x11] sm:$0xff]
        %v1245 = vld [vmem:[#allocation2 + $0x19] sm:$0xff]
        %v1246 = vld [vmem:[#allocation2 + $0x21] sm:$0xff]
        %v1247 = vld [vmem:[#allocation2 + $0x29] sm:$0xff]
        %v1248 = vld [vmem:[#allocation2 + $0x31] sm:$0xff]
        %v1249 = vld [vmem:[#allocation2 + $0x39] sm:$0xff]
        %v1250 = vld [vmem:[#allocation2 + $0x41] sm:$0xff]
        %v1251 = vsel %vm687, %v1243, 0.0
        %v1252 = vsel %vm688, %v1244, 0.0
        %v1253 = vsel %vm689, %v1245, 0.0
        %v1254 = vsel %vm690, %v1246, 0.0
        %v1255 = vsel %vm691, %v1247, 0.0
        %v1256 = vsel %vm692, %v1248, 0.0
        %v1257 = vsel %vm693, %v1249, 0.0
        %v1258 = vsel %vm694, %v1250, 0.0
        %v1259 = vperm.slane %v1174, 2
        %v1260 = vmul.f32 %v1251, %v1259
        %v1261 = vmul.f32 %v1252, %v1259
        %v1262 = vmul.f32 %v1253, %v1259
        %v1263 = vmul.f32 %v1254, %v1259
        %v1264 = vmul.f32 %v1255, %v1259
        %v1265 = vmul.f32 %v1256, %v1259
        %v1266 = vmul.f32 %v1257, %v1259
        %v1267 = vmul.f32 %v1258, %v1259
        %v1268 = vadd.f32 %v1235, %v1260
        %v1269 = vadd.f32 %v1236, %v1261
        %v1270 = vadd.f32 %v1237, %v1262
        %v1271 = vadd.f32 %v1238, %v1263
        %v1272 = vadd.f32 %v1239, %v1264
        %v1273 = vadd.f32 %v1240, %v1265
        %v1274 = vadd.f32 %v1241, %v1266
        %v1275 = vadd.f32 %v1242, %v1267
        %v1276 = vld [vmem:[#allocation2 + $0x47] sm:$0xff]
        %v1277 = vsel %vm761, %v1178, 0.0
        %v1278 = vsel %vm762, %v1179, 0.0
        %v1279 = vsel %vm763, %v1180, 0.0
        %v1280 = vsel %vm764, %v1181, 0.0
        %v1281 = vsel %vm765, %v1182, 0.0
        %v1282 = vsel %vm766, %v1183, 0.0
        %v1283 = vsel %vm767, %v1184, 0.0
        %v1284 = vsel %vm768, %v1276, 0.0
        %v1285 = vperm.slane %v1174, 3
        %v1286 = vmul.f32 %v1277, %v1285
        %v1287 = vmul.f32 %v1278, %v1285
        %v1288 = vmul.f32 %v1279, %v1285
        %v1289 = vmul.f32 %v1280, %v1285
        %v1290 = vmul.f32 %v1281, %v1285
        %v1291 = vmul.f32 %v1282, %v1285
        %v1292 = vmul.f32 %v1283, %v1285
        %v1293 = vmul.f32 %v1284, %v1285
        %v1294 = vadd.f32 %v1268, %v1286
        %v1295 = vadd.f32 %v1269, %v1287
        %v1296 = vadd.f32 %v1270, %v1288
        %v1297 = vadd.f32 %v1271, %v1289
        %v1298 = vadd.f32 %v1272, %v1290
        %v1299 = vadd.f32 %v1273, %v1291
        %v1300 = vadd.f32 %v1274, %v1292
        %v1301 = vadd.f32 %v1275, %v1293
        %v1302 = vld [vmem:[#allocation2 + $0x48] sm:$0xff]
        %v1303 = vsel %vm811, %v1211, 0.0
        %v1304 = vsel %vm812, %v1212, 0.0
        %v1305 = vsel %vm813, %v1213, 0.0
        %v1306 = vsel %vm814, %v1214, 0.0
        %v1307 = vsel %vm815, %v1215, 0.0
        %v1308 = vsel %vm816, %v1216, 0.0
        %v1309 = vsel %vm817, %v1217, 0.0
        %v1310 = vsel %vm818, %v1302, 0.0
        %v1311 = vperm.slane %v1174, 4
        %v1312 = vmul.f32 %v1303, %v1311
        %v1313 = vmul.f32 %v1304, %v1311
        %v1314 = vmul.f32 %v1305, %v1311
        %v1315 = vmul.f32 %v1306, %v1311
        %v1316 = vmul.f32 %v1307, %v1311
        %v1317 = vmul.f32 %v1308, %v1311
        %v1318 = vmul.f32 %v1309, %v1311
        %v1319 = vmul.f32 %v1310, %v1311
        %v1320 = vadd.f32 %v1294, %v1312
        %v1321 = vadd.f32 %v1295, %v1313
        %v1322 = vadd.f32 %v1296, %v1314
        %v1323 = vadd.f32 %v1297, %v1315
        %v1324 = vadd.f32 %v1298, %v1316
        %v1325 = vadd.f32 %v1299, %v1317
        %v1326 = vadd.f32 %v1300, %v1318
        %v1327 = vadd.f32 %v1301, %v1319
        %v1328 = vld [vmem:[#allocation2 + $0x49] sm:$0xff]
        %v1329 = vsel %vm861, %v1244, 0.0
        %v1330 = vsel %vm862, %v1245, 0.0
        %v1331 = vsel %vm863, %v1246, 0.0
        %v1332 = vsel %vm864, %v1247, 0.0
        %v1333 = vsel %vm865, %v1248, 0.0
        %v1334 = vsel %vm866, %v1249, 0.0
        %v1335 = vsel %vm867, %v1250, 0.0
        %v1336 = vsel %vm868, %v1328, 0.0
        %v1337 = vperm.slane %v1174, 5
        %v1338 = vmul.f32 %v1329, %v1337
        %v1339 = vmul.f32 %v1330, %v1337
        %v1340 = vmul.f32 %v1331, %v1337
        %v1341 = vmul.f32 %v1332, %v1337
        %v1342 = vmul.f32 %v1333, %v1337
        %v1343 = vmul.f32 %v1334, %v1337
        %v1344 = vmul.f32 %v1335, %v1337
        %v1345 = vmul.f32 %v1336, %v1337
        %v1346 = vadd.f32 %v1320, %v1338
        %v1347 = vadd.f32 %v1321, %v1339
        %v1348 = vadd.f32 %v1322, %v1340
        %v1349 = vadd.f32 %v1323, %v1341
        %v1350 = vadd.f32 %v1324, %v1342
        %v1351 = vadd.f32 %v1325, %v1343
        %v1352 = vadd.f32 %v1326, %v1344
        %v1353 = vadd.f32 %v1327, %v1345
        %v1354 = vld [vmem:[#allocation2 + $0x4f] sm:$0xff]
        %v1355 = vsel %vm943, %v1179, 0.0
        %v1356 = vsel %vm944, %v1180, 0.0
        %v1357 = vsel %vm945, %v1181, 0.0
        %v1358 = vsel %vm946, %v1182, 0.0
        %v1359 = vsel %vm947, %v1183, 0.0
        %v1360 = vsel %vm948, %v1184, 0.0
        %v1361 = vsel %vm949, %v1276, 0.0
        %v1362 = vsel %vm950, %v1354, 0.0
        %v1363 = vperm.slane %v1174, 6
        %v1364 = vmul.f32 %v1355, %v1363
        %v1365 = vmul.f32 %v1356, %v1363
        %v1366 = vmul.f32 %v1357, %v1363
        %v1367 = vmul.f32 %v1358, %v1363
        %v1368 = vmul.f32 %v1359, %v1363
        %v1369 = vmul.f32 %v1360, %v1363
        %v1370 = vmul.f32 %v1361, %v1363
        %v1371 = vmul.f32 %v1362, %v1363
        %v1372 = vadd.f32 %v1346, %v1364
        %v1373 = vadd.f32 %v1347, %v1365
        %v1374 = vadd.f32 %v1348, %v1366
        %v1375 = vadd.f32 %v1349, %v1367
        %v1376 = vadd.f32 %v1350, %v1368
        %v1377 = vadd.f32 %v1351, %v1369
        %v1378 = vadd.f32 %v1352, %v1370
        %v1379 = vadd.f32 %v1353, %v1371
        %v1380 = vld [vmem:[#allocation2 + $0x50] sm:$0xff]
        %v1381 = vsel %vm993, %v1212, 0.0
        %v1382 = vsel %vm994, %v1213, 0.0
        %v1383 = vsel %vm995, %v1214, 0.0
        %v1384 = vsel %vm996, %v1215, 0.0
        %v1385 = vsel %vm997, %v1216, 0.0
        %v1386 = vsel %vm998, %v1217, 0.0
        %v1387 = vsel %vm999, %v1302, 0.0
        %v1388 = vsel %vm1000, %v1380, 0.0
        %v1389 = vperm.slane %v1174, 7
        %v1390 = vmul.f32 %v1381, %v1389
        %v1391 = vmul.f32 %v1382, %v1389
        %v1392 = vmul.f32 %v1383, %v1389
        %v1393 = vmul.f32 %v1384, %v1389
        %v1394 = vmul.f32 %v1385, %v1389
        %v1395 = vmul.f32 %v1386, %v1389
        %v1396 = vmul.f32 %v1387, %v1389
        %v1397 = vmul.f32 %v1388, %v1389
        %v1398 = vadd.f32 %v1372, %v1390
        %v1399 = vadd.f32 %v1373, %v1391
        %v1400 = vadd.f32 %v1374, %v1392
        %v1401 = vadd.f32 %v1375, %v1393
        %v1402 = vadd.f32 %v1376, %v1394
        %v1403 = vadd.f32 %v1377, %v1395
        %v1404 = vadd.f32 %v1378, %v1396
        %v1405 = vadd.f32 %v1379, %v1397
        %v1406 = vld [vmem:[#allocation2 + $0x51] sm:$0xff]
        %v1407 = vsel %vm1043, %v1245, 0.0
        %v1408 = vsel %vm1044, %v1246, 0.0
        %v1409 = vsel %vm1045, %v1247, 0.0
        %v1410 = vsel %vm1046, %v1248, 0.0
        %v1411 = vsel %vm1047, %v1249, 0.0
        %v1412 = vsel %vm1048, %v1250, 0.0
        %v1413 = vsel %vm1049, %v1328, 0.0
        %v1414 = vsel %vm1050, %v1406, 0.0
        %v1415 = vperm.slane %v1175, 0
        %v1416 = vmul.f32 %v1407, %v1415
        %v1417 = vmul.f32 %v1408, %v1415
        %v1418 = vmul.f32 %v1409, %v1415
        %v1419 = vmul.f32 %v1410, %v1415
        %v1420 = vmul.f32 %v1411, %v1415
        %v1421 = vmul.f32 %v1412, %v1415
        %v1422 = vmul.f32 %v1413, %v1415
        %v1423 = vmul.f32 %v1414, %v1415
        %v1424 = vadd.f32 %v1398, %v1416
        %v1425 = vadd.f32 %v1399, %v1417
        %v1426 = vadd.f32 %v1400, %v1418
        %v1427 = vadd.f32 %v1401, %v1419
        %v1428 = vadd.f32 %v1402, %v1420
        %v1429 = vadd.f32 %v1403, %v1421
        %v1430 = vadd.f32 %v1404, %v1422
        %v1431 = vadd.f32 %v1405, %v1423
        %v1432 = vperm.slane %v1176, 0
        %v1433 = vadd.f32 %v1424, %v1432
        %v1434 = vadd.f32 %v1425, %v1432
        %v1435 = vadd.f32 %v1426, %v1432
        %v1436 = vadd.f32 %v1427, %v1432
        %v1437 = vadd.f32 %v1428, %v1432
        %v1438 = vadd.f32 %v1429, %v1432
        %v1439 = vadd.f32 %v1430, %v1432
        %v1440 = vadd.f32 %v1431, %v1432
        %v1441 = vmax.f32 %v1433, 0.0
        %v1442 = vmax.f32 %v1434, 0.0
        %v1443 = vmax.f32 %v1435, 0.0
        %v1444 = vmax.f32 %v1436, 0.0
        %v1445 = vmax.f32 %v1437, 0.0
        %v1446 = vmax.f32 %v1438, 0.0
        %v1447 = vmax.f32 %v1439, 0.0
        %v1448 = vmax.f32 %v1440, 0.0
        %v1449 = vlaneseq
        %v1450 = vand.u32 %v1449, 127
        %v1451 = vshra.s32 %v397, 4
        %v1452 = vshra.s32 %v398, 4
        %v1453 = vand.u32 %v397, 15
        %v1454 = vand.u32 %v398, 15
        %v1455 = vshra.s32 %v1453, 2
        %v1456 = vshra.s32 %v1454, 2
        %v1457 = vand.u32 %v1453, 3
        %v1458 = vand.u32 %v1454, 3
        %v1459 = vmul.u32 %v1451, 64
        %v1460 = vmul.u32 %v1452, 64
        %v1461 = vmul.u32 %v1455, 16
        %v1462 = vmul.u32 %v1456, 16
        %v1463 = vadd.s32 %v1459, %v1461
        %v1464 = vadd.s32 %v1460, %v1462
        %v1465 = vmul.u32 %v1457, 2
        %v1466 = vmul.u32 %v1458, 2
        %v1467 = vadd.s32 %v1463, %v1465
        %v1468 = vadd.s32 %v1464, %v1466
        %vm1469 = vcmp.eq.s32.totalorder %v1450, %v1467
        %vm1470 = vcmp.eq.s32.totalorder %v1450, %v1468
        %v1471 = vsel %vm1469, 1, 0
        %v1472 = vsel %vm1470, 1, 0
        %v1473 = vcvt.s32.f32 %v1471
        %v1474 = vcvt.s32.f32 %v1472
        %v1476 = vsel %vm1164, %v1473, 0
        %v1479 = vsel %vm1164, %v1474, 0
        %1481 = vmatpush.msra.mxu0 0.0
        %1482 = vmatpush.msra.mxu0 0.0
        %1483 = vmatpush.msra.mxu0 0.0
        %1484 = vmatpush.msra.mxu0 0.0
        %1485 = vmatpush.msra.mxu0 0.0
        %1486 = vmatpush.msra.mxu0 0.0
        %1487 = vmatpush.msra.mxu0 0.0
        %1488 = vmatpush.msra.mxu0 0.0
        %1489 = vmatpush.msra.mxu0 %v1448
        %1490 = vmatpush.msra.mxu0 %v1447
        %1491 = vmatpush.msra.mxu0 %v1446
        %1492 = vmatpush.msra.mxu0 %v1445
        %1493 = vmatpush.msra.mxu0 %v1444
        %1494 = vmatpush.msra.mxu0 %v1443
        %1495 = vmatpush.msra.mxu0 %v1442
        %1496 = vmatpush.msra.mxu0 %v1441
        %1497 = vmatmul.f32.gmra.mxu0 %v1476
        %v1498 = vpop.f32.mrf.mxu0
        %v1499 = vadd.f32 0.0, %v1498
        %1500 = vmatmul.f32.gmra.mxu0 %v1479
        %v1501 = vpop.f32.mrf.mxu0
        %v1502 = vadd.f32 0.0, %v1501
        %1503 = vdwg.mxu0
        %s1504 = scalar_lea.vmem %s3, 64
        %v1505 = vld [vmem:[%s1504] sm:$0xf]
        %v1506 = vld [vmem:[%s1504 + $0x4] sm:$0xf]
        %v1507 = vld [vmem:[%s1504 + $0x8] sm:$0xf]
        %v1508 = vld [vmem:[%s1504 + $0xc] sm:$0xf]
        %v1509 = vld [vmem:[%s1504 + $0x10] sm:$0xf]
        %v1510 = vld [vmem:[%s1504 + $0x14] sm:$0xf]
        %v1511 = vld [vmem:[%s1504 + $0x18] sm:$0xf]
        %v1512 = vld [vmem:[%s1504 + $0x1c] sm:$0xf]
        %v1513 = vpack.c.bf16 %v1502, %v1499
        %v1514 = vld [vmem:[%s4 + $0x1] sm:$0x1]
        %v1515 = vperm.slane %v1514, 0
        %v1524 = vunpack.c.l.b16 %v1505
        %v1525 = vunpack.c.l.b16 %v1506
        %v1526 = vunpack.c.l.b16 %v1507
        %v1527 = vunpack.c.l.b16 %v1508
        %v1528 = vunpack.c.l.b16 %v1509
        %v1529 = vunpack.c.l.b16 %v1510
        %v1530 = vunpack.c.l.b16 %v1511
        %v1531 = vunpack.c.l.b16 %v1512
        %v1532 = vpack.c.b16 %v1525, %v1524
        %v1533 = vpack.c.b16 %v1527, %v1526
        %v1534 = vpack.c.b16 %v1529, %v1528
        %v1535 = vpack.c.b16 %v1531, %v1530
        %v1541 = vsel %vm1164, %v1513, 0
        %1543 = vmatpush.bf16.msra.mxu0 0
        %1544 = vmatpush.bf16.msra.mxu0 0
        %1545 = vmatpush.bf16.msra.mxu0 0
        %1546 = vmatpush.bf16.msra.mxu0 0
        %1547 = vmatpush.bf16.msra.mxu0 %v1535
        %1548 = vmatpush.bf16.msra.mxu0 %v1534
        %1549 = vmatpush.bf16.msra.mxu0 %v1533
        %1550 = vmatpush.bf16.msra.mxu0 %v1532
        %1551 = vmatmul.bf16.gmra.mxu0 %v1541
        %v1552 = vpop.f32.mrf.mxu0
        %v1553 = vadd.f32 %v1515, %v1552
        %v1554 = vpop.f32.mrf.mxu0
        %v1555 = vadd.f32 %v1515, %v1554
        %1556 = vdwg.mxu0
        %s1557 = scalar_lea.vmem %s3, 128
        %v1558 = vld [vmem:[%s1557] sm:$0xf]
        %v1559 = vld [vmem:[%s1557 + $0x4] sm:$0xf]
        %v1560 = vpack.c.bf16 %v1555, %v1553
        %v1561 = vld [vmem:[%s4 + $0x2] sm:$0x1]
        %v1562 = vperm.slane %v1561, 0
        %v1565 = vunpack.c.l.b16 %v1558
        %v1566 = vunpack.c.l.b16 %v1559
        %v1567 = vpack.c.b16 %v1566, %v1565
        %vm1569 = vcmask 130048
        %v1571 = vsel %vm1569, %v1560, 0
        %1573 = vmatpush.bf16.msra.mxu0 0
        %1574 = vmatpush.bf16.msra.mxu0 0
        %1575 = vmatpush.bf16.msra.mxu0 0
        %1576 = vmatpush.bf16.msra.mxu0 0
        %1577 = vmatpush.bf16.msra.mxu0 0
        %1578 = vmatpush.bf16.msra.mxu0 0
        %1579 = vmatpush.bf16.msra.mxu0 0
        %1580 = vmatpush.bf16.msra.mxu0 %v1567
        %1581 = vmatmul.bf16.gmra.mxu0 %v1571
        %v1582 = vpop.f32.mrf.mxu0
        %v1583 = vadd.f32 %v1562, %v1582
        %v1584 = vpop.f32.mrf.mxu0
        %v1585 = vadd.f32 %v1562, %v1584
        %1586 = vdwg.mxu0
        %v1587 = vmax.f32 %v1583, 0.0
        %v1588 = vmax.f32 %v1585, 0.0
        %1589 = vst.msk [vmem:[#allocation2 + $0x10] sm:$0xff] %vm384, %v1587
        %1590 = vst.msk [vmem:[#allocation2 + $0x18] sm:$0xff] %vm384, %v1588
        %s1591 = scalar_lea.vmem %s5, 32
        %v1592 = vld [vmem:[%s1591] sm:$0xff]
        %v1593 = vld [vmem:[%s1591 + $0x8] sm:$0x1]
        %v1594 = vld [vmem:[%s6 + $0x2] sm:$0x1]
        %v1595 = vadd.s32 %v1455, 4294967295
        %v1596 = vadd.s32 %v1456, 4294967295
        %vm1597 = vcmp.ge.s32.totalorder %v1595, 0
        %vm1598 = vcmp.ge.s32.totalorder %v1596, 0
        %vm1599 = vcmp.le.s32.totalorder %v1595, 3
        %vm1600 = vcmp.le.s32.totalorder %v1596, 3
        %vm1601 = vmand %vm1597, %vm1599
        %vm1602 = vmand %vm1598, %vm1600
        %v1603 = vadd.s32 %v1457, 4294967295
        %v1604 = vadd.s32 %v1458, 4294967295
        %vm1605 = vcmp.ge.s32.totalorder %v1603, 0
        %vm1606 = vcmp.ge.s32.totalorder %v1604, 0
        %vm1607 = vcmp.le.s32.totalorder %v1603, 3
        %vm1608 = vcmp.le.s32.totalorder %v1604, 3
        %vm1609 = vmand %vm1605, %vm1607
        %vm1610 = vmand %vm1606, %vm1608
        %vm1611 = vmand %vm1601, %vm1609
        %vm1612 = vmand %vm1602, %vm1610
        %v1613 = vld [vmem:[#allocation2 + $0xb] sm:$0xff]
        %v1614 = vld [vmem:[#allocation2 + $0x13] sm:$0xff]
        %v1615 = vsel %vm1611, 1, 0
        %v1616 = vsel %vm1612, 1, 0
        %vm1617 = vcmp.eq.s32.totalorder %v1615, 1
        %vm1618 = vcmp.eq.s32.totalorder %v1616, 1
        %v1619 = vsel %vm1617, %v1613, 0.0
        %v1620 = vsel %vm1618, %v1614, 0.0
        %v1621 = vperm.slane %v1592, 0
        %v1622 = vmul.f32 %v1619, %v1621
        %v1623 = vmul.f32 %v1620, %v1621
        %v1624 = vadd.f32 %v1622, 0.0
        %v1625 = vadd.f32 %v1623, 0.0
        %vm1626 = vcmp.ge.s32.totalorder %v1457, 0
        %vm1627 = vcmp.ge.s32.totalorder %v1458, 0
        %vm1628 = vcmp.le.s32.totalorder %v1457, 3
        %vm1629 = vcmp.le.s32.totalorder %v1458, 3
        %vm1630 = vmand %vm1626, %vm1628
        %vm1631 = vmand %vm1627, %vm1629
        %vm1632 = vmand %vm1601, %vm1630
        %vm1633 = vmand %vm1602, %vm1631
        %v1634 = vld [vmem:[#allocation2 + $0xc] sm:$0xff]
        %v1635 = vld [vmem:[#allocation2 + $0x14] sm:$0xff]
        %v1636 = vsel %vm1632, 1, 0
        %v1637 = vsel %vm1633, 1, 0
        %vm1638 = vcmp.eq.s32.totalorder %v1636, 1
        %vm1639 = vcmp.eq.s32.totalorder %v1637, 1
        %v1640 = vsel %vm1638, %v1634, 0.0
        %v1641 = vsel %vm1639, %v1635, 0.0
        %v1642 = vperm.slane %v1592, 1
        %v1643 = vmul.f32 %v1640, %v1642
        %v1644 = vmul.f32 %v1641, %v1642
        %v1645 = vadd.f32 %v1624, %v1643
        %v1646 = vadd.f32 %v1625, %v1644
        %v1647 = vadd.s32 %v1457, 1
        %v1648 = vadd.s32 %v1458, 1
        %vm1649 = vcmp.ge.s32.totalorder %v1647, 0
        %vm1650 = vcmp.ge.s32.totalorder %v1648, 0
        %vm1651 = vcmp.le.s32.totalorder %v1647, 3
        %vm1652 = vcmp.le.s32.totalorder %v1648, 3
        %vm1653 = vmand %vm1649, %vm1651
        %vm1654 = vmand %vm1650, %vm1652
        %vm1655 = vmand %vm1601, %vm1653
        %vm1656 = vmand %vm1602, %vm1654
        %v1657 = vld [vmem:[#allocation2 + $0xd] sm:$0xff]
        %v1658 = vld [vmem:[#allocation2 + $0x15] sm:$0xff]
        %v1659 = vsel %vm1655, 1, 0
        %v1660 = vsel %vm1656, 1, 0
        %vm1661 = vcmp.eq.s32.totalorder %v1659, 1
        %vm1662 = vcmp.eq.s32.totalorder %v1660, 1
        %v1663 = vsel %vm1661, %v1657, 0.0
        %v1664 = vsel %vm1662, %v1658, 0.0
        %v1665 = vperm.slane %v1592, 2
        %v1666 = vmul.f32 %v1663, %v1665
        %v1667 = vmul.f32 %v1664, %v1665
        %v1668 = vadd.f32 %v1645, %v1666
        %v1669 = vadd.f32 %v1646, %v1667
        %vm1670 = vcmp.ge.s32.totalorder %v1455, 0
        %vm1671 = vcmp.ge.s32.totalorder %v1456, 0
        %vm1672 = vcmp.le.s32.totalorder %v1455, 3
        %vm1673 = vcmp.le.s32.totalorder %v1456, 3
        %vm1674 = vmand %vm1670, %vm1672
        %vm1675 = vmand %vm1671, %vm1673
        %vm1676 = vmand %vm1674, %vm1609
        %vm1677 = vmand %vm1675, %vm1610
        %v1678 = vld [vmem:[#allocation2 + $0xf] sm:$0xff]
        %v1679 = vld [vmem:[#allocation2 + $0x17] sm:$0xff]
        %v1680 = vsel %vm1676, 1, 0
        %v1681 = vsel %vm1677, 1, 0
        %vm1682 = vcmp.eq.s32.totalorder %v1680, 1
        %vm1683 = vcmp.eq.s32.totalorder %v1681, 1
        %v1684 = vsel %vm1682, %v1678, 0.0
        %v1685 = vsel %vm1683, %v1679, 0.0
        %v1686 = vperm.slane %v1592, 3
        %v1687 = vmul.f32 %v1684, %v1686
        %v1688 = vmul.f32 %v1685, %v1686
        %v1689 = vadd.f32 %v1668, %v1687
        %v1690 = vadd.f32 %v1669, %v1688
        %vm1691 = vmand %vm1674, %vm1630
        %vm1692 = vmand %vm1675, %vm1631
        %v1693 = vld [vmem:[#allocation2 + $0x10] sm:$0xff]
        %v1694 = vld [vmem:[#allocation2 + $0x18] sm:$0xff]
        %v1695 = vsel %vm1691, 1, 0
        %v1696 = vsel %vm1692, 1, 0
        %vm1697 = vcmp.eq.s32.totalorder %v1695, 1
        %vm1698 = vcmp.eq.s32.totalorder %v1696, 1
        %v1699 = vsel %vm1697, %v1693, 0.0
        %v1700 = vsel %vm1698, %v1694, 0.0
        %v1701 = vperm.slane %v1592, 4
        %v1702 = vmul.f32 %v1699, %v1701
        %v1703 = vmul.f32 %v1700, %v1701
        %v1704 = vadd.f32 %v1689, %v1702
        %v1705 = vadd.f32 %v1690, %v1703
        %vm1706 = vmand %vm1674, %vm1653
        %vm1707 = vmand %vm1675, %vm1654
        %v1708 = vld [vmem:[#allocation2 + $0x11] sm:$0xff]
        %v1709 = vld [vmem:[#allocation2 + $0x19] sm:$0xff]
        %v1710 = vsel %vm1706, 1, 0
        %v1711 = vsel %vm1707, 1, 0
        %vm1712 = vcmp.eq.s32.totalorder %v1710, 1
        %vm1713 = vcmp.eq.s32.totalorder %v1711, 1
        %v1714 = vsel %vm1712, %v1708, 0.0
        %v1715 = vsel %vm1713, %v1709, 0.0
        %v1716 = vperm.slane %v1592, 5
        %v1717 = vmul.f32 %v1714, %v1716
        %v1718 = vmul.f32 %v1715, %v1716
        %v1719 = vadd.f32 %v1704, %v1717
        %v1720 = vadd.f32 %v1705, %v1718
        %v1721 = vadd.s32 %v1455, 1
        %v1722 = vadd.s32 %v1456, 1
        %vm1723 = vcmp.ge.s32.totalorder %v1721, 0
        %vm1724 = vcmp.ge.s32.totalorder %v1722, 0
        %vm1725 = vcmp.le.s32.totalorder %v1721, 3
        %vm1726 = vcmp.le.s32.totalorder %v1722, 3
        %vm1727 = vmand %vm1723, %vm1725
        %vm1728 = vmand %vm1724, %vm1726
        %vm1729 = vmand %vm1727, %vm1609
        %vm1730 = vmand %vm1728, %vm1610
        %v1731 = vld [vmem:[#allocation2 + $0x1b] sm:$0xff]
        %v1732 = vsel %vm1729, 1, 0
        %v1733 = vsel %vm1730, 1, 0
        %vm1734 = vcmp.eq.s32.totalorder %v1732, 1
        %vm1735 = vcmp.eq.s32.totalorder %v1733, 1
        %v1736 = vsel %vm1734, %v1614, 0.0
        %v1737 = vsel %vm1735, %v1731, 0.0
        %v1738 = vperm.slane %v1592, 6
        %v1739 = vmul.f32 %v1736, %v1738
        %v1740 = vmul.f32 %v1737, %v1738
        %v1741 = vadd.f32 %v1719, %v1739
        %v1742 = vadd.f32 %v1720, %v1740
        %vm1743 = vmand %vm1727, %vm1630
        %vm1744 = vmand %vm1728, %vm1631
        %v1745 = vld [vmem:[#allocation2 + $0x1c] sm:$0xff]
        %v1746 = vsel %vm1743, 1, 0
        %v1747 = vsel %vm1744, 1, 0
        %vm1748 = vcmp.eq.s32.totalorder %v1746, 1
        %vm1749 = vcmp.eq.s32.totalorder %v1747, 1
        %v1750 = vsel %vm1748, %v1635, 0.0
        %v1751 = vsel %vm1749, %v1745, 0.0
        %v1752 = vperm.slane %v1592, 7
        %v1753 = vmul.f32 %v1750, %v1752
        %v1754 = vmul.f32 %v1751, %v1752
        %v1755 = vadd.f32 %v1741, %v1753
        %v1756 = vadd.f32 %v1742, %v1754
        %vm1757 = vmand %vm1727, %vm1653
        %vm1758 = vmand %vm1728, %vm1654
        %v1759 = vld [vmem:[#allocation2 + $0x1d] sm:$0xff]
        %v1760 = vsel %vm1757, 1, 0
        %v1761 = vsel %vm1758, 1, 0
        %vm1762 = vcmp.eq.s32.totalorder %v1760, 1
        %vm1763 = vcmp.eq.s32.totalorder %v1761, 1
        %v1764 = vsel %vm1762, %v1658, 0.0
        %v1765 = vsel %vm1763, %v1759, 0.0
        %v1766 = vperm.slane %v1593, 0
        %v1767 = vmul.f32 %v1764, %v1766
        %v1768 = vmul.f32 %v1765, %v1766
        %v1769 = vadd.f32 %v1755, %v1767
        %v1770 = vadd.f32 %v1756, %v1768
        %v1771 = vperm.slane %v1594, 0
        %v1772 = vadd.f32 %v1769, %v1771
        %v1773 = vadd.f32 %v1770, %v1771
        %v1774 = vmax.f32 %v1772, 0.0
        %v1775 = vmax.f32 %v1773, 0.0
        %s1776 = scalar_lea.vmem %s3, 192
        %v1777 = vld [vmem:[%s1776] sm:$0xf]
        %v1778 = vld [vmem:[%s1776 + $0x4] sm:$0xf]
        %v1779 = vld [vmem:[%s1776 + $0x8] sm:$0xf]
        %v1780 = vld [vmem:[%s1776 + $0xc] sm:$0xf]
        %v1781 = vpack.c.bf16 %v1775, %v1774
        %v1782 = vld [vmem:[%s4 + $0x3] sm:$0x1]
        %v1783 = vperm.slane %v1782, 0
        %v1788 = vunpack.c.l.b16 %v1777
        %v1789 = vunpack.c.l.b16 %v1778
        %v1790 = vunpack.c.l.b16 %v1779
        %v1791 = vunpack.c.l.b16 %v1780
        %v1792 = vpack.c.b16 %v1789, %v1788
        %v1793 = vpack.c.b16 %v1791, %v1790
        %v1797 = vsel %vm384, %v1781, 0
        %1799 = vmatpush.bf16.msra.mxu0 0
        %1800 = vmatpush.bf16.msra.mxu0 0
        %1801 = vmatpush.bf16.msra.mxu0 0
        %1802 = vmatpush.bf16.msra.mxu0 0
        %1803 = vmatpush.bf16.msra.mxu0 0
        %1804 = vmatpush.bf16.msra.mxu0 0
        %1805 = vmatpush.bf16.msra.mxu0 %v1793
        %1806 = vmatpush.bf16.msra.mxu0 %v1792
        %1807 = vmatmul.bf16.gmra.mxu0 %v1797
        %v1808 = vpop.f32.mrf.mxu0
        %v1809 = vadd.f32 %v1783, %v1808
        %v1810 = vpop.f32.mrf.mxu0
        %v1811 = vadd.f32 %v1783, %v1810
        %1812 = vdwg.mxu0
        %v1813 = vadd.f32 %v1809, %v1553
        %v1814 = vadd.f32 %v1811, %v1555
        %s1815 = scalar_lea.vmem %s3, 256
        %v1816 = vld [vmem:[%s1815] sm:$0xf]
        %v1817 = vld [vmem:[%s1815 + $0x4] sm:$0xf]
        %v1818 = vpack.c.bf16 %v1814, %v1813
        %v1819 = vld [vmem:[%s4 + $0x4] sm:$0x1]
        %v1820 = vperm.slane %v1819, 0
        %v1823 = vunpack.c.l.b16 %v1816
        %v1824 = vunpack.c.l.b16 %v1817
        %v1825 = vpack.c.b16 %v1824, %v1823
        %v1828 = vsel %vm1569, %v1818, 0
        %1830 = vmatpush.bf16.msra.mxu0 0
        %1831 = vmatpush.bf16.msra.mxu0 0
        %1832 = vmatpush.bf16.msra.mxu0 0
        %1833 = vmatpush.bf16.msra.mxu0 0
        %1834 = vmatpush.bf16.msra.mxu0 0
        %1835 = vmatpush.bf16.msra.mxu0 0
        %1836 = vmatpush.bf16.msra.mxu0 0
        %1837 = vmatpush.bf16.msra.mxu0 %v1825
        %1838 = vmatmul.bf16.gmra.mxu0 %v1828
        %v1839 = vpop.f32.mrf.mxu0
        %v1840 = vadd.f32 %v1820, %v1839
        %v1841 = vpop.f32.mrf.mxu0
        %v1842 = vadd.f32 %v1820, %v1841
        %1843 = vdwg.mxu0
        %v1844 = vmax.f32 %v1840, 0.0
        %v1845 = vmax.f32 %v1842, 0.0
        %1846 = vst.msk [vmem:[#allocation2 + $0x10] sm:$0xff] %vm384, %v1844
        %1847 = vst.msk [vmem:[#allocation2 + $0x18] sm:$0xff] %vm384, %v1845
        %s1848 = scalar_lea.vmem %s5, 48
        %v1849 = vld [vmem:[%s1848] sm:$0xff]
        %v1850 = vld [vmem:[%s1848 + $0x8] sm:$0x1]
        %v1851 = vld [vmem:[%s6 + $0x3] sm:$0x1]
        %v1852 = vld [vmem:[#allocation2 + $0xb] sm:$0xff]
        %v1853 = vld [vmem:[#allocation2 + $0x13] sm:$0xff]
        %v1854 = vsel %vm1617, %v1852, 0.0
        %v1855 = vsel %vm1618, %v1853, 0.0
        %v1856 = vperm.slane %v1849, 0
        %v1857 = vmul.f32 %v1854, %v1856
        %v1858 = vmul.f32 %v1855, %v1856
        %v1859 = vadd.f32 %v1857, 0.0
        %v1860 = vadd.f32 %v1858, 0.0
        %v1861 = vld [vmem:[#allocation2 + $0xc] sm:$0xff]
        %v1862 = vld [vmem:[#allocation2 + $0x14] sm:$0xff]
        %v1863 = vsel %vm1638, %v1861, 0.0
        %v1864 = vsel %vm1639, %v1862, 0.0
        %v1865 = vperm.slane %v1849, 1
        %v1866 = vmul.f32 %v1863, %v1865
        %v1867 = vmul.f32 %v1864, %v1865
        %v1868 = vadd.f32 %v1859, %v1866
        %v1869 = vadd.f32 %v1860, %v1867
        %v1870 = vld [vmem:[#allocation2 + $0xd] sm:$0xff]
        %v1871 = vld [vmem:[#allocation2 + $0x15] sm:$0xff]
        %v1872 = vsel %vm1661, %v1870, 0.0
        %v1873 = vsel %vm1662, %v1871, 0.0
        %v1874 = vperm.slane %v1849, 2
        %v1875 = vmul.f32 %v1872, %v1874
        %v1876 = vmul.f32 %v1873, %v1874
        %v1877 = vadd.f32 %v1868, %v1875
        %v1878 = vadd.f32 %v1869, %v1876
        %v1879 = vld [vmem:[#allocation2 + $0xf] sm:$0xff]
        %v1880 = vld [vmem:[#allocation2 + $0x17] sm:$0xff]
        %v1881 = vsel %vm1682, %v1879, 0.0
        %v1882 = vsel %vm1683, %v1880, 0.0
        %v1883 = vperm.slane %v1849, 3
        %v1884 = vmul.f32 %v1881, %v1883
        %v1885 = vmul.f32 %v1882, %v1883
        %v1886 = vadd.f32 %v1877, %v1884
        %v1887 = vadd.f32 %v1878, %v1885
        %v1888 = vld [vmem:[#allocation2 + $0x10] sm:$0xff]
        %v1889 = vld [vmem:[#allocation2 + $0x18] sm:$0xff]
        %v1890 = vsel %vm1697, %v1888, 0.0
        %v1891 = vsel %vm1698, %v1889, 0.0
        %v1892 = vperm.slane %v1849, 4
        %v1893 = vmul.f32 %v1890, %v1892
        %v1894 = vmul.f32 %v1891, %v1892
        %v1895 = vadd.f32 %v1886, %v1893
        %v1896 = vadd.f32 %v1887, %v1894
        %v1897 = vld [vmem:[#allocation2 + $0x11] sm:$0xff]
        %v1898 = vld [vmem:[#allocation2 + $0x19] sm:$0xff]
        %v1899 = vsel %vm1712, %v1897, 0.0
        %v1900 = vsel %vm1713, %v1898, 0.0
        %v1901 = vperm.slane %v1849, 5
        %v1902 = vmul.f32 %v1899, %v1901
        %v1903 = vmul.f32 %v1900, %v1901
        %v1904 = vadd.f32 %v1895, %v1902
        %v1905 = vadd.f32 %v1896, %v1903
        %v1906 = vld [vmem:[#allocation2 + $0x1b] sm:$0xff]
        %v1907 = vsel %vm1734, %v1853, 0.0
        %v1908 = vsel %vm1735, %v1906, 0.0
        %v1909 = vperm.slane %v1849, 6
        %v1910 = vmul.f32 %v1907, %v1909
        %v1911 = vmul.f32 %v1908, %v1909
        %v1912 = vadd.f32 %v1904, %v1910
        %v1913 = vadd.f32 %v1905, %v1911
        %v1914 = vld [vmem:[#allocation2 + $0x1c] sm:$0xff]
        %v1915 = vsel %vm1748, %v1862, 0.0
        %v1916 = vsel %vm1749, %v1914, 0.0
        %v1917 = vperm.slane %v1849, 7
        %v1918 = vmul.f32 %v1915, %v1917
        %v1919 = vmul.f32 %v1916, %v1917
        %v1920 = vadd.f32 %v1912, %v1918
        %v1921 = vadd.f32 %v1913, %v1919
        %v1922 = vld [vmem:[#allocation2 + $0x1d] sm:$0xff]
        %v1923 = vsel %vm1762, %v1871, 0.0
        %v1924 = vsel %vm1763, %v1922, 0.0
        %v1925 = vperm.slane %v1850, 0
        %v1926 = vmul.f32 %v1923, %v1925
        %v1927 = vmul.f32 %v1924, %v1925
        %v1928 = vadd.f32 %v1920, %v1926
        %v1929 = vadd.f32 %v1921, %v1927
        %v1930 = vperm.slane %v1851, 0
        %v1931 = vadd.f32 %v1928, %v1930
        %v1932 = vadd.f32 %v1929, %v1930
        %v1933 = vmax.f32 %v1931, 0.0
        %v1934 = vmax.f32 %v1932, 0.0
        %s1935 = scalar_lea.vmem %s3, 320
        %v1936 = vld [vmem:[%s1935] sm:$0xf]
        %v1937 = vld [vmem:[%s1935 + $0x4] sm:$0xf]
        %v1938 = vld [vmem:[%s1935 + $0x8] sm:$0xf]
        %v1939 = vld [vmem:[%s1935 + $0xc] sm:$0xf]
        %v1940 = vpack.c.bf16 %v1934, %v1933
        %v1941 = vld [vmem:[%s4 + $0x5] sm:$0x1]
        %v1942 = vperm.slane %v1941, 0
        %v1947 = vunpack.c.l.b16 %v1936
        %v1948 = vunpack.c.l.b16 %v1937
        %v1949 = vunpack.c.l.b16 %v1938
        %v1950 = vunpack.c.l.b16 %v1939
        %v1951 = vpack.c.b16 %v1948, %v1947
        %v1952 = vpack.c.b16 %v1950, %v1949
        %v1956 = vsel %vm384, %v1940, 0
        %1958 = vmatpush.bf16.msra.mxu0 0
        %1959 = vmatpush.bf16.msra.mxu0 0
        %1960 = vmatpush.bf16.msra.mxu0 0
        %1961 = vmatpush.bf16.msra.mxu0 0
        %1962 = vmatpush.bf16.msra.mxu0 0
        %1963 = vmatpush.bf16.msra.mxu0 0
        %1964 = vmatpush.bf16.msra.mxu0 %v1952
        %1965 = vmatpush.bf16.msra.mxu0 %v1951
        %1966 = vmatmul.bf16.gmra.mxu0 %v1956
        %v1967 = vpop.f32.mrf.mxu0
        %v1968 = vadd.f32 %v1942, %v1967
        %v1969 = vpop.f32.mrf.mxu0
        %v1970 = vadd.f32 %v1942, %v1969
        %1971 = vdwg.mxu0
        %v1972 = vadd.f32 %v1968, %v1813
        %v1973 = vadd.f32 %v1970, %v1814
        %s1974 = scalar_lea.vmem %s3, 384
        %v1975 = vld [vmem:[%s1974] sm:$0xf]
        %v1976 = vld [vmem:[%s1974 + $0x4] sm:$0xf]
        %v1977 = vpack.c.bf16 %v1973, %v1972
        %v1978 = vld [vmem:[%s4 + $0x6] sm:$0x1]
        %v1979 = vperm.slane %v1978, 0
        %v1982 = vunpack.c.l.b16 %v1975
        %v1983 = vunpack.c.l.b16 %v1976
        %v1984 = vpack.c.b16 %v1983, %v1982
        %v1987 = vsel %vm1569, %v1977, 0
        %1989 = vmatpush.bf16.msra.mxu0 0
        %1990 = vmatpush.bf16.msra.mxu0 0
        %1991 = vmatpush.bf16.msra.mxu0 0
        %1992 = vmatpush.bf16.msra.mxu0 0
        %1993 = vmatpush.bf16.msra.mxu0 0
        %1994 = vmatpush.bf16.msra.mxu0 0
        %1995 = vmatpush.bf16.msra.mxu0 0
        %1996 = vmatpush.bf16.msra.mxu0 %v1984
        %1997 = vmatmul.bf16.gmra.mxu0 %v1987
        %v1998 = vpop.f32.mrf.mxu0
        %v1999 = vadd.f32 %v1979, %v1998
        %v2000 = vpop.f32.mrf.mxu0
        %v2001 = vadd.f32 %v1979, %v2000
        %2002 = vdwg.mxu0
        %v2003 = vmax.f32 %v1999, 0.0
        %v2004 = vmax.f32 %v2001, 0.0
        %2005 = vst.msk [vmem:[#allocation2 + $0x10] sm:$0xff] %vm384, %v2003
        %2006 = vst.msk [vmem:[#allocation2 + $0x18] sm:$0xff] %vm384, %v2004
        %s2007 = scalar_lea.vmem %s5, 64
        %v2008 = vld [vmem:[%s2007] sm:$0xff]
        %v2009 = vld [vmem:[%s2007 + $0x8] sm:$0x1]
        %v2010 = vld [vmem:[%s6 + $0x4] sm:$0x1]
        %v2011 = vld [vmem:[#allocation2 + $0xb] sm:$0xff]
        %v2012 = vld [vmem:[#allocation2 + $0x13] sm:$0xff]
        %v2013 = vsel %vm1617, %v2011, 0.0
        %v2014 = vsel %vm1618, %v2012, 0.0
        %v2015 = vperm.slane %v2008, 0
        %v2016 = vmul.f32 %v2013, %v2015
        %v2017 = vmul.f32 %v2014, %v2015
        %v2018 = vadd.f32 %v2016, 0.0
        %v2019 = vadd.f32 %v2017, 0.0
        %v2020 = vld [vmem:[#allocation2 + $0xc] sm:$0xff]
        %v2021 = vld [vmem:[#allocation2 + $0x14] sm:$0xff]
        %v2022 = vsel %vm1638, %v2020, 0.0
        %v2023 = vsel %vm1639, %v2021, 0.0
        %v2024 = vperm.slane %v2008, 1
        %v2025 = vmul.f32 %v2022, %v2024
        %v2026 = vmul.f32 %v2023, %v2024
        %v2027 = vadd.f32 %v2018, %v2025
        %v2028 = vadd.f32 %v2019, %v2026
        %v2029 = vld [vmem:[#allocation2 + $0xd] sm:$0xff]
        %v2030 = vld [vmem:[#allocation2 + $0x15] sm:$0xff]
        %v2031 = vsel %vm1661, %v2029, 0.0
        %v2032 = vsel %vm1662, %v2030, 0.0
        %v2033 = vperm.slane %v2008, 2
        %v2034 = vmul.f32 %v2031, %v2033
        %v2035 = vmul.f32 %v2032, %v2033
        %v2036 = vadd.f32 %v2027, %v2034
        %v2037 = vadd.f32 %v2028, %v2035
        %v2038 = vld [vmem:[#allocation2 + $0xf] sm:$0xff]
        %v2039 = vld [vmem:[#allocation2 + $0x17] sm:$0xff]
        %v2040 = vsel %vm1682, %v2038, 0.0
        %v2041 = vsel %vm1683, %v2039, 0.0
        %v2042 = vperm.slane %v2008, 3
        %v2043 = vmul.f32 %v2040, %v2042
        %v2044 = vmul.f32 %v2041, %v2042
        %v2045 = vadd.f32 %v2036, %v2043
        %v2046 = vadd.f32 %v2037, %v2044
        %v2047 = vld [vmem:[#allocation2 + $0x10] sm:$0xff]
        %v2048 = vld [vmem:[#allocation2 + $0x18] sm:$0xff]
        %v2049 = vsel %vm1697, %v2047, 0.0
        %v2050 = vsel %vm1698, %v2048, 0.0
        %v2051 = vperm.slane %v2008, 4
        %v2052 = vmul.f32 %v2049, %v2051
        %v2053 = vmul.f32 %v2050, %v2051
        %v2054 = vadd.f32 %v2045, %v2052
        %v2055 = vadd.f32 %v2046, %v2053
        %v2056 = vld [vmem:[#allocation2 + $0x11] sm:$0xff]
        %v2057 = vld [vmem:[#allocation2 + $0x19] sm:$0xff]
        %v2058 = vsel %vm1712, %v2056, 0.0
        %v2059 = vsel %vm1713, %v2057, 0.0
        %v2060 = vperm.slane %v2008, 5
        %v2061 = vmul.f32 %v2058, %v2060
        %v2062 = vmul.f32 %v2059, %v2060
        %v2063 = vadd.f32 %v2054, %v2061
        %v2064 = vadd.f32 %v2055, %v2062
        %v2065 = vld [vmem:[#allocation2 + $0x1b] sm:$0xff]
        %v2066 = vsel %vm1734, %v2012, 0.0
        %v2067 = vsel %vm1735, %v2065, 0.0
        %v2068 = vperm.slane %v2008, 6
        %v2069 = vmul.f32 %v2066, %v2068
        %v2070 = vmul.f32 %v2067, %v2068
        %v2071 = vadd.f32 %v2063, %v2069
        %v2072 = vadd.f32 %v2064, %v2070
        %v2073 = vld [vmem:[#allocation2 + $0x1c] sm:$0xff]
        %v2074 = vsel %vm1748, %v2021, 0.0
        %v2075 = vsel %vm1749, %v2073, 0.0
        %v2076 = vperm.slane %v2008, 7
        %v2077 = vmul.f32 %v2074, %v2076
        %v2078 = vmul.f32 %v2075, %v2076
        %v2079 = vadd.f32 %v2071, %v2077
        %v2080 = vadd.f32 %v2072, %v2078
        %v2081 = vld [vmem:[#allocation2 + $0x1d] sm:$0xff]
        %v2082 = vsel %vm1762, %v2030, 0.0
        %v2083 = vsel %vm1763, %v2081, 0.0
        %v2084 = vperm.slane %v2009, 0
        %v2085 = vmul.f32 %v2082, %v2084
        %v2086 = vmul.f32 %v2083, %v2084
        %v2087 = vadd.f32 %v2079, %v2085
        %v2088 = vadd.f32 %v2080, %v2086
        %v2089 = vperm.slane %v2010, 0
        %v2090 = vadd.f32 %v2087, %v2089
        %v2091 = vadd.f32 %v2088, %v2089
        %v2092 = vmax.f32 %v2090, 0.0
        %v2093 = vmax.f32 %v2091, 0.0
        %s2094 = scalar_lea.vmem %s3, 448
        %v2095 = vld [vmem:[%s2094] sm:$0xf]
        %v2096 = vld [vmem:[%s2094 + $0x4] sm:$0xf]
        %v2097 = vld [vmem:[%s2094 + $0x8] sm:$0xf]
        %v2098 = vld [vmem:[%s2094 + $0xc] sm:$0xf]
        %v2099 = vpack.c.bf16 %v2093, %v2092
        %v2100 = vld [vmem:[%s4 + $0x7] sm:$0x1]
        %v2101 = vperm.slane %v2100, 0
        %v2106 = vunpack.c.l.b16 %v2095
        %v2107 = vunpack.c.l.b16 %v2096
        %v2108 = vunpack.c.l.b16 %v2097
        %v2109 = vunpack.c.l.b16 %v2098
        %v2110 = vpack.c.b16 %v2107, %v2106
        %v2111 = vpack.c.b16 %v2109, %v2108
        %v2115 = vsel %vm384, %v2099, 0
        %2117 = vmatpush.bf16.msra.mxu0 0
        %2118 = vmatpush.bf16.msra.mxu0 0
        %2119 = vmatpush.bf16.msra.mxu0 0
        %2120 = vmatpush.bf16.msra.mxu0 0
        %2121 = vmatpush.bf16.msra.mxu0 0
        %2122 = vmatpush.bf16.msra.mxu0 0
        %2123 = vmatpush.bf16.msra.mxu0 %v2111
        %2124 = vmatpush.bf16.msra.mxu0 %v2110
        %2125 = vmatmul.bf16.gmra.mxu0 %v2115
        %v2126 = vpop.f32.mrf.mxu0
        %v2127 = vadd.f32 %v2101, %v2126
        %v2128 = vpop.f32.mrf.mxu0
        %v2129 = vadd.f32 %v2101, %v2128
        %2130 = vdwg.mxu0
        %v2131 = vadd.f32 %v2127, %v1972
        %v2132 = vadd.f32 %v2129, %v1973
        %s2133 = scalar_lea.vmem %s3, 512
        %v2134 = vld [vmem:[%s2133] sm:$0xf]
        %v2135 = vld [vmem:[%s2133 + $0x4] sm:$0xf]
        %v2136 = vpack.c.bf16 %v2132, %v2131
        %v2137 = vld [vmem:[%s4 + $0x8] sm:$0x1]
        %v2138 = vperm.slane %v2137, 0
        %v2141 = vunpack.c.l.b16 %v2134
        %v2142 = vunpack.c.l.b16 %v2135
        %v2143 = vpack.c.b16 %v2142, %v2141
        %v2146 = vsel %vm1569, %v2136, 0
        %2148 = vmatpush.bf16.msra.mxu0 0
        %2149 = vmatpush.bf16.msra.mxu0 0
        %2150 = vmatpush.bf16.msra.mxu0 0
        %2151 = vmatpush.bf16.msra.mxu0 0
        %2152 = vmatpush.bf16.msra.mxu0 0
        %2153 = vmatpush.bf16.msra.mxu0 0
        %2154 = vmatpush.bf16.msra.mxu0 0
        %2155 = vmatpush.bf16.msra.mxu0 %v2143
        %2156 = vmatmul.bf16.gmra.mxu0 %v2146
        %v2157 = vpop.f32.mrf.mxu0
        %v2158 = vadd.f32 %v2138, %v2157
        %v2159 = vpop.f32.mrf.mxu0
        %v2160 = vadd.f32 %v2138, %v2159
        %2161 = vdwg.mxu0
        %v2162 = vmax.f32 %v2158, 0.0
        %v2163 = vmax.f32 %v2160, 0.0
        %2164 = vst.msk [vmem:[#allocation2 + $0x10] sm:$0xff] %vm384, %v2162
        %2165 = vst.msk [vmem:[#allocation2 + $0x18] sm:$0xff] %vm384, %v2163
        %s2166 = scalar_lea.vmem %s5, 80
        %v2167 = vld [vmem:[%s2166] sm:$0xff]
        %v2168 = vld [vmem:[%s2166 + $0x8] sm:$0x1]
        %v2169 = vld [vmem:[%s6 + $0x5] sm:$0x1]
        %v2170 = vld [vmem:[#allocation2 + $0xb] sm:$0xff]
        %v2171 = vld [vmem:[#allocation2 + $0x13] sm:$0xff]
        %v2172 = vsel %vm1617, %v2170, 0.0
        %v2173 = vsel %vm1618, %v2171, 0.0
        %v2174 = vperm.slane %v2167, 0
        %v2175 = vmul.f32 %v2172, %v2174
        %v2176 = vmul.f32 %v2173, %v2174
        %v2177 = vadd.f32 %v2175, 0.0
        %v2178 = vadd.f32 %v2176, 0.0
        %v2179 = vld [vmem:[#allocation2 + $0xc] sm:$0xff]
        %v2180 = vld [vmem:[#allocation2 + $0x14] sm:$0xff]
        %v2181 = vsel %vm1638, %v2179, 0.0
        %v2182 = vsel %vm1639, %v2180, 0.0
        %v2183 = vperm.slane %v2167, 1
        %v2184 = vmul.f32 %v2181, %v2183
        %v2185 = vmul.f32 %v2182, %v2183
        %v2186 = vadd.f32 %v2177, %v2184
        %v2187 = vadd.f32 %v2178, %v2185
        %v2188 = vld [vmem:[#allocation2 + $0xd] sm:$0xff]
        %v2189 = vld [vmem:[#allocation2 + $0x15] sm:$0xff]
        %v2190 = vsel %vm1661, %v2188, 0.0
        %v2191 = vsel %vm1662, %v2189, 0.0
        %v2192 = vperm.slane %v2167, 2
        %v2193 = vmul.f32 %v2190, %v2192
        %v2194 = vmul.f32 %v2191, %v2192
        %v2195 = vadd.f32 %v2186, %v2193
        %v2196 = vadd.f32 %v2187, %v2194
        %v2197 = vld [vmem:[#allocation2 + $0xf] sm:$0xff]
        %v2198 = vld [vmem:[#allocation2 + $0x17] sm:$0xff]
        %v2199 = vsel %vm1682, %v2197, 0.0
        %v2200 = vsel %vm1683, %v2198, 0.0
        %v2201 = vperm.slane %v2167, 3
        %v2202 = vmul.f32 %v2199, %v2201
        %v2203 = vmul.f32 %v2200, %v2201
        %v2204 = vadd.f32 %v2195, %v2202
        %v2205 = vadd.f32 %v2196, %v2203
        %v2206 = vld [vmem:[#allocation2 + $0x10] sm:$0xff]
        %v2207 = vld [vmem:[#allocation2 + $0x18] sm:$0xff]
        %v2208 = vsel %vm1697, %v2206, 0.0
        %v2209 = vsel %vm1698, %v2207, 0.0
        %v2210 = vperm.slane %v2167, 4
        %v2211 = vmul.f32 %v2208, %v2210
        %v2212 = vmul.f32 %v2209, %v2210
        %v2213 = vadd.f32 %v2204, %v2211
        %v2214 = vadd.f32 %v2205, %v2212
        %v2215 = vld [vmem:[#allocation2 + $0x11] sm:$0xff]
        %v2216 = vld [vmem:[#allocation2 + $0x19] sm:$0xff]
        %v2217 = vsel %vm1712, %v2215, 0.0
        %v2218 = vsel %vm1713, %v2216, 0.0
        %v2219 = vperm.slane %v2167, 5
        %v2220 = vmul.f32 %v2217, %v2219
        %v2221 = vmul.f32 %v2218, %v2219
        %v2222 = vadd.f32 %v2213, %v2220
        %v2223 = vadd.f32 %v2214, %v2221
        %v2224 = vld [vmem:[#allocation2 + $0x1b] sm:$0xff]
        %v2225 = vsel %vm1734, %v2171, 0.0
        %v2226 = vsel %vm1735, %v2224, 0.0
        %v2227 = vperm.slane %v2167, 6
        %v2228 = vmul.f32 %v2225, %v2227
        %v2229 = vmul.f32 %v2226, %v2227
        %v2230 = vadd.f32 %v2222, %v2228
        %v2231 = vadd.f32 %v2223, %v2229
        %v2232 = vld [vmem:[#allocation2 + $0x1c] sm:$0xff]
        %v2233 = vsel %vm1748, %v2180, 0.0
        %v2234 = vsel %vm1749, %v2232, 0.0
        %v2235 = vperm.slane %v2167, 7
        %v2236 = vmul.f32 %v2233, %v2235
        %v2237 = vmul.f32 %v2234, %v2235
        %v2238 = vadd.f32 %v2230, %v2236
        %v2239 = vadd.f32 %v2231, %v2237
        %v2240 = vld [vmem:[#allocation2 + $0x1d] sm:$0xff]
        %v2241 = vsel %vm1762, %v2189, 0.0
        %v2242 = vsel %vm1763, %v2240, 0.0
        %v2243 = vperm.slane %v2168, 0
        %v2244 = vmul.f32 %v2241, %v2243
        %v2245 = vmul.f32 %v2242, %v2243
        %v2246 = vadd.f32 %v2238, %v2244
        %v2247 = vadd.f32 %v2239, %v2245
        %v2248 = vperm.slane %v2169, 0
        %v2249 = vadd.f32 %v2246, %v2248
        %v2250 = vadd.f32 %v2247, %v2248
        %v2251 = vmax.f32 %v2249, 0.0
        %v2252 = vmax.f32 %v2250, 0.0
        %s2253 = scalar_lea.vmem %s3, 576
        %v2254 = vld [vmem:[%s2253] sm:$0xf]
        %v2255 = vld [vmem:[%s2253 + $0x4] sm:$0xf]
        %v2256 = vld [vmem:[%s2253 + $0x8] sm:$0xf]
        %v2257 = vld [vmem:[%s2253 + $0xc] sm:$0xf]
        %v2258 = vpack.c.bf16 %v2252, %v2251
        %v2259 = vld [vmem:[%s4 + $0x9] sm:$0x1]
        %v2260 = vperm.slane %v2259, 0
        %v2265 = vunpack.c.l.b16 %v2254
        %v2266 = vunpack.c.l.b16 %v2255
        %v2267 = vunpack.c.l.b16 %v2256
        %v2268 = vunpack.c.l.b16 %v2257
        %v2269 = vpack.c.b16 %v2266, %v2265
        %v2270 = vpack.c.b16 %v2268, %v2267
        %v2274 = vsel %vm384, %v2258, 0
        %2276 = vmatpush.bf16.msra.mxu0 0
        %2277 = vmatpush.bf16.msra.mxu0 0
        %2278 = vmatpush.bf16.msra.mxu0 0
        %2279 = vmatpush.bf16.msra.mxu0 0
        %2280 = vmatpush.bf16.msra.mxu0 0
        %2281 = vmatpush.bf16.msra.mxu0 0
        %2282 = vmatpush.bf16.msra.mxu0 %v2270
        %2283 = vmatpush.bf16.msra.mxu0 %v2269
        %2284 = vmatmul.bf16.gmra.mxu0 %v2274
        %v2285 = vpop.f32.mrf.mxu0
        %v2286 = vadd.f32 %v2260, %v2285
        %v2287 = vpop.f32.mrf.mxu0
        %v2288 = vadd.f32 %v2260, %v2287
        %2289 = vdwg.mxu0
        %v2290 = vadd.f32 %v2286, %v2131
        %v2291 = vadd.f32 %v2288, %v2132
        %s2292 = scalar_lea.vmem %s3, 640
        %v2293 = vld [vmem:[%s2292] sm:$0xf]
        %v2294 = vld [vmem:[%s2292 + $0x4] sm:$0xf]
        %v2295 = vpack.c.bf16 %v2291, %v2290
        %v2296 = vld [vmem:[%s4 + $0xa] sm:$0x1]
        %v2297 = vperm.slane %v2296, 0
        %v2300 = vunpack.c.l.b16 %v2293
        %v2301 = vunpack.c.l.b16 %v2294
        %v2302 = vpack.c.b16 %v2301, %v2300
        %v2305 = vsel %vm1569, %v2295, 0
        %2307 = vmatpush.bf16.msra.mxu0 0
        %2308 = vmatpush.bf16.msra.mxu0 0
        %2309 = vmatpush.bf16.msra.mxu0 0
        %2310 = vmatpush.bf16.msra.mxu0 0
        %2311 = vmatpush.bf16.msra.mxu0 0
        %2312 = vmatpush.bf16.msra.mxu0 0
        %2313 = vmatpush.bf16.msra.mxu0 0
        %2314 = vmatpush.bf16.msra.mxu0 %v2302
        %2315 = vmatmul.bf16.gmra.mxu0 %v2305
        %v2316 = vpop.f32.mrf.mxu0
        %v2317 = vadd.f32 %v2297, %v2316
        %v2318 = vpop.f32.mrf.mxu0
        %v2319 = vadd.f32 %v2297, %v2318
        %2320 = vdwg.mxu0
        %v2321 = vmax.f32 %v2317, 0.0
        %v2322 = vmax.f32 %v2319, 0.0
        %2323 = vst.msk [vmem:[#allocation2 + $0x10] sm:$0xff] %vm384, %v2321
        %2324 = vst.msk [vmem:[#allocation2 + $0x18] sm:$0xff] %vm384, %v2322
        %s2325 = scalar_lea.vmem %s5, 96
        %v2326 = vld [vmem:[%s2325] sm:$0xff]
        %v2327 = vld [vmem:[%s2325 + $0x8] sm:$0x1]
        %v2328 = vld [vmem:[%s6 + $0x6] sm:$0x1]
        %v2329 = vld [vmem:[#allocation2 + $0xb] sm:$0xff]
        %v2330 = vld [vmem:[#allocation2 + $0x13] sm:$0xff]
        %v2331 = vsel %vm1617, %v2329, 0.0
        %v2332 = vsel %vm1618, %v2330, 0.0
        %v2333 = vperm.slane %v2326, 0
        %v2334 = vmul.f32 %v2331, %v2333
        %v2335 = vmul.f32 %v2332, %v2333
        %v2336 = vadd.f32 %v2334, 0.0
        %v2337 = vadd.f32 %v2335, 0.0
        %v2338 = vld [vmem:[#allocation2 + $0xc] sm:$0xff]
        %v2339 = vld [vmem:[#allocation2 + $0x14] sm:$0xff]
        %v2340 = vsel %vm1638, %v2338, 0.0
        %v2341 = vsel %vm1639, %v2339, 0.0
        %v2342 = vperm.slane %v2326, 1
        %v2343 = vmul.f32 %v2340, %v2342
        %v2344 = vmul.f32 %v2341, %v2342
        %v2345 = vadd.f32 %v2336, %v2343
        %v2346 = vadd.f32 %v2337, %v2344
        %v2347 = vld [vmem:[#allocation2 + $0xd] sm:$0xff]
        %v2348 = vld [vmem:[#allocation2 + $0x15] sm:$0xff]
        %v2349 = vsel %vm1661, %v2347, 0.0
        %v2350 = vsel %vm1662, %v2348, 0.0
        %v2351 = vperm.slane %v2326, 2
        %v2352 = vmul.f32 %v2349, %v2351
        %v2353 = vmul.f32 %v2350, %v2351
        %v2354 = vadd.f32 %v2345, %v2352
        %v2355 = vadd.f32 %v2346, %v2353
        %v2356 = vld [vmem:[#allocation2 + $0xf] sm:$0xff]
        %v2357 = vld [vmem:[#allocation2 + $0x17] sm:$0xff]
        %v2358 = vsel %vm1682, %v2356, 0.0
        %v2359 = vsel %vm1683, %v2357, 0.0
        %v2360 = vperm.slane %v2326, 3
        %v2361 = vmul.f32 %v2358, %v2360
        %v2362 = vmul.f32 %v2359, %v2360
        %v2363 = vadd.f32 %v2354, %v2361
        %v2364 = vadd.f32 %v2355, %v2362
        %v2365 = vld [vmem:[#allocation2 + $0x10] sm:$0xff]
        %v2366 = vld [vmem:[#allocation2 + $0x18] sm:$0xff]
        %v2367 = vsel %vm1697, %v2365, 0.0
        %v2368 = vsel %vm1698, %v2366, 0.0
        %v2369 = vperm.slane %v2326, 4
        %v2370 = vmul.f32 %v2367, %v2369
        %v2371 = vmul.f32 %v2368, %v2369
        %v2372 = vadd.f32 %v2363, %v2370
        %v2373 = vadd.f32 %v2364, %v2371
        %v2374 = vld [vmem:[#allocation2 + $0x11] sm:$0xff]
        %v2375 = vld [vmem:[#allocation2 + $0x19] sm:$0xff]
        %v2376 = vsel %vm1712, %v2374, 0.0
        %v2377 = vsel %vm1713, %v2375, 0.0
        %v2378 = vperm.slane %v2326, 5
        %v2379 = vmul.f32 %v2376, %v2378
        %v2380 = vmul.f32 %v2377, %v2378
        %v2381 = vadd.f32 %v2372, %v2379
        %v2382 = vadd.f32 %v2373, %v2380
        %v2383 = vld [vmem:[#allocation2 + $0x1b] sm:$0xff]
        %v2384 = vsel %vm1734, %v2330, 0.0
        %v2385 = vsel %vm1735, %v2383, 0.0
        %v2386 = vperm.slane %v2326, 6
        %v2387 = vmul.f32 %v2384, %v2386
        %v2388 = vmul.f32 %v2385, %v2386
        %v2389 = vadd.f32 %v2381, %v2387
        %v2390 = vadd.f32 %v2382, %v2388
        %v2391 = vld [vmem:[#allocation2 + $0x1c] sm:$0xff]
        %v2392 = vsel %vm1748, %v2339, 0.0
        %v2393 = vsel %vm1749, %v2391, 0.0
        %v2394 = vperm.slane %v2326, 7
        %v2395 = vmul.f32 %v2392, %v2394
        %v2396 = vmul.f32 %v2393, %v2394
        %v2397 = vadd.f32 %v2389, %v2395
        %v2398 = vadd.f32 %v2390, %v2396
        %v2399 = vld [vmem:[#allocation2 + $0x1d] sm:$0xff]
        %v2400 = vsel %vm1762, %v2348, 0.0
        %v2401 = vsel %vm1763, %v2399, 0.0
        %v2402 = vperm.slane %v2327, 0
        %v2403 = vmul.f32 %v2400, %v2402
        %v2404 = vmul.f32 %v2401, %v2402
        %v2405 = vadd.f32 %v2397, %v2403
        %v2406 = vadd.f32 %v2398, %v2404
        %v2407 = vperm.slane %v2328, 0
        %v2408 = vadd.f32 %v2405, %v2407
        %v2409 = vadd.f32 %v2406, %v2407
        %v2410 = vmax.f32 %v2408, 0.0
        %v2411 = vmax.f32 %v2409, 0.0
        %v2412 = vshra.s32 %v397, 2
        %v2413 = vand.u32 %v397, 3
        %v2414 = vshra.s32 %v2413, 1
        %v2415 = vand.u32 %v2413, 1
        %v2416 = vmul.u32 %v2412, 16
        %v2417 = vmul.u32 %v2414, 8
        %v2418 = vadd.s32 %v2416, %v2417
        %v2419 = vmul.u32 %v2415, 2
        %v2420 = vadd.s32 %v2418, %v2419
        %vm2421 = vcmp.eq.s32.totalorder %v1450, %v2420
        %v2422 = vsel %vm2421, 1, 0
        %v2423 = vcvt.s32.f32 %v2422
        %v2425 = vsel %vm1569, %v2423, 0
        %2427 = vmatpush.msra.mxu0 0.0
        %2428 = vmatpush.msra.mxu0 0.0
        %2429 = vmatpush.msra.mxu0 0.0
        %2430 = vmatpush.msra.mxu0 0.0
        %2431 = vmatpush.msra.mxu0 0.0
        %2432 = vmatpush.msra.mxu0 0.0
        %2433 = vmatpush.msra.mxu0 0.0
        %2434 = vmatpush.msra.mxu0 0.0
        %2435 = vmatpush.msra.mxu0 0.0
        %2436 = vmatpush.msra.mxu0 0.0
        %2437 = vmatpush.msra.mxu0 0.0
        %2438 = vmatpush.msra.mxu0 0.0
        %2439 = vmatpush.msra.mxu0 0.0
        %2440 = vmatpush.msra.mxu0 0.0
        %2441 = vmatpush.msra.mxu0 %v2411
        %2442 = vmatpush.msra.mxu0 %v2410
        %2443 = vmatmul.f32.gmra.mxu0 %v2425
        %v2444 = vpop.f32.mrf.mxu0
        %v2445 = vadd.f32 0.0, %v2444
        %2446 = vdwg.mxu0
        %s2447 = scalar_lea.vmem %s3, 704
        %v2448 = vld [vmem:[%s2447] sm:$0xf]
        %v2449 = vld [vmem:[%s2447 + $0x4] sm:$0xf]
        %v2450 = vld [vmem:[%s2447 + $0x8] sm:$0xf]
        %v2451 = vld [vmem:[%s2447 + $0xc] sm:$0xf]
        %v2452 = vpack.c.bf16 %v2445, %v2445
        %v2453 = vld [vmem:[%s4 + $0xb] sm:$0x1]
        %v2454 = vperm.slane %v2453, 0
        %v2459 = vunpack.c.l.b16 %v2448
        %v2460 = vunpack.c.l.b16 %v2449
        %v2461 = vunpack.c.l.b16 %v2450
        %v2462 = vunpack.c.l.b16 %v2451
        %v2463 = vpack.c.b16 %v2460, %v2459
        %v2464 = vpack.c.b16 %v2462, %v2461
        %v2468 = vsel %vm384, %v2452, 0
        %2470 = vmatpush.bf16.msra.mxu0 0
        %2471 = vmatpush.bf16.msra.mxu0 0
        %2472 = vmatpush.bf16.msra.mxu0 0
        %2473 = vmatpush.bf16.msra.mxu0 0
        %2474 = vmatpush.bf16.msra.mxu0 0
        %2475 = vmatpush.bf16.msra.mxu0 0
        %2476 = vmatpush.bf16.msra.mxu0 %v2464
        %2477 = vmatpush.bf16.msra.mxu0 %v2463
        %2478 = vmatmul.bf16.gmra.mxu0 %v2468
        %v2479 = vpop.f32.mrf.mxu0
        %v2480 = vadd.f32 %v2454, %v2479
        %v2481 = vpop.f32.mrf.mxu0
        %2482 = vdwg.mxu0
        %s2483 = scalar_lea.vmem %s3, 768
        %v2484 = vld [vmem:[%s2483] sm:$0xf]
        %v2485 = vld [vmem:[%s2483 + $0x4] sm:$0xf]
        %v2486 = vld [vmem:[%s2483 + $0x8] sm:$0xf]
        %v2487 = vld [vmem:[%s2483 + $0xc] sm:$0xf]
        %v2488 = vpack.c.bf16 %v2480, %v2480
        %v2489 = vld [vmem:[%s4 + $0xc] sm:$0x1]
        %v2490 = vperm.slane %v2489, 0
        %v2495 = vunpack.c.l.b16 %v2484
        %v2496 = vunpack.c.l.b16 %v2485
        %v2497 = vunpack.c.l.b16 %v2486
        %v2498 = vunpack.c.l.b16 %v2487
        %v2499 = vpack.c.b16 %v2496, %v2495
        %v2500 = vpack.c.b16 %v2498, %v2497
        %v2504 = vsel %vm384, %v2488, 0
        %2506 = vmatpush.bf16.msra.mxu0 0
        %2507 = vmatpush.bf16.msra.mxu0 0
        %2508 = vmatpush.bf16.msra.mxu0 0
        %2509 = vmatpush.bf16.msra.mxu0 0
        %2510 = vmatpush.bf16.msra.mxu0 0
        %2511 = vmatpush.bf16.msra.mxu0 0
        %2512 = vmatpush.bf16.msra.mxu0 %v2500
        %2513 = vmatpush.bf16.msra.mxu0 %v2499
        %2514 = vmatmul.bf16.gmra.mxu0 %v2504
        %v2515 = vpop.f32.mrf.mxu0
        %v2516 = vadd.f32 %v2490, %v2515
        %v2517 = vpop.f32.mrf.mxu0
        %2518 = vdwg.mxu0
        %v2519 = vmax.f32 %v2516, 0.0
        %2520 = vst [vmem:[#allocation2 + $0x10] sm:$0xf] %v2519
        %s2521 = scalar_lea.vmem %s5, 112
        %v2522 = vld [vmem:[%s2521] sm:$0xff]
        %v2523 = vld [vmem:[%s2521 + $0x8] sm:$0x1]
        %v2524 = vld [vmem:[%s6 + $0x7] sm:$0x1]
        %v2525 = vadd.s32 %v2414, 4294967295
        %vm2526 = vcmp.ge.s32.totalorder %v2525, 0
        %vm2527 = vcmp.le.s32.totalorder %v2525, 1
        %vm2528 = vmand %vm2526, %vm2527
        %v2529 = vadd.s32 %v2415, 4294967295
        %vm2530 = vcmp.ge.s32.totalorder %v2529, 0
        %vm2531 = vcmp.le.s32.totalorder %v2529, 1
        %vm2532 = vmand %vm2530, %vm2531
        %vm2533 = vmand %vm2528, %vm2532
        %v2534 = vld [vmem:[#allocation2 + $0xd] sm:$0xf]
        %v2535 = vsel %vm2533, 1, 0
        %vm2536 = vcmp.eq.s32.totalorder %v2535, 1
        %v2537 = vsel %vm2536, %v2534, 0.0
        %v2538 = vperm.slane %v2522, 0
        %v2539 = vmul.f32 %v2537, %v2538
        %v2540 = vadd.f32 %v2539, 0.0
        %vm2541 = vcmp.ge.s32.totalorder %v2415, 0
        %vm2542 = vcmp.le.s32.totalorder %v2415, 1
        %vm2543 = vmand %vm2541, %vm2542
        %vm2544 = vmand %vm2528, %vm2543
        %v2545 = vld [vmem:[#allocation2 + $0xe] sm:$0xf]
        %v2546 = vsel %vm2544, 1, 0
        %vm2547 = vcmp.eq.s32.totalorder %v2546, 1
        %v2548 = vsel %vm2547, %v2545, 0.0
        %v2549 = vperm.slane %v2522, 1
        %v2550 = vmul.f32 %v2548, %v2549
        %v2551 = vadd.f32 %v2540, %v2550
        %v2552 = vadd.s32 %v2415, 1
        %vm2553 = vcmp.ge.s32.totalorder %v2552, 0
        %vm2554 = vcmp.le.s32.totalorder %v2552, 1
        %vm2555 = vmand %vm2553, %vm2554
        %vm2556 = vmand %vm2528, %vm2555
        %v2557 = vld [vmem:[#allocation2 + $0xf] sm:$0xf]
        %v2558 = vsel %vm2556, 1, 0
        %vm2559 = vcmp.eq.s32.totalorder %v2558, 1
        %v2560 = vsel %vm2559, %v2557, 0.0
        %v2561 = vperm.slane %v2522, 2
        %v2562 = vmul.f32 %v2560, %v2561
        %v2563 = vadd.f32 %v2551, %v2562
        %vm2564 = vcmp.ge.s32.totalorder %v2414, 0
        %vm2565 = vcmp.le.s32.totalorder %v2414, 1
        %vm2566 = vmand %vm2564, %vm2565
        %vm2567 = vmand %vm2566, %vm2532
        %v2568 = vsel %vm2567, 1, 0
        %vm2569 = vcmp.eq.s32.totalorder %v2568, 1
        %v2570 = vsel %vm2569, %v2557, 0.0
        %v2571 = vperm.slane %v2522, 3
        %v2572 = vmul.f32 %v2570, %v2571
        %v2573 = vadd.f32 %v2563, %v2572
        %vm2574 = vmand %vm2566, %vm2543
        %v2575 = vld [vmem:[#allocation2 + $0x10] sm:$0xf]
        %v2576 = vsel %vm2574, 1, 0
        %vm2577 = vcmp.eq.s32.totalorder %v2576, 1
        %v2578 = vsel %vm2577, %v2575, 0.0
        %v2579 = vperm.slane %v2522, 4
        %v2580 = vmul.f32 %v2578, %v2579
        %v2581 = vadd.f32 %v2573, %v2580
        %vm2582 = vmand %vm2566, %vm2555
        %v2583 = vld [vmem:[#allocation2 + $0x11] sm:$0xf]
        %v2584 = vsel %vm2582, 1, 0
        %vm2585 = vcmp.eq.s32.totalorder %v2584, 1
        %v2586 = vsel %vm2585, %v2583, 0.0
        %v2587 = vperm.slane %v2522, 5
        %v2588 = vmul.f32 %v2586, %v2587
        %v2589 = vadd.f32 %v2581, %v2588
        %v2590 = vadd.s32 %v2414, 1
        %vm2591 = vcmp.ge.s32.totalorder %v2590, 0
        %vm2592 = vcmp.le.s32.totalorder %v2590, 1
        %vm2593 = vmand %vm2591, %vm2592
        %vm2594 = vmand %vm2593, %vm2532
        %v2595 = vsel %vm2594, 1, 0
        %vm2596 = vcmp.eq.s32.totalorder %v2595, 1
        %v2597 = vsel %vm2596, %v2583, 0.0
        %v2598 = vperm.slane %v2522, 6
        %v2599 = vmul.f32 %v2597, %v2598
        %v2600 = vadd.f32 %v2589, %v2599
        %vm2601 = vmand %vm2593, %vm2543
        %v2602 = vld [vmem:[#allocation2 + $0x12] sm:$0xf]
        %v2603 = vsel %vm2601, 1, 0
        %vm2604 = vcmp.eq.s32.totalorder %v2603, 1
        %v2605 = vsel %vm2604, %v2602, 0.0
        %v2606 = vperm.slane %v2522, 7
        %v2607 = vmul.f32 %v2605, %v2606
        %v2608 = vadd.f32 %v2600, %v2607
        %vm2609 = vmand %vm2593, %vm2555
        %v2610 = vld [vmem:[#allocation2 + $0x13] sm:$0xf]
        %v2611 = vsel %vm2609, 1, 0
        %vm2612 = vcmp.eq.s32.totalorder %v2611, 1
        %v2613 = vsel %vm2612, %v2610, 0.0
        %v2614 = vperm.slane %v2523, 0
        %v2615 = vmul.f32 %v2613, %v2614
        %v2616 = vadd.f32 %v2608, %v2615
        %v2617 = vperm.slane %v2524, 0
        %v2618 = vadd.f32 %v2616, %v2617
        %v2619 = vmax.f32 %v2618, 0.0
        %s2620 = scalar_lea.vmem %s3, 832
        %v2621 = vld [vmem:[%s2620] sm:$0xf]
        %v2622 = vld [vmem:[%s2620 + $0x4] sm:$0xf]
        %v2623 = vld [vmem:[%s2620 + $0x8] sm:$0xf]
        %v2624 = vld [vmem:[%s2620 + $0xc] sm:$0xf]
        %v2625 = vld [vmem:[%s2620 + $0x10] sm:$0xf]
        %v2626 = vld [vmem:[%s2620 + $0x14] sm:$0xf]
        %v2627 = vld [vmem:[%s2620 + $0x18] sm:$0xf]
        %v2628 = vld [vmem:[%s2620 + $0x1c] sm:$0xf]
        %v2629 = vld [vmem:[%s2620 + $0x20] sm:$0xf]
        %v2630 = vld [vmem:[%s2620 + $0x24] sm:$0xf]
        %v2631 = vld [vmem:[%s2620 + $0x28] sm:$0xf]
        %v2632 = vld [vmem:[%s2620 + $0x2c] sm:$0xf]
        %v2633 = vld [vmem:[%s2620 + $0x30] sm:$0xf]
        %v2634 = vld [vmem:[%s2620 + $0x34] sm:$0xf]
        %v2635 = vld [vmem:[%s2620 + $0x38] sm:$0xf]
        %v2636 = vld [vmem:[%s2620 + $0x3c] sm:$0xf]
        %v2637 = vpack.c.bf16 %v2619, %v2619
        %v2638 = vld [vmem:[%s4 + $0xd] sm:$0x1]
        %v2639 = vperm.slane %v2638, 0
        %v2656 = vunpack.c.l.b16 %v2621
        %v2657 = vunpack.c.l.b16 %v2622
        %v2658 = vunpack.c.l.b16 %v2623
        %v2659 = vunpack.c.l.b16 %v2624
        %v2660 = vunpack.c.l.b16 %v2625
        %v2661 = vunpack.c.l.b16 %v2626
        %v2662 = vunpack.c.l.b16 %v2627
        %v2663 = vunpack.c.l.b16 %v2628
        %v2664 = vunpack.c.l.b16 %v2629
        %v2665 = vunpack.c.l.b16 %v2630
        %v2666 = vunpack.c.l.b16 %v2631
        %v2667 = vunpack.c.l.b16 %v2632
        %v2668 = vunpack.c.l.b16 %v2633
        %v2669 = vunpack.c.l.b16 %v2634
        %v2670 = vunpack.c.l.b16 %v2635
        %v2671 = vunpack.c.l.b16 %v2636
        %v2672 = vpack.c.b16 %v2657, %v2656
        %v2673 = vpack.c.b16 %v2659, %v2658
        %v2674 = vpack.c.b16 %v2661, %v2660
        %v2675 = vpack.c.b16 %v2663, %v2662
        %v2676 = vpack.c.b16 %v2665, %v2664
        %v2677 = vpack.c.b16 %v2667, %v2666
        %v2678 = vpack.c.b16 %v2669, %v2668
        %v2679 = vpack.c.b16 %v2671, %v2670
        %2688 = vmatpush.bf16.msra.mxu0 %v2679
        %2689 = vmatpush.bf16.msra.mxu0 %v2678
        %2690 = vmatpush.bf16.msra.mxu0 %v2677
        %2691 = vmatpush.bf16.msra.mxu0 %v2676
        %2692 = vmatpush.bf16.msra.mxu0 %v2675
        %2693 = vmatpush.bf16.msra.mxu0 %v2674
        %2694 = vmatpush.bf16.msra.mxu0 %v2673
        %2695 = vmatpush.bf16.msra.mxu0 %v2672
        %2696 = vmatmul.bf16.gmra.mxu0 %v2637
        %v2697 = vpop.f32.mrf.mxu0
        %v2698 = vadd.f32 %v2639, %v2697
        %v2699 = vpop.f32.mrf.mxu0
        %2700 = vdwg.mxu0
        %v2701 = vadd.f32 %v2698, %v2480
        %s2702 = scalar_lea.vmem %s3, 896
        %v2703 = vld [vmem:[%s2702] sm:$0xf]
        %v2704 = vld [vmem:[%s2702 + $0x4] sm:$0xf]
        %v2705 = vld [vmem:[%s2702 + $0x8] sm:$0xf]
        %v2706 = vld [vmem:[%s2702 + $0xc] sm:$0xf]
        %v2707 = vpack.c.bf16 %v2701, %v2701
        %v2708 = vld [vmem:[%s4 + $0xe] sm:$0x1]
        %v2709 = vperm.slane %v2708, 0
        %v2714 = vunpack.c.l.b16 %v2703
        %v2715 = vunpack.c.l.b16 %v2704
        %v2716 = vunpack.c.l.b16 %v2705
        %v2717 = vunpack.c.l.b16 %v2706
        %v2718 = vpack.c.b16 %v2715, %v2714
        %v2719 = vpack.c.b16 %v2717, %v2716
        %v2723 = vsel %vm384, %v2707, 0
        %2725 = vmatpush.bf16.msra.mxu0 0
        %2726 = vmatpush.bf16.msra.mxu0 0
        %2727 = vmatpush.bf16.msra.mxu0 0
        %2728 = vmatpush.bf16.msra.mxu0 0
        %2729 = vmatpush.bf16.msra.mxu0 0
        %2730 = vmatpush.bf16.msra.mxu0 0
        %2731 = vmatpush.bf16.msra.mxu0 %v2719
        %2732 = vmatpush.bf16.msra.mxu0 %v2718
        %2733 = vmatmul.bf16.gmra.mxu0 %v2723
        %v2734 = vpop.f32.mrf.mxu0
        %v2735 = vadd.f32 %v2709, %v2734
        %v2736 = vpop.f32.mrf.mxu0
        %2737 = vdwg.mxu0
        %v2738 = vmax.f32 %v2735, 0.0
        %2739 = vst [vmem:[#allocation2 + $0x10] sm:$0xf] %v2738
        %s2740 = scalar_lea.vmem %s5, 128
        %v2741 = vld [vmem:[%s2740] sm:$0xff]
        %v2742 = vld [vmem:[%s2740 + $0x8] sm:$0x1]
        %v2743 = vld [vmem:[%s6 + $0x8] sm:$0x1]
        %v2744 = vld [vmem:[#allocation2 + $0xd] sm:$0xf]
        %v2745 = vsel %vm2536, %v2744, 0.0
        %v2746 = vperm.slane %v2741, 0
        %v2747 = vmul.f32 %v2745, %v2746
        %v2748 = vadd.f32 %v2747, 0.0
        %v2749 = vld [vmem:[#allocation2 + $0xe] sm:$0xf]
        %v2750 = vsel %vm2547, %v2749, 0.0
        %v2751 = vperm.slane %v2741, 1
        %v2752 = vmul.f32 %v2750, %v2751
        %v2753 = vadd.f32 %v2748, %v2752
        %v2754 = vld [vmem:[#allocation2 + $0xf] sm:$0xf]
        %v2755 = vsel %vm2559, %v2754, 0.0
        %v2756 = vperm.slane %v2741, 2
        %v2757 = vmul.f32 %v2755, %v2756
        %v2758 = vadd.f32 %v2753, %v2757
        %v2759 = vsel %vm2569, %v2754, 0.0
        %v2760 = vperm.slane %v2741, 3
        %v2761 = vmul.f32 %v2759, %v2760
        %v2762 = vadd.f32 %v2758, %v2761
        %v2763 = vld [vmem:[#allocation2 + $0x10] sm:$0xf]
        %v2764 = vsel %vm2577, %v2763, 0.0
        %v2765 = vperm.slane %v2741, 4
        %v2766 = vmul.f32 %v2764, %v2765
        %v2767 = vadd.f32 %v2762, %v2766
        %v2768 = vld [vmem:[#allocation2 + $0x11] sm:$0xf]
        %v2769 = vsel %vm2585, %v2768, 0.0
        %v2770 = vperm.slane %v2741, 5
        %v2771 = vmul.f32 %v2769, %v2770
        %v2772 = vadd.f32 %v2767, %v2771
        %v2773 = vsel %vm2596, %v2768, 0.0
        %v2774 = vperm.slane %v2741, 6
        %v2775 = vmul.f32 %v2773, %v2774
        %v2776 = vadd.f32 %v2772, %v2775
        %v2777 = vld [vmem:[#allocation2 + $0x12] sm:$0xf]
        %v2778 = vsel %vm2604, %v2777, 0.0
        %v2779 = vperm.slane %v2741, 7
        %v2780 = vmul.f32 %v2778, %v2779
        %v2781 = vadd.f32 %v2776, %v2780
        %v2782 = vld [vmem:[#allocation2 + $0x13] sm:$0xf]
        %v2783 = vsel %vm2612, %v2782, 0.0
        %v2784 = vperm.slane %v2742, 0
        %v2785 = vmul.f32 %v2783, %v2784
        %v2786 = vadd.f32 %v2781, %v2785
        %v2787 = vperm.slane %v2743, 0
        %v2788 = vadd.f32 %v2786, %v2787
        %v2789 = vmax.f32 %v2788, 0.0
        %s2790 = scalar_lea.vmem %s3, 960
        %v2791 = vld [vmem:[%s2790] sm:$0xf]
        %v2792 = vld [vmem:[%s2790 + $0x4] sm:$0xf]
        %v2793 = vld [vmem:[%s2790 + $0x8] sm:$0xf]
        %v2794 = vld [vmem:[%s2790 + $0xc] sm:$0xf]
        %v2795 = vld [vmem:[%s2790 + $0x10] sm:$0xf]
        %v2796 = vld [vmem:[%s2790 + $0x14] sm:$0xf]
        %v2797 = vld [vmem:[%s2790 + $0x18] sm:$0xf]
        %v2798 = vld [vmem:[%s2790 + $0x1c] sm:$0xf]
        %v2799 = vld [vmem:[%s2790 + $0x20] sm:$0xf]
        %v2800 = vld [vmem:[%s2790 + $0x24] sm:$0xf]
        %v2801 = vld [vmem:[%s2790 + $0x28] sm:$0xf]
        %v2802 = vld [vmem:[%s2790 + $0x2c] sm:$0xf]
        %v2803 = vld [vmem:[%s2790 + $0x30] sm:$0xf]
        %v2804 = vld [vmem:[%s2790 + $0x34] sm:$0xf]
        %v2805 = vld [vmem:[%s2790 + $0x38] sm:$0xf]
        %v2806 = vld [vmem:[%s2790 + $0x3c] sm:$0xf]
        %v2807 = vpack.c.bf16 %v2789, %v2789
        %v2808 = vld [vmem:[%s4 + $0xf] sm:$0x1]
        %v2809 = vperm.slane %v2808, 0
        %v2826 = vunpack.c.l.b16 %v2791
        %v2827 = vunpack.c.l.b16 %v2792
        %v2828 = vunpack.c.l.b16 %v2793
        %v2829 = vunpack.c.l.b16 %v2794
        %v2830 = vunpack.c.l.b16 %v2795
        %v2831 = vunpack.c.l.b16 %v2796
        %v2832 = vunpack.c.l.b16 %v2797
        %v2833 = vunpack.c.l.b16 %v2798
        %v2834 = vunpack.c.l.b16 %v2799
        %v2835 = vunpack.c.l.b16 %v2800
        %v2836 = vunpack.c.l.b16 %v2801
        %v2837 = vunpack.c.l.b16 %v2802
        %v2838 = vunpack.c.l.b16 %v2803
        %v2839 = vunpack.c.l.b16 %v2804
        %v2840 = vunpack.c.l.b16 %v2805
        %v2841 = vunpack.c.l.b16 %v2806
        %v2842 = vpack.c.b16 %v2827, %v2826
        %v2843 = vpack.c.b16 %v2829, %v2828
        %v2844 = vpack.c.b16 %v2831, %v2830
        %v2845 = vpack.c.b16 %v2833, %v2832
        %v2846 = vpack.c.b16 %v2835, %v2834
        %v2847 = vpack.c.b16 %v2837, %v2836
        %v2848 = vpack.c.b16 %v2839, %v2838
        %v2849 = vpack.c.b16 %v2841, %v2840
        %2858 = vmatpush.bf16.msra.mxu0 %v2849
        %2859 = vmatpush.bf16.msra.mxu0 %v2848
        %2860 = vmatpush.bf16.msra.mxu0 %v2847
        %2861 = vmatpush.bf16.msra.mxu0 %v2846
        %2862 = vmatpush.bf16.msra.mxu0 %v2845
        %2863 = vmatpush.bf16.msra.mxu0 %v2844
        %2864 = vmatpush.bf16.msra.mxu0 %v2843
        %2865 = vmatpush.bf16.msra.mxu0 %v2842
        %2866 = vmatmul.bf16.gmra.mxu0 %v2807
        %v2867 = vpop.f32.mrf.mxu0
        %v2868 = vadd.f32 %v2809, %v2867
        %v2869 = vpop.f32.mrf.mxu0
        %2870 = vdwg.mxu0
        %v2871 = vadd.f32 %v2868, %v2701
        %s2872 = scalar_lea.vmem %s3, 1024
        %v2873 = vld [vmem:[%s2872] sm:$0xf]
        %v2874 = vld [vmem:[%s2872 + $0x4] sm:$0xf]
        %v2875 = vld [vmem:[%s2872 + $0x8] sm:$0xf]
        %v2876 = vld [vmem:[%s2872 + $0xc] sm:$0xf]
        %v2877 = vpack.c.bf16 %v2871, %v2871
        %v2878 = vld [vmem:[%s4 + $0x10] sm:$0x1]
        %v2879 = vperm.slane %v2878, 0
        %v2884 = vunpack.c.l.b16 %v2873
        %v2885 = vunpack.c.l.b16 %v2874
        %v2886 = vunpack.c.l.b16 %v2875
        %v2887 = vunpack.c.l.b16 %v2876
        %v2888 = vpack.c.b16 %v2885, %v2884
        %v2889 = vpack.c.b16 %v2887, %v2886
        %v2893 = vsel %vm384, %v2877, 0
        %2895 = vmatpush.bf16.msra.mxu0 0
        %2896 = vmatpush.bf16.msra.mxu0 0
        %2897 = vmatpush.bf16.msra.mxu0 0
        %2898 = vmatpush.bf16.msra.mxu0 0
        %2899 = vmatpush.bf16.msra.mxu0 0
        %2900 = vmatpush.bf16.msra.mxu0 0
        %2901 = vmatpush.bf16.msra.mxu0 %v2889
        %2902 = vmatpush.bf16.msra.mxu0 %v2888
        %2903 = vmatmul.bf16.gmra.mxu0 %v2893
        %v2904 = vpop.f32.mrf.mxu0
        %v2905 = vadd.f32 %v2879, %v2904
        %v2906 = vpop.f32.mrf.mxu0
        %2907 = vdwg.mxu0
        %v2908 = vmax.f32 %v2905, 0.0
        %2909 = vst [vmem:[#allocation2 + $0x10] sm:$0xf] %v2908
        %s2910 = scalar_lea.vmem %s5, 144
        %v2911 = vld [vmem:[%s2910] sm:$0xff]
        %v2912 = vld [vmem:[%s2910 + $0x8] sm:$0x1]
        %v2913 = vld [vmem:[%s6 + $0x9] sm:$0x1]
        %v2914 = vld [vmem:[#allocation2 + $0xd] sm:$0xf]
        %v2915 = vsel %vm2536, %v2914, 0.0
        %v2916 = vperm.slane %v2911, 0
        %v2917 = vmul.f32 %v2915, %v2916
        %v2918 = vadd.f32 %v2917, 0.0
        %v2919 = vld [vmem:[#allocation2 + $0xe] sm:$0xf]
        %v2920 = vsel %vm2547, %v2919, 0.0
        %v2921 = vperm.slane %v2911, 1
        %v2922 = vmul.f32 %v2920, %v2921
        %v2923 = vadd.f32 %v2918, %v2922
        %v2924 = vld [vmem:[#allocation2 + $0xf] sm:$0xf]
        %v2925 = vsel %vm2559, %v2924, 0.0
        %v2926 = vperm.slane %v2911, 2
        %v2927 = vmul.f32 %v2925, %v2926
        %v2928 = vadd.f32 %v2923, %v2927
        %v2929 = vsel %vm2569, %v2924, 0.0
        %v2930 = vperm.slane %v2911, 3
        %v2931 = vmul.f32 %v2929, %v2930
        %v2932 = vadd.f32 %v2928, %v2931
        %v2933 = vld [vmem:[#allocation2 + $0x10] sm:$0xf]
        %v2934 = vsel %vm2577, %v2933, 0.0
        %v2935 = vperm.slane %v2911, 4
        %v2936 = vmul.f32 %v2934, %v2935
        %v2937 = vadd.f32 %v2932, %v2936
        %v2938 = vld [vmem:[#allocation2 + $0x11] sm:$0xf]
        %v2939 = vsel %vm2585, %v2938, 0.0
        %v2940 = vperm.slane %v2911, 5
        %v2941 = vmul.f32 %v2939, %v2940
        %v2942 = vadd.f32 %v2937, %v2941
        %v2943 = vsel %vm2596, %v2938, 0.0
        %v2944 = vperm.slane %v2911, 6
        %v2945 = vmul.f32 %v2943, %v2944
        %v2946 = vadd.f32 %v2942, %v2945
        %v2947 = vld [vmem:[#allocation2 + $0x12] sm:$0xf]
        %v2948 = vsel %vm2604, %v2947, 0.0
        %v2949 = vperm.slane %v2911, 7
        %v2950 = vmul.f32 %v2948, %v2949
        %v2951 = vadd.f32 %v2946, %v2950
        %v2952 = vld [vmem:[#allocation2 + $0x13] sm:$0xf]
        %v2953 = vsel %vm2612, %v2952, 0.0
        %v2954 = vperm.slane %v2912, 0
        %v2955 = vmul.f32 %v2953, %v2954
        %v2956 = vadd.f32 %v2951, %v2955
        %v2957 = vperm.slane %v2913, 0
        %v2958 = vadd.f32 %v2956, %v2957
        %v2959 = vmax.f32 %v2958, 0.0
        %s2960 = scalar_lea.vmem %s3, 1088
        %v2961 = vld [vmem:[%s2960] sm:$0xf]
        %v2962 = vld [vmem:[%s2960 + $0x4] sm:$0xf]
        %v2963 = vld [vmem:[%s2960 + $0x8] sm:$0xf]
        %v2964 = vld [vmem:[%s2960 + $0xc] sm:$0xf]
        %v2965 = vld [vmem:[%s2960 + $0x10] sm:$0xf]
        %v2966 = vld [vmem:[%s2960 + $0x14] sm:$0xf]
        %v2967 = vld [vmem:[%s2960 + $0x18] sm:$0xf]
        %v2968 = vld [vmem:[%s2960 + $0x1c] sm:$0xf]
        %v2969 = vld [vmem:[%s2960 + $0x20] sm:$0xf]
        %v2970 = vld [vmem:[%s2960 + $0x24] sm:$0xf]
        %v2971 = vld [vmem:[%s2960 + $0x28] sm:$0xf]
        %v2972 = vld [vmem:[%s2960 + $0x2c] sm:$0xf]
        %v2973 = vld [vmem:[%s2960 + $0x30] sm:$0xf]
        %v2974 = vld [vmem:[%s2960 + $0x34] sm:$0xf]
        %v2975 = vld [vmem:[%s2960 + $0x38] sm:$0xf]
        %v2976 = vld [vmem:[%s2960 + $0x3c] sm:$0xf]
        %v2977 = vpack.c.bf16 %v2959, %v2959
        %v2978 = vld [vmem:[%s4 + $0x11] sm:$0x1]
        %v2979 = vperm.slane %v2978, 0
        %v2996 = vunpack.c.l.b16 %v2961
        %v2997 = vunpack.c.l.b16 %v2962
        %v2998 = vunpack.c.l.b16 %v2963
        %v2999 = vunpack.c.l.b16 %v2964
        %v3000 = vunpack.c.l.b16 %v2965
        %v3001 = vunpack.c.l.b16 %v2966
        %v3002 = vunpack.c.l.b16 %v2967
        %v3003 = vunpack.c.l.b16 %v2968
        %v3004 = vunpack.c.l.b16 %v2969
        %v3005 = vunpack.c.l.b16 %v2970
        %v3006 = vunpack.c.l.b16 %v2971
        %v3007 = vunpack.c.l.b16 %v2972
        %v3008 = vunpack.c.l.b16 %v2973
        %v3009 = vunpack.c.l.b16 %v2974
        %v3010 = vunpack.c.l.b16 %v2975
        %v3011 = vunpack.c.l.b16 %v2976
        %v3012 = vpack.c.b16 %v2997, %v2996
        %v3013 = vpack.c.b16 %v2999, %v2998
        %v3014 = vpack.c.b16 %v3001, %v3000
        %v3015 = vpack.c.b16 %v3003, %v3002
        %v3016 = vpack.c.b16 %v3005, %v3004
        %v3017 = vpack.c.b16 %v3007, %v3006
        %v3018 = vpack.c.b16 %v3009, %v3008
        %v3019 = vpack.c.b16 %v3011, %v3010
        %3028 = vmatpush.bf16.msra.mxu0 %v3019
        %3029 = vmatpush.bf16.msra.mxu0 %v3018
        %3030 = vmatpush.bf16.msra.mxu0 %v3017
        %3031 = vmatpush.bf16.msra.mxu0 %v3016
        %3032 = vmatpush.bf16.msra.mxu0 %v3015
        %3033 = vmatpush.bf16.msra.mxu0 %v3014
        %3034 = vmatpush.bf16.msra.mxu0 %v3013
        %3035 = vmatpush.bf16.msra.mxu0 %v3012
        %3036 = vmatmul.bf16.gmra.mxu0 %v2977
        %v3037 = vpop.f32.mrf.mxu0
        %v3038 = vadd.f32 %v2979, %v3037
        %v3039 = vpop.f32.mrf.mxu0
        %3040 = vdwg.mxu0
        %v3041 = vadd.f32 %v3038, %v2871
        %s3042 = scalar_lea.vmem %s3, 1152
        %v3043 = vld [vmem:[%s3042] sm:$0xf]
        %v3044 = vld [vmem:[%s3042 + $0x4] sm:$0xf]
        %v3045 = vld [vmem:[%s3042 + $0x8] sm:$0xf]
        %v3046 = vld [vmem:[%s3042 + $0xc] sm:$0xf]
        %v3047 = vpack.c.bf16 %v3041, %v3041
        %v3048 = vld [vmem:[%s4 + $0x12] sm:$0x1]
        %v3049 = vperm.slane %v3048, 0
        %v3054 = vunpack.c.l.b16 %v3043
        %v3055 = vunpack.c.l.b16 %v3044
        %v3056 = vunpack.c.l.b16 %v3045
        %v3057 = vunpack.c.l.b16 %v3046
        %v3058 = vpack.c.b16 %v3055, %v3054
        %v3059 = vpack.c.b16 %v3057, %v3056
        %v3063 = vsel %vm384, %v3047, 0
        %3065 = vmatpush.bf16.msra.mxu0 0
        %3066 = vmatpush.bf16.msra.mxu0 0
        %3067 = vmatpush.bf16.msra.mxu0 0
        %3068 = vmatpush.bf16.msra.mxu0 0
        %3069 = vmatpush.bf16.msra.mxu0 0
        %3070 = vmatpush.bf16.msra.mxu0 0
        %3071 = vmatpush.bf16.msra.mxu0 %v3059
        %3072 = vmatpush.bf16.msra.mxu0 %v3058
        %3073 = vmatmul.bf16.gmra.mxu0 %v3063
        %v3074 = vpop.f32.mrf.mxu0
        %v3075 = vadd.f32 %v3049, %v3074
        %v3076 = vpop.f32.mrf.mxu0
        %3077 = vdwg.mxu0
        %v3078 = vmax.f32 %v3075, 0.0
        %3079 = vst [vmem:[#allocation2 + $0x10] sm:$0xf] %v3078
        %s3080 = scalar_lea.vmem %s5, 160
        %v3081 = vld [vmem:[%s3080] sm:$0xff]
        %v3082 = vld [vmem:[%s3080 + $0x8] sm:$0x1]
        %v3083 = vld [vmem:[%s6 + $0xa] sm:$0x1]
        %v3084 = vld [vmem:[#allocation2 + $0xd] sm:$0xf]
        %v3085 = vsel %vm2536, %v3084, 0.0
        %v3086 = vperm.slane %v3081, 0
        %v3087 = vmul.f32 %v3085, %v3086
        %v3088 = vadd.f32 %v3087, 0.0
        %v3089 = vld [vmem:[#allocation2 + $0xe] sm:$0xf]
        %v3090 = vsel %vm2547, %v3089, 0.0
        %v3091 = vperm.slane %v3081, 1
        %v3092 = vmul.f32 %v3090, %v3091
        %v3093 = vadd.f32 %v3088, %v3092
        %v3094 = vld [vmem:[#allocation2 + $0xf] sm:$0xf]
        %v3095 = vsel %vm2559, %v3094, 0.0
        %v3096 = vperm.slane %v3081, 2
        %v3097 = vmul.f32 %v3095, %v3096
        %v3098 = vadd.f32 %v3093, %v3097
        %v3099 = vsel %vm2569, %v3094, 0.0
        %v3100 = vperm.slane %v3081, 3
        %v3101 = vmul.f32 %v3099, %v3100
        %v3102 = vadd.f32 %v3098, %v3101
        %v3103 = vld [vmem:[#allocation2 + $0x10] sm:$0xf]
        %v3104 = vsel %vm2577, %v3103, 0.0
        %v3105 = vperm.slane %v3081, 4
        %v3106 = vmul.f32 %v3104, %v3105
        %v3107 = vadd.f32 %v3102, %v3106
        %v3108 = vld [vmem:[#allocation2 + $0x11] sm:$0xf]
        %v3109 = vsel %vm2585, %v3108, 0.0
        %v3110 = vperm.slane %v3081, 5
        %v3111 = vmul.f32 %v3109, %v3110
        %v3112 = vadd.f32 %v3107, %v3111
        %v3113 = vsel %vm2596, %v3108, 0.0
        %v3114 = vperm.slane %v3081, 6
        %v3115 = vmul.f32 %v3113, %v3114
        %v3116 = vadd.f32 %v3112, %v3115
        %v3117 = vld [vmem:[#allocation2 + $0x12] sm:$0xf]
        %v3118 = vsel %vm2604, %v3117, 0.0
        %v3119 = vperm.slane %v3081, 7
        %v3120 = vmul.f32 %v3118, %v3119
        %v3121 = vadd.f32 %v3116, %v3120
        %v3122 = vld [vmem:[#allocation2 + $0x13] sm:$0xf]
        %v3123 = vsel %vm2612, %v3122, 0.0
        %v3124 = vperm.slane %v3082, 0
        %v3125 = vmul.f32 %v3123, %v3124
        %v3126 = vadd.f32 %v3121, %v3125
        %v3127 = vperm.slane %v3083, 0
        %v3128 = vadd.f32 %v3126, %v3127
        %v3129 = vmax.f32 %v3128, 0.0
        %s3130 = scalar_lea.vmem %s3, 1216
        %v3131 = vld [vmem:[%s3130] sm:$0xf]
        %v3132 = vld [vmem:[%s3130 + $0x4] sm:$0xf]
        %v3133 = vld [vmem:[%s3130 + $0x8] sm:$0xf]
        %v3134 = vld [vmem:[%s3130 + $0xc] sm:$0xf]
        %v3135 = vld [vmem:[%s3130 + $0x10] sm:$0xf]
        %v3136 = vld [vmem:[%s3130 + $0x14] sm:$0xf]
        %v3137 = vld [vmem:[%s3130 + $0x18] sm:$0xf]
        %v3138 = vld [vmem:[%s3130 + $0x1c] sm:$0xf]
        %v3139 = vld [vmem:[%s3130 + $0x20] sm:$0xf]
        %v3140 = vld [vmem:[%s3130 + $0x24] sm:$0xf]
        %v3141 = vld [vmem:[%s3130 + $0x28] sm:$0xf]
        %v3142 = vld [vmem:[%s3130 + $0x2c] sm:$0xf]
        %v3143 = vld [vmem:[%s3130 + $0x30] sm:$0xf]
        %v3144 = vld [vmem:[%s3130 + $0x34] sm:$0xf]
        %v3145 = vld [vmem:[%s3130 + $0x38] sm:$0xf]
        %v3146 = vld [vmem:[%s3130 + $0x3c] sm:$0xf]
        %v3147 = vpack.c.bf16 %v3129, %v3129
        %v3148 = vld [vmem:[%s4 + $0x13] sm:$0x1]
        %v3149 = vperm.slane %v3148, 0
        %v3166 = vunpack.c.l.b16 %v3131
        %v3167 = vunpack.c.l.b16 %v3132
        %v3168 = vunpack.c.l.b16 %v3133
        %v3169 = vunpack.c.l.b16 %v3134
        %v3170 = vunpack.c.l.b16 %v3135
        %v3171 = vunpack.c.l.b16 %v3136
        %v3172 = vunpack.c.l.b16 %v3137
        %v3173 = vunpack.c.l.b16 %v3138
        %v3174 = vunpack.c.l.b16 %v3139
        %v3175 = vunpack.c.l.b16 %v3140
        %v3176 = vunpack.c.l.b16 %v3141
        %v3177 = vunpack.c.l.b16 %v3142
        %v3178 = vunpack.c.l.b16 %v3143
        %v3179 = vunpack.c.l.b16 %v3144
        %v3180 = vunpack.c.l.b16 %v3145
        %v3181 = vunpack.c.l.b16 %v3146
        %v3182 = vpack.c.b16 %v3167, %v3166
        %v3183 = vpack.c.b16 %v3169, %v3168
        %v3184 = vpack.c.b16 %v3171, %v3170
        %v3185 = vpack.c.b16 %v3173, %v3172
        %v3186 = vpack.c.b16 %v3175, %v3174
        %v3187 = vpack.c.b16 %v3177, %v3176
        %v3188 = vpack.c.b16 %v3179, %v3178
        %v3189 = vpack.c.b16 %v3181, %v3180
        %3198 = vmatpush.bf16.msra.mxu0 %v3189
        %3199 = vmatpush.bf16.msra.mxu0 %v3188
        %3200 = vmatpush.bf16.msra.mxu0 %v3187
        %3201 = vmatpush.bf16.msra.mxu0 %v3186
        %3202 = vmatpush.bf16.msra.mxu0 %v3185
        %3203 = vmatpush.bf16.msra.mxu0 %v3184
        %3204 = vmatpush.bf16.msra.mxu0 %v3183
        %3205 = vmatpush.bf16.msra.mxu0 %v3182
        %3206 = vmatmul.bf16.gmra.mxu0 %v3147
        %v3207 = vpop.f32.mrf.mxu0
        %v3208 = vadd.f32 %v3149, %v3207
        %v3209 = vpop.f32.mrf.mxu0
        %3210 = vdwg.mxu0
        %v3211 = vadd.f32 %v3208, %v3041
        %s3212 = scalar_lea.vmem %s3, 1280
        %v3213 = vld [vmem:[%s3212] sm:$0xf]
        %v3214 = vld [vmem:[%s3212 + $0x4] sm:$0xf]
        %v3215 = vld [vmem:[%s3212 + $0x8] sm:$0xf]
        %v3216 = vld [vmem:[%s3212 + $0xc] sm:$0xf]
        %v3217 = vpack.c.bf16 %v3211, %v3211
        %v3218 = vld [vmem:[%s4 + $0x14] sm:$0x1]
        %v3219 = vperm.slane %v3218, 0
        %v3224 = vunpack.c.l.b16 %v3213
        %v3225 = vunpack.c.l.b16 %v3214
        %v3226 = vunpack.c.l.b16 %v3215
        %v3227 = vunpack.c.l.b16 %v3216
        %v3228 = vpack.c.b16 %v3225, %v3224
        %v3229 = vpack.c.b16 %v3227, %v3226
        %v3233 = vsel %vm384, %v3217, 0
        %3235 = vmatpush.bf16.msra.mxu0 0
        %3236 = vmatpush.bf16.msra.mxu0 0
        %3237 = vmatpush.bf16.msra.mxu0 0
        %3238 = vmatpush.bf16.msra.mxu0 0
        %3239 = vmatpush.bf16.msra.mxu0 0
        %3240 = vmatpush.bf16.msra.mxu0 0
        %3241 = vmatpush.bf16.msra.mxu0 %v3229
        %3242 = vmatpush.bf16.msra.mxu0 %v3228
        %3243 = vmatmul.bf16.gmra.mxu0 %v3233
        %v3244 = vpop.f32.mrf.mxu0
        %v3245 = vadd.f32 %v3219, %v3244
        %v3246 = vpop.f32.mrf.mxu0
        %3247 = vdwg.mxu0
        %v3248 = vmax.f32 %v3245, 0.0
        %3249 = vst [vmem:[#allocation2 + $0x10] sm:$0xf] %v3248
        %s3250 = scalar_lea.vmem %s5, 176
        %v3251 = vld [vmem:[%s3250] sm:$0xff]
        %v3252 = vld [vmem:[%s3250 + $0x8] sm:$0x1]
        %v3253 = vld [vmem:[%s6 + $0xb] sm:$0x1]
        %v3254 = vld [vmem:[#allocation2 + $0xd] sm:$0xf]
        %v3255 = vsel %vm2536, %v3254, 0.0
        %v3256 = vperm.slane %v3251, 0
        %v3257 = vmul.f32 %v3255, %v3256
        %v3258 = vadd.f32 %v3257, 0.0
        %v3259 = vld [vmem:[#allocation2 + $0xe] sm:$0xf]
        %v3260 = vsel %vm2547, %v3259, 0.0
        %v3261 = vperm.slane %v3251, 1
        %v3262 = vmul.f32 %v3260, %v3261
        %v3263 = vadd.f32 %v3258, %v3262
        %v3264 = vld [vmem:[#allocation2 + $0xf] sm:$0xf]
        %v3265 = vsel %vm2559, %v3264, 0.0
        %v3266 = vperm.slane %v3251, 2
        %v3267 = vmul.f32 %v3265, %v3266
        %v3268 = vadd.f32 %v3263, %v3267
        %v3269 = vsel %vm2569, %v3264, 0.0
        %v3270 = vperm.slane %v3251, 3
        %v3271 = vmul.f32 %v3269, %v3270
        %v3272 = vadd.f32 %v3268, %v3271
        %v3273 = vld [vmem:[#allocation2 + $0x10] sm:$0xf]
        %v3274 = vsel %vm2577, %v3273, 0.0
        %v3275 = vperm.slane %v3251, 4
        %v3276 = vmul.f32 %v3274, %v3275
        %v3277 = vadd.f32 %v3272, %v3276
        %v3278 = vld [vmem:[#allocation2 + $0x11] sm:$0xf]
        %v3279 = vsel %vm2585, %v3278, 0.0
        %v3280 = vperm.slane %v3251, 5
        %v3281 = vmul.f32 %v3279, %v3280
        %v3282 = vadd.f32 %v3277, %v3281
        %v3283 = vsel %vm2596, %v3278, 0.0
        %v3284 = vperm.slane %v3251, 6
        %v3285 = vmul.f32 %v3283, %v3284
        %v3286 = vadd.f32 %v3282, %v3285
        %v3287 = vld [vmem:[#allocation2 + $0x12] sm:$0xf]
        %v3288 = vsel %vm2604, %v3287, 0.0
        %v3289 = vperm.slane %v3251, 7
        %v3290 = vmul.f32 %v3288, %v3289
        %v3291 = vadd.f32 %v3286, %v3290
        %v3292 = vld [vmem:[#allocation2 + $0x13] sm:$0xf]
        %v3293 = vsel %vm2612, %v3292, 0.0
        %v3294 = vperm.slane %v3252, 0
        %v3295 = vmul.f32 %v3293, %v3294
        %v3296 = vadd.f32 %v3291, %v3295
        %v3297 = vperm.slane %v3253, 0
        %v3298 = vadd.f32 %v3296, %v3297
        %v3299 = vmax.f32 %v3298, 0.0
        %s3300 = scalar_lea.vmem %s3, 1344
        %v3301 = vld [vmem:[%s3300] sm:$0xf]
        %v3302 = vld [vmem:[%s3300 + $0x4] sm:$0xf]
        %v3303 = vld [vmem:[%s3300 + $0x8] sm:$0xf]
        %v3304 = vld [vmem:[%s3300 + $0xc] sm:$0xf]
        %v3305 = vld [vmem:[%s3300 + $0x10] sm:$0xf]
        %v3306 = vld [vmem:[%s3300 + $0x14] sm:$0xf]
        %v3307 = vld [vmem:[%s3300 + $0x18] sm:$0xf]
        %v3308 = vld [vmem:[%s3300 + $0x1c] sm:$0xf]
        %v3309 = vld [vmem:[%s3300 + $0x20] sm:$0xf]
        %v3310 = vld [vmem:[%s3300 + $0x24] sm:$0xf]
        %v3311 = vld [vmem:[%s3300 + $0x28] sm:$0xf]
        %v3312 = vld [vmem:[%s3300 + $0x2c] sm:$0xf]
        %v3313 = vld [vmem:[%s3300 + $0x30] sm:$0xf]
        %v3314 = vld [vmem:[%s3300 + $0x34] sm:$0xf]
        %v3315 = vld [vmem:[%s3300 + $0x38] sm:$0xf]
        %v3316 = vld [vmem:[%s3300 + $0x3c] sm:$0xf]
        %v3317 = vpack.c.bf16 %v3299, %v3299
        %v3318 = vld [vmem:[%s4 + $0x15] sm:$0x1]
        %v3319 = vperm.slane %v3318, 0
        %v3336 = vunpack.c.l.b16 %v3301
        %v3337 = vunpack.c.l.b16 %v3302
        %v3338 = vunpack.c.l.b16 %v3303
        %v3339 = vunpack.c.l.b16 %v3304
        %v3340 = vunpack.c.l.b16 %v3305
        %v3341 = vunpack.c.l.b16 %v3306
        %v3342 = vunpack.c.l.b16 %v3307
        %v3343 = vunpack.c.l.b16 %v3308
        %v3344 = vunpack.c.l.b16 %v3309
        %v3345 = vunpack.c.l.b16 %v3310
        %v3346 = vunpack.c.l.b16 %v3311
        %v3347 = vunpack.c.l.b16 %v3312
        %v3348 = vunpack.c.l.b16 %v3313
        %v3349 = vunpack.c.l.b16 %v3314
        %v3350 = vunpack.c.l.b16 %v3315
        %v3351 = vunpack.c.l.b16 %v3316
        %v3352 = vpack.c.b16 %v3337, %v3336
        %v3353 = vpack.c.b16 %v3339, %v3338
        %v3354 = vpack.c.b16 %v3341, %v3340
        %v3355 = vpack.c.b16 %v3343, %v3342
        %v3356 = vpack.c.b16 %v3345, %v3344
        %v3357 = vpack.c.b16 %v3347, %v3346
        %v3358 = vpack.c.b16 %v3349, %v3348
        %v3359 = vpack.c.b16 %v3351, %v3350
        %3368 = vmatpush.bf16.msra.mxu0 %v3359
        %3369 = vmatpush.bf16.msra.mxu0 %v3358
        %3370 = vmatpush.bf16.msra.mxu0 %v3357
        %3371 = vmatpush.bf16.msra.mxu0 %v3356
        %3372 = vmatpush.bf16.msra.mxu0 %v3355
        %3373 = vmatpush.bf16.msra.mxu0 %v3354
        %3374 = vmatpush.bf16.msra.mxu0 %v3353
        %3375 = vmatpush.bf16.msra.mxu0 %v3352
        %3376 = vmatmul.bf16.gmra.mxu0 %v3317
        %v3377 = vpop.f32.mrf.mxu0
        %v3378 = vadd.f32 %v3319, %v3377
        %v3379 = vpop.f32.mrf.mxu0
        %3380 = vdwg.mxu0
        %v3381 = vadd.f32 %v3378, %v3211
        %s3382 = scalar_lea.vmem %s3, 1408
        %v3383 = vld [vmem:[%s3382] sm:$0xf]
        %v3384 = vld [vmem:[%s3382 + $0x4] sm:$0xf]
        %v3385 = vld [vmem:[%s3382 + $0x8] sm:$0xf]
        %v3386 = vld [vmem:[%s3382 + $0xc] sm:$0xf]
        %v3387 = vpack.c.bf16 %v3381, %v3381
        %v3388 = vld [vmem:[%s4 + $0x16] sm:$0x1]
        %v3389 = vperm.slane %v3388, 0
        %v3394 = vunpack.c.l.b16 %v3383
        %v3395 = vunpack.c.l.b16 %v3384
        %v3396 = vunpack.c.l.b16 %v3385
        %v3397 = vunpack.c.l.b16 %v3386
        %v3398 = vpack.c.b16 %v3395, %v3394
        %v3399 = vpack.c.b16 %v3397, %v3396
        %v3403 = vsel %vm384, %v3387, 0
        %3405 = vmatpush.bf16.msra.mxu0 0
        %3406 = vmatpush.bf16.msra.mxu0 0
        %3407 = vmatpush.bf16.msra.mxu0 0
        %3408 = vmatpush.bf16.msra.mxu0 0
        %3409 = vmatpush.bf16.msra.mxu0 0
        %3410 = vmatpush.bf16.msra.mxu0 0
        %3411 = vmatpush.bf16.msra.mxu0 %v3399
        %3412 = vmatpush.bf16.msra.mxu0 %v3398
        %3413 = vmatmul.bf16.gmra.mxu0 %v3403
        %v3414 = vpop.f32.mrf.mxu0
        %v3415 = vadd.f32 %v3389, %v3414
        %v3416 = vpop.f32.mrf.mxu0
        %3417 = vdwg.mxu0
        %v3418 = vmax.f32 %v3415, 0.0
        %3419 = vst [vmem:[#allocation2 + $0x10] sm:$0xf] %v3418
        %s3420 = scalar_lea.vmem %s5, 192
        %v3421 = vld [vmem:[%s3420] sm:$0xff]
        %v3422 = vld [vmem:[%s3420 + $0x8] sm:$0x1]
        %v3423 = vld [vmem:[%s6 + $0xc] sm:$0x1]
        %v3424 = vld [vmem:[#allocation2 + $0xd] sm:$0xf]
        %v3425 = vsel %vm2536, %v3424, 0.0
        %v3426 = vperm.slane %v3421, 0
        %v3427 = vmul.f32 %v3425, %v3426
        %v3428 = vadd.f32 %v3427, 0.0
        %v3429 = vld [vmem:[#allocation2 + $0xe] sm:$0xf]
        %v3430 = vsel %vm2547, %v3429, 0.0
        %v3431 = vperm.slane %v3421, 1
        %v3432 = vmul.f32 %v3430, %v3431
        %v3433 = vadd.f32 %v3428, %v3432
        %v3434 = vld [vmem:[#allocation2 + $0xf] sm:$0xf]
        %v3435 = vsel %vm2559, %v3434, 0.0
        %v3436 = vperm.slane %v3421, 2
        %v3437 = vmul.f32 %v3435, %v3436
        %v3438 = vadd.f32 %v3433, %v3437
        %v3439 = vsel %vm2569, %v3434, 0.0
        %v3440 = vperm.slane %v3421, 3
        %v3441 = vmul.f32 %v3439, %v3440
        %v3442 = vadd.f32 %v3438, %v3441
        %v3443 = vld [vmem:[#allocation2 + $0x10] sm:$0xf]
        %v3444 = vsel %vm2577, %v3443, 0.0
        %v3445 = vperm.slane %v3421, 4
        %v3446 = vmul.f32 %v3444, %v3445
        %v3447 = vadd.f32 %v3442, %v3446
        %v3448 = vld [vmem:[#allocation2 + $0x11] sm:$0xf]
        %v3449 = vsel %vm2585, %v3448, 0.0
        %v3450 = vperm.slane %v3421, 5
        %v3451 = vmul.f32 %v3449, %v3450
        %v3452 = vadd.f32 %v3447, %v3451
        %v3453 = vsel %vm2596, %v3448, 0.0
        %v3454 = vperm.slane %v3421, 6
        %v3455 = vmul.f32 %v3453, %v3454
        %v3456 = vadd.f32 %v3452, %v3455
        %v3457 = vld [vmem:[#allocation2 + $0x12] sm:$0xf]
        %v3458 = vsel %vm2604, %v3457, 0.0
        %v3459 = vperm.slane %v3421, 7
        %v3460 = vmul.f32 %v3458, %v3459
        %v3461 = vadd.f32 %v3456, %v3460
        %v3462 = vld [vmem:[#allocation2 + $0x13] sm:$0xf]
        %v3463 = vsel %vm2612, %v3462, 0.0
        %v3464 = vperm.slane %v3422, 0
        %v3465 = vmul.f32 %v3463, %v3464
        %v3466 = vadd.f32 %v3461, %v3465
        %v3467 = vperm.slane %v3423, 0
        %v3468 = vadd.f32 %v3466, %v3467
        %v3469 = vmax.f32 %v3468, 0.0
        %s3470 = scalar_lea.vmem %s3, 1472
        %v3471 = vld [vmem:[%s3470] sm:$0xf]
        %v3472 = vld [vmem:[%s3470 + $0x4] sm:$0xf]
        %v3473 = vld [vmem:[%s3470 + $0x8] sm:$0xf]
        %v3474 = vld [vmem:[%s3470 + $0xc] sm:$0xf]
        %v3475 = vld [vmem:[%s3470 + $0x10] sm:$0xf]
        %v3476 = vld [vmem:[%s3470 + $0x14] sm:$0xf]
        %v3477 = vld [vmem:[%s3470 + $0x18] sm:$0xf]
        %v3478 = vld [vmem:[%s3470 + $0x1c] sm:$0xf]
        %v3479 = vld [vmem:[%s3470 + $0x20] sm:$0xf]
        %v3480 = vld [vmem:[%s3470 + $0x24] sm:$0xf]
        %v3481 = vld [vmem:[%s3470 + $0x28] sm:$0xf]
        %v3482 = vld [vmem:[%s3470 + $0x2c] sm:$0xf]
        %v3483 = vld [vmem:[%s3470 + $0x30] sm:$0xf]
        %v3484 = vld [vmem:[%s3470 + $0x34] sm:$0xf]
        %v3485 = vld [vmem:[%s3470 + $0x38] sm:$0xf]
        %v3486 = vld [vmem:[%s3470 + $0x3c] sm:$0xf]
        %v3487 = vpack.c.bf16 %v3469, %v3469
        %v3488 = vld [vmem:[%s4 + $0x17] sm:$0x1]
        %v3489 = vperm.slane %v3488, 0
        %v3506 = vunpack.c.l.b16 %v3471
        %v3507 = vunpack.c.l.b16 %v3472
        %v3508 = vunpack.c.l.b16 %v3473
        %v3509 = vunpack.c.l.b16 %v3474
        %v3510 = vunpack.c.l.b16 %v3475
        %v3511 = vunpack.c.l.b16 %v3476
        %v3512 = vunpack.c.l.b16 %v3477
        %v3513 = vunpack.c.l.b16 %v3478
        %v3514 = vunpack.c.l.b16 %v3479
        %v3515 = vunpack.c.l.b16 %v3480
        %v3516 = vunpack.c.l.b16 %v3481
        %v3517 = vunpack.c.l.b16 %v3482
        %v3518 = vunpack.c.l.b16 %v3483
        %v3519 = vunpack.c.l.b16 %v3484
        %v3520 = vunpack.c.l.b16 %v3485
        %v3521 = vunpack.c.l.b16 %v3486
        %v3522 = vpack.c.b16 %v3507, %v3506
        %v3523 = vpack.c.b16 %v3509, %v3508
        %v3524 = vpack.c.b16 %v3511, %v3510
        %v3525 = vpack.c.b16 %v3513, %v3512
        %v3526 = vpack.c.b16 %v3515, %v3514
        %v3527 = vpack.c.b16 %v3517, %v3516
        %v3528 = vpack.c.b16 %v3519, %v3518
        %v3529 = vpack.c.b16 %v3521, %v3520
        %3538 = vmatpush.bf16.msra.mxu0 %v3529
        %3539 = vmatpush.bf16.msra.mxu0 %v3528
        %3540 = vmatpush.bf16.msra.mxu0 %v3527
        %3541 = vmatpush.bf16.msra.mxu0 %v3526
        %3542 = vmatpush.bf16.msra.mxu0 %v3525
        %3543 = vmatpush.bf16.msra.mxu0 %v3524
        %3544 = vmatpush.bf16.msra.mxu0 %v3523
        %3545 = vmatpush.bf16.msra.mxu0 %v3522
        %3546 = vmatmul.bf16.gmra.mxu0 %v3487
        %v3547 = vpop.f32.mrf.mxu0
        %v3548 = vadd.f32 %v3489, %v3547
        %v3549 = vpop.f32.mrf.mxu0
        %3550 = vdwg.mxu0
        %v3551 = vadd.f32 %v3548, %v3381
        %s3552 = scalar_lea.vmem %s3, 1536
        %v3553 = vld [vmem:[%s3552] sm:$0xf]
        %v3554 = vld [vmem:[%s3552 + $0x4] sm:$0xf]
        %v3555 = vld [vmem:[%s3552 + $0x8] sm:$0xf]
        %v3556 = vld [vmem:[%s3552 + $0xc] sm:$0xf]
        %v3557 = vpack.c.bf16 %v3551, %v3551
        %v3558 = vld [vmem:[%s4 + $0x18] sm:$0x1]
        %v3559 = vperm.slane %v3558, 0
        %v3564 = vunpack.c.l.b16 %v3553
        %v3565 = vunpack.c.l.b16 %v3554
        %v3566 = vunpack.c.l.b16 %v3555
        %v3567 = vunpack.c.l.b16 %v3556
        %v3568 = vpack.c.b16 %v3565, %v3564
        %v3569 = vpack.c.b16 %v3567, %v3566
        %v3573 = vsel %vm384, %v3557, 0
        %3575 = vmatpush.bf16.msra.mxu0 0
        %3576 = vmatpush.bf16.msra.mxu0 0
        %3577 = vmatpush.bf16.msra.mxu0 0
        %3578 = vmatpush.bf16.msra.mxu0 0
        %3579 = vmatpush.bf16.msra.mxu0 0
        %3580 = vmatpush.bf16.msra.mxu0 0
        %3581 = vmatpush.bf16.msra.mxu0 %v3569
        %3582 = vmatpush.bf16.msra.mxu0 %v3568
        %3583 = vmatmul.bf16.gmra.mxu0 %v3573
        %v3584 = vpop.f32.mrf.mxu0
        %v3585 = vadd.f32 %v3559, %v3584
        %v3586 = vpop.f32.mrf.mxu0
        %3587 = vdwg.mxu0
        %v3588 = vmax.f32 %v3585, 0.0
        %vm3589 = vcmask 519168
        %3590 = vst.msk [vmem:[#allocation2 + $0x10] sm:$0xf] %vm3589, %v3588
        %s3591 = scalar_lea.vmem %s5, 208
        %v3592 = vld [vmem:[%s3591] sm:$0xff]
        %v3593 = vld [vmem:[%s3591 + $0x8] sm:$0x1]
        %v3594 = vld [vmem:[%s6 + $0xd] sm:$0x1]
        %v3595 = vld [vmem:[#allocation2 + $0xd] sm:$0xf]
        %v3596 = vsel %vm2536, %v3595, 0.0
        %v3597 = vperm.slane %v3592, 0
        %v3598 = vmul.f32 %v3596, %v3597
        %v3599 = vadd.f32 %v3598, 0.0
        %v3600 = vld [vmem:[#allocation2 + $0xe] sm:$0xf]
        %v3601 = vsel %vm2547, %v3600, 0.0
        %v3602 = vperm.slane %v3592, 1
        %v3603 = vmul.f32 %v3601, %v3602
        %v3604 = vadd.f32 %v3599, %v3603
        %v3605 = vld [vmem:[#allocation2 + $0xf] sm:$0xf]
        %v3606 = vsel %vm2559, %v3605, 0.0
        %v3607 = vperm.slane %v3592, 2
        %v3608 = vmul.f32 %v3606, %v3607
        %v3609 = vadd.f32 %v3604, %v3608
        %v3610 = vsel %vm2569, %v3605, 0.0
        %v3611 = vperm.slane %v3592, 3
        %v3612 = vmul.f32 %v3610, %v3611
        %v3613 = vadd.f32 %v3609, %v3612
        %v3614 = vld [vmem:[#allocation2 + $0x10] sm:$0xf]
        %v3615 = vsel %vm2577, %v3614, 0.0
        %v3616 = vperm.slane %v3592, 4
        %v3617 = vmul.f32 %v3615, %v3616
        %v3618 = vadd.f32 %v3613, %v3617
        %v3619 = vld [vmem:[#allocation2 + $0x11] sm:$0xf]
        %v3620 = vsel %vm2585, %v3619, 0.0
        %v3621 = vperm.slane %v3592, 5
        %v3622 = vmul.f32 %v3620, %v3621
        %v3623 = vadd.f32 %v3618, %v3622
        %v3624 = vsel %vm2596, %v3619, 0.0
        %v3625 = vperm.slane %v3592, 6
        %v3626 = vmul.f32 %v3624, %v3625
        %v3627 = vadd.f32 %v3623, %v3626
        %v3628 = vld [vmem:[#allocation2 + $0x12] sm:$0xf]
        %v3629 = vsel %vm2604, %v3628, 0.0
        %v3630 = vperm.slane %v3592, 7
        %v3631 = vmul.f32 %v3629, %v3630
        %v3632 = vadd.f32 %v3627, %v3631
        %v3633 = vld [vmem:[#allocation2 + $0x13] sm:$0xf]
        %v3634 = vsel %vm2612, %v3633, 0.0
        %v3635 = vperm.slane %v3593, 0
        %v3636 = vmul.f32 %v3634, %v3635
        %v3637 = vadd.f32 %v3632, %v3636
        %v3638 = vperm.slane %v3594, 0
        %v3639 = vadd.f32 %v3637, %v3638
        %v3640 = vmax.f32 %v3639, 0.0
        %s3641 = scalar_lea.vmem %s3, 1600
        %v3642 = vld [vmem:[%s3641] sm:$0xf]
        %v3643 = vld [vmem:[%s3641 + $0x4] sm:$0xf]
        %v3644 = vld [vmem:[%s3641 + $0x8] sm:$0xf]
        %v3645 = vld [vmem:[%s3641 + $0xc] sm:$0xf]
        %v3646 = vld [vmem:[%s3641 + $0x10] sm:$0xf]
        %v3647 = vld [vmem:[%s3641 + $0x14] sm:$0xf]
        %v3648 = vld [vmem:[%s3641 + $0x18] sm:$0xf]
        %v3649 = vld [vmem:[%s3641 + $0x1c] sm:$0xf]
        %v3650 = vpack.c.bf16 %v3640, %v3640
        %v3651 = vld [vmem:[%s4 + $0x19] sm:$0x1]
        %v3652 = vperm.slane %v3651, 0
        %v3661 = vunpack.c.l.b16 %v3642
        %v3662 = vunpack.c.l.b16 %v3643
        %v3663 = vunpack.c.l.b16 %v3644
        %v3664 = vunpack.c.l.b16 %v3645
        %v3665 = vunpack.c.l.b16 %v3646
        %v3666 = vunpack.c.l.b16 %v3647
        %v3667 = vunpack.c.l.b16 %v3648
        %v3668 = vunpack.c.l.b16 %v3649
        %v3669 = vpack.c.b16 %v3662, %v3661
        %v3670 = vpack.c.b16 %v3664, %v3663
        %v3671 = vpack.c.b16 %v3666, %v3665
        %v3672 = vpack.c.b16 %v3668, %v3667
        %v3678 = vsel %vm1164, %v3650, 0
        %3680 = vmatpush.bf16.msra.mxu0 0
        %3681 = vmatpush.bf16.msra.mxu0 0
        %3682 = vmatpush.bf16.msra.mxu0 0
        %3683 = vmatpush.bf16.msra.mxu0 0
        %3684 = vmatpush.bf16.msra.mxu0 %v3672
        %3685 = vmatpush.bf16.msra.mxu0 %v3671
        %3686 = vmatpush.bf16.msra.mxu0 %v3670
        %3687 = vmatpush.bf16.msra.mxu0 %v3669
        %3688 = vmatmul.bf16.gmra.mxu0 %v3678
        %v3689 = vpop.f32.mrf.mxu0
        %v3690 = vadd.f32 %v3652, %v3689
        %v3691 = vpop.f32.mrf.mxu0
        %3692 = vdwg.mxu0
        %vm3693 = vcmask 125952
        %3694 = vst.msk [vmem:[%s271] sm:$0xf] %vm3693, %v3690
        %s3695 = sand.u32 %s181, 1
        %s3696 = scalar_lea.sflag [#allocation4], %s3695
        %s3697 = sand.u32 %s181, 1
        %s3698 = smul.addr %s3697, 4
        %s3699 = scalar_lea.vmem [#allocation3], %s3698
        // Predicated region
        $region49: #{forward.1} parent=47 // pred_check
          %p3700 = pneg %p191
        $region50: #{forward.1} parent=47 // pred_check_branch
          %3702 = sbr.rel (%p3700) target = $region52
        $region51: #{forward.1} parent=47 // pred_region
          %3704 = vsyncadd %s3696, 0
          %s3705 = smul.addr %s21, 4
          %s3706 = scalar_lea.hbm %s7, %s3705
          %s3708 = sshll.u32 %s3699, 4
          %s3709 = int_to_ptr.vmem [resolvable:$true] %s3708
          %s3710 = sshll.u32 %s3706, 4
          %s3711 = int_to_ptr.hbm [resolvable:$true] %s3710
          %3713 = dma.vmem_to_hbm [thread:$0]  %s3709, 64, %s3711, %s3696
        $region52: #{forward.1} parent=47 // pred_fallthru
          _
      $region48: #{forward.1} parent=5 // pred_fallthru
        _
      %p3714 = scmp.le.s32.totalorder 2, %s16
      // Predicated region
      $region53: #{forward.1} parent=5 // pred_check
        %p3715 = pneg %p3714
      $region54: #{forward.1} parent=5 // pred_check_branch
        %3717 = sbr.rel (%p3715) target = $region56
      $region55: #{forward.1} parent=5 // pred_region
        %s3718 = ssub.s32 %s16, 2
        // Predicated region
        $region57: #{forward.1} parent=55 // pred_check
          %p3719 = pneg %p197
        $region58: #{forward.1} parent=55 // pred_check_branch
          %3721 = sbr.rel (%p3719) target = $region60
        $region59: #{forward.1} parent=55 // pred_region
          %s3722 = sand.u32 %s182, 1
          %s3723 = scalar_lea.sflag [#allocation4], %s3722
          %s3724 = sand.u32 %s182, 1
          %s3725 = smul.addr %s3724, 4
          %s3726 = scalar_lea.vmem [#allocation3], %s3725
          %3728 = dma.done %s3723, 64
        $region60: #{forward.1} parent=55 // pred_fallthru
          _
      $region56: #{forward.1} parent=5 // pred_fallthru
        _
    $region6: #{forward.1} parent=1 // loop_footer
      %s20 = sadd.s32 1, %s16
    $region7: #{forward.1} parent=1 // loop_footer_branch
      %15 = sbr.rel target = $region3
    $region8: #{forward.1} parent=1 // loop_exit
      _
    %3729 = vsyncpa [#allocation4], 1
    %s3730 = scalar_lea.sflag [#allocation4], 1
    %3731 = vsyncpa %s3730, 1

</llo_original>
